<compile_context>
chip_gen: v7x
topology: tpu7x:2x2x1
jax: 0.10.0
libtpu: 0.0.40
codegen_flags: <defaults>
</compile_context>

<pallas_src>
import functools

import jax
import jax.numpy as jnp
from jax.experimental import pallas as pl
from jax.experimental.pallas import tpu as pltpu

LANE = 128
SUBLANE = 8


def _round_up(x, m):
    return ((x + m - 1) // m) * m


def _choose_time_block(T, max_tt=16):
    """Largest divisor of T that is <= max_tt (so no time padding is needed)."""
    for tt in range(min(max_tt, T), 0, -1):
        if T % tt == 0:
            return tt
    return 1


# ---------------------------------------------------------------------------
# Fused kernel: layer-0 block input projection + multi-layer recurrence + FC.
# Grid = (T // TT,), sequential ("arbitrary").  Gate order: i, f, g, o, each
# lane-aligned to Hp columns.
# ---------------------------------------------------------------------------
def _fused_lstm_kernel(x_ref, wih0_ref, whh0_ref, b0_ref, *rest,
                       num_layers, hidden_pad, tt):
    if num_layers > 1:
        (wcat_ref, bcat_ref, wfc_ref, bfc_ref,
         out_ref, h_scr, c_scr, gx_scr) = rest
    else:
        wcat_ref = bcat_ref = None
        wfc_ref, bfc_ref, out_ref, h_scr, c_scr, gx_scr = rest

    Hp = hidden_pad
    Bp = h_scr.shape[1]
    step = pl.program_id(0)
    nsteps = pl.num_programs(0)

    # h0 / c0 are zeros (init_hidden in the PyTorch module).
    @pl.when(step == 0)
    def _():
        h_scr[...] = jnp.zeros_like(h_scr)
        c_scr[...] = jnp.zeros_like(c_scr)

    # Layer-0 input projection for the whole TT-timestep block: one
    # MXU-efficient matmul over (TT*Bp, D), result kept in VMEM scratch.
    gx_scr[...] = (
        jnp.dot(x_ref[...].astype(jnp.bfloat16), wih0_ref[...],
                preferred_element_type=jnp.float32)
        + b0_ref[...])

    def cell(gates, c_prev):
        i_g = jax.nn.sigmoid(gates[:, 0 * Hp:1 * Hp])
        f_g = jax.nn.sigmoid(gates[:, 1 * Hp:2 * Hp])
        g_g = jnp.tanh(gates[:, 2 * Hp:3 * Hp])
        o_g = jax.nn.sigmoid(gates[:, 3 * Hp:4 * Hp])
        c_new = f_g * c_prev + i_g * g_g
        h_new = o_g * jnp.tanh(c_new)
        return h_new, c_new

    # Static unroll over the TT timesteps of this block.
    for t in range(tt):
        # ---- layer 0: input gates precomputed above, add recurrent term ----
        gates0 = (gx_scr[pl.ds(t * Bp, Bp), :]
                  + jnp.dot(h_scr[0].astype(jnp.bfloat16), whh0_ref[...],
                            preferred_element_type=jnp.float32))
        h_new, c_new = cell(gates0, c_scr[0])
        h_scr[0] = h_new
        c_scr[0] = c_new
        x_l = h_new

        # ---- layers 1..L-1: single fused K=2*Hp matmul per layer ----
        for l in range(1, num_layers):
            xh = jnp.concatenate([x_l, h_scr[l]], axis=-1).astype(jnp.bfloat16)
            gates = (jnp.dot(xh, wcat_ref[l - 1],
                             preferred_element_type=jnp.float32)
                     + bcat_ref[l - 1])
            h_new, c_new = cell(gates, c_scr[l])
            h_scr[l] = h_new
            c_scr[l] = c_new
            x_l = h_new

    # ---- epilogue: fused fully-connected layer on the final timestep ----
    @pl.when(step == nsteps - 1)
    def _():
        h_last = h_scr[num_layers - 1]
        out_ref[...] = (
            jnp.dot(h_last.astype(jnp.bfloat16), wfc_ref[...],
                    preferred_element_type=jnp.float32)
            + bfc_ref[...]).astype(out_ref.dtype)


def fused_lstm(x_flat, prep, *, batch_pad, num_layers, tt):
    """x_flat: (T*Bp, D) bf16, time-major rows; returns (Bp, Op) f32."""
    Hp = prep["hidden_pad"]
    Op = prep["out_pad"]
    G = 4 * Hp
    Bp = batch_pad
    TB, D = x_flat.shape
    T = TB // Bp
    nsteps = T // tt
    L = num_layers

    in_specs = [
        pl.BlockSpec((tt * Bp, D), lambda s: (s, 0)),      # x block (TT steps)
        pl.BlockSpec((D, G), lambda s: (0, 0)),            # W_ih layer 0 (bf16)
        pl.BlockSpec((Hp, G), lambda s: (0, 0)),           # W_hh layer 0 (bf16)
        pl.BlockSpec((1, G), lambda s: (0, 0)),            # bias layer 0 (f32)
    ]
    args = [x_flat, prep["w_ih0"], prep["w_hh0"], prep["b0"]]
    if L > 1:
        Lr = L - 1
        in_specs += [
            pl.BlockSpec((Lr, 2 * Hp, G), lambda s: (0, 0, 0)),  # [W_ih;W_hh]
            pl.BlockSpec((Lr, 1, G), lambda s: (0, 0, 0)),       # biases
        ]
        args += [prep["w_cat"], prep["b_cat"]]
    in_specs += [
        pl.BlockSpec((Hp, Op), lambda s: (0, 0)),          # FC weight (bf16)
        pl.BlockSpec((1, Op), lambda s: (0, 0)),           # FC bias (f32)
    ]
    args += [prep["w_fc"], prep["b_fc"]]

    kernel = functools.partial(_fused_lstm_kernel, num_layers=L,
                               hidden_pad=Hp, tt=tt)
    return pl.pallas_call(
        kernel,
        out_shape=jax.ShapeDtypeStruct((Bp, Op), jnp.float32),
        grid_spec=pltpu.PrefetchScalarGridSpec(
            num_scalar_prefetch=0,
            grid=(nsteps,),
            in_specs=in_specs,
            out_specs=pl.BlockSpec((Bp, Op), lambda s: (0, 0)),
            scratch_shapes=[
                pltpu.VMEM((L, Bp, Hp), jnp.float32),   # h state, all layers
                pltpu.VMEM((L, Bp, Hp), jnp.float32),   # c state, all layers
                pltpu.VMEM((tt * Bp, G), jnp.float32),  # layer-0 gate block
            ],
        ),
        compiler_params=pltpu.CompilerParams(
            dimension_semantics=("arbitrary",),   # sequential recurrence
        ),
    )(*args)


# ---------------------------------------------------------------------------
# Parameter init (PyTorch nn.LSTM/nn.Linear shapes + uniform distribution)
# and conversion to the padded / stacked / bf16 kernel layout.
# ---------------------------------------------------------------------------
def init_params(key, input_dim, hidden_dim, num_layers, output_dim):
    bound = 1.0 / jnp.sqrt(jnp.float32(hidden_dim))
    layers = []
    for layer in range(num_layers):
        in_dim = input_dim if layer == 0 else hidden_dim
        key, k1, k2, k3, k4 = jax.random.split(key, 5)
        layers.append({
            "w_ih": jax.random.uniform(k1, (4 * hidden_dim, in_dim),
                                       minval=-bound, maxval=bound,
                                       dtype=jnp.float32),
            "w_hh": jax.random.uniform(k2, (4 * hidden_dim, hidden_dim),
                                       minval=-bound, maxval=bound,
                                       dtype=jnp.float32),
            "b_ih": jax.random.uniform(k3, (4 * hidden_dim,),
                                       minval=-bound, maxval=bound,
                                       dtype=jnp.float32),
            "b_hh": jax.random.uniform(k4, (4 * hidden_dim,),
                                       minval=-bound, maxval=bound,
                                       dtype=jnp.float32),
        })
    key, kf1, kf2 = jax.random.split(key, 3)
    fc_w = jax.random.uniform(kf1, (output_dim, hidden_dim),
                              minval=-bound, maxval=bound, dtype=jnp.float32)
    fc_b = jax.random.uniform(kf2, (output_dim,),
                              minval=-bound, maxval=bound, dtype=jnp.float32)
    return {"layers": layers, "fc_w": fc_w, "fc_b": fc_b}


def _pad_gate_cols(w, H, Hp):
    """(in, 4H) -> (in, 4*Hp): zero-pad each i/f/g/o block to Hp lanes."""
    in_dim = w.shape[0]
    w = w.reshape(in_dim, 4, H)
    w = jnp.pad(w, ((0, 0), (0, 0), (0, Hp - H)))
    return w.reshape(in_dim, 4 * Hp)


def prepare_params(raw, input_dim, hidden_dim, num_layers, output_dim):
    H = hidden_dim
    Hp = _round_up(H, LANE)
    Op = _round_up(output_dim, LANE)
    layers = raw["layers"]

    # Layer 0 (input projection handled block-wise inside the kernel).
    w_ih0 = _pad_gate_cols(layers[0]["w_ih"].T, H, Hp)              # (D, 4Hp)
    b0 = _pad_gate_cols((layers[0]["b_ih"] + layers[0]["b_hh"])
                        .reshape(1, 4 * H), H, Hp)                  # (1, 4Hp)
    w_hh0 = _pad_gate_cols(layers[0]["w_hh"].T, H, Hp)
    w_hh0 = jnp.pad(w_hh0, ((0, Hp - H), (0, 0)))                   # (Hp, 4Hp)

    # Upper layers: stacked [W_ih; W_hh] for one fused K=2*Hp matmul.
    w_cat, b_cat = [], []
    for l in range(1, num_layers):
        wih = _pad_gate_cols(layers[l]["w_ih"].T, H, Hp)
        wih = jnp.pad(wih, ((0, Hp - H), (0, 0)))                   # (Hp, 4Hp)
        whh = _pad_gate_cols(layers[l]["w_hh"].T, H, Hp)
        whh = jnp.pad(whh, ((0, Hp - H), (0, 0)))                   # (Hp, 4Hp)
        w_cat.append(jnp.concatenate([wih, whh], axis=0))           # (2Hp, 4Hp)
        b_cat.append(_pad_gate_cols(
            (layers[l]["b_ih"] + layers[l]["b_hh"]).reshape(1, 4 * H), H, Hp))

    w_fc = jnp.pad(raw["fc_w"].T, ((0, Hp - H), (0, Op - output_dim)))
    b_fc = jnp.pad(raw["fc_b"].reshape(1, -1), ((0, 0), (0, Op - output_dim)))

    prep = {
        "w_ih0": w_ih0.astype(jnp.bfloat16),
        "w_hh0": w_hh0.astype(jnp.bfloat16),
        "b0": b0.astype(jnp.float32),
        "w_fc": w_fc.astype(jnp.bfloat16),
        "b_fc": b_fc.astype(jnp.float32),
        "hidden_pad": Hp,
        "out_pad": Op,
    }
    if num_layers > 1:
        prep["w_cat"] = jnp.stack(w_cat).astype(jnp.bfloat16)   # (L-1, 2Hp, 4Hp)
        prep["b_cat"] = jnp.stack(b_cat).astype(jnp.float32)    # (L-1, 1, 4Hp)
    return prep


# ---------------------------------------------------------------------------
# Full module forward: x (B, T, input_dim) batch_first -> (B, output_dim)
# ---------------------------------------------------------------------------
def lstm_forward(prep, x, *, num_layers, output_dim, max_time_block=16):
    B, T, D = x.shape
    Bp = _round_up(B, SUBLANE)             # pad batch to sublane multiple
    tt = _choose_time_block(T, max_time_block)

    x_tbd = jnp.transpose(x, (1, 0, 2)).astype(jnp.float32)    # (T, B, D)
    if Bp != B:
        x_tbd = jnp.pad(x_tbd, ((0, 0), (0, Bp - B), (0, 0)))  # (T, Bp, D)
    # Time-major flat rows so each grid step DMAs one contiguous TT block.
    x_flat = x_tbd.reshape(T * Bp, D).astype(jnp.bfloat16)

    out = fused_lstm(x_flat, prep, batch_pad=Bp,
                     num_layers=num_layers, tt=tt)
    return out[:B, :output_dim]


if __name__ == "__main__":
    B, T = 2, 8
    input_dim, hidden_dim, num_layers, output_dim = 8, 32, 2, 4

    key = jax.random.PRNGKey(0)
    key, kx, kp = jax.random.split(key, 3)
    x = jax.random.normal(kx, (B, T, input_dim), dtype=jnp.float32)
    raw = init_params(kp, input_dim, hidden_dim, num_layers, output_dim)
    prep = prepare_params(raw, input_dim, hidden_dim, num_layers, output_dim)

    out = lstm_forward(prep, x, num_layers=num_layers, output_dim=output_dim)
    out = jax.block_until_ready(out)
    assert out.shape == (B, output_dim), out.shape
    print("KERNEL_OK")
</pallas_src>

<mosaic_0001>
module attributes {stable_mosaic.version = 11 : i64} {
  func.func @_fused_lstm_kernel(%arg0: i32, %arg1: memref<64x8xbf16, #tpu.memory_space<vmem>>, %arg2: memref<8x512xbf16, #tpu.memory_space<vmem>>, %arg3: memref<128x512xbf16, #tpu.memory_space<vmem>>, %arg4: memref<1x512xf32, #tpu.memory_space<vmem>>, %arg5: memref<1x256x512xbf16, #tpu.memory_space<vmem>>, %arg6: memref<1x1x512xf32, #tpu.memory_space<vmem>>, %arg7: memref<128x128xbf16, #tpu.memory_space<vmem>>, %arg8: memref<1x128xf32, #tpu.memory_space<vmem>>, %arg9: memref<8x128xf32, #tpu.memory_space<vmem>>, %arg10: memref<2x8x128xf32, #tpu.memory_space<vmem>>, %arg11: memref<2x8x128xf32, #tpu.memory_space<vmem>>, %arg12: memref<64x512xf32, #tpu.memory_space<vmem>>) attributes {dimension_semantics = [#tpu.dimension_semantics<arbitrary>], iteration_bounds = array<i64: 1>, scalar_prefetch = 0 : i64, scratch_operands = 3 : i64, tpu.core_type = #tpu.core_type<tc>, window_params = [{transform_indices = @transform_0, window_bounds = array<i64: 64, 8>}, {pipeline_mode = #tpu.pipeline_mode<synchronous>, transform_indices = @transform_1, window_bounds = array<i64: 8, 512>}, {pipeline_mode = #tpu.pipeline_mode<synchronous>, transform_indices = @transform_2, window_bounds = array<i64: 128, 512>}, {pipeline_mode = #tpu.pipeline_mode<synchronous>, transform_indices = @transform_3, window_bounds = array<i64: 1, 512>}, {pipeline_mode = #tpu.pipeline_mode<synchronous>, transform_indices = @transform_4, window_bounds = array<i64: 1, 256, 512>}, {pipeline_mode = #tpu.pipeline_mode<synchronous>, transform_indices = @transform_5, window_bounds = array<i64: 1, 1, 512>}, {pipeline_mode = #tpu.pipeline_mode<synchronous>, transform_indices = @transform_6, window_bounds = array<i64: 128, 128>}, {pipeline_mode = #tpu.pipeline_mode<synchronous>, transform_indices = @transform_7, window_bounds = array<i64: 1, 128>}, {pipeline_mode = #tpu.pipeline_mode<synchronous>, transform_indices = @transform_8, window_bounds = array<i64: 8, 128>}]} {
    %c0_i32 = arith.constant 0 : i32
    %0 = arith.cmpi eq, %arg0, %c0_i32 : i32
    %1 = arith.extui %0 : i1 to i32
    %c0_i32_0 = arith.constant 0 : i32
    %2 = arith.cmpi ne, %1, %c0_i32_0 : i32
    scf.if %2 {
      %cst_338 = arith.constant 0.000000e+00 : f32
      %685 = vector.broadcast %cst_338 : f32 to vector<2x8x128xf32>
      %c0_339 = arith.constant 0 : index
      %c0_340 = arith.constant 0 : index
      %c0_341 = arith.constant 0 : index
      %686 = vector.load %arg10[%c0_339, %c0_340, %c0_341] : memref<2x8x128xf32, #tpu.memory_space<vmem>>, vector<2x8x128xf32>
      tpu.vector_store %arg10[%c0_339, %c0_340, %c0_341], %685 {strides = array<i32>} : memref<2x8x128xf32, #tpu.memory_space<vmem>>, vector<2x8x128xf32>,
      %cst_342 = arith.constant 0.000000e+00 : f32
      %687 = vector.broadcast %cst_342 : f32 to vector<2x8x128xf32>
      %c0_343 = arith.constant 0 : index
      %c0_344 = arith.constant 0 : index
      %c0_345 = arith.constant 0 : index
      %688 = vector.load %arg11[%c0_343, %c0_344, %c0_345] : memref<2x8x128xf32, #tpu.memory_space<vmem>>, vector<2x8x128xf32>
      tpu.vector_store %arg11[%c0_343, %c0_344, %c0_345], %687 {strides = array<i32>} : memref<2x8x128xf32, #tpu.memory_space<vmem>>, vector<2x8x128xf32>,
    } else {
    }
    %c0 = arith.constant 0 : index
    %c0_1 = arith.constant 0 : index
    %3 = vector.load %arg1[%c0, %c0_1] : memref<64x8xbf16, #tpu.memory_space<vmem>>, vector<64x8xbf16>
    %c0_2 = arith.constant 0 : index
    %c0_3 = arith.constant 0 : index
    %4 = vector.load %arg2[%c0_2, %c0_3] : memref<8x512xbf16, #tpu.memory_space<vmem>>, vector<8x512xbf16>
    %cst = arith.constant dense<0.000000e+00> : vector<64x512xf32>
    %5 = tpu.matmul %3, %4, %cst {dimension_numbers = #tpu.dot_dimension_numbers<[1], [0], [0], [1], [0, 0, 1, 1], [], []>} : vector<64x8xbf16>, vector<8x512xbf16>, vector<64x512xf32> -> vector<64x512xf32>
    %c0_4 = arith.constant 0 : index
    %c0_5 = arith.constant 0 : index
    %6 = vector.load %arg4[%c0_4, %c0_5] : memref<1x512xf32, #tpu.memory_space<vmem>>, vector<1x512xf32>
    %7 = vector.broadcast %6 : vector<1x512xf32> to vector<64x512xf32>
    %8 = arith.addf %5, %7 : vector<64x512xf32>
    %c0_6 = arith.constant 0 : index
    %c0_7 = arith.constant 0 : index
    %9 = vector.load %arg12[%c0_6, %c0_7] : memref<64x512xf32, #tpu.memory_space<vmem>>, vector<64x512xf32>
    tpu.vector_store %arg12[%c0_6, %c0_7], %8 {strides = array<i32>} : memref<64x512xf32, #tpu.memory_space<vmem>>, vector<64x512xf32>,
    %c0_8 = arith.constant 0 : index
    %c0_9 = arith.constant 0 : index
    %10 = vector.load %arg12[%c0_8, %c0_9] : memref<64x512xf32, #tpu.memory_space<vmem>>, vector<8x512xf32>
    %c0_10 = arith.constant 0 : index
    %c0_11 = arith.constant 0 : index
    %c0_12 = arith.constant 0 : index
    %11 = vector.load %arg10[%c0_10, %c0_11, %c0_12] : memref<2x8x128xf32, #tpu.memory_space<vmem>>, vector<1x8x128xf32>
    %12 = vector.shape_cast %11 : vector<1x8x128xf32> to vector<8x128xf32>
    %13 = arith.truncf %12 : vector<8x128xf32> to vector<8x128xbf16>
    %c0_13 = arith.constant 0 : index
    %c0_14 = arith.constant 0 : index
    %14 = vector.load %arg3[%c0_13, %c0_14] : memref<128x512xbf16, #tpu.memory_space<vmem>>, vector<128x512xbf16>
    %cst_15 = arith.constant dense<0.000000e+00> : vector<8x512xf32>
    %15 = tpu.matmul %13, %14, %cst_15 {dimension_numbers = #tpu.dot_dimension_numbers<[1], [0], [0], [1], [0, 0, 1, 1], [], []>} : vector<8x128xbf16>, vector<128x512xbf16>, vector<8x512xf32> -> vector<8x512xf32>
    %16 = arith.addf %10, %15 : vector<8x512xf32>
    %c0_16 = arith.constant 0 : index
    %c0_17 = arith.constant 0 : index
    %c0_18 = arith.constant 0 : index
    %17 = vector.load %arg11[%c0_16, %c0_17, %c0_18] : memref<2x8x128xf32, #tpu.memory_space<vmem>>, vector<1x8x128xf32>
    %18 = vector.shape_cast %17 : vector<1x8x128xf32> to vector<8x128xf32>
    %19 = vector.extract_strided_slice %16 {offsets = [0, 0], sizes = [8, 128], strides = [1, 1]} : vector<8x512xf32> to vector<8x128xf32>
    %20 = arith.negf %19 : vector<8x128xf32>
    %21 = math.exp %20 : vector<8x128xf32>
    %cst_19 = arith.constant 1.000000e+00 : f32
    %22 = vector.broadcast %cst_19 : f32 to vector<8x128xf32>
    %23 = arith.addf %22, %21 : vector<8x128xf32>
    %24 = arith.divf %22, %23 : vector<8x128xf32>
    %25 = vector.extract_strided_slice %16 {offsets = [0, 128], sizes = [8, 128], strides = [1, 1]} : vector<8x512xf32> to vector<8x128xf32>
    %26 = arith.negf %25 : vector<8x128xf32>
    %27 = math.exp %26 : vector<8x128xf32>
    %cst_20 = arith.constant 1.000000e+00 : f32
    %28 = vector.broadcast %cst_20 : f32 to vector<8x128xf32>
    %29 = arith.addf %28, %27 : vector<8x128xf32>
    %30 = arith.divf %28, %29 : vector<8x128xf32>
    %31 = vector.extract_strided_slice %16 {offsets = [0, 256], sizes = [8, 128], strides = [1, 1]} : vector<8x512xf32> to vector<8x128xf32>
    %32 = math.tanh %31 : vector<8x128xf32>
    %33 = vector.extract_strided_slice %16 {offsets = [0, 384], sizes = [8, 128], strides = [1, 1]} : vector<8x512xf32> to vector<8x128xf32>
    %34 = arith.negf %33 : vector<8x128xf32>
    %35 = math.exp %34 : vector<8x128xf32>
    %cst_21 = arith.constant 1.000000e+00 : f32
    %36 = vector.broadcast %cst_21 : f32 to vector<8x128xf32>
    %37 = arith.addf %36, %35 : vector<8x128xf32>
    %38 = arith.divf %36, %37 : vector<8x128xf32>
    %39 = arith.mulf %30, %18 : vector<8x128xf32>
    %40 = arith.mulf %24, %32 : vector<8x128xf32>
    %41 = arith.addf %39, %40 : vector<8x128xf32>
    %42 = math.tanh %41 : vector<8x128xf32>
    %43 = arith.mulf %38, %42 : vector<8x128xf32>
    %c0_22 = arith.constant 0 : index
    %c0_23 = arith.constant 0 : index
    %c0_24 = arith.constant 0 : index
    %44 = vector.load %arg10[%c0_22, %c0_23, %c0_24] : memref<2x8x128xf32, #tpu.memory_space<vmem>>, vector<1x8x128xf32>
    %45 = vector.shape_cast %44 : vector<1x8x128xf32> to vector<8x128xf32>
    %46 = vector.shape_cast %43 : vector<8x128xf32> to vector<1x8x128xf32>
    tpu.vector_store %arg10[%c0_22, %c0_23, %c0_24], %46 {strides = array<i32>} : memref<2x8x128xf32, #tpu.memory_space<vmem>>, vector<1x8x128xf32>,
    %c0_25 = arith.constant 0 : index
    %c0_26 = arith.constant 0 : index
    %c0_27 = arith.constant 0 : index
    %47 = vector.load %arg11[%c0_25, %c0_26, %c0_27] : memref<2x8x128xf32, #tpu.memory_space<vmem>>, vector<1x8x128xf32>
    %48 = vector.shape_cast %47 : vector<1x8x128xf32> to vector<8x128xf32>
    %49 = vector.shape_cast %41 : vector<8x128xf32> to vector<1x8x128xf32>
    tpu.vector_store %arg11[%c0_25, %c0_26, %c0_27], %49 {strides = array<i32>} : memref<2x8x128xf32, #tpu.memory_space<vmem>>, vector<1x8x128xf32>,
    %c1 = arith.constant 1 : index
    %c0_28 = arith.constant 0 : index
    %c0_29 = arith.constant 0 : index
    %50 = vector.load %arg10[%c1, %c0_28, %c0_29] : memref<2x8x128xf32, #tpu.memory_space<vmem>>, vector<1x8x128xf32>
    %51 = vector.shape_cast %50 : vector<1x8x128xf32> to vector<8x128xf32>
    %52 = tpu.concatenate %43, %51 in 1 : vector<8x128xf32>, vector<8x128xf32> -> vector<8x256xf32>
    %53 = arith.truncf %52 : vector<8x256xf32> to vector<8x256xbf16>
    %c0_30 = arith.constant 0 : index
    %c0_31 = arith.constant 0 : index
    %c0_32 = arith.constant 0 : index
    %54 = vector.load %arg5[%c0_30, %c0_31, %c0_32] : memref<1x256x512xbf16, #tpu.memory_space<vmem>>, vector<1x256x512xbf16>
    %55 = vector.shape_cast %54 : vector<1x256x512xbf16> to vector<256x512xbf16>
    %cst_33 = arith.constant dense<0.000000e+00> : vector<8x512xf32>
    %56 = tpu.matmul %53, %55, %cst_33 {dimension_numbers = #tpu.dot_dimension_numbers<[1], [0], [0], [1], [0, 0, 1, 1], [], []>} : vector<8x256xbf16>, vector<256x512xbf16>, vector<8x512xf32> -> vector<8x512xf32>
    %c0_34 = arith.constant 0 : index
    %c0_35 = arith.constant 0 : index
    %c0_36 = arith.constant 0 : index
    %57 = vector.load %arg6[%c0_34, %c0_35, %c0_36] : memref<1x1x512xf32, #tpu.memory_space<vmem>>, vector<1x1x512xf32>
    %58 = vector.shape_cast %57 : vector<1x1x512xf32> to vector<1x512xf32>
    %59 = vector.broadcast %58 : vector<1x512xf32> to vector<8x512xf32>
    %60 = arith.addf %56, %59 : vector<8x512xf32>
    %c1_37 = arith.constant 1 : index
    %c0_38 = arith.constant 0 : index
    %c0_39 = arith.constant 0 : index
    %61 = vector.load %arg11[%c1_37, %c0_38, %c0_39] : memref<2x8x128xf32, #tpu.memory_space<vmem>>, vector<1x8x128xf32>
    %62 = vector.shape_cast %61 : vector<1x8x128xf32> to vector<8x128xf32>
    %63 = vector.extract_strided_slice %60 {offsets = [0, 0], sizes = [8, 128], strides = [1, 1]} : vector<8x512xf32> to vector<8x128xf32>
    %64 = arith.negf %63 : vector<8x128xf32>
    %65 = math.exp %64 : vector<8x128xf32>
    %cst_40 = arith.constant 1.000000e+00 : f32
    %66 = vector.broadcast %cst_40 : f32 to vector<8x128xf32>
    %67 = arith.addf %66, %65 : vector<8x128xf32>
    %68 = arith.divf %66, %67 : vector<8x128xf32>
    %69 = vector.extract_strided_slice %60 {offsets = [0, 128], sizes = [8, 128], strides = [1, 1]} : vector<8x512xf32> to vector<8x128xf32>
    %70 = arith.negf %69 : vector<8x128xf32>
    %71 = math.exp %70 : vector<8x128xf32>
    %cst_41 = arith.constant 1.000000e+00 : f32
    %72 = vector.broadcast %cst_41 : f32 to vector<8x128xf32>
    %73 = arith.addf %72, %71 : vector<8x128xf32>
    %74 = arith.divf %72, %73 : vector<8x128xf32>
    %75 = vector.extract_strided_slice %60 {offsets = [0, 256], sizes = [8, 128], strides = [1, 1]} : vector<8x512xf32> to vector<8x128xf32>
    %76 = math.tanh %75 : vector<8x128xf32>
    %77 = vector.extract_strided_slice %60 {offsets = [0, 384], sizes = [8, 128], strides = [1, 1]} : vector<8x512xf32> to vector<8x128xf32>
    %78 = arith.negf %77 : vector<8x128xf32>
    %79 = math.exp %78 : vector<8x128xf32>
    %cst_42 = arith.constant 1.000000e+00 : f32
    %80 = vector.broadcast %cst_42 : f32 to vector<8x128xf32>
    %81 = arith.addf %80, %79 : vector<8x128xf32>
    %82 = arith.divf %80, %81 : vector<8x128xf32>
    %83 = arith.mulf %74, %62 : vector<8x128xf32>
    %84 = arith.mulf %68, %76 : vector<8x128xf32>
    %85 = arith.addf %83, %84 : vector<8x128xf32>
    %86 = math.tanh %85 : vector<8x128xf32>
    %87 = arith.mulf %82, %86 : vector<8x128xf32>
    %c1_43 = arith.constant 1 : index
    %c0_44 = arith.constant 0 : index
    %c0_45 = arith.constant 0 : index
    %88 = vector.load %arg10[%c1_43, %c0_44, %c0_45] : memref<2x8x128xf32, #tpu.memory_space<vmem>>, vector<1x8x128xf32>
    %89 = vector.shape_cast %88 : vector<1x8x128xf32> to vector<8x128xf32>
    %90 = vector.shape_cast %87 : vector<8x128xf32> to vector<1x8x128xf32>
    tpu.vector_store %arg10[%c1_43, %c0_44, %c0_45], %90 {strides = array<i32>} : memref<2x8x128xf32, #tpu.memory_space<vmem>>, vector<1x8x128xf32>,
    %c1_46 = arith.constant 1 : index
    %c0_47 = arith.constant 0 : index
    %c0_48 = arith.constant 0 : index
    %91 = vector.load %arg11[%c1_46, %c0_47, %c0_48] : memref<2x8x128xf32, #tpu.memory_space<vmem>>, vector<1x8x128xf32>
    %92 = vector.shape_cast %91 : vector<1x8x128xf32> to vector<8x128xf32>
    %93 = vector.shape_cast %85 : vector<8x128xf32> to vector<1x8x128xf32>
    tpu.vector_store %arg11[%c1_46, %c0_47, %c0_48], %93 {strides = array<i32>} : memref<2x8x128xf32, #tpu.memory_space<vmem>>, vector<1x8x128xf32>,
    %c8 = arith.constant 8 : index
    %c0_49 = arith.constant 0 : index
    %94 = vector.load %arg12[%c8, %c0_49] : memref<64x512xf32, #tpu.memory_space<vmem>>, vector<8x512xf32>
    %c0_50 = arith.constant 0 : index
    %c0_51 = arith.constant 0 : index
    %c0_52 = arith.constant 0 : index
    %95 = vector.load %arg10[%c0_50, %c0_51, %c0_52] : memref<2x8x128xf32, #tpu.memory_space<vmem>>, vector<1x8x128xf32>
    %96 = vector.shape_cast %95 : vector<1x8x128xf32> to vector<8x128xf32>
    %97 = arith.truncf %96 : vector<8x128xf32> to vector<8x128xbf16>
    %c0_53 = arith.constant 0 : index
    %c0_54 = arith.constant 0 : index
    %98 = vector.load %arg3[%c0_53, %c0_54] : memref<128x512xbf16, #tpu.memory_space<vmem>>, vector<128x512xbf16>
    %cst_55 = arith.constant dense<0.000000e+00> : vector<8x512xf32>
    %99 = tpu.matmul %97, %98, %cst_55 {dimension_numbers = #tpu.dot_dimension_numbers<[1], [0], [0], [1], [0, 0, 1, 1], [], []>} : vector<8x128xbf16>, vector<128x512xbf16>, vector<8x512xf32> -> vector<8x512xf32>
    %100 = arith.addf %94, %99 : vector<8x512xf32>
    %c0_56 = arith.constant 0 : index
    %c0_57 = arith.constant 0 : index
    %c0_58 = arith.constant 0 : index
    %101 = vector.load %arg11[%c0_56, %c0_57, %c0_58] : memref<2x8x128xf32, #tpu.memory_space<vmem>>, vector<1x8x128xf32>
    %102 = vector.shape_cast %101 : vector<1x8x128xf32> to vector<8x128xf32>
    %103 = vector.extract_strided_slice %100 {offsets = [0, 0], sizes = [8, 128], strides = [1, 1]} : vector<8x512xf32> to vector<8x128xf32>
    %104 = arith.negf %103 : vector<8x128xf32>
    %105 = math.exp %104 : vector<8x128xf32>
    %cst_59 = arith.constant 1.000000e+00 : f32
    %106 = vector.broadcast %cst_59 : f32 to vector<8x128xf32>
    %107 = arith.addf %106, %105 : vector<8x128xf32>
    %108 = arith.divf %106, %107 : vector<8x128xf32>
    %109 = vector.extract_strided_slice %100 {offsets = [0, 128], sizes = [8, 128], strides = [1, 1]} : vector<8x512xf32> to vector<8x128xf32>
    %110 = arith.negf %109 : vector<8x128xf32>
    %111 = math.exp %110 : vector<8x128xf32>
    %cst_60 = arith.constant 1.000000e+00 : f32
    %112 = vector.broadcast %cst_60 : f32 to vector<8x128xf32>
    %113 = arith.addf %112, %111 : vector<8x128xf32>
    %114 = arith.divf %112, %113 : vector<8x128xf32>
    %115 = vector.extract_strided_slice %100 {offsets = [0, 256], sizes = [8, 128], strides = [1, 1]} : vector<8x512xf32> to vector<8x128xf32>
    %116 = math.tanh %115 : vector<8x128xf32>
    %117 = vector.extract_strided_slice %100 {offsets = [0, 384], sizes = [8, 128], strides = [1, 1]} : vector<8x512xf32> to vector<8x128xf32>
    %118 = arith.negf %117 : vector<8x128xf32>
    %119 = math.exp %118 : vector<8x128xf32>
    %cst_61 = arith.constant 1.000000e+00 : f32
    %120 = vector.broadcast %cst_61 : f32 to vector<8x128xf32>
    %121 = arith.addf %120, %119 : vector<8x128xf32>
    %122 = arith.divf %120, %121 : vector<8x128xf32>
    %123 = arith.mulf %114, %102 : vector<8x128xf32>
    %124 = arith.mulf %108, %116 : vector<8x128xf32>
    %125 = arith.addf %123, %124 : vector<8x128xf32>
    %126 = math.tanh %125 : vector<8x128xf32>
    %127 = arith.mulf %122, %126 : vector<8x128xf32>
    %c0_62 = arith.constant 0 : index
    %c0_63 = arith.constant 0 : index
    %c0_64 = arith.constant 0 : index
    %128 = vector.load %arg10[%c0_62, %c0_63, %c0_64] : memref<2x8x128xf32, #tpu.memory_space<vmem>>, vector<1x8x128xf32>
    %129 = vector.shape_cast %128 : vector<1x8x128xf32> to vector<8x128xf32>
    %130 = vector.shape_cast %127 : vector<8x128xf32> to vector<1x8x128xf32>
    tpu.vector_store %arg10[%c0_62, %c0_63, %c0_64], %130 {strides = array<i32>} : memref<2x8x128xf32, #tpu.memory_space<vmem>>, vector<1x8x128xf32>,
    %c0_65 = arith.constant 0 : index
    %c0_66 = arith.constant 0 : index
    %c0_67 = arith.constant 0 : index
    %131 = vector.load %arg11[%c0_65, %c0_66, %c0_67] : memref<2x8x128xf32, #tpu.memory_space<vmem>>, vector<1x8x128xf32>
    %132 = vector.shape_cast %131 : vector<1x8x128xf32> to vector<8x128xf32>
    %133 = vector.shape_cast %125 : vector<8x128xf32> to vector<1x8x128xf32>
    tpu.vector_store %arg11[%c0_65, %c0_66, %c0_67], %133 {strides = array<i32>} : memref<2x8x128xf32, #tpu.memory_space<vmem>>, vector<1x8x128xf32>,
    %c1_68 = arith.constant 1 : index
    %c0_69 = arith.constant 0 : index
    %c0_70 = arith.constant 0 : index
    %134 = vector.load %arg10[%c1_68, %c0_69, %c0_70] : memref<2x8x128xf32, #tpu.memory_space<vmem>>, vector<1x8x128xf32>
    %135 = vector.shape_cast %134 : vector<1x8x128xf32> to vector<8x128xf32>
    %136 = tpu.concatenate %127, %135 in 1 : vector<8x128xf32>, vector<8x128xf32> -> vector<8x256xf32>
    %137 = arith.truncf %136 : vector<8x256xf32> to vector<8x256xbf16>
    %c0_71 = arith.constant 0 : index
    %c0_72 = arith.constant 0 : index
    %c0_73 = arith.constant 0 : index
    %138 = vector.load %arg5[%c0_71, %c0_72, %c0_73] : memref<1x256x512xbf16, #tpu.memory_space<vmem>>, vector<1x256x512xbf16>
    %139 = vector.shape_cast %138 : vector<1x256x512xbf16> to vector<256x512xbf16>
    %cst_74 = arith.constant dense<0.000000e+00> : vector<8x512xf32>
    %140 = tpu.matmul %137, %139, %cst_74 {dimension_numbers = #tpu.dot_dimension_numbers<[1], [0], [0], [1], [0, 0, 1, 1], [], []>} : vector<8x256xbf16>, vector<256x512xbf16>, vector<8x512xf32> -> vector<8x512xf32>
    %c0_75 = arith.constant 0 : index
    %c0_76 = arith.constant 0 : index
    %c0_77 = arith.constant 0 : index
    %141 = vector.load %arg6[%c0_75, %c0_76, %c0_77] : memref<1x1x512xf32, #tpu.memory_space<vmem>>, vector<1x1x512xf32>
    %142 = vector.shape_cast %141 : vector<1x1x512xf32> to vector<1x512xf32>
    %143 = vector.broadcast %142 : vector<1x512xf32> to vector<8x512xf32>
    %144 = arith.addf %140, %143 : vector<8x512xf32>
    %c1_78 = arith.constant 1 : index
    %c0_79 = arith.constant 0 : index
    %c0_80 = arith.constant 0 : index
    %145 = vector.load %arg11[%c1_78, %c0_79, %c0_80] : memref<2x8x128xf32, #tpu.memory_space<vmem>>, vector<1x8x128xf32>
    %146 = vector.shape_cast %145 : vector<1x8x128xf32> to vector<8x128xf32>
    %147 = vector.extract_strided_slice %144 {offsets = [0, 0], sizes = [8, 128], strides = [1, 1]} : vector<8x512xf32> to vector<8x128xf32>
    %148 = arith.negf %147 : vector<8x128xf32>
    %149 = math.exp %148 : vector<8x128xf32>
    %cst_81 = arith.constant 1.000000e+00 : f32
    %150 = vector.broadcast %cst_81 : f32 to vector<8x128xf32>
    %151 = arith.addf %150, %149 : vector<8x128xf32>
    %152 = arith.divf %150, %151 : vector<8x128xf32>
    %153 = vector.extract_strided_slice %144 {offsets = [0, 128], sizes = [8, 128], strides = [1, 1]} : vector<8x512xf32> to vector<8x128xf32>
    %154 = arith.negf %153 : vector<8x128xf32>
    %155 = math.exp %154 : vector<8x128xf32>
    %cst_82 = arith.constant 1.000000e+00 : f32
    %156 = vector.broadcast %cst_82 : f32 to vector<8x128xf32>
    %157 = arith.addf %156, %155 : vector<8x128xf32>
    %158 = arith.divf %156, %157 : vector<8x128xf32>
    %159 = vector.extract_strided_slice %144 {offsets = [0, 256], sizes = [8, 128], strides = [1, 1]} : vector<8x512xf32> to vector<8x128xf32>
    %160 = math.tanh %159 : vector<8x128xf32>
    %161 = vector.extract_strided_slice %144 {offsets = [0, 384], sizes = [8, 128], strides = [1, 1]} : vector<8x512xf32> to vector<8x128xf32>
    %162 = arith.negf %161 : vector<8x128xf32>
    %163 = math.exp %162 : vector<8x128xf32>
    %cst_83 = arith.constant 1.000000e+00 : f32
    %164 = vector.broadcast %cst_83 : f32 to vector<8x128xf32>
    %165 = arith.addf %164, %163 : vector<8x128xf32>
    %166 = arith.divf %164, %165 : vector<8x128xf32>
    %167 = arith.mulf %158, %146 : vector<8x128xf32>
    %168 = arith.mulf %152, %160 : vector<8x128xf32>
    %169 = arith.addf %167, %168 : vector<8x128xf32>
    %170 = math.tanh %169 : vector<8x128xf32>
    %171 = arith.mulf %166, %170 : vector<8x128xf32>
    %c1_84 = arith.constant 1 : index
    %c0_85 = arith.constant 0 : index
    %c0_86 = arith.constant 0 : index
    %172 = vector.load %arg10[%c1_84, %c0_85, %c0_86] : memref<2x8x128xf32, #tpu.memory_space<vmem>>, vector<1x8x128xf32>
    %173 = vector.shape_cast %172 : vector<1x8x128xf32> to vector<8x128xf32>
    %174 = vector.shape_cast %171 : vector<8x128xf32> to vector<1x8x128xf32>
    tpu.vector_store %arg10[%c1_84, %c0_85, %c0_86], %174 {strides = array<i32>} : memref<2x8x128xf32, #tpu.memory_space<vmem>>, vector<1x8x128xf32>,
    %c1_87 = arith.constant 1 : index
    %c0_88 = arith.constant 0 : index
    %c0_89 = arith.constant 0 : index
    %175 = vector.load %arg11[%c1_87, %c0_88, %c0_89] : memref<2x8x128xf32, #tpu.memory_space<vmem>>, vector<1x8x128xf32>
    %176 = vector.shape_cast %175 : vector<1x8x128xf32> to vector<8x128xf32>
    %177 = vector.shape_cast %169 : vector<8x128xf32> to vector<1x8x128xf32>
    tpu.vector_store %arg11[%c1_87, %c0_88, %c0_89], %177 {strides = array<i32>} : memref<2x8x128xf32, #tpu.memory_space<vmem>>, vector<1x8x128xf32>,
    %c16 = arith.constant 16 : index
    %c0_90 = arith.constant 0 : index
    %178 = vector.load %arg12[%c16, %c0_90] : memref<64x512xf32, #tpu.memory_space<vmem>>, vector<8x512xf32>
    %c0_91 = arith.constant 0 : index
    %c0_92 = arith.constant 0 : index
    %c0_93 = arith.constant 0 : index
    %179 = vector.load %arg10[%c0_91, %c0_92, %c0_93] : memref<2x8x128xf32, #tpu.memory_space<vmem>>, vector<1x8x128xf32>
    %180 = vector.shape_cast %179 : vector<1x8x128xf32> to vector<8x128xf32>
    %181 = arith.truncf %180 : vector<8x128xf32> to vector<8x128xbf16>
    %c0_94 = arith.constant 0 : index
    %c0_95 = arith.constant 0 : index
    %182 = vector.load %arg3[%c0_94, %c0_95] : memref<128x512xbf16, #tpu.memory_space<vmem>>, vector<128x512xbf16>
    %cst_96 = arith.constant dense<0.000000e+00> : vector<8x512xf32>
    %183 = tpu.matmul %181, %182, %cst_96 {dimension_numbers = #tpu.dot_dimension_numbers<[1], [0], [0], [1], [0, 0, 1, 1], [], []>} : vector<8x128xbf16>, vector<128x512xbf16>, vector<8x512xf32> -> vector<8x512xf32>
    %184 = arith.addf %178, %183 : vector<8x512xf32>
    %c0_97 = arith.constant 0 : index
    %c0_98 = arith.constant 0 : index
    %c0_99 = arith.constant 0 : index
    %185 = vector.load %arg11[%c0_97, %c0_98, %c0_99] : memref<2x8x128xf32, #tpu.memory_space<vmem>>, vector<1x8x128xf32>
    %186 = vector.shape_cast %185 : vector<1x8x128xf32> to vector<8x128xf32>
    %187 = vector.extract_strided_slice %184 {offsets = [0, 0], sizes = [8, 128], strides = [1, 1]} : vector<8x512xf32> to vector<8x128xf32>
    %188 = arith.negf %187 : vector<8x128xf32>
    %189 = math.exp %188 : vector<8x128xf32>
    %cst_100 = arith.constant 1.000000e+00 : f32
    %190 = vector.broadcast %cst_100 : f32 to vector<8x128xf32>
    %191 = arith.addf %190, %189 : vector<8x128xf32>
    %192 = arith.divf %190, %191 : vector<8x128xf32>
    %193 = vector.extract_strided_slice %184 {offsets = [0, 128], sizes = [8, 128], strides = [1, 1]} : vector<8x512xf32> to vector<8x128xf32>
    %194 = arith.negf %193 : vector<8x128xf32>
    %195 = math.exp %194 : vector<8x128xf32>
    %cst_101 = arith.constant 1.000000e+00 : f32
    %196 = vector.broadcast %cst_101 : f32 to vector<8x128xf32>
    %197 = arith.addf %196, %195 : vector<8x128xf32>
    %198 = arith.divf %196, %197 : vector<8x128xf32>
    %199 = vector.extract_strided_slice %184 {offsets = [0, 256], sizes = [8, 128], strides = [1, 1]} : vector<8x512xf32> to vector<8x128xf32>
    %200 = math.tanh %199 : vector<8x128xf32>
    %201 = vector.extract_strided_slice %184 {offsets = [0, 384], sizes = [8, 128], strides = [1, 1]} : vector<8x512xf32> to vector<8x128xf32>
    %202 = arith.negf %201 : vector<8x128xf32>
    %203 = math.exp %202 : vector<8x128xf32>
    %cst_102 = arith.constant 1.000000e+00 : f32
    %204 = vector.broadcast %cst_102 : f32 to vector<8x128xf32>
    %205 = arith.addf %204, %203 : vector<8x128xf32>
    %206 = arith.divf %204, %205 : vector<8x128xf32>
    %207 = arith.mulf %198, %186 : vector<8x128xf32>
    %208 = arith.mulf %192, %200 : vector<8x128xf32>
    %209 = arith.addf %207, %208 : vector<8x128xf32>
    %210 = math.tanh %209 : vector<8x128xf32>
    %211 = arith.mulf %206, %210 : vector<8x128xf32>
    %c0_103 = arith.constant 0 : index
    %c0_104 = arith.constant 0 : index
    %c0_105 = arith.constant 0 : index
    %212 = vector.load %arg10[%c0_103, %c0_104, %c0_105] : memref<2x8x128xf32, #tpu.memory_space<vmem>>, vector<1x8x128xf32>
    %213 = vector.shape_cast %212 : vector<1x8x128xf32> to vector<8x128xf32>
    %214 = vector.shape_cast %211 : vector<8x128xf32> to vector<1x8x128xf32>
    tpu.vector_store %arg10[%c0_103, %c0_104, %c0_105], %214 {strides = array<i32>} : memref<2x8x128xf32, #tpu.memory_space<vmem>>, vector<1x8x128xf32>,
    %c0_106 = arith.constant 0 : index
    %c0_107 = arith.constant 0 : index
    %c0_108 = arith.constant 0 : index
    %215 = vector.load %arg11[%c0_106, %c0_107, %c0_108] : memref<2x8x128xf32, #tpu.memory_space<vmem>>, vector<1x8x128xf32>
    %216 = vector.shape_cast %215 : vector<1x8x128xf32> to vector<8x128xf32>
    %217 = vector.shape_cast %209 : vector<8x128xf32> to vector<1x8x128xf32>
    tpu.vector_store %arg11[%c0_106, %c0_107, %c0_108], %217 {strides = array<i32>} : memref<2x8x128xf32, #tpu.memory_space<vmem>>, vector<1x8x128xf32>,
    %c1_109 = arith.constant 1 : index
    %c0_110 = arith.constant 0 : index
    %c0_111 = arith.constant 0 : index
    %218 = vector.load %arg10[%c1_109, %c0_110, %c0_111] : memref<2x8x128xf32, #tpu.memory_space<vmem>>, vector<1x8x128xf32>
    %219 = vector.shape_cast %218 : vector<1x8x128xf32> to vector<8x128xf32>
    %220 = tpu.concatenate %211, %219 in 1 : vector<8x128xf32>, vector<8x128xf32> -> vector<8x256xf32>
    %221 = arith.truncf %220 : vector<8x256xf32> to vector<8x256xbf16>
    %c0_112 = arith.constant 0 : index
    %c0_113 = arith.constant 0 : index
    %c0_114 = arith.constant 0 : index
    %222 = vector.load %arg5[%c0_112, %c0_113, %c0_114] : memref<1x256x512xbf16, #tpu.memory_space<vmem>>, vector<1x256x512xbf16>
    %223 = vector.shape_cast %222 : vector<1x256x512xbf16> to vector<256x512xbf16>
    %cst_115 = arith.constant dense<0.000000e+00> : vector<8x512xf32>
    %224 = tpu.matmul %221, %223, %cst_115 {dimension_numbers = #tpu.dot_dimension_numbers<[1], [0], [0], [1], [0, 0, 1, 1], [], []>} : vector<8x256xbf16>, vector<256x512xbf16>, vector<8x512xf32> -> vector<8x512xf32>
    %c0_116 = arith.constant 0 : index
    %c0_117 = arith.constant 0 : index
    %c0_118 = arith.constant 0 : index
    %225 = vector.load %arg6[%c0_116, %c0_117, %c0_118] : memref<1x1x512xf32, #tpu.memory_space<vmem>>, vector<1x1x512xf32>
    %226 = vector.shape_cast %225 : vector<1x1x512xf32> to vector<1x512xf32>
    %227 = vector.broadcast %226 : vector<1x512xf32> to vector<8x512xf32>
    %228 = arith.addf %224, %227 : vector<8x512xf32>
    %c1_119 = arith.constant 1 : index
    %c0_120 = arith.constant 0 : index
    %c0_121 = arith.constant 0 : index
    %229 = vector.load %arg11[%c1_119, %c0_120, %c0_121] : memref<2x8x128xf32, #tpu.memory_space<vmem>>, vector<1x8x128xf32>
    %230 = vector.shape_cast %229 : vector<1x8x128xf32> to vector<8x128xf32>
    %231 = vector.extract_strided_slice %228 {offsets = [0, 0], sizes = [8, 128], strides = [1, 1]} : vector<8x512xf32> to vector<8x128xf32>
    %232 = arith.negf %231 : vector<8x128xf32>
    %233 = math.exp %232 : vector<8x128xf32>
    %cst_122 = arith.constant 1.000000e+00 : f32
    %234 = vector.broadcast %cst_122 : f32 to vector<8x128xf32>
    %235 = arith.addf %234, %233 : vector<8x128xf32>
    %236 = arith.divf %234, %235 : vector<8x128xf32>
    %237 = vector.extract_strided_slice %228 {offsets = [0, 128], sizes = [8, 128], strides = [1, 1]} : vector<8x512xf32> to vector<8x128xf32>
    %238 = arith.negf %237 : vector<8x128xf32>
    %239 = math.exp %238 : vector<8x128xf32>
    %cst_123 = arith.constant 1.000000e+00 : f32
    %240 = vector.broadcast %cst_123 : f32 to vector<8x128xf32>
    %241 = arith.addf %240, %239 : vector<8x128xf32>
    %242 = arith.divf %240, %241 : vector<8x128xf32>
    %243 = vector.extract_strided_slice %228 {offsets = [0, 256], sizes = [8, 128], strides = [1, 1]} : vector<8x512xf32> to vector<8x128xf32>
    %244 = math.tanh %243 : vector<8x128xf32>
    %245 = vector.extract_strided_slice %228 {offsets = [0, 384], sizes = [8, 128], strides = [1, 1]} : vector<8x512xf32> to vector<8x128xf32>
    %246 = arith.negf %245 : vector<8x128xf32>
    %247 = math.exp %246 : vector<8x128xf32>
    %cst_124 = arith.constant 1.000000e+00 : f32
    %248 = vector.broadcast %cst_124 : f32 to vector<8x128xf32>
    %249 = arith.addf %248, %247 : vector<8x128xf32>
    %250 = arith.divf %248, %249 : vector<8x128xf32>
    %251 = arith.mulf %242, %230 : vector<8x128xf32>
    %252 = arith.mulf %236, %244 : vector<8x128xf32>
    %253 = arith.addf %251, %252 : vector<8x128xf32>
    %254 = math.tanh %253 : vector<8x128xf32>
    %255 = arith.mulf %250, %254 : vector<8x128xf32>
    %c1_125 = arith.constant 1 : index
    %c0_126 = arith.constant 0 : index
    %c0_127 = arith.constant 0 : index
    %256 = vector.load %arg10[%c1_125, %c0_126, %c0_127] : memref<2x8x128xf32, #tpu.memory_space<vmem>>, vector<1x8x128xf32>
    %257 = vector.shape_cast %256 : vector<1x8x128xf32> to vector<8x128xf32>
    %258 = vector.shape_cast %255 : vector<8x128xf32> to vector<1x8x128xf32>
    tpu.vector_store %arg10[%c1_125, %c0_126, %c0_127], %258 {strides = array<i32>} : memref<2x8x128xf32, #tpu.memory_space<vmem>>, vector<1x8x128xf32>,
    %c1_128 = arith.constant 1 : index
    %c0_129 = arith.constant 0 : index
    %c0_130 = arith.constant 0 : index
    %259 = vector.load %arg11[%c1_128, %c0_129, %c0_130] : memref<2x8x128xf32, #tpu.memory_space<vmem>>, vector<1x8x128xf32>
    %260 = vector.shape_cast %259 : vector<1x8x128xf32> to vector<8x128xf32>
    %261 = vector.shape_cast %253 : vector<8x128xf32> to vector<1x8x128xf32>
    tpu.vector_store %arg11[%c1_128, %c0_129, %c0_130], %261 {strides = array<i32>} : memref<2x8x128xf32, #tpu.memory_space<vmem>>, vector<1x8x128xf32>,
    %c24 = arith.constant 24 : index
    %c0_131 = arith.constant 0 : index
    %262 = vector.load %arg12[%c24, %c0_131] : memref<64x512xf32, #tpu.memory_space<vmem>>, vector<8x512xf32>
    %c0_132 = arith.constant 0 : index
    %c0_133 = arith.constant 0 : index
    %c0_134 = arith.constant 0 : index
    %263 = vector.load %arg10[%c0_132, %c0_133, %c0_134] : memref<2x8x128xf32, #tpu.memory_space<vmem>>, vector<1x8x128xf32>
    %264 = vector.shape_cast %263 : vector<1x8x128xf32> to vector<8x128xf32>
    %265 = arith.truncf %264 : vector<8x128xf32> to vector<8x128xbf16>
    %c0_135 = arith.constant 0 : index
    %c0_136 = arith.constant 0 : index
    %266 = vector.load %arg3[%c0_135, %c0_136] : memref<128x512xbf16, #tpu.memory_space<vmem>>, vector<128x512xbf16>
    %cst_137 = arith.constant dense<0.000000e+00> : vector<8x512xf32>
    %267 = tpu.matmul %265, %266, %cst_137 {dimension_numbers = #tpu.dot_dimension_numbers<[1], [0], [0], [1], [0, 0, 1, 1], [], []>} : vector<8x128xbf16>, vector<128x512xbf16>, vector<8x512xf32> -> vector<8x512xf32>
    %268 = arith.addf %262, %267 : vector<8x512xf32>
    %c0_138 = arith.constant 0 : index
    %c0_139 = arith.constant 0 : index
    %c0_140 = arith.constant 0 : index
    %269 = vector.load %arg11[%c0_138, %c0_139, %c0_140] : memref<2x8x128xf32, #tpu.memory_space<vmem>>, vector<1x8x128xf32>
    %270 = vector.shape_cast %269 : vector<1x8x128xf32> to vector<8x128xf32>
    %271 = vector.extract_strided_slice %268 {offsets = [0, 0], sizes = [8, 128], strides = [1, 1]} : vector<8x512xf32> to vector<8x128xf32>
    %272 = arith.negf %271 : vector<8x128xf32>
    %273 = math.exp %272 : vector<8x128xf32>
    %cst_141 = arith.constant 1.000000e+00 : f32
    %274 = vector.broadcast %cst_141 : f32 to vector<8x128xf32>
    %275 = arith.addf %274, %273 : vector<8x128xf32>
    %276 = arith.divf %274, %275 : vector<8x128xf32>
    %277 = vector.extract_strided_slice %268 {offsets = [0, 128], sizes = [8, 128], strides = [1, 1]} : vector<8x512xf32> to vector<8x128xf32>
    %278 = arith.negf %277 : vector<8x128xf32>
    %279 = math.exp %278 : vector<8x128xf32>
    %cst_142 = arith.constant 1.000000e+00 : f32
    %280 = vector.broadcast %cst_142 : f32 to vector<8x128xf32>
    %281 = arith.addf %280, %279 : vector<8x128xf32>
    %282 = arith.divf %280, %281 : vector<8x128xf32>
    %283 = vector.extract_strided_slice %268 {offsets = [0, 256], sizes = [8, 128], strides = [1, 1]} : vector<8x512xf32> to vector<8x128xf32>
    %284 = math.tanh %283 : vector<8x128xf32>
    %285 = vector.extract_strided_slice %268 {offsets = [0, 384], sizes = [8, 128], strides = [1, 1]} : vector<8x512xf32> to vector<8x128xf32>
    %286 = arith.negf %285 : vector<8x128xf32>
    %287 = math.exp %286 : vector<8x128xf32>
    %cst_143 = arith.constant 1.000000e+00 : f32
    %288 = vector.broadcast %cst_143 : f32 to vector<8x128xf32>
    %289 = arith.addf %288, %287 : vector<8x128xf32>
    %290 = arith.divf %288, %289 : vector<8x128xf32>
    %291 = arith.mulf %282, %270 : vector<8x128xf32>
    %292 = arith.mulf %276, %284 : vector<8x128xf32>
    %293 = arith.addf %291, %292 : vector<8x128xf32>
    %294 = math.tanh %293 : vector<8x128xf32>
    %295 = arith.mulf %290, %294 : vector<8x128xf32>
    %c0_144 = arith.constant 0 : index
    %c0_145 = arith.constant 0 : index
    %c0_146 = arith.constant 0 : index
    %296 = vector.load %arg10[%c0_144, %c0_145, %c0_146] : memref<2x8x128xf32, #tpu.memory_space<vmem>>, vector<1x8x128xf32>
    %297 = vector.shape_cast %296 : vector<1x8x128xf32> to vector<8x128xf32>
    %298 = vector.shape_cast %295 : vector<8x128xf32> to vector<1x8x128xf32>
    tpu.vector_store %arg10[%c0_144, %c0_145, %c0_146], %298 {strides = array<i32>} : memref<2x8x128xf32, #tpu.memory_space<vmem>>, vector<1x8x128xf32>,
    %c0_147 = arith.constant 0 : index
    %c0_148 = arith.constant 0 : index
    %c0_149 = arith.constant 0 : index
    %299 = vector.load %arg11[%c0_147, %c0_148, %c0_149] : memref<2x8x128xf32, #tpu.memory_space<vmem>>, vector<1x8x128xf32>
    %300 = vector.shape_cast %299 : vector<1x8x128xf32> to vector<8x128xf32>
    %301 = vector.shape_cast %293 : vector<8x128xf32> to vector<1x8x128xf32>
    tpu.vector_store %arg11[%c0_147, %c0_148, %c0_149], %301 {strides = array<i32>} : memref<2x8x128xf32, #tpu.memory_space<vmem>>, vector<1x8x128xf32>,
    %c1_150 = arith.constant 1 : index
    %c0_151 = arith.constant 0 : index
    %c0_152 = arith.constant 0 : index
    %302 = vector.load %arg10[%c1_150, %c0_151, %c0_152] : memref<2x8x128xf32, #tpu.memory_space<vmem>>, vector<1x8x128xf32>
    %303 = vector.shape_cast %302 : vector<1x8x128xf32> to vector<8x128xf32>
    %304 = tpu.concatenate %295, %303 in 1 : vector<8x128xf32>, vector<8x128xf32> -> vector<8x256xf32>
    %305 = arith.truncf %304 : vector<8x256xf32> to vector<8x256xbf16>
    %c0_153 = arith.constant 0 : index
    %c0_154 = arith.constant 0 : index
    %c0_155 = arith.constant 0 : index
    %306 = vector.load %arg5[%c0_153, %c0_154, %c0_155] : memref<1x256x512xbf16, #tpu.memory_space<vmem>>, vector<1x256x512xbf16>
    %307 = vector.shape_cast %306 : vector<1x256x512xbf16> to vector<256x512xbf16>
    %cst_156 = arith.constant dense<0.000000e+00> : vector<8x512xf32>
    %308 = tpu.matmul %305, %307, %cst_156 {dimension_numbers = #tpu.dot_dimension_numbers<[1], [0], [0], [1], [0, 0, 1, 1], [], []>} : vector<8x256xbf16>, vector<256x512xbf16>, vector<8x512xf32> -> vector<8x512xf32>
    %c0_157 = arith.constant 0 : index
    %c0_158 = arith.constant 0 : index
    %c0_159 = arith.constant 0 : index
    %309 = vector.load %arg6[%c0_157, %c0_158, %c0_159] : memref<1x1x512xf32, #tpu.memory_space<vmem>>, vector<1x1x512xf32>
    %310 = vector.shape_cast %309 : vector<1x1x512xf32> to vector<1x512xf32>
    %311 = vector.broadcast %310 : vector<1x512xf32> to vector<8x512xf32>
    %312 = arith.addf %308, %311 : vector<8x512xf32>
    %c1_160 = arith.constant 1 : index
    %c0_161 = arith.constant 0 : index
    %c0_162 = arith.constant 0 : index
    %313 = vector.load %arg11[%c1_160, %c0_161, %c0_162] : memref<2x8x128xf32, #tpu.memory_space<vmem>>, vector<1x8x128xf32>
    %314 = vector.shape_cast %313 : vector<1x8x128xf32> to vector<8x128xf32>
    %315 = vector.extract_strided_slice %312 {offsets = [0, 0], sizes = [8, 128], strides = [1, 1]} : vector<8x512xf32> to vector<8x128xf32>
    %316 = arith.negf %315 : vector<8x128xf32>
    %317 = math.exp %316 : vector<8x128xf32>
    %cst_163 = arith.constant 1.000000e+00 : f32
    %318 = vector.broadcast %cst_163 : f32 to vector<8x128xf32>
    %319 = arith.addf %318, %317 : vector<8x128xf32>
    %320 = arith.divf %318, %319 : vector<8x128xf32>
    %321 = vector.extract_strided_slice %312 {offsets = [0, 128], sizes = [8, 128], strides = [1, 1]} : vector<8x512xf32> to vector<8x128xf32>
    %322 = arith.negf %321 : vector<8x128xf32>
    %323 = math.exp %322 : vector<8x128xf32>
    %cst_164 = arith.constant 1.000000e+00 : f32
    %324 = vector.broadcast %cst_164 : f32 to vector<8x128xf32>
    %325 = arith.addf %324, %323 : vector<8x128xf32>
    %326 = arith.divf %324, %325 : vector<8x128xf32>
    %327 = vector.extract_strided_slice %312 {offsets = [0, 256], sizes = [8, 128], strides = [1, 1]} : vector<8x512xf32> to vector<8x128xf32>
    %328 = math.tanh %327 : vector<8x128xf32>
    %329 = vector.extract_strided_slice %312 {offsets = [0, 384], sizes = [8, 128], strides = [1, 1]} : vector<8x512xf32> to vector<8x128xf32>
    %330 = arith.negf %329 : vector<8x128xf32>
    %331 = math.exp %330 : vector<8x128xf32>
    %cst_165 = arith.constant 1.000000e+00 : f32
    %332 = vector.broadcast %cst_165 : f32 to vector<8x128xf32>
    %333 = arith.addf %332, %331 : vector<8x128xf32>
    %334 = arith.divf %332, %333 : vector<8x128xf32>
    %335 = arith.mulf %326, %314 : vector<8x128xf32>
    %336 = arith.mulf %320, %328 : vector<8x128xf32>
    %337 = arith.addf %335, %336 : vector<8x128xf32>
    %338 = math.tanh %337 : vector<8x128xf32>
    %339 = arith.mulf %334, %338 : vector<8x128xf32>
    %c1_166 = arith.constant 1 : index
    %c0_167 = arith.constant 0 : index
    %c0_168 = arith.constant 0 : index
    %340 = vector.load %arg10[%c1_166, %c0_167, %c0_168] : memref<2x8x128xf32, #tpu.memory_space<vmem>>, vector<1x8x128xf32>
    %341 = vector.shape_cast %340 : vector<1x8x128xf32> to vector<8x128xf32>
    %342 = vector.shape_cast %339 : vector<8x128xf32> to vector<1x8x128xf32>
    tpu.vector_store %arg10[%c1_166, %c0_167, %c0_168], %342 {strides = array<i32>} : memref<2x8x128xf32, #tpu.memory_space<vmem>>, vector<1x8x128xf32>,
    %c1_169 = arith.constant 1 : index
    %c0_170 = arith.constant 0 : index
    %c0_171 = arith.constant 0 : index
    %343 = vector.load %arg11[%c1_169, %c0_170, %c0_171] : memref<2x8x128xf32, #tpu.memory_space<vmem>>, vector<1x8x128xf32>
    %344 = vector.shape_cast %343 : vector<1x8x128xf32> to vector<8x128xf32>
    %345 = vector.shape_cast %337 : vector<8x128xf32> to vector<1x8x128xf32>
    tpu.vector_store %arg11[%c1_169, %c0_170, %c0_171], %345 {strides = array<i32>} : memref<2x8x128xf32, #tpu.memory_space<vmem>>, vector<1x8x128xf32>,
    %c32 = arith.constant 32 : index
    %c0_172 = arith.constant 0 : index
    %346 = vector.load %arg12[%c32, %c0_172] : memref<64x512xf32, #tpu.memory_space<vmem>>, vector<8x512xf32>
    %c0_173 = arith.constant 0 : index
    %c0_174 = arith.constant 0 : index
    %c0_175 = arith.constant 0 : index
    %347 = vector.load %arg10[%c0_173, %c0_174, %c0_175] : memref<2x8x128xf32, #tpu.memory_space<vmem>>, vector<1x8x128xf32>
    %348 = vector.shape_cast %347 : vector<1x8x128xf32> to vector<8x128xf32>
    %349 = arith.truncf %348 : vector<8x128xf32> to vector<8x128xbf16>
    %c0_176 = arith.constant 0 : index
    %c0_177 = arith.constant 0 : index
    %350 = vector.load %arg3[%c0_176, %c0_177] : memref<128x512xbf16, #tpu.memory_space<vmem>>, vector<128x512xbf16>
    %cst_178 = arith.constant dense<0.000000e+00> : vector<8x512xf32>
    %351 = tpu.matmul %349, %350, %cst_178 {dimension_numbers = #tpu.dot_dimension_numbers<[1], [0], [0], [1], [0, 0, 1, 1], [], []>} : vector<8x128xbf16>, vector<128x512xbf16>, vector<8x512xf32> -> vector<8x512xf32>
    %352 = arith.addf %346, %351 : vector<8x512xf32>
    %c0_179 = arith.constant 0 : index
    %c0_180 = arith.constant 0 : index
    %c0_181 = arith.constant 0 : index
    %353 = vector.load %arg11[%c0_179, %c0_180, %c0_181] : memref<2x8x128xf32, #tpu.memory_space<vmem>>, vector<1x8x128xf32>
    %354 = vector.shape_cast %353 : vector<1x8x128xf32> to vector<8x128xf32>
    %355 = vector.extract_strided_slice %352 {offsets = [0, 0], sizes = [8, 128], strides = [1, 1]} : vector<8x512xf32> to vector<8x128xf32>
    %356 = arith.negf %355 : vector<8x128xf32>
    %357 = math.exp %356 : vector<8x128xf32>
    %cst_182 = arith.constant 1.000000e+00 : f32
    %358 = vector.broadcast %cst_182 : f32 to vector<8x128xf32>
    %359 = arith.addf %358, %357 : vector<8x128xf32>
    %360 = arith.divf %358, %359 : vector<8x128xf32>
    %361 = vector.extract_strided_slice %352 {offsets = [0, 128], sizes = [8, 128], strides = [1, 1]} : vector<8x512xf32> to vector<8x128xf32>
    %362 = arith.negf %361 : vector<8x128xf32>
    %363 = math.exp %362 : vector<8x128xf32>
    %cst_183 = arith.constant 1.000000e+00 : f32
    %364 = vector.broadcast %cst_183 : f32 to vector<8x128xf32>
    %365 = arith.addf %364, %363 : vector<8x128xf32>
    %366 = arith.divf %364, %365 : vector<8x128xf32>
    %367 = vector.extract_strided_slice %352 {offsets = [0, 256], sizes = [8, 128], strides = [1, 1]} : vector<8x512xf32> to vector<8x128xf32>
    %368 = math.tanh %367 : vector<8x128xf32>
    %369 = vector.extract_strided_slice %352 {offsets = [0, 384], sizes = [8, 128], strides = [1, 1]} : vector<8x512xf32> to vector<8x128xf32>
    %370 = arith.negf %369 : vector<8x128xf32>
    %371 = math.exp %370 : vector<8x128xf32>
    %cst_184 = arith.constant 1.000000e+00 : f32
    %372 = vector.broadcast %cst_184 : f32 to vector<8x128xf32>
    %373 = arith.addf %372, %371 : vector<8x128xf32>
    %374 = arith.divf %372, %373 : vector<8x128xf32>
    %375 = arith.mulf %366, %354 : vector<8x128xf32>
    %376 = arith.mulf %360, %368 : vector<8x128xf32>
    %377 = arith.addf %375, %376 : vector<8x128xf32>
    %378 = math.tanh %377 : vector<8x128xf32>
    %379 = arith.mulf %374, %378 : vector<8x128xf32>
    %c0_185 = arith.constant 0 : index
    %c0_186 = arith.constant 0 : index
    %c0_187 = arith.constant 0 : index
    %380 = vector.load %arg10[%c0_185, %c0_186, %c0_187] : memref<2x8x128xf32, #tpu.memory_space<vmem>>, vector<1x8x128xf32>
    %381 = vector.shape_cast %380 : vector<1x8x128xf32> to vector<8x128xf32>
    %382 = vector.shape_cast %379 : vector<8x128xf32> to vector<1x8x128xf32>
    tpu.vector_store %arg10[%c0_185, %c0_186, %c0_187], %382 {strides = array<i32>} : memref<2x8x128xf32, #tpu.memory_space<vmem>>, vector<1x8x128xf32>,
    %c0_188 = arith.constant 0 : index
    %c0_189 = arith.constant 0 : index
    %c0_190 = arith.constant 0 : index
    %383 = vector.load %arg11[%c0_188, %c0_189, %c0_190] : memref<2x8x128xf32, #tpu.memory_space<vmem>>, vector<1x8x128xf32>
    %384 = vector.shape_cast %383 : vector<1x8x128xf32> to vector<8x128xf32>
    %385 = vector.shape_cast %377 : vector<8x128xf32> to vector<1x8x128xf32>
    tpu.vector_store %arg11[%c0_188, %c0_189, %c0_190], %385 {strides = array<i32>} : memref<2x8x128xf32, #tpu.memory_space<vmem>>, vector<1x8x128xf32>,
    %c1_191 = arith.constant 1 : index
    %c0_192 = arith.constant 0 : index
    %c0_193 = arith.constant 0 : index
    %386 = vector.load %arg10[%c1_191, %c0_192, %c0_193] : memref<2x8x128xf32, #tpu.memory_space<vmem>>, vector<1x8x128xf32>
    %387 = vector.shape_cast %386 : vector<1x8x128xf32> to vector<8x128xf32>
    %388 = tpu.concatenate %379, %387 in 1 : vector<8x128xf32>, vector<8x128xf32> -> vector<8x256xf32>
    %389 = arith.truncf %388 : vector<8x256xf32> to vector<8x256xbf16>
    %c0_194 = arith.constant 0 : index
    %c0_195 = arith.constant 0 : index
    %c0_196 = arith.constant 0 : index
    %390 = vector.load %arg5[%c0_194, %c0_195, %c0_196] : memref<1x256x512xbf16, #tpu.memory_space<vmem>>, vector<1x256x512xbf16>
    %391 = vector.shape_cast %390 : vector<1x256x512xbf16> to vector<256x512xbf16>
    %cst_197 = arith.constant dense<0.000000e+00> : vector<8x512xf32>
    %392 = tpu.matmul %389, %391, %cst_197 {dimension_numbers = #tpu.dot_dimension_numbers<[1], [0], [0], [1], [0, 0, 1, 1], [], []>} : vector<8x256xbf16>, vector<256x512xbf16>, vector<8x512xf32> -> vector<8x512xf32>
    %c0_198 = arith.constant 0 : index
    %c0_199 = arith.constant 0 : index
    %c0_200 = arith.constant 0 : index
    %393 = vector.load %arg6[%c0_198, %c0_199, %c0_200] : memref<1x1x512xf32, #tpu.memory_space<vmem>>, vector<1x1x512xf32>
    %394 = vector.shape_cast %393 : vector<1x1x512xf32> to vector<1x512xf32>
    %395 = vector.broadcast %394 : vector<1x512xf32> to vector<8x512xf32>
    %396 = arith.addf %392, %395 : vector<8x512xf32>
    %c1_201 = arith.constant 1 : index
    %c0_202 = arith.constant 0 : index
    %c0_203 = arith.constant 0 : index
    %397 = vector.load %arg11[%c1_201, %c0_202, %c0_203] : memref<2x8x128xf32, #tpu.memory_space<vmem>>, vector<1x8x128xf32>
    %398 = vector.shape_cast %397 : vector<1x8x128xf32> to vector<8x128xf32>
    %399 = vector.extract_strided_slice %396 {offsets = [0, 0], sizes = [8, 128], strides = [1, 1]} : vector<8x512xf32> to vector<8x128xf32>
    %400 = arith.negf %399 : vector<8x128xf32>
    %401 = math.exp %400 : vector<8x128xf32>
    %cst_204 = arith.constant 1.000000e+00 : f32
    %402 = vector.broadcast %cst_204 : f32 to vector<8x128xf32>
    %403 = arith.addf %402, %401 : vector<8x128xf32>
    %404 = arith.divf %402, %403 : vector<8x128xf32>
    %405 = vector.extract_strided_slice %396 {offsets = [0, 128], sizes = [8, 128], strides = [1, 1]} : vector<8x512xf32> to vector<8x128xf32>
    %406 = arith.negf %405 : vector<8x128xf32>
    %407 = math.exp %406 : vector<8x128xf32>
    %cst_205 = arith.constant 1.000000e+00 : f32
    %408 = vector.broadcast %cst_205 : f32 to vector<8x128xf32>
    %409 = arith.addf %408, %407 : vector<8x128xf32>
    %410 = arith.divf %408, %409 : vector<8x128xf32>
    %411 = vector.extract_strided_slice %396 {offsets = [0, 256], sizes = [8, 128], strides = [1, 1]} : vector<8x512xf32> to vector<8x128xf32>
    %412 = math.tanh %411 : vector<8x128xf32>
    %413 = vector.extract_strided_slice %396 {offsets = [0, 384], sizes = [8, 128], strides = [1, 1]} : vector<8x512xf32> to vector<8x128xf32>
    %414 = arith.negf %413 : vector<8x128xf32>
    %415 = math.exp %414 : vector<8x128xf32>
    %cst_206 = arith.constant 1.000000e+00 : f32
    %416 = vector.broadcast %cst_206 : f32 to vector<8x128xf32>
    %417 = arith.addf %416, %415 : vector<8x128xf32>
    %418 = arith.divf %416, %417 : vector<8x128xf32>
    %419 = arith.mulf %410, %398 : vector<8x128xf32>
    %420 = arith.mulf %404, %412 : vector<8x128xf32>
    %421 = arith.addf %419, %420 : vector<8x128xf32>
    %422 = math.tanh %421 : vector<8x128xf32>
    %423 = arith.mulf %418, %422 : vector<8x128xf32>
    %c1_207 = arith.constant 1 : index
    %c0_208 = arith.constant 0 : index
    %c0_209 = arith.constant 0 : index
    %424 = vector.load %arg10[%c1_207, %c0_208, %c0_209] : memref<2x8x128xf32, #tpu.memory_space<vmem>>, vector<1x8x128xf32>
    %425 = vector.shape_cast %424 : vector<1x8x128xf32> to vector<8x128xf32>
    %426 = vector.shape_cast %423 : vector<8x128xf32> to vector<1x8x128xf32>
    tpu.vector_store %arg10[%c1_207, %c0_208, %c0_209], %426 {strides = array<i32>} : memref<2x8x128xf32, #tpu.memory_space<vmem>>, vector<1x8x128xf32>,
    %c1_210 = arith.constant 1 : index
    %c0_211 = arith.constant 0 : index
    %c0_212 = arith.constant 0 : index
    %427 = vector.load %arg11[%c1_210, %c0_211, %c0_212] : memref<2x8x128xf32, #tpu.memory_space<vmem>>, vector<1x8x128xf32>
    %428 = vector.shape_cast %427 : vector<1x8x128xf32> to vector<8x128xf32>
    %429 = vector.shape_cast %421 : vector<8x128xf32> to vector<1x8x128xf32>
    tpu.vector_store %arg11[%c1_210, %c0_211, %c0_212], %429 {strides = array<i32>} : memref<2x8x128xf32, #tpu.memory_space<vmem>>, vector<1x8x128xf32>,
    %c40 = arith.constant 40 : index
    %c0_213 = arith.constant 0 : index
    %430 = vector.load %arg12[%c40, %c0_213] : memref<64x512xf32, #tpu.memory_space<vmem>>, vector<8x512xf32>
    %c0_214 = arith.constant 0 : index
    %c0_215 = arith.constant 0 : index
    %c0_216 = arith.constant 0 : index
    %431 = vector.load %arg10[%c0_214, %c0_215, %c0_216] : memref<2x8x128xf32, #tpu.memory_space<vmem>>, vector<1x8x128xf32>
    %432 = vector.shape_cast %431 : vector<1x8x128xf32> to vector<8x128xf32>
    %433 = arith.truncf %432 : vector<8x128xf32> to vector<8x128xbf16>
    %c0_217 = arith.constant 0 : index
    %c0_218 = arith.constant 0 : index
    %434 = vector.load %arg3[%c0_217, %c0_218] : memref<128x512xbf16, #tpu.memory_space<vmem>>, vector<128x512xbf16>
    %cst_219 = arith.constant dense<0.000000e+00> : vector<8x512xf32>
    %435 = tpu.matmul %433, %434, %cst_219 {dimension_numbers = #tpu.dot_dimension_numbers<[1], [0], [0], [1], [0, 0, 1, 1], [], []>} : vector<8x128xbf16>, vector<128x512xbf16>, vector<8x512xf32> -> vector<8x512xf32>
    %436 = arith.addf %430, %435 : vector<8x512xf32>
    %c0_220 = arith.constant 0 : index
    %c0_221 = arith.constant 0 : index
    %c0_222 = arith.constant 0 : index
    %437 = vector.load %arg11[%c0_220, %c0_221, %c0_222] : memref<2x8x128xf32, #tpu.memory_space<vmem>>, vector<1x8x128xf32>
    %438 = vector.shape_cast %437 : vector<1x8x128xf32> to vector<8x128xf32>
    %439 = vector.extract_strided_slice %436 {offsets = [0, 0], sizes = [8, 128], strides = [1, 1]} : vector<8x512xf32> to vector<8x128xf32>
    %440 = arith.negf %439 : vector<8x128xf32>
    %441 = math.exp %440 : vector<8x128xf32>
    %cst_223 = arith.constant 1.000000e+00 : f32
    %442 = vector.broadcast %cst_223 : f32 to vector<8x128xf32>
    %443 = arith.addf %442, %441 : vector<8x128xf32>
    %444 = arith.divf %442, %443 : vector<8x128xf32>
    %445 = vector.extract_strided_slice %436 {offsets = [0, 128], sizes = [8, 128], strides = [1, 1]} : vector<8x512xf32> to vector<8x128xf32>
    %446 = arith.negf %445 : vector<8x128xf32>
    %447 = math.exp %446 : vector<8x128xf32>
    %cst_224 = arith.constant 1.000000e+00 : f32
    %448 = vector.broadcast %cst_224 : f32 to vector<8x128xf32>
    %449 = arith.addf %448, %447 : vector<8x128xf32>
    %450 = arith.divf %448, %449 : vector<8x128xf32>
    %451 = vector.extract_strided_slice %436 {offsets = [0, 256], sizes = [8, 128], strides = [1, 1]} : vector<8x512xf32> to vector<8x128xf32>
    %452 = math.tanh %451 : vector<8x128xf32>
    %453 = vector.extract_strided_slice %436 {offsets = [0, 384], sizes = [8, 128], strides = [1, 1]} : vector<8x512xf32> to vector<8x128xf32>
    %454 = arith.negf %453 : vector<8x128xf32>
    %455 = math.exp %454 : vector<8x128xf32>
    %cst_225 = arith.constant 1.000000e+00 : f32
    %456 = vector.broadcast %cst_225 : f32 to vector<8x128xf32>
    %457 = arith.addf %456, %455 : vector<8x128xf32>
    %458 = arith.divf %456, %457 : vector<8x128xf32>
    %459 = arith.mulf %450, %438 : vector<8x128xf32>
    %460 = arith.mulf %444, %452 : vector<8x128xf32>
    %461 = arith.addf %459, %460 : vector<8x128xf32>
    %462 = math.tanh %461 : vector<8x128xf32>
    %463 = arith.mulf %458, %462 : vector<8x128xf32>
    %c0_226 = arith.constant 0 : index
    %c0_227 = arith.constant 0 : index
    %c0_228 = arith.constant 0 : index
    %464 = vector.load %arg10[%c0_226, %c0_227, %c0_228] : memref<2x8x128xf32, #tpu.memory_space<vmem>>, vector<1x8x128xf32>
    %465 = vector.shape_cast %464 : vector<1x8x128xf32> to vector<8x128xf32>
    %466 = vector.shape_cast %463 : vector<8x128xf32> to vector<1x8x128xf32>
    tpu.vector_store %arg10[%c0_226, %c0_227, %c0_228], %466 {strides = array<i32>} : memref<2x8x128xf32, #tpu.memory_space<vmem>>, vector<1x8x128xf32>,
    %c0_229 = arith.constant 0 : index
    %c0_230 = arith.constant 0 : index
    %c0_231 = arith.constant 0 : index
    %467 = vector.load %arg11[%c0_229, %c0_230, %c0_231] : memref<2x8x128xf32, #tpu.memory_space<vmem>>, vector<1x8x128xf32>
    %468 = vector.shape_cast %467 : vector<1x8x128xf32> to vector<8x128xf32>
    %469 = vector.shape_cast %461 : vector<8x128xf32> to vector<1x8x128xf32>
    tpu.vector_store %arg11[%c0_229, %c0_230, %c0_231], %469 {strides = array<i32>} : memref<2x8x128xf32, #tpu.memory_space<vmem>>, vector<1x8x128xf32>,
    %c1_232 = arith.constant 1 : index
    %c0_233 = arith.constant 0 : index
    %c0_234 = arith.constant 0 : index
    %470 = vector.load %arg10[%c1_232, %c0_233, %c0_234] : memref<2x8x128xf32, #tpu.memory_space<vmem>>, vector<1x8x128xf32>
    %471 = vector.shape_cast %470 : vector<1x8x128xf32> to vector<8x128xf32>
    %472 = tpu.concatenate %463, %471 in 1 : vector<8x128xf32>, vector<8x128xf32> -> vector<8x256xf32>
    %473 = arith.truncf %472 : vector<8x256xf32> to vector<8x256xbf16>
    %c0_235 = arith.constant 0 : index
    %c0_236 = arith.constant 0 : index
    %c0_237 = arith.constant 0 : index
    %474 = vector.load %arg5[%c0_235, %c0_236, %c0_237] : memref<1x256x512xbf16, #tpu.memory_space<vmem>>, vector<1x256x512xbf16>
    %475 = vector.shape_cast %474 : vector<1x256x512xbf16> to vector<256x512xbf16>
    %cst_238 = arith.constant dense<0.000000e+00> : vector<8x512xf32>
    %476 = tpu.matmul %473, %475, %cst_238 {dimension_numbers = #tpu.dot_dimension_numbers<[1], [0], [0], [1], [0, 0, 1, 1], [], []>} : vector<8x256xbf16>, vector<256x512xbf16>, vector<8x512xf32> -> vector<8x512xf32>
    %c0_239 = arith.constant 0 : index
    %c0_240 = arith.constant 0 : index
    %c0_241 = arith.constant 0 : index
    %477 = vector.load %arg6[%c0_239, %c0_240, %c0_241] : memref<1x1x512xf32, #tpu.memory_space<vmem>>, vector<1x1x512xf32>
    %478 = vector.shape_cast %477 : vector<1x1x512xf32> to vector<1x512xf32>
    %479 = vector.broadcast %478 : vector<1x512xf32> to vector<8x512xf32>
    %480 = arith.addf %476, %479 : vector<8x512xf32>
    %c1_242 = arith.constant 1 : index
    %c0_243 = arith.constant 0 : index
    %c0_244 = arith.constant 0 : index
    %481 = vector.load %arg11[%c1_242, %c0_243, %c0_244] : memref<2x8x128xf32, #tpu.memory_space<vmem>>, vector<1x8x128xf32>
    %482 = vector.shape_cast %481 : vector<1x8x128xf32> to vector<8x128xf32>
    %483 = vector.extract_strided_slice %480 {offsets = [0, 0], sizes = [8, 128], strides = [1, 1]} : vector<8x512xf32> to vector<8x128xf32>
    %484 = arith.negf %483 : vector<8x128xf32>
    %485 = math.exp %484 : vector<8x128xf32>
    %cst_245 = arith.constant 1.000000e+00 : f32
    %486 = vector.broadcast %cst_245 : f32 to vector<8x128xf32>
    %487 = arith.addf %486, %485 : vector<8x128xf32>
    %488 = arith.divf %486, %487 : vector<8x128xf32>
    %489 = vector.extract_strided_slice %480 {offsets = [0, 128], sizes = [8, 128], strides = [1, 1]} : vector<8x512xf32> to vector<8x128xf32>
    %490 = arith.negf %489 : vector<8x128xf32>
    %491 = math.exp %490 : vector<8x128xf32>
    %cst_246 = arith.constant 1.000000e+00 : f32
    %492 = vector.broadcast %cst_246 : f32 to vector<8x128xf32>
    %493 = arith.addf %492, %491 : vector<8x128xf32>
    %494 = arith.divf %492, %493 : vector<8x128xf32>
    %495 = vector.extract_strided_slice %480 {offsets = [0, 256], sizes = [8, 128], strides = [1, 1]} : vector<8x512xf32> to vector<8x128xf32>
    %496 = math.tanh %495 : vector<8x128xf32>
    %497 = vector.extract_strided_slice %480 {offsets = [0, 384], sizes = [8, 128], strides = [1, 1]} : vector<8x512xf32> to vector<8x128xf32>
    %498 = arith.negf %497 : vector<8x128xf32>
    %499 = math.exp %498 : vector<8x128xf32>
    %cst_247 = arith.constant 1.000000e+00 : f32
    %500 = vector.broadcast %cst_247 : f32 to vector<8x128xf32>
    %501 = arith.addf %500, %499 : vector<8x128xf32>
    %502 = arith.divf %500, %501 : vector<8x128xf32>
    %503 = arith.mulf %494, %482 : vector<8x128xf32>
    %504 = arith.mulf %488, %496 : vector<8x128xf32>
    %505 = arith.addf %503, %504 : vector<8x128xf32>
    %506 = math.tanh %505 : vector<8x128xf32>
    %507 = arith.mulf %502, %506 : vector<8x128xf32>
    %c1_248 = arith.constant 1 : index
    %c0_249 = arith.constant 0 : index
    %c0_250 = arith.constant 0 : index
    %508 = vector.load %arg10[%c1_248, %c0_249, %c0_250] : memref<2x8x128xf32, #tpu.memory_space<vmem>>, vector<1x8x128xf32>
    %509 = vector.shape_cast %508 : vector<1x8x128xf32> to vector<8x128xf32>
    %510 = vector.shape_cast %507 : vector<8x128xf32> to vector<1x8x128xf32>
    tpu.vector_store %arg10[%c1_248, %c0_249, %c0_250], %510 {strides = array<i32>} : memref<2x8x128xf32, #tpu.memory_space<vmem>>, vector<1x8x128xf32>,
    %c1_251 = arith.constant 1 : index
    %c0_252 = arith.constant 0 : index
    %c0_253 = arith.constant 0 : index
    %511 = vector.load %arg11[%c1_251, %c0_252, %c0_253] : memref<2x8x128xf32, #tpu.memory_space<vmem>>, vector<1x8x128xf32>
    %512 = vector.shape_cast %511 : vector<1x8x128xf32> to vector<8x128xf32>
    %513 = vector.shape_cast %505 : vector<8x128xf32> to vector<1x8x128xf32>
    tpu.vector_store %arg11[%c1_251, %c0_252, %c0_253], %513 {strides = array<i32>} : memref<2x8x128xf32, #tpu.memory_space<vmem>>, vector<1x8x128xf32>,
    %c48 = arith.constant 48 : index
    %c0_254 = arith.constant 0 : index
    %514 = vector.load %arg12[%c48, %c0_254] : memref<64x512xf32, #tpu.memory_space<vmem>>, vector<8x512xf32>
    %c0_255 = arith.constant 0 : index
    %c0_256 = arith.constant 0 : index
    %c0_257 = arith.constant 0 : index
    %515 = vector.load %arg10[%c0_255, %c0_256, %c0_257] : memref<2x8x128xf32, #tpu.memory_space<vmem>>, vector<1x8x128xf32>
    %516 = vector.shape_cast %515 : vector<1x8x128xf32> to vector<8x128xf32>
    %517 = arith.truncf %516 : vector<8x128xf32> to vector<8x128xbf16>
    %c0_258 = arith.constant 0 : index
    %c0_259 = arith.constant 0 : index
    %518 = vector.load %arg3[%c0_258, %c0_259] : memref<128x512xbf16, #tpu.memory_space<vmem>>, vector<128x512xbf16>
    %cst_260 = arith.constant dense<0.000000e+00> : vector<8x512xf32>
    %519 = tpu.matmul %517, %518, %cst_260 {dimension_numbers = #tpu.dot_dimension_numbers<[1], [0], [0], [1], [0, 0, 1, 1], [], []>} : vector<8x128xbf16>, vector<128x512xbf16>, vector<8x512xf32> -> vector<8x512xf32>
    %520 = arith.addf %514, %519 : vector<8x512xf32>
    %c0_261 = arith.constant 0 : index
    %c0_262 = arith.constant 0 : index
    %c0_263 = arith.constant 0 : index
    %521 = vector.load %arg11[%c0_261, %c0_262, %c0_263] : memref<2x8x128xf32, #tpu.memory_space<vmem>>, vector<1x8x128xf32>
    %522 = vector.shape_cast %521 : vector<1x8x128xf32> to vector<8x128xf32>
    %523 = vector.extract_strided_slice %520 {offsets = [0, 0], sizes = [8, 128], strides = [1, 1]} : vector<8x512xf32> to vector<8x128xf32>
    %524 = arith.negf %523 : vector<8x128xf32>
    %525 = math.exp %524 : vector<8x128xf32>
    %cst_264 = arith.constant 1.000000e+00 : f32
    %526 = vector.broadcast %cst_264 : f32 to vector<8x128xf32>
    %527 = arith.addf %526, %525 : vector<8x128xf32>
    %528 = arith.divf %526, %527 : vector<8x128xf32>
    %529 = vector.extract_strided_slice %520 {offsets = [0, 128], sizes = [8, 128], strides = [1, 1]} : vector<8x512xf32> to vector<8x128xf32>
    %530 = arith.negf %529 : vector<8x128xf32>
    %531 = math.exp %530 : vector<8x128xf32>
    %cst_265 = arith.constant 1.000000e+00 : f32
    %532 = vector.broadcast %cst_265 : f32 to vector<8x128xf32>
    %533 = arith.addf %532, %531 : vector<8x128xf32>
    %534 = arith.divf %532, %533 : vector<8x128xf32>
    %535 = vector.extract_strided_slice %520 {offsets = [0, 256], sizes = [8, 128], strides = [1, 1]} : vector<8x512xf32> to vector<8x128xf32>
    %536 = math.tanh %535 : vector<8x128xf32>
    %537 = vector.extract_strided_slice %520 {offsets = [0, 384], sizes = [8, 128], strides = [1, 1]} : vector<8x512xf32> to vector<8x128xf32>
    %538 = arith.negf %537 : vector<8x128xf32>
    %539 = math.exp %538 : vector<8x128xf32>
    %cst_266 = arith.constant 1.000000e+00 : f32
    %540 = vector.broadcast %cst_266 : f32 to vector<8x128xf32>
    %541 = arith.addf %540, %539 : vector<8x128xf32>
    %542 = arith.divf %540, %541 : vector<8x128xf32>
    %543 = arith.mulf %534, %522 : vector<8x128xf32>
    %544 = arith.mulf %528, %536 : vector<8x128xf32>
    %545 = arith.addf %543, %544 : vector<8x128xf32>
    %546 = math.tanh %545 : vector<8x128xf32>
    %547 = arith.mulf %542, %546 : vector<8x128xf32>
    %c0_267 = arith.constant 0 : index
    %c0_268 = arith.constant 0 : index
    %c0_269 = arith.constant 0 : index
    %548 = vector.load %arg10[%c0_267, %c0_268, %c0_269] : memref<2x8x128xf32, #tpu.memory_space<vmem>>, vector<1x8x128xf32>
    %549 = vector.shape_cast %548 : vector<1x8x128xf32> to vector<8x128xf32>
    %550 = vector.shape_cast %547 : vector<8x128xf32> to vector<1x8x128xf32>
    tpu.vector_store %arg10[%c0_267, %c0_268, %c0_269], %550 {strides = array<i32>} : memref<2x8x128xf32, #tpu.memory_space<vmem>>, vector<1x8x128xf32>,
    %c0_270 = arith.constant 0 : index
    %c0_271 = arith.constant 0 : index
    %c0_272 = arith.constant 0 : index
    %551 = vector.load %arg11[%c0_270, %c0_271, %c0_272] : memref<2x8x128xf32, #tpu.memory_space<vmem>>, vector<1x8x128xf32>
    %552 = vector.shape_cast %551 : vector<1x8x128xf32> to vector<8x128xf32>
    %553 = vector.shape_cast %545 : vector<8x128xf32> to vector<1x8x128xf32>
    tpu.vector_store %arg11[%c0_270, %c0_271, %c0_272], %553 {strides = array<i32>} : memref<2x8x128xf32, #tpu.memory_space<vmem>>, vector<1x8x128xf32>,
    %c1_273 = arith.constant 1 : index
    %c0_274 = arith.constant 0 : index
    %c0_275 = arith.constant 0 : index
    %554 = vector.load %arg10[%c1_273, %c0_274, %c0_275] : memref<2x8x128xf32, #tpu.memory_space<vmem>>, vector<1x8x128xf32>
    %555 = vector.shape_cast %554 : vector<1x8x128xf32> to vector<8x128xf32>
    %556 = tpu.concatenate %547, %555 in 1 : vector<8x128xf32>, vector<8x128xf32> -> vector<8x256xf32>
    %557 = arith.truncf %556 : vector<8x256xf32> to vector<8x256xbf16>
    %c0_276 = arith.constant 0 : index
    %c0_277 = arith.constant 0 : index
    %c0_278 = arith.constant 0 : index
    %558 = vector.load %arg5[%c0_276, %c0_277, %c0_278] : memref<1x256x512xbf16, #tpu.memory_space<vmem>>, vector<1x256x512xbf16>
    %559 = vector.shape_cast %558 : vector<1x256x512xbf16> to vector<256x512xbf16>
    %cst_279 = arith.constant dense<0.000000e+00> : vector<8x512xf32>
    %560 = tpu.matmul %557, %559, %cst_279 {dimension_numbers = #tpu.dot_dimension_numbers<[1], [0], [0], [1], [0, 0, 1, 1], [], []>} : vector<8x256xbf16>, vector<256x512xbf16>, vector<8x512xf32> -> vector<8x512xf32>
    %c0_280 = arith.constant 0 : index
    %c0_281 = arith.constant 0 : index
    %c0_282 = arith.constant 0 : index
    %561 = vector.load %arg6[%c0_280, %c0_281, %c0_282] : memref<1x1x512xf32, #tpu.memory_space<vmem>>, vector<1x1x512xf32>
    %562 = vector.shape_cast %561 : vector<1x1x512xf32> to vector<1x512xf32>
    %563 = vector.broadcast %562 : vector<1x512xf32> to vector<8x512xf32>
    %564 = arith.addf %560, %563 : vector<8x512xf32>
    %c1_283 = arith.constant 1 : index
    %c0_284 = arith.constant 0 : index
    %c0_285 = arith.constant 0 : index
    %565 = vector.load %arg11[%c1_283, %c0_284, %c0_285] : memref<2x8x128xf32, #tpu.memory_space<vmem>>, vector<1x8x128xf32>
    %566 = vector.shape_cast %565 : vector<1x8x128xf32> to vector<8x128xf32>
    %567 = vector.extract_strided_slice %564 {offsets = [0, 0], sizes = [8, 128], strides = [1, 1]} : vector<8x512xf32> to vector<8x128xf32>
    %568 = arith.negf %567 : vector<8x128xf32>
    %569 = math.exp %568 : vector<8x128xf32>
    %cst_286 = arith.constant 1.000000e+00 : f32
    %570 = vector.broadcast %cst_286 : f32 to vector<8x128xf32>
    %571 = arith.addf %570, %569 : vector<8x128xf32>
    %572 = arith.divf %570, %571 : vector<8x128xf32>
    %573 = vector.extract_strided_slice %564 {offsets = [0, 128], sizes = [8, 128], strides = [1, 1]} : vector<8x512xf32> to vector<8x128xf32>
    %574 = arith.negf %573 : vector<8x128xf32>
    %575 = math.exp %574 : vector<8x128xf32>
    %cst_287 = arith.constant 1.000000e+00 : f32
    %576 = vector.broadcast %cst_287 : f32 to vector<8x128xf32>
    %577 = arith.addf %576, %575 : vector<8x128xf32>
    %578 = arith.divf %576, %577 : vector<8x128xf32>
    %579 = vector.extract_strided_slice %564 {offsets = [0, 256], sizes = [8, 128], strides = [1, 1]} : vector<8x512xf32> to vector<8x128xf32>
    %580 = math.tanh %579 : vector<8x128xf32>
    %581 = vector.extract_strided_slice %564 {offsets = [0, 384], sizes = [8, 128], strides = [1, 1]} : vector<8x512xf32> to vector<8x128xf32>
    %582 = arith.negf %581 : vector<8x128xf32>
    %583 = math.exp %582 : vector<8x128xf32>
    %cst_288 = arith.constant 1.000000e+00 : f32
    %584 = vector.broadcast %cst_288 : f32 to vector<8x128xf32>
    %585 = arith.addf %584, %583 : vector<8x128xf32>
    %586 = arith.divf %584, %585 : vector<8x128xf32>
    %587 = arith.mulf %578, %566 : vector<8x128xf32>
    %588 = arith.mulf %572, %580 : vector<8x128xf32>
    %589 = arith.addf %587, %588 : vector<8x128xf32>
    %590 = math.tanh %589 : vector<8x128xf32>
    %591 = arith.mulf %586, %590 : vector<8x128xf32>
    %c1_289 = arith.constant 1 : index
    %c0_290 = arith.constant 0 : index
    %c0_291 = arith.constant 0 : index
    %592 = vector.load %arg10[%c1_289, %c0_290, %c0_291] : memref<2x8x128xf32, #tpu.memory_space<vmem>>, vector<1x8x128xf32>
    %593 = vector.shape_cast %592 : vector<1x8x128xf32> to vector<8x128xf32>
    %594 = vector.shape_cast %591 : vector<8x128xf32> to vector<1x8x128xf32>
    tpu.vector_store %arg10[%c1_289, %c0_290, %c0_291], %594 {strides = array<i32>} : memref<2x8x128xf32, #tpu.memory_space<vmem>>, vector<1x8x128xf32>,
    %c1_292 = arith.constant 1 : index
    %c0_293 = arith.constant 0 : index
    %c0_294 = arith.constant 0 : index
    %595 = vector.load %arg11[%c1_292, %c0_293, %c0_294] : memref<2x8x128xf32, #tpu.memory_space<vmem>>, vector<1x8x128xf32>
    %596 = vector.shape_cast %595 : vector<1x8x128xf32> to vector<8x128xf32>
    %597 = vector.shape_cast %589 : vector<8x128xf32> to vector<1x8x128xf32>
    tpu.vector_store %arg11[%c1_292, %c0_293, %c0_294], %597 {strides = array<i32>} : memref<2x8x128xf32, #tpu.memory_space<vmem>>, vector<1x8x128xf32>,
    %c56 = arith.constant 56 : index
    %c0_295 = arith.constant 0 : index
    %598 = vector.load %arg12[%c56, %c0_295] : memref<64x512xf32, #tpu.memory_space<vmem>>, vector<8x512xf32>
    %c0_296 = arith.constant 0 : index
    %c0_297 = arith.constant 0 : index
    %c0_298 = arith.constant 0 : index
    %599 = vector.load %arg10[%c0_296, %c0_297, %c0_298] : memref<2x8x128xf32, #tpu.memory_space<vmem>>, vector<1x8x128xf32>
    %600 = vector.shape_cast %599 : vector<1x8x128xf32> to vector<8x128xf32>
    %601 = arith.truncf %600 : vector<8x128xf32> to vector<8x128xbf16>
    %c0_299 = arith.constant 0 : index
    %c0_300 = arith.constant 0 : index
    %602 = vector.load %arg3[%c0_299, %c0_300] : memref<128x512xbf16, #tpu.memory_space<vmem>>, vector<128x512xbf16>
    %cst_301 = arith.constant dense<0.000000e+00> : vector<8x512xf32>
    %603 = tpu.matmul %601, %602, %cst_301 {dimension_numbers = #tpu.dot_dimension_numbers<[1], [0], [0], [1], [0, 0, 1, 1], [], []>} : vector<8x128xbf16>, vector<128x512xbf16>, vector<8x512xf32> -> vector<8x512xf32>
    %604 = arith.addf %598, %603 : vector<8x512xf32>
    %c0_302 = arith.constant 0 : index
    %c0_303 = arith.constant 0 : index
    %c0_304 = arith.constant 0 : index
    %605 = vector.load %arg11[%c0_302, %c0_303, %c0_304] : memref<2x8x128xf32, #tpu.memory_space<vmem>>, vector<1x8x128xf32>
    %606 = vector.shape_cast %605 : vector<1x8x128xf32> to vector<8x128xf32>
    %607 = vector.extract_strided_slice %604 {offsets = [0, 0], sizes = [8, 128], strides = [1, 1]} : vector<8x512xf32> to vector<8x128xf32>
    %608 = arith.negf %607 : vector<8x128xf32>
    %609 = math.exp %608 : vector<8x128xf32>
    %cst_305 = arith.constant 1.000000e+00 : f32
    %610 = vector.broadcast %cst_305 : f32 to vector<8x128xf32>
    %611 = arith.addf %610, %609 : vector<8x128xf32>
    %612 = arith.divf %610, %611 : vector<8x128xf32>
    %613 = vector.extract_strided_slice %604 {offsets = [0, 128], sizes = [8, 128], strides = [1, 1]} : vector<8x512xf32> to vector<8x128xf32>
    %614 = arith.negf %613 : vector<8x128xf32>
    %615 = math.exp %614 : vector<8x128xf32>
    %cst_306 = arith.constant 1.000000e+00 : f32
    %616 = vector.broadcast %cst_306 : f32 to vector<8x128xf32>
    %617 = arith.addf %616, %615 : vector<8x128xf32>
    %618 = arith.divf %616, %617 : vector<8x128xf32>
    %619 = vector.extract_strided_slice %604 {offsets = [0, 256], sizes = [8, 128], strides = [1, 1]} : vector<8x512xf32> to vector<8x128xf32>
    %620 = math.tanh %619 : vector<8x128xf32>
    %621 = vector.extract_strided_slice %604 {offsets = [0, 384], sizes = [8, 128], strides = [1, 1]} : vector<8x512xf32> to vector<8x128xf32>
    %622 = arith.negf %621 : vector<8x128xf32>
    %623 = math.exp %622 : vector<8x128xf32>
    %cst_307 = arith.constant 1.000000e+00 : f32
    %624 = vector.broadcast %cst_307 : f32 to vector<8x128xf32>
    %625 = arith.addf %624, %623 : vector<8x128xf32>
    %626 = arith.divf %624, %625 : vector<8x128xf32>
    %627 = arith.mulf %618, %606 : vector<8x128xf32>
    %628 = arith.mulf %612, %620 : vector<8x128xf32>
    %629 = arith.addf %627, %628 : vector<8x128xf32>
    %630 = math.tanh %629 : vector<8x128xf32>
    %631 = arith.mulf %626, %630 : vector<8x128xf32>
    %c0_308 = arith.constant 0 : index
    %c0_309 = arith.constant 0 : index
    %c0_310 = arith.constant 0 : index
    %632 = vector.load %arg10[%c0_308, %c0_309, %c0_310] : memref<2x8x128xf32, #tpu.memory_space<vmem>>, vector<1x8x128xf32>
    %633 = vector.shape_cast %632 : vector<1x8x128xf32> to vector<8x128xf32>
    %634 = vector.shape_cast %631 : vector<8x128xf32> to vector<1x8x128xf32>
    tpu.vector_store %arg10[%c0_308, %c0_309, %c0_310], %634 {strides = array<i32>} : memref<2x8x128xf32, #tpu.memory_space<vmem>>, vector<1x8x128xf32>,
    %c0_311 = arith.constant 0 : index
    %c0_312 = arith.constant 0 : index
    %c0_313 = arith.constant 0 : index
    %635 = vector.load %arg11[%c0_311, %c0_312, %c0_313] : memref<2x8x128xf32, #tpu.memory_space<vmem>>, vector<1x8x128xf32>
    %636 = vector.shape_cast %635 : vector<1x8x128xf32> to vector<8x128xf32>
    %637 = vector.shape_cast %629 : vector<8x128xf32> to vector<1x8x128xf32>
    tpu.vector_store %arg11[%c0_311, %c0_312, %c0_313], %637 {strides = array<i32>} : memref<2x8x128xf32, #tpu.memory_space<vmem>>, vector<1x8x128xf32>,
    %c1_314 = arith.constant 1 : index
    %c0_315 = arith.constant 0 : index
    %c0_316 = arith.constant 0 : index
    %638 = vector.load %arg10[%c1_314, %c0_315, %c0_316] : memref<2x8x128xf32, #tpu.memory_space<vmem>>, vector<1x8x128xf32>
    %639 = vector.shape_cast %638 : vector<1x8x128xf32> to vector<8x128xf32>
    %640 = tpu.concatenate %631, %639 in 1 : vector<8x128xf32>, vector<8x128xf32> -> vector<8x256xf32>
    %641 = arith.truncf %640 : vector<8x256xf32> to vector<8x256xbf16>
    %c0_317 = arith.constant 0 : index
    %c0_318 = arith.constant 0 : index
    %c0_319 = arith.constant 0 : index
    %642 = vector.load %arg5[%c0_317, %c0_318, %c0_319] : memref<1x256x512xbf16, #tpu.memory_space<vmem>>, vector<1x256x512xbf16>
    %643 = vector.shape_cast %642 : vector<1x256x512xbf16> to vector<256x512xbf16>
    %cst_320 = arith.constant dense<0.000000e+00> : vector<8x512xf32>
    %644 = tpu.matmul %641, %643, %cst_320 {dimension_numbers = #tpu.dot_dimension_numbers<[1], [0], [0], [1], [0, 0, 1, 1], [], []>} : vector<8x256xbf16>, vector<256x512xbf16>, vector<8x512xf32> -> vector<8x512xf32>
    %c0_321 = arith.constant 0 : index
    %c0_322 = arith.constant 0 : index
    %c0_323 = arith.constant 0 : index
    %645 = vector.load %arg6[%c0_321, %c0_322, %c0_323] : memref<1x1x512xf32, #tpu.memory_space<vmem>>, vector<1x1x512xf32>
    %646 = vector.shape_cast %645 : vector<1x1x512xf32> to vector<1x512xf32>
    %647 = vector.broadcast %646 : vector<1x512xf32> to vector<8x512xf32>
    %648 = arith.addf %644, %647 : vector<8x512xf32>
    %c1_324 = arith.constant 1 : index
    %c0_325 = arith.constant 0 : index
    %c0_326 = arith.constant 0 : index
    %649 = vector.load %arg11[%c1_324, %c0_325, %c0_326] : memref<2x8x128xf32, #tpu.memory_space<vmem>>, vector<1x8x128xf32>
    %650 = vector.shape_cast %649 : vector<1x8x128xf32> to vector<8x128xf32>
    %651 = vector.extract_strided_slice %648 {offsets = [0, 0], sizes = [8, 128], strides = [1, 1]} : vector<8x512xf32> to vector<8x128xf32>
    %652 = arith.negf %651 : vector<8x128xf32>
    %653 = math.exp %652 : vector<8x128xf32>
    %cst_327 = arith.constant 1.000000e+00 : f32
    %654 = vector.broadcast %cst_327 : f32 to vector<8x128xf32>
    %655 = arith.addf %654, %653 : vector<8x128xf32>
    %656 = arith.divf %654, %655 : vector<8x128xf32>
    %657 = vector.extract_strided_slice %648 {offsets = [0, 128], sizes = [8, 128], strides = [1, 1]} : vector<8x512xf32> to vector<8x128xf32>
    %658 = arith.negf %657 : vector<8x128xf32>
    %659 = math.exp %658 : vector<8x128xf32>
    %cst_328 = arith.constant 1.000000e+00 : f32
    %660 = vector.broadcast %cst_328 : f32 to vector<8x128xf32>
    %661 = arith.addf %660, %659 : vector<8x128xf32>
    %662 = arith.divf %660, %661 : vector<8x128xf32>
    %663 = vector.extract_strided_slice %648 {offsets = [0, 256], sizes = [8, 128], strides = [1, 1]} : vector<8x512xf32> to vector<8x128xf32>
    %664 = math.tanh %663 : vector<8x128xf32>
    %665 = vector.extract_strided_slice %648 {offsets = [0, 384], sizes = [8, 128], strides = [1, 1]} : vector<8x512xf32> to vector<8x128xf32>
    %666 = arith.negf %665 : vector<8x128xf32>
    %667 = math.exp %666 : vector<8x128xf32>
    %cst_329 = arith.constant 1.000000e+00 : f32
    %668 = vector.broadcast %cst_329 : f32 to vector<8x128xf32>
    %669 = arith.addf %668, %667 : vector<8x128xf32>
    %670 = arith.divf %668, %669 : vector<8x128xf32>
    %671 = arith.mulf %662, %650 : vector<8x128xf32>
    %672 = arith.mulf %656, %664 : vector<8x128xf32>
    %673 = arith.addf %671, %672 : vector<8x128xf32>
    %674 = math.tanh %673 : vector<8x128xf32>
    %675 = arith.mulf %670, %674 : vector<8x128xf32>
    %c1_330 = arith.constant 1 : index
    %c0_331 = arith.constant 0 : index
    %c0_332 = arith.constant 0 : index
    %676 = vector.load %arg10[%c1_330, %c0_331, %c0_332] : memref<2x8x128xf32, #tpu.memory_space<vmem>>, vector<1x8x128xf32>
    %677 = vector.shape_cast %676 : vector<1x8x128xf32> to vector<8x128xf32>
    %678 = vector.shape_cast %675 : vector<8x128xf32> to vector<1x8x128xf32>
    tpu.vector_store %arg10[%c1_330, %c0_331, %c0_332], %678 {strides = array<i32>} : memref<2x8x128xf32, #tpu.memory_space<vmem>>, vector<1x8x128xf32>,
    %c1_333 = arith.constant 1 : index
    %c0_334 = arith.constant 0 : index
    %c0_335 = arith.constant 0 : index
    %679 = vector.load %arg11[%c1_333, %c0_334, %c0_335] : memref<2x8x128xf32, #tpu.memory_space<vmem>>, vector<1x8x128xf32>
    %680 = vector.shape_cast %679 : vector<1x8x128xf32> to vector<8x128xf32>
    %681 = vector.shape_cast %673 : vector<8x128xf32> to vector<1x8x128xf32>
    tpu.vector_store %arg11[%c1_333, %c0_334, %c0_335], %681 {strides = array<i32>} : memref<2x8x128xf32, #tpu.memory_space<vmem>>, vector<1x8x128xf32>,
    %c0_i32_336 = arith.constant 0 : i32
    %682 = arith.cmpi eq, %arg0, %c0_i32_336 : i32
    %683 = arith.extui %682 : i1 to i32
    %c0_i32_337 = arith.constant 0 : i32
    %684 = arith.cmpi ne, %683, %c0_i32_337 : i32
    scf.if %684 {
      %c1_338 = arith.constant 1 : index
      %c0_339 = arith.constant 0 : index
      %c0_340 = arith.constant 0 : index
      %685 = vector.load %arg10[%c1_338, %c0_339, %c0_340] : memref<2x8x128xf32, #tpu.memory_space<vmem>>, vector<1x8x128xf32>
      %686 = vector.shape_cast %685 : vector<1x8x128xf32> to vector<8x128xf32>
      %687 = arith.truncf %686 : vector<8x128xf32> to vector<8x128xbf16>
      %c0_341 = arith.constant 0 : index
      %c0_342 = arith.constant 0 : index
      %688 = vector.load %arg7[%c0_341, %c0_342] : memref<128x128xbf16, #tpu.memory_space<vmem>>, vector<128x128xbf16>
      %cst_343 = arith.constant dense<0.000000e+00> : vector<8x128xf32>
      %689 = tpu.matmul %687, %688, %cst_343 {dimension_numbers = #tpu.dot_dimension_numbers<[1], [0], [0], [1], [0, 0, 1, 1], [], []>} : vector<8x128xbf16>, vector<128x128xbf16>, vector<8x128xf32> -> vector<8x128xf32>
      %c0_344 = arith.constant 0 : index
      %c0_345 = arith.constant 0 : index
      %690 = vector.load %arg8[%c0_344, %c0_345] : memref<1x128xf32, #tpu.memory_space<vmem>>, vector<1x128xf32>
      %691 = vector.broadcast %690 : vector<1x128xf32> to vector<8x128xf32>
      %692 = arith.addf %689, %691 : vector<8x128xf32>
      %c0_346 = arith.constant 0 : index
      %c0_347 = arith.constant 0 : index
      %693 = vector.load %arg9[%c0_346, %c0_347] : memref<8x128xf32, #tpu.memory_space<vmem>>, vector<8x128xf32>
      tpu.vector_store %arg9[%c0_346, %c0_347], %692 {strides = array<i32>} : memref<8x128xf32, #tpu.memory_space<vmem>>, vector<8x128xf32>,
    } else {
    }
    return
  }
  func.func @transform_0(%arg0: i32) -> (i32, i32) {
    %c0_i32 = arith.constant 0 : i32
    %c0_i32_0 = arith.constant 0 : i32
    return %arg0, %c0_i32 : i32, i32
  }
  func.func @transform_1(%arg0: i32) -> (i32, i32) {
    %c0_i32 = arith.constant 0 : i32
    %c0_i32_0 = arith.constant 0 : i32
    %c0_i32_1 = arith.constant 0 : i32
    return %c0_i32, %c0_i32_0 : i32, i32
  }
  func.func @transform_2(%arg0: i32) -> (i32, i32) {
    %c0_i32 = arith.constant 0 : i32
    %c0_i32_0 = arith.constant 0 : i32
    %c0_i32_1 = arith.constant 0 : i32
    return %c0_i32, %c0_i32_0 : i32, i32
  }
  func.func @transform_3(%arg0: i32) -> (i32, i32) {
    %c0_i32 = arith.constant 0 : i32
    %c0_i32_0 = arith.constant 0 : i32
    %c0_i32_1 = arith.constant 0 : i32
    return %c0_i32, %c0_i32_0 : i32, i32
  }
  func.func @transform_4(%arg0: i32) -> (i32, i32, i32) {
    %c0_i32 = arith.constant 0 : i32
    %c0_i32_0 = arith.constant 0 : i32
    %c0_i32_1 = arith.constant 0 : i32
    %c0_i32_2 = arith.constant 0 : i32
    return %c0_i32, %c0_i32_0, %c0_i32_1 : i32, i32, i32
  }
  func.func @transform_5(%arg0: i32) -> (i32, i32, i32) {
    %c0_i32 = arith.constant 0 : i32
    %c0_i32_0 = arith.constant 0 : i32
    %c0_i32_1 = arith.constant 0 : i32
    %c0_i32_2 = arith.constant 0 : i32
    return %c0_i32, %c0_i32_0, %c0_i32_1 : i32, i32, i32
  }
  func.func @transform_6(%arg0: i32) -> (i32, i32) {
    %c0_i32 = arith.constant 0 : i32
    %c0_i32_0 = arith.constant 0 : i32
    %c0_i32_1 = arith.constant 0 : i32
    return %c0_i32, %c0_i32_0 : i32, i32
  }
  func.func @transform_7(%arg0: i32) -> (i32, i32) {
    %c0_i32 = arith.constant 0 : i32
    %c0_i32_0 = arith.constant 0 : i32
    %c0_i32_1 = arith.constant 0 : i32
    return %c0_i32, %c0_i32_0 : i32, i32
  }
  func.func @transform_8(%arg0: i32) -> (i32, i32) {
    %c0_i32 = arith.constant 0 : i32
    %c0_i32_0 = arith.constant 0 : i32
    %c0_i32_1 = arith.constant 0 : i32
    return %c0_i32, %c0_i32_0 : i32, i32
  }
}

</mosaic_0001>

<llo_original>
// kernel: tpu_custom_call.1
$region0: #{tpu_custom_call.1}
  #allocation0 [shape = 'u32[]', space=smem, size = 0x4, offset = 0x4, fixed_abs, tag = 'smem constant byte address 0x4 - core index']
  #allocation1 [shape = 'u32[144,128]{1,0:T(1,128)}', space=vmem, size = 0x12000, scoped, tag = 'internal scratch']
  #allocation2 [shape = 'f32[2,8,128]{2,1,0:T(8,128)}', space=vmem, size = 0x2000, scoped, tag = 'scratch operand']
  #allocation3 [shape = 'f32[2,8,128]{2,1,0:T(8,128)}', space=vmem, size = 0x2000, scoped, tag = 'scratch operand']
  #allocation4 [shape = 'f32[64,512]{1,0:T(8,128)}', space=vmem, size = 0x20000, scoped, tag = 'scratch operand']
  %s0 = inlined_call_operand.vmem [shape: bf16[64,8], index: 0, kind: input, shape index: {}]
  %s1 = inlined_call_operand.vmem [shape: bf16[8,512], index: 1, kind: input, shape index: {}]
  %s2 = inlined_call_operand.hbm [shape: bf16[128,512], index: 2, kind: input, shape index: {}]
  %s3 = inlined_call_operand.vmem [shape: f32[1,512], index: 3, kind: input, shape index: {}]
  %s4 = inlined_call_operand.hbm [shape: bf16[1,256,512], index: 4, kind: input, shape index: {}]
  %s5 = inlined_call_operand.vmem [shape: f32[1,1,512], index: 5, kind: input, shape index: {}]
  %s6 = inlined_call_operand.hbm [shape: bf16[128,128], index: 6, kind: input, shape index: {}]
  %s7 = inlined_call_operand.vmem [shape: f32[1,128], index: 7, kind: input, shape index: {}]
  %s8 = inlined_call_operand.hbm [shape: f32[8,128], index: 8, kind: output, shape index: {}]
  %s9 = sld [smem:[#allocation0]]
  $region62: #{tpu_custom_call.1} parent=0
    _
  %s11 = ssub.s32 1, %s9
  %s12 = scalar_select 0, %s11, %s9
  $region1: #{tpu_custom_call.1} parent=0
    #allocation5 [shape = 'u8[131072]{0}', space=vmem, size = 0x20000, scoped, tag = 'input window, operand 2, single buffered']
    #allocation6 [shape = 's32[1]{0}', space=sflag, size = 0x4, scoped, tag = 'scoped memory for tpu_custom_call.1']
    #allocation7 [shape = 's32[1]{0}', space=sflag, size = 0x4, scoped, tag = 'scoped memory for tpu_custom_call.1']
    #allocation8 [shape = 'u8[262144]{0}', space=vmem, size = 0x40000, scoped, tag = 'input window, operand 4, single buffered']
    #allocation9 [shape = 's32[1]{0}', space=sflag, size = 0x4, scoped, tag = 'scoped memory for tpu_custom_call.1']
    #allocation10 [shape = 'u8[32768]{0}', space=vmem, size = 0x8000, scoped, tag = 'input window, operand 6, single buffered']
    #allocation11 [shape = 'u8[4096]{0}', space=vmem, size = 0x1000, scoped, tag = 'output window, operand 0, single buffered']
    %13 = vsyncpa [#allocation6], 0
    %14 = vsyncpa [#allocation9], 0
    %15 = vsyncpa [#allocation7], 0
    // Predicated region
    $region2: #{tpu_custom_call.1} parent=1 // pred_check
      _
    $region3: #{tpu_custom_call.1} parent=1 // pred_check_branch
      %17 = sbr.rel (0) target = $region5
    $region4: #{tpu_custom_call.1} parent=1 // pred_region
      _
    $region5: #{tpu_custom_call.1} parent=1 // pred_fallthru
      _
    // Predicated region
    $region6: #{tpu_custom_call.1} parent=1 // pred_check
      _
    $region7: #{tpu_custom_call.1} parent=1 // pred_check_branch
      %19 = sbr.rel (0) target = $region9
    $region8: #{tpu_custom_call.1} parent=1 // pred_region
      _
    $region9: #{tpu_custom_call.1} parent=1 // pred_fallthru
      _
    // Predicated region
    $region10: #{tpu_custom_call.1} parent=1 // pred_check
      _
    $region11: #{tpu_custom_call.1} parent=1 // pred_check_branch
      %21 = sbr.rel (0) target = $region13
    $region12: #{tpu_custom_call.1} parent=1 // pred_region
      %s23 = ssub.s32 4096, 4096
      %24 = vsyncadd [#allocation6], %s23
      %s25 = sshll.u32 [#allocation5], 4
      %s26 = int_to_ptr.vmem [resolvable:$true] %s25
      %31 = dma.hbm_to_vmem [thread:$0]  %s2, 4096, %s26, [#allocation6], 256, 256, 16
    $region13: #{tpu_custom_call.1} parent=1 // pred_fallthru
      _
    // Predicated region
    $region14: #{tpu_custom_call.1} parent=1 // pred_check
      _
    $region15: #{tpu_custom_call.1} parent=1 // pred_check_branch
      %33 = sbr.rel (0) target = $region17
    $region16: #{tpu_custom_call.1} parent=1 // pred_region
      _
    $region17: #{tpu_custom_call.1} parent=1 // pred_fallthru
      _
    // Predicated region
    $region18: #{tpu_custom_call.1} parent=1 // pred_check
      _
    $region19: #{tpu_custom_call.1} parent=1 // pred_check_branch
      %35 = sbr.rel (0) target = $region21
    $region20: #{tpu_custom_call.1} parent=1 // pred_region
      %s37 = ssub.s32 8192, 8192
      %38 = vsyncadd [#allocation9], %s37
      %s39 = sshll.u32 [#allocation8], 4
      %s40 = int_to_ptr.vmem [resolvable:$true] %s39
      %45 = dma.hbm_to_vmem [thread:$0]  %s4, 8192, %s40, [#allocation9], 256, 256, 16
    $region21: #{tpu_custom_call.1} parent=1 // pred_fallthru
      _
    // Predicated region
    $region22: #{tpu_custom_call.1} parent=1 // pred_check
      _
    $region23: #{tpu_custom_call.1} parent=1 // pred_check_branch
      %47 = sbr.rel (0) target = $region25
    $region24: #{tpu_custom_call.1} parent=1 // pred_region
      _
    $region25: #{tpu_custom_call.1} parent=1 // pred_fallthru
      _
    // Predicated region
    $region26: #{tpu_custom_call.1} parent=1 // pred_check
      _
    $region27: #{tpu_custom_call.1} parent=1 // pred_check_branch
      %49 = sbr.rel (0) target = $region29
    $region28: #{tpu_custom_call.1} parent=1 // pred_region
      %s51 = ssub.s32 1024, 1024
      %52 = vsyncadd [#allocation9], %s51
      %s53 = sshll.u32 [#allocation10], 4
      %s54 = int_to_ptr.vmem [resolvable:$true] %s53
      %59 = dma.hbm_to_vmem [thread:$0]  %s6, 1024, %s54, [#allocation9], 64, 64, 4
    $region29: #{tpu_custom_call.1} parent=1 // pred_fallthru
      _
    // Predicated region
    $region30: #{tpu_custom_call.1} parent=1 // pred_check
      _
    $region31: #{tpu_custom_call.1} parent=1 // pred_check_branch
      %61 = sbr.rel (0) target = $region33
    $region32: #{tpu_custom_call.1} parent=1 // pred_region
      _
    $region33: #{tpu_custom_call.1} parent=1 // pred_fallthru
      _
    // Predicated region
    $region34: #{tpu_custom_call.1} parent=1 // pred_check
      _
    $region35: #{tpu_custom_call.1} parent=1 // pred_check_branch
      %63 = sbr.rel (0) target = $region37
    $region36: #{tpu_custom_call.1} parent=1 // pred_region
      %64 = dma.done [#allocation6], 4096
    $region37: #{tpu_custom_call.1} parent=1 // pred_fallthru
      _
    // Predicated region
    $region38: #{tpu_custom_call.1} parent=1 // pred_check
      _
    $region39: #{tpu_custom_call.1} parent=1 // pred_check_branch
      %66 = sbr.rel (0) target = $region41
    $region40: #{tpu_custom_call.1} parent=1 // pred_region
      %67 = dma.done [#allocation9], 8192
    $region41: #{tpu_custom_call.1} parent=1 // pred_fallthru
      _
    // Predicated region
    $region42: #{tpu_custom_call.1} parent=1 // pred_check
      _
    $region43: #{tpu_custom_call.1} parent=1 // pred_check_branch
      %69 = sbr.rel (0) target = $region45
    $region44: #{tpu_custom_call.1} parent=1 // pred_region
      %70 = dma.done [#allocation9], 1024
    $region45: #{tpu_custom_call.1} parent=1 // pred_fallthru
      _
    %p72 = scmp.eq.s32.totalorder 0, 0
    // Predicated region
    $region46: #{tpu_custom_call.1} parent=1 // pred_check
      %p73 = pneg %p72
    $region47: #{tpu_custom_call.1} parent=1 // pred_check_branch
      %75 = sbr.rel (%p73) target = $region49
    $region48: #{tpu_custom_call.1} parent=1 // pred_region
      %76 = vst [vmem:[#allocation2] sm:$0xff] 0.0
      %77 = vst [vmem:[#allocation2 + $0x8] sm:$0xff] 0.0
      %78 = vst [vmem:[#allocation3] sm:$0xff] 0.0
      %79 = vst [vmem:[#allocation3 + $0x8] sm:$0xff] 0.0
    $region49: #{tpu_custom_call.1} parent=1 // pred_fallthru
      _
    %v80 = vld [vmem:[%s0] sm:$0xf]
    %v81 = vld [vmem:[%s0 + $0x4] sm:$0xf]
    %v82 = vld [vmem:[%s0 + $0x8] sm:$0xf]
    %v83 = vld [vmem:[%s0 + $0xc] sm:$0xf]
    %v84 = vld [vmem:[%s0 + $0x10] sm:$0xf]
    %v85 = vld [vmem:[%s0 + $0x14] sm:$0xf]
    %v86 = vld [vmem:[%s0 + $0x18] sm:$0xf]
    %v87 = vld [vmem:[%s0 + $0x1c] sm:$0xf]
    %v88 = vld [vmem:[%s1] sm:$0xff]
    %v89 = vld [vmem:[%s1 + $0x8] sm:$0xff]
    %v90 = vld [vmem:[%s3] sm:$0xf]
    %v92 = vlaneseq
    %v93 = vshrl.u32 %v92, 7
    %v94 = vsub.s32 0, %v93
    %v95 = vrot.slane %v90, %v94
    %v96 = vlaneseq
    %v97 = vshrl.u32 %v96, 7
    %v98 = vsub.s32 1, %v97
    %v99 = vrot.slane %v90, %v98
    %v100 = vlaneseq
    %v101 = vshrl.u32 %v100, 7
    %v102 = vsub.s32 2, %v101
    %v103 = vrot.slane %v90, %v102
    %v104 = vlaneseq
    %v105 = vshrl.u32 %v104, 7
    %v106 = vsub.s32 3, %v105
    %v107 = vrot.slane %v90, %v106
    %v120 = vunpack.c.l.b16 %v80
    %v121 = vunpack.c.l.b16 %v81
    %v122 = vunpack.c.l.b16 %v82
    %v123 = vunpack.c.l.b16 %v83
    %v124 = vunpack.c.l.b16 %v84
    %v125 = vunpack.c.l.b16 %v85
    %v126 = vunpack.c.l.b16 %v86
    %v127 = vunpack.c.l.b16 %v87
    %v128 = vpack.c.b16 %v121, %v120
    %v129 = vpack.c.b16 %v123, %v122
    %v130 = vpack.c.b16 %v125, %v124
    %v131 = vpack.c.b16 %v127, %v126
    %v134 = vunpack.c.l.b16 %v88
    %v135 = vunpack.c.h.b16 %v88
    %v136 = vunpack.c.l.b16 %v89
    %v137 = vunpack.c.h.b16 %v89
    %v138 = vpack.c.b16 %v134, %v134
    %v139 = vpack.c.b16 %v135, %v135
    %v140 = vpack.c.b16 %v136, %v136
    %v141 = vpack.c.b16 %v137, %v137
    %vm142 = vcmask 64512
    %v144 = vsel %vm142, %v128, 0
    %v147 = vsel %vm142, %v129, 0
    %v150 = vsel %vm142, %v130, 0
    %v153 = vsel %vm142, %v131, 0
    %vm155 = vcmask 1043456
    %v157 = vsel %vm155, %v138, 0
    %v160 = vsel %vm155, %v139, 0
    %v163 = vsel %vm155, %v140, 0
    %v166 = vsel %vm155, %v141, 0
    %168 = vmatprep.subr.bf16.mxu0 %v160
    %169 = vmatpush1.bf16.msra.mxu0 %v157
    %170 = vmatprep.subr.bf16.mxu0 0
    %171 = vmatpush1.bf16.msra.mxu0 0
    %172 = vmatprep.subr.bf16.mxu0 0
    %173 = vmatpush1.bf16.msra.mxu0 0
    %174 = vmatprep.subr.bf16.mxu0 0
    %175 = vmatpush1.bf16.msra.mxu0 0
    %176 = vmatprep.subr.bf16.mxu0 0
    %177 = vmatpush1.bf16.msra.mxu0 0
    %178 = vmatprep.subr.bf16.mxu0 0
    %179 = vmatpush1.bf16.msra.mxu0 0
    %180 = vmatprep.subr.bf16.mxu0 0
    %181 = vmatpush1.bf16.msra.mxu0 0
    %182 = vmatprep.subr.bf16.mxu0 0
    %183 = vmatpush1.bf16.msra.mxu0 0
    %184 = vmatprep.subr.bf16.mxu0 0
    %185 = vmatpush1.bf16.msra.mxu0 0
    %186 = vmatprep.subr.bf16.mxu0 0
    %187 = vmatpush1.bf16.msra.mxu0 0
    %188 = vmatprep.subr.bf16.mxu0 0
    %189 = vmatpush1.bf16.msra.mxu0 0
    %190 = vmatprep.subr.bf16.mxu0 0
    %191 = vmatpush1.bf16.msra.mxu0 0
    %192 = vmatprep.subr.bf16.mxu0 0
    %193 = vmatpush1.bf16.msra.mxu0 0
    %194 = vmatprep.subr.bf16.mxu0 0
    %195 = vmatpush1.bf16.msra.mxu0 0
    %196 = vmatprep.subr.bf16.mxu0 0
    %197 = vmatpush1.bf16.msra.mxu0 0
    %198 = vmatprep.subr.bf16.mxu0 0
    %199 = vmatpush1.bf16.msra.mxu0 0
    %200 = vmatprep.mubr.bf16.mxu0 0
    %201 = vmatmul.mubr.bf16.gmra.mrb[0].mxu0 %v144
    %v202 = vpop.f32.mrb[0].mxu0
    %v203 = vadd.f32 %v95, %v202
    %v204 = vpop.f32.mrb[0].mxu0
    %v205 = vadd.f32 %v99, %v204
    %v206 = vpop.f32.mrb[0].mxu0
    %v207 = vadd.f32 %v95, %v206
    %v208 = vpop.f32.mrb[0].mxu0
    %v209 = vadd.f32 %v99, %v208
    %210 = vmatprep.mubr.bf16.mxu0 0
    %211 = vmatmul.mubr.bf16.gmra.mrb[0].mxu0 %v147
    %v212 = vpop.f32.mrb[0].mxu0
    %v213 = vadd.f32 %v95, %v212
    %v214 = vpop.f32.mrb[0].mxu0
    %v215 = vadd.f32 %v99, %v214
    %v216 = vpop.f32.mrb[0].mxu0
    %v217 = vadd.f32 %v95, %v216
    %v218 = vpop.f32.mrb[0].mxu0
    %v219 = vadd.f32 %v99, %v218
    %220 = vmatprep.mubr.bf16.mxu0 0
    %221 = vmatmul.mubr.bf16.gmra.mrb[0].mxu0 %v150
    %v222 = vpop.f32.mrb[0].mxu0
    %v223 = vadd.f32 %v95, %v222
    %v224 = vpop.f32.mrb[0].mxu0
    %v225 = vadd.f32 %v99, %v224
    %v226 = vpop.f32.mrb[0].mxu0
    %v227 = vadd.f32 %v95, %v226
    %v228 = vpop.f32.mrb[0].mxu0
    %v229 = vadd.f32 %v99, %v228
    %230 = vmatprep.mubr.bf16.mxu0 0
    %231 = vmatmul.mubr.bf16.gmra.mrb[0].mxu0 %v153
    %v232 = vpop.f32.mrb[0].mxu0
    %v233 = vadd.f32 %v95, %v232
    %v234 = vpop.f32.mrb[0].mxu0
    %v235 = vadd.f32 %v99, %v234
    %v236 = vpop.f32.mrb[0].mxu0
    %v237 = vadd.f32 %v95, %v236
    %v238 = vpop.f32.mrb[0].mxu0
    %v239 = vadd.f32 %v99, %v238
    %240 = vdwg.mxu0
    %241 = vmatprep.subr.bf16.mxu0 %v166
    %242 = vmatpush1.bf16.msra.mxu0 %v163
    %243 = vmatprep.subr.bf16.mxu0 0
    %244 = vmatpush1.bf16.msra.mxu0 0
    %245 = vmatprep.subr.bf16.mxu0 0
    %246 = vmatpush1.bf16.msra.mxu0 0
    %247 = vmatprep.subr.bf16.mxu0 0
    %248 = vmatpush1.bf16.msra.mxu0 0
    %249 = vmatprep.subr.bf16.mxu0 0
    %250 = vmatpush1.bf16.msra.mxu0 0
    %251 = vmatprep.subr.bf16.mxu0 0
    %252 = vmatpush1.bf16.msra.mxu0 0
    %253 = vmatprep.subr.bf16.mxu0 0
    %254 = vmatpush1.bf16.msra.mxu0 0
    %255 = vmatprep.subr.bf16.mxu0 0
    %256 = vmatpush1.bf16.msra.mxu0 0
    %257 = vmatprep.subr.bf16.mxu0 0
    %258 = vmatpush1.bf16.msra.mxu0 0
    %259 = vmatprep.subr.bf16.mxu0 0
    %260 = vmatpush1.bf16.msra.mxu0 0
    %261 = vmatprep.subr.bf16.mxu0 0
    %262 = vmatpush1.bf16.msra.mxu0 0
    %263 = vmatprep.subr.bf16.mxu0 0
    %264 = vmatpush1.bf16.msra.mxu0 0
    %265 = vmatprep.subr.bf16.mxu0 0
    %266 = vmatpush1.bf16.msra.mxu0 0
    %267 = vmatprep.subr.bf16.mxu0 0
    %268 = vmatpush1.bf16.msra.mxu0 0
    %269 = vmatprep.subr.bf16.mxu0 0
    %270 = vmatpush1.bf16.msra.mxu0 0
    %271 = vmatprep.subr.bf16.mxu0 0
    %272 = vmatpush1.bf16.msra.mxu0 0
    %273 = vmatprep.mubr.bf16.mxu0 0
    %274 = vmatmul.mubr.bf16.gmra.mrb[0].mxu0 %v144
    %v275 = vpop.f32.mrb[0].mxu0
    %v276 = vadd.f32 %v103, %v275
    %v277 = vpop.f32.mrb[0].mxu0
    %v278 = vadd.f32 %v107, %v277
    %v279 = vpop.f32.mrb[0].mxu0
    %v280 = vadd.f32 %v103, %v279
    %v281 = vpop.f32.mrb[0].mxu0
    %v282 = vadd.f32 %v107, %v281
    %283 = vmatprep.mubr.bf16.mxu0 0
    %284 = vmatmul.mubr.bf16.gmra.mrb[0].mxu0 %v147
    %v285 = vpop.f32.mrb[0].mxu0
    %v286 = vadd.f32 %v103, %v285
    %v287 = vpop.f32.mrb[0].mxu0
    %v288 = vadd.f32 %v107, %v287
    %v289 = vpop.f32.mrb[0].mxu0
    %v290 = vadd.f32 %v103, %v289
    %v291 = vpop.f32.mrb[0].mxu0
    %v292 = vadd.f32 %v107, %v291
    %293 = vmatprep.mubr.bf16.mxu0 0
    %294 = vmatmul.mubr.bf16.gmra.mrb[0].mxu0 %v150
    %v295 = vpop.f32.mrb[0].mxu0
    %v296 = vadd.f32 %v103, %v295
    %v297 = vpop.f32.mrb[0].mxu0
    %v298 = vadd.f32 %v107, %v297
    %v299 = vpop.f32.mrb[0].mxu0
    %v300 = vadd.f32 %v103, %v299
    %v301 = vpop.f32.mrb[0].mxu0
    %v302 = vadd.f32 %v107, %v301
    %303 = vmatprep.mubr.bf16.mxu0 0
    %304 = vmatmul.mubr.bf16.gmra.mrb[0].mxu0 %v153
    %v305 = vpop.f32.mrb[0].mxu0
    %v306 = vadd.f32 %v103, %v305
    %v307 = vpop.f32.mrb[0].mxu0
    %v308 = vadd.f32 %v107, %v307
    %v309 = vpop.f32.mrb[0].mxu0
    %v310 = vadd.f32 %v103, %v309
    %v311 = vpop.f32.mrb[0].mxu0
    %v312 = vadd.f32 %v107, %v311
    %313 = vdwg.mxu0
    %314 = vst [vmem:[#allocation4] sm:$0xff] %v203
    %315 = vst [vmem:[#allocation4 + $0x8] sm:$0xff] %v205
    %316 = vst [vmem:[#allocation4 + $0x10] sm:$0xff] %v276
    %317 = vst [vmem:[#allocation4 + $0x18] sm:$0xff] %v278
    %318 = vst [vmem:[#allocation4 + $0x20] sm:$0xff] %v207
    %319 = vst [vmem:[#allocation4 + $0x28] sm:$0xff] %v209
    %320 = vst [vmem:[#allocation4 + $0x30] sm:$0xff] %v280
    %321 = vst [vmem:[#allocation4 + $0x38] sm:$0xff] %v282
    %322 = vst [vmem:[#allocation4 + $0x40] sm:$0xff] %v213
    %323 = vst [vmem:[#allocation4 + $0x48] sm:$0xff] %v215
    %324 = vst [vmem:[#allocation4 + $0x50] sm:$0xff] %v286
    %325 = vst [vmem:[#allocation4 + $0x58] sm:$0xff] %v288
    %326 = vst [vmem:[#allocation4 + $0x60] sm:$0xff] %v217
    %327 = vst [vmem:[#allocation4 + $0x68] sm:$0xff] %v219
    %328 = vst [vmem:[#allocation4 + $0x70] sm:$0xff] %v290
    %329 = vst [vmem:[#allocation4 + $0x78] sm:$0xff] %v292
    %330 = vst [vmem:[#allocation4 + $0x80] sm:$0xff] %v223
    %331 = vst [vmem:[#allocation4 + $0x88] sm:$0xff] %v225
    %332 = vst [vmem:[#allocation4 + $0x90] sm:$0xff] %v296
    %333 = vst [vmem:[#allocation4 + $0x98] sm:$0xff] %v298
    %334 = vst [vmem:[#allocation4 + $0xa0] sm:$0xff] %v227
    %335 = vst [vmem:[#allocation4 + $0xa8] sm:$0xff] %v229
    %336 = vst [vmem:[#allocation4 + $0xb0] sm:$0xff] %v300
    %337 = vst [vmem:[#allocation4 + $0xb8] sm:$0xff] %v302
    %338 = vst [vmem:[#allocation4 + $0xc0] sm:$0xff] %v233
    %339 = vst [vmem:[#allocation4 + $0xc8] sm:$0xff] %v235
    %340 = vst [vmem:[#allocation4 + $0xd0] sm:$0xff] %v306
    %341 = vst [vmem:[#allocation4 + $0xd8] sm:$0xff] %v308
    %342 = vst [vmem:[#allocation4 + $0xe0] sm:$0xff] %v237
    %343 = vst [vmem:[#allocation4 + $0xe8] sm:$0xff] %v239
    %344 = vst [vmem:[#allocation4 + $0xf0] sm:$0xff] %v310
    %345 = vst [vmem:[#allocation4 + $0xf8] sm:$0xff] %v312
    %v346 = vld [vmem:[#allocation4] sm:$0xff]
    %v347 = vld [vmem:[#allocation4 + $0x8] sm:$0xff]
    %v348 = vld [vmem:[#allocation4 + $0x10] sm:$0xff]
    %v349 = vld [vmem:[#allocation4 + $0x18] sm:$0xff]
    %v350 = vld [vmem:[#allocation2] sm:$0xff]
    %v351 = vpack.c.bf16 %v350, %v350
    %v352 = vld [vmem:[#allocation5] sm:$0xff]
    %v353 = vld [vmem:[#allocation5 + $0x8] sm:$0xff]
    %v354 = vld [vmem:[#allocation5 + $0x10] sm:$0xff]
    %v355 = vld [vmem:[#allocation5 + $0x18] sm:$0xff]
    %v356 = vld [vmem:[#allocation5 + $0x20] sm:$0xff]
    %v357 = vld [vmem:[#allocation5 + $0x28] sm:$0xff]
    %v358 = vld [vmem:[#allocation5 + $0x30] sm:$0xff]
    %v359 = vld [vmem:[#allocation5 + $0x38] sm:$0xff]
    %v360 = vld [vmem:[#allocation5 + $0x40] sm:$0xff]
    %v361 = vld [vmem:[#allocation5 + $0x48] sm:$0xff]
    %v362 = vld [vmem:[#allocation5 + $0x50] sm:$0xff]
    %v363 = vld [vmem:[#allocation5 + $0x58] sm:$0xff]
    %v364 = vld [vmem:[#allocation5 + $0x60] sm:$0xff]
    %v365 = vld [vmem:[#allocation5 + $0x68] sm:$0xff]
    %v366 = vld [vmem:[#allocation5 + $0x70] sm:$0xff]
    %v367 = vld [vmem:[#allocation5 + $0x78] sm:$0xff]
    %v368 = vld [vmem:[#allocation5 + $0x80] sm:$0xff]
    %v369 = vld [vmem:[#allocation5 + $0x88] sm:$0xff]
    %v370 = vld [vmem:[#allocation5 + $0x90] sm:$0xff]
    %v371 = vld [vmem:[#allocation5 + $0x98] sm:$0xff]
    %v372 = vld [vmem:[#allocation5 + $0xa0] sm:$0xff]
    %v373 = vld [vmem:[#allocation5 + $0xa8] sm:$0xff]
    %v374 = vld [vmem:[#allocation5 + $0xb0] sm:$0xff]
    %v375 = vld [vmem:[#allocation5 + $0xb8] sm:$0xff]
    %v376 = vld [vmem:[#allocation5 + $0xc0] sm:$0xff]
    %v377 = vld [vmem:[#allocation5 + $0xc8] sm:$0xff]
    %v378 = vld [vmem:[#allocation5 + $0xd0] sm:$0xff]
    %v379 = vld [vmem:[#allocation5 + $0xd8] sm:$0xff]
    %v380 = vld [vmem:[#allocation5 + $0xe0] sm:$0xff]
    %v381 = vld [vmem:[#allocation5 + $0xe8] sm:$0xff]
    %v382 = vld [vmem:[#allocation5 + $0xf0] sm:$0xff]
    %v383 = vld [vmem:[#allocation5 + $0xf8] sm:$0xff]
    %v416 = vunpack.c.l.b16 %v352
    %v417 = vunpack.c.h.b16 %v352
    %v418 = vunpack.c.l.b16 %v353
    %v419 = vunpack.c.h.b16 %v353
    %v420 = vunpack.c.l.b16 %v354
    %v421 = vunpack.c.h.b16 %v354
    %v422 = vunpack.c.l.b16 %v355
    %v423 = vunpack.c.h.b16 %v355
    %v424 = vunpack.c.l.b16 %v356
    %v425 = vunpack.c.h.b16 %v356
    %v426 = vunpack.c.l.b16 %v357
    %v427 = vunpack.c.h.b16 %v357
    %v428 = vunpack.c.l.b16 %v358
    %v429 = vunpack.c.h.b16 %v358
    %v430 = vunpack.c.l.b16 %v359
    %v431 = vunpack.c.h.b16 %v359
    %v432 = vunpack.c.l.b16 %v360
    %v433 = vunpack.c.h.b16 %v360
    %v434 = vunpack.c.l.b16 %v361
    %v435 = vunpack.c.h.b16 %v361
    %v436 = vunpack.c.l.b16 %v362
    %v437 = vunpack.c.h.b16 %v362
    %v438 = vunpack.c.l.b16 %v363
    %v439 = vunpack.c.h.b16 %v363
    %v440 = vunpack.c.l.b16 %v364
    %v441 = vunpack.c.h.b16 %v364
    %v442 = vunpack.c.l.b16 %v365
    %v443 = vunpack.c.h.b16 %v365
    %v444 = vunpack.c.l.b16 %v366
    %v445 = vunpack.c.h.b16 %v366
    %v446 = vunpack.c.l.b16 %v367
    %v447 = vunpack.c.h.b16 %v367
    %v448 = vunpack.c.l.b16 %v368
    %v449 = vunpack.c.h.b16 %v368
    %v450 = vunpack.c.l.b16 %v369
    %v451 = vunpack.c.h.b16 %v369
    %v452 = vunpack.c.l.b16 %v370
    %v453 = vunpack.c.h.b16 %v370
    %v454 = vunpack.c.l.b16 %v371
    %v455 = vunpack.c.h.b16 %v371
    %v456 = vunpack.c.l.b16 %v372
    %v457 = vunpack.c.h.b16 %v372
    %v458 = vunpack.c.l.b16 %v373
    %v459 = vunpack.c.h.b16 %v373
    %v460 = vunpack.c.l.b16 %v374
    %v461 = vunpack.c.h.b16 %v374
    %v462 = vunpack.c.l.b16 %v375
    %v463 = vunpack.c.h.b16 %v375
    %v464 = vunpack.c.l.b16 %v376
    %v465 = vunpack.c.h.b16 %v376
    %v466 = vunpack.c.l.b16 %v377
    %v467 = vunpack.c.h.b16 %v377
    %v468 = vunpack.c.l.b16 %v378
    %v469 = vunpack.c.h.b16 %v378
    %v470 = vunpack.c.l.b16 %v379
    %v471 = vunpack.c.h.b16 %v379
    %v472 = vunpack.c.l.b16 %v380
    %v473 = vunpack.c.h.b16 %v380
    %v474 = vunpack.c.l.b16 %v381
    %v475 = vunpack.c.h.b16 %v381
    %v476 = vunpack.c.l.b16 %v382
    %v477 = vunpack.c.h.b16 %v382
    %v478 = vunpack.c.l.b16 %v383
    %v479 = vunpack.c.h.b16 %v383
    %v480 = vpack.c.b16 %v420, %v416
    %v481 = vpack.c.b16 %v421, %v417
    %v482 = vpack.c.b16 %v422, %v418
    %v483 = vpack.c.b16 %v423, %v419
    %v484 = vpack.c.b16 %v428, %v424
    %v485 = vpack.c.b16 %v429, %v425
    %v486 = vpack.c.b16 %v430, %v426
    %v487 = vpack.c.b16 %v431, %v427
    %v488 = vpack.c.b16 %v436, %v432
    %v489 = vpack.c.b16 %v437, %v433
    %v490 = vpack.c.b16 %v438, %v434
    %v491 = vpack.c.b16 %v439, %v435
    %v492 = vpack.c.b16 %v444, %v440
    %v493 = vpack.c.b16 %v445, %v441
    %v494 = vpack.c.b16 %v446, %v442
    %v495 = vpack.c.b16 %v447, %v443
    %v496 = vpack.c.b16 %v452, %v448
    %v497 = vpack.c.b16 %v453, %v449
    %v498 = vpack.c.b16 %v454, %v450
    %v499 = vpack.c.b16 %v455, %v451
    %v500 = vpack.c.b16 %v460, %v456
    %v501 = vpack.c.b16 %v461, %v457
    %v502 = vpack.c.b16 %v462, %v458
    %v503 = vpack.c.b16 %v463, %v459
    %v504 = vpack.c.b16 %v468, %v464
    %v505 = vpack.c.b16 %v469, %v465
    %v506 = vpack.c.b16 %v470, %v466
    %v507 = vpack.c.b16 %v471, %v467
    %v508 = vpack.c.b16 %v476, %v472
    %v509 = vpack.c.b16 %v477, %v473
    %v510 = vpack.c.b16 %v478, %v474
    %v511 = vpack.c.b16 %v479, %v475
    %544 = vmatprep.subr.bf16.mxu0 %v481
    %545 = vmatpush1.bf16.msra.mxu0 %v480
    %546 = vmatprep.subr.bf16.mxu0 %v485
    %547 = vmatpush1.bf16.msra.mxu0 %v484
    %548 = vmatprep.subr.bf16.mxu0 %v489
    %549 = vmatpush1.bf16.msra.mxu0 %v488
    %550 = vmatprep.subr.bf16.mxu0 %v493
    %551 = vmatpush1.bf16.msra.mxu0 %v492
    %552 = vmatprep.subr.bf16.mxu0 %v497
    %553 = vmatpush1.bf16.msra.mxu0 %v496
    %554 = vmatprep.subr.bf16.mxu0 %v501
    %555 = vmatpush1.bf16.msra.mxu0 %v500
    %556 = vmatprep.subr.bf16.mxu0 %v505
    %557 = vmatpush1.bf16.msra.mxu0 %v504
    %558 = vmatprep.subr.bf16.mxu0 %v509
    %559 = vmatpush1.bf16.msra.mxu0 %v508
    %560 = vmatprep.subr.bf16.mxu0 0
    %561 = vmatpush1.bf16.msra.mxu0 0
    %562 = vmatprep.subr.bf16.mxu0 0
    %563 = vmatpush1.bf16.msra.mxu0 0
    %564 = vmatprep.subr.bf16.mxu0 0
    %565 = vmatpush1.bf16.msra.mxu0 0
    %566 = vmatprep.subr.bf16.mxu0 0
    %567 = vmatpush1.bf16.msra.mxu0 0
    %568 = vmatprep.subr.bf16.mxu0 0
    %569 = vmatpush1.bf16.msra.mxu0 0
    %570 = vmatprep.subr.bf16.mxu0 0
    %571 = vmatpush1.bf16.msra.mxu0 0
    %572 = vmatprep.subr.bf16.mxu0 0
    %573 = vmatpush1.bf16.msra.mxu0 0
    %574 = vmatprep.subr.bf16.mxu0 0
    %575 = vmatpush1.bf16.msra.mxu0 0
    %576 = vmatprep.mubr.bf16.mxu0 0
    %577 = vmatmul.mubr.bf16.gmra.mrb[0].mxu0 %v351
    %v578 = vpop.f32.mrb[0].mxu0
    %v579 = vadd.f32 0.0, %v578
    %v580 = vpop.f32.mrb[0].mxu0
    %v581 = vadd.f32 0.0, %v580
    %v582 = vpop.f32.mrb[0].mxu0
    %v583 = vpop.f32.mrb[0].mxu0
    %584 = vdwg.mxu0
    %585 = vmatprep.subr.bf16.mxu0 %v483
    %586 = vmatpush1.bf16.msra.mxu0 %v482
    %587 = vmatprep.subr.bf16.mxu0 %v487
    %588 = vmatpush1.bf16.msra.mxu0 %v486
    %589 = vmatprep.subr.bf16.mxu0 %v491
    %590 = vmatpush1.bf16.msra.mxu0 %v490
    %591 = vmatprep.subr.bf16.mxu0 %v495
    %592 = vmatpush1.bf16.msra.mxu0 %v494
    %593 = vmatprep.subr.bf16.mxu0 %v499
    %594 = vmatpush1.bf16.msra.mxu0 %v498
    %595 = vmatprep.subr.bf16.mxu0 %v503
    %596 = vmatpush1.bf16.msra.mxu0 %v502
    %597 = vmatprep.subr.bf16.mxu0 %v507
    %598 = vmatpush1.bf16.msra.mxu0 %v506
    %599 = vmatprep.subr.bf16.mxu0 %v511
    %600 = vmatpush1.bf16.msra.mxu0 %v510
    %601 = vmatprep.subr.bf16.mxu0 0
    %602 = vmatpush1.bf16.msra.mxu0 0
    %603 = vmatprep.subr.bf16.mxu0 0
    %604 = vmatpush1.bf16.msra.mxu0 0
    %605 = vmatprep.subr.bf16.mxu0 0
    %606 = vmatpush1.bf16.msra.mxu0 0
    %607 = vmatprep.subr.bf16.mxu0 0
    %608 = vmatpush1.bf16.msra.mxu0 0
    %609 = vmatprep.subr.bf16.mxu0 0
    %610 = vmatpush1.bf16.msra.mxu0 0
    %611 = vmatprep.subr.bf16.mxu0 0
    %612 = vmatpush1.bf16.msra.mxu0 0
    %613 = vmatprep.subr.bf16.mxu0 0
    %614 = vmatpush1.bf16.msra.mxu0 0
    %615 = vmatprep.subr.bf16.mxu0 0
    %616 = vmatpush1.bf16.msra.mxu0 0
    %617 = vmatprep.mubr.bf16.mxu0 0
    %618 = vmatmul.mubr.bf16.gmra.mrb[0].mxu0 %v351
    %v619 = vpop.f32.mrb[0].mxu0
    %v620 = vadd.f32 0.0, %v619
    %v621 = vpop.f32.mrb[0].mxu0
    %v622 = vadd.f32 0.0, %v621
    %v623 = vpop.f32.mrb[0].mxu0
    %v624 = vpop.f32.mrb[0].mxu0
    %625 = vdwg.mxu0
    %v626 = vadd.f32 %v346, %v579
    %v627 = vadd.f32 %v347, %v581
    %v628 = vadd.f32 %v348, %v620
    %v629 = vadd.f32 %v349, %v622
    %v630 = vld [vmem:[#allocation3] sm:$0xff]
    %v631 = vxor.u32 %v626, 2147483648
    %v632 = vmul.f32 %v631, 1.442695
    %v633 = vpow.pop %v632
    %v634 = vadd.f32 %v633, 1.0
    %v635 = vrcp.pop %v634
    %v636 = vmul.f32 1.0, %v635
    %v637 = vxor.u32 %v627, 2147483648
    %v638 = vmul.f32 %v637, 1.442695
    %v639 = vpow.pop %v638
    %v640 = vadd.f32 %v639, 1.0
    %v641 = vrcp.pop %v640
    %v642 = vmul.f32 1.0, %v641
    %v643 = vtanh.pop %v628
    %v644 = vxor.u32 %v629, 2147483648
    %v645 = vmul.f32 %v644, 1.442695
    %v646 = vpow.pop %v645
    %v647 = vadd.f32 %v646, 1.0
    %v648 = vrcp.pop %v647
    %v649 = vmul.f32 1.0, %v648
    %v650 = vmul.f32 %v642, %v630
    %v651 = vmul.f32 %v636, %v643
    %v652 = vadd.f32 %v650, %v651
    %v653 = vtanh.pop %v652
    %v654 = vmul.f32 %v649, %v653
    %655 = vst [vmem:[#allocation2] sm:$0xff] %v654
    %656 = vst [vmem:[#allocation3] sm:$0xff] %v652
    %s657 = scalar_lea.vmem [#allocation2], 8
    %v658 = vld [vmem:[%s657] sm:$0xff]
    %v659 = vpack.c.bf16 %v654, %v654
    %v660 = vpack.c.bf16 %v658, %v658
    %v661 = vld [vmem:[#allocation8] sm:$0xff]
    %v662 = vld [vmem:[#allocation8 + $0x8] sm:$0xff]
    %v663 = vld [vmem:[#allocation8 + $0x10] sm:$0xff]
    %v664 = vld [vmem:[#allocation8 + $0x18] sm:$0xff]
    %v665 = vld [vmem:[#allocation8 + $0x20] sm:$0xff]
    %v666 = vld [vmem:[#allocation8 + $0x28] sm:$0xff]
    %v667 = vld [vmem:[#allocation8 + $0x30] sm:$0xff]
    %v668 = vld [vmem:[#allocation8 + $0x38] sm:$0xff]
    %v669 = vld [vmem:[#allocation8 + $0x40] sm:$0xff]
    %v670 = vld [vmem:[#allocation8 + $0x48] sm:$0xff]
    %v671 = vld [vmem:[#allocation8 + $0x50] sm:$0xff]
    %v672 = vld [vmem:[#allocation8 + $0x58] sm:$0xff]
    %v673 = vld [vmem:[#allocation8 + $0x60] sm:$0xff]
    %v674 = vld [vmem:[#allocation8 + $0x68] sm:$0xff]
    %v675 = vld [vmem:[#allocation8 + $0x70] sm:$0xff]
    %v676 = vld [vmem:[#allocation8 + $0x78] sm:$0xff]
    %v677 = vld [vmem:[#allocation8 + $0x80] sm:$0xff]
    %v678 = vld [vmem:[#allocation8 + $0x88] sm:$0xff]
    %v679 = vld [vmem:[#allocation8 + $0x90] sm:$0xff]
    %v680 = vld [vmem:[#allocation8 + $0x98] sm:$0xff]
    %v681 = vld [vmem:[#allocation8 + $0xa0] sm:$0xff]
    %v682 = vld [vmem:[#allocation8 + $0xa8] sm:$0xff]
    %v683 = vld [vmem:[#allocation8 + $0xb0] sm:$0xff]
    %v684 = vld [vmem:[#allocation8 + $0xb8] sm:$0xff]
    %v685 = vld [vmem:[#allocation8 + $0xc0] sm:$0xff]
    %v686 = vld [vmem:[#allocation8 + $0xc8] sm:$0xff]
    %v687 = vld [vmem:[#allocation8 + $0xd0] sm:$0xff]
    %v688 = vld [vmem:[#allocation8 + $0xd8] sm:$0xff]
    %v689 = vld [vmem:[#allocation8 + $0xe0] sm:$0xff]
    %v690 = vld [vmem:[#allocation8 + $0xe8] sm:$0xff]
    %v691 = vld [vmem:[#allocation8 + $0xf0] sm:$0xff]
    %v692 = vld [vmem:[#allocation8 + $0xf8] sm:$0xff]
    %v693 = vld [vmem:[#allocation8 + $0x100] sm:$0xff]
    %v694 = vld [vmem:[#allocation8 + $0x108] sm:$0xff]
    %v695 = vld [vmem:[#allocation8 + $0x110] sm:$0xff]
    %v696 = vld [vmem:[#allocation8 + $0x118] sm:$0xff]
    %v697 = vld [vmem:[#allocation8 + $0x120] sm:$0xff]
    %v698 = vld [vmem:[#allocation8 + $0x128] sm:$0xff]
    %v699 = vld [vmem:[#allocation8 + $0x130] sm:$0xff]
    %v700 = vld [vmem:[#allocation8 + $0x138] sm:$0xff]
    %v701 = vld [vmem:[#allocation8 + $0x140] sm:$0xff]
    %v702 = vld [vmem:[#allocation8 + $0x148] sm:$0xff]
    %v703 = vld [vmem:[#allocation8 + $0x150] sm:$0xff]
    %v704 = vld [vmem:[#allocation8 + $0x158] sm:$0xff]
    %v705 = vld [vmem:[#allocation8 + $0x160] sm:$0xff]
    %v706 = vld [vmem:[#allocation8 + $0x168] sm:$0xff]
    %v707 = vld [vmem:[#allocation8 + $0x170] sm:$0xff]
    %v708 = vld [vmem:[#allocation8 + $0x178] sm:$0xff]
    %v709 = vld [vmem:[#allocation8 + $0x180] sm:$0xff]
    %v710 = vld [vmem:[#allocation8 + $0x188] sm:$0xff]
    %v711 = vld [vmem:[#allocation8 + $0x190] sm:$0xff]
    %v712 = vld [vmem:[#allocation8 + $0x198] sm:$0xff]
    %v713 = vld [vmem:[#allocation8 + $0x1a0] sm:$0xff]
    %v714 = vld [vmem:[#allocation8 + $0x1a8] sm:$0xff]
    %v715 = vld [vmem:[#allocation8 + $0x1b0] sm:$0xff]
    %v716 = vld [vmem:[#allocation8 + $0x1b8] sm:$0xff]
    %v717 = vld [vmem:[#allocation8 + $0x1c0] sm:$0xff]
    %v718 = vld [vmem:[#allocation8 + $0x1c8] sm:$0xff]
    %v719 = vld [vmem:[#allocation8 + $0x1d0] sm:$0xff]
    %v720 = vld [vmem:[#allocation8 + $0x1d8] sm:$0xff]
    %v721 = vld [vmem:[#allocation8 + $0x1e0] sm:$0xff]
    %v722 = vld [vmem:[#allocation8 + $0x1e8] sm:$0xff]
    %v723 = vld [vmem:[#allocation8 + $0x1f0] sm:$0xff]
    %v724 = vld [vmem:[#allocation8 + $0x1f8] sm:$0xff]
    %v725 = vld [vmem:[%s5] sm:$0xf]
    %v727 = vlaneseq
    %v728 = vshrl.u32 %v727, 7
    %v729 = vsub.s32 0, %v728
    %v730 = vrot.slane %v725, %v729
    %v731 = vlaneseq
    %v732 = vshrl.u32 %v731, 7
    %v733 = vsub.s32 1, %v732
    %v734 = vrot.slane %v725, %v733
    %v735 = vlaneseq
    %v736 = vshrl.u32 %v735, 7
    %v737 = vsub.s32 2, %v736
    %v738 = vrot.slane %v725, %v737
    %v739 = vlaneseq
    %v740 = vshrl.u32 %v739, 7
    %v741 = vsub.s32 3, %v740
    %v742 = vrot.slane %v725, %v741
    %v811 = vunpack.c.l.b16 %v661
    %v812 = vunpack.c.h.b16 %v661
    %v813 = vunpack.c.l.b16 %v662
    %v814 = vunpack.c.h.b16 %v662
    %v815 = vunpack.c.l.b16 %v663
    %v816 = vunpack.c.h.b16 %v663
    %v817 = vunpack.c.l.b16 %v664
    %v818 = vunpack.c.h.b16 %v664
    %v819 = vunpack.c.l.b16 %v665
    %v820 = vunpack.c.h.b16 %v665
    %v821 = vunpack.c.l.b16 %v666
    %v822 = vunpack.c.h.b16 %v666
    %v823 = vunpack.c.l.b16 %v667
    %v824 = vunpack.c.h.b16 %v667
    %v825 = vunpack.c.l.b16 %v668
    %v826 = vunpack.c.h.b16 %v668
    %v827 = vunpack.c.l.b16 %v669
    %v828 = vunpack.c.h.b16 %v669
    %v829 = vunpack.c.l.b16 %v670
    %v830 = vunpack.c.h.b16 %v670
    %v831 = vunpack.c.l.b16 %v671
    %v832 = vunpack.c.h.b16 %v671
    %v833 = vunpack.c.l.b16 %v672
    %v834 = vunpack.c.h.b16 %v672
    %v835 = vunpack.c.l.b16 %v673
    %v836 = vunpack.c.h.b16 %v673
    %v837 = vunpack.c.l.b16 %v674
    %v838 = vunpack.c.h.b16 %v674
    %v839 = vunpack.c.l.b16 %v675
    %v840 = vunpack.c.h.b16 %v675
    %v841 = vunpack.c.l.b16 %v676
    %v842 = vunpack.c.h.b16 %v676
    %v843 = vunpack.c.l.b16 %v677
    %v844 = vunpack.c.h.b16 %v677
    %v845 = vunpack.c.l.b16 %v678
    %v846 = vunpack.c.h.b16 %v678
    %v847 = vunpack.c.l.b16 %v679
    %v848 = vunpack.c.h.b16 %v679
    %v849 = vunpack.c.l.b16 %v680
    %v850 = vunpack.c.h.b16 %v680
    %v851 = vunpack.c.l.b16 %v681
    %v852 = vunpack.c.h.b16 %v681
    %v853 = vunpack.c.l.b16 %v682
    %v854 = vunpack.c.h.b16 %v682
    %v855 = vunpack.c.l.b16 %v683
    %v856 = vunpack.c.h.b16 %v683
    %v857 = vunpack.c.l.b16 %v684
    %v858 = vunpack.c.h.b16 %v684
    %v859 = vunpack.c.l.b16 %v685
    %v860 = vunpack.c.h.b16 %v685
    %v861 = vunpack.c.l.b16 %v686
    %v862 = vunpack.c.h.b16 %v686
    %v863 = vunpack.c.l.b16 %v687
    %v864 = vunpack.c.h.b16 %v687
    %v865 = vunpack.c.l.b16 %v688
    %v866 = vunpack.c.h.b16 %v688
    %v867 = vunpack.c.l.b16 %v689
    %v868 = vunpack.c.h.b16 %v689
    %v869 = vunpack.c.l.b16 %v690
    %v870 = vunpack.c.h.b16 %v690
    %v871 = vunpack.c.l.b16 %v691
    %v872 = vunpack.c.h.b16 %v691
    %v873 = vunpack.c.l.b16 %v692
    %v874 = vunpack.c.h.b16 %v692
    %v875 = vunpack.c.l.b16 %v693
    %v876 = vunpack.c.h.b16 %v693
    %v877 = vunpack.c.l.b16 %v694
    %v878 = vunpack.c.h.b16 %v694
    %v879 = vunpack.c.l.b16 %v695
    %v880 = vunpack.c.h.b16 %v695
    %v881 = vunpack.c.l.b16 %v696
    %v882 = vunpack.c.h.b16 %v696
    %v883 = vunpack.c.l.b16 %v697
    %v884 = vunpack.c.h.b16 %v697
    %v885 = vunpack.c.l.b16 %v698
    %v886 = vunpack.c.h.b16 %v698
    %v887 = vunpack.c.l.b16 %v699
    %v888 = vunpack.c.h.b16 %v699
    %v889 = vunpack.c.l.b16 %v700
    %v890 = vunpack.c.h.b16 %v700
    %v891 = vunpack.c.l.b16 %v701
    %v892 = vunpack.c.h.b16 %v701
    %v893 = vunpack.c.l.b16 %v702
    %v894 = vunpack.c.h.b16 %v702
    %v895 = vunpack.c.l.b16 %v703
    %v896 = vunpack.c.h.b16 %v703
    %v897 = vunpack.c.l.b16 %v704
    %v898 = vunpack.c.h.b16 %v704
    %v899 = vunpack.c.l.b16 %v705
    %v900 = vunpack.c.h.b16 %v705
    %v901 = vunpack.c.l.b16 %v706
    %v902 = vunpack.c.h.b16 %v706
    %v903 = vunpack.c.l.b16 %v707
    %v904 = vunpack.c.h.b16 %v707
    %v905 = vunpack.c.l.b16 %v708
    %v906 = vunpack.c.h.b16 %v708
    %v907 = vunpack.c.l.b16 %v709
    %v908 = vunpack.c.h.b16 %v709
    %v909 = vunpack.c.l.b16 %v710
    %v910 = vunpack.c.h.b16 %v710
    %v911 = vunpack.c.l.b16 %v711
    %v912 = vunpack.c.h.b16 %v711
    %v913 = vunpack.c.l.b16 %v712
    %v914 = vunpack.c.h.b16 %v712
    %v915 = vunpack.c.l.b16 %v713
    %v916 = vunpack.c.h.b16 %v713
    %v917 = vunpack.c.l.b16 %v714
    %v918 = vunpack.c.h.b16 %v714
    %v919 = vunpack.c.l.b16 %v715
    %v920 = vunpack.c.h.b16 %v715
    %v921 = vunpack.c.l.b16 %v716
    %v922 = vunpack.c.h.b16 %v716
    %v923 = vunpack.c.l.b16 %v717
    %v924 = vunpack.c.h.b16 %v717
    %v925 = vunpack.c.l.b16 %v718
    %v926 = vunpack.c.h.b16 %v718
    %v927 = vunpack.c.l.b16 %v719
    %v928 = vunpack.c.h.b16 %v719
    %v929 = vunpack.c.l.b16 %v720
    %v930 = vunpack.c.h.b16 %v720
    %v931 = vunpack.c.l.b16 %v721
    %v932 = vunpack.c.h.b16 %v721
    %v933 = vunpack.c.l.b16 %v722
    %v934 = vunpack.c.h.b16 %v722
    %v935 = vunpack.c.l.b16 %v723
    %v936 = vunpack.c.h.b16 %v723
    %v937 = vunpack.c.l.b16 %v724
    %v938 = vunpack.c.h.b16 %v724
    %v939 = vpack.c.b16 %v815, %v811
    %v940 = vpack.c.b16 %v816, %v812
    %v941 = vpack.c.b16 %v817, %v813
    %v942 = vpack.c.b16 %v818, %v814
    %v943 = vpack.c.b16 %v823, %v819
    %v944 = vpack.c.b16 %v824, %v820
    %v945 = vpack.c.b16 %v825, %v821
    %v946 = vpack.c.b16 %v826, %v822
    %v947 = vpack.c.b16 %v831, %v827
    %v948 = vpack.c.b16 %v832, %v828
    %v949 = vpack.c.b16 %v833, %v829
    %v950 = vpack.c.b16 %v834, %v830
    %v951 = vpack.c.b16 %v839, %v835
    %v952 = vpack.c.b16 %v840, %v836
    %v953 = vpack.c.b16 %v841, %v837
    %v954 = vpack.c.b16 %v842, %v838
    %v955 = vpack.c.b16 %v847, %v843
    %v956 = vpack.c.b16 %v848, %v844
    %v957 = vpack.c.b16 %v849, %v845
    %v958 = vpack.c.b16 %v850, %v846
    %v959 = vpack.c.b16 %v855, %v851
    %v960 = vpack.c.b16 %v856, %v852
    %v961 = vpack.c.b16 %v857, %v853
    %v962 = vpack.c.b16 %v858, %v854
    %v963 = vpack.c.b16 %v863, %v859
    %v964 = vpack.c.b16 %v864, %v860
    %v965 = vpack.c.b16 %v865, %v861
    %v966 = vpack.c.b16 %v866, %v862
    %v967 = vpack.c.b16 %v871, %v867
    %v968 = vpack.c.b16 %v872, %v868
    %v969 = vpack.c.b16 %v873, %v869
    %v970 = vpack.c.b16 %v874, %v870
    %v971 = vpack.c.b16 %v879, %v875
    %v972 = vpack.c.b16 %v880, %v876
    %v973 = vpack.c.b16 %v881, %v877
    %v974 = vpack.c.b16 %v882, %v878
    %v975 = vpack.c.b16 %v887, %v883
    %v976 = vpack.c.b16 %v888, %v884
    %v977 = vpack.c.b16 %v889, %v885
    %v978 = vpack.c.b16 %v890, %v886
    %v979 = vpack.c.b16 %v895, %v891
    %v980 = vpack.c.b16 %v896, %v892
    %v981 = vpack.c.b16 %v897, %v893
    %v982 = vpack.c.b16 %v898, %v894
    %v983 = vpack.c.b16 %v903, %v899
    %v984 = vpack.c.b16 %v904, %v900
    %v985 = vpack.c.b16 %v905, %v901
    %v986 = vpack.c.b16 %v906, %v902
    %v987 = vpack.c.b16 %v911, %v907
    %v988 = vpack.c.b16 %v912, %v908
    %v989 = vpack.c.b16 %v913, %v909
    %v990 = vpack.c.b16 %v914, %v910
    %v991 = vpack.c.b16 %v919, %v915
    %v992 = vpack.c.b16 %v920, %v916
    %v993 = vpack.c.b16 %v921, %v917
    %v994 = vpack.c.b16 %v922, %v918
    %v995 = vpack.c.b16 %v927, %v923
    %v996 = vpack.c.b16 %v928, %v924
    %v997 = vpack.c.b16 %v929, %v925
    %v998 = vpack.c.b16 %v930, %v926
    %v999 = vpack.c.b16 %v935, %v931
    %v1000 = vpack.c.b16 %v936, %v932
    %v1001 = vpack.c.b16 %v937, %v933
    %v1002 = vpack.c.b16 %v938, %v934
    %1067 = vmatprep.subr.bf16.mxu0 %v940
    %1068 = vmatpush1.bf16.msra.mxu0 %v939
    %1069 = vmatprep.subr.bf16.mxu0 %v944
    %1070 = vmatpush1.bf16.msra.mxu0 %v943
    %1071 = vmatprep.subr.bf16.mxu0 %v948
    %1072 = vmatpush1.bf16.msra.mxu0 %v947
    %1073 = vmatprep.subr.bf16.mxu0 %v952
    %1074 = vmatpush1.bf16.msra.mxu0 %v951
    %1075 = vmatprep.subr.bf16.mxu0 %v956
    %1076 = vmatpush1.bf16.msra.mxu0 %v955
    %1077 = vmatprep.subr.bf16.mxu0 %v960
    %1078 = vmatpush1.bf16.msra.mxu0 %v959
    %1079 = vmatprep.subr.bf16.mxu0 %v964
    %1080 = vmatpush1.bf16.msra.mxu0 %v963
    %1081 = vmatprep.subr.bf16.mxu0 %v968
    %1082 = vmatpush1.bf16.msra.mxu0 %v967
    %1083 = vmatprep.subr.bf16.mxu0 %v972
    %1084 = vmatpush1.bf16.msra.mxu0 %v971
    %1085 = vmatprep.subr.bf16.mxu0 %v976
    %1086 = vmatpush1.bf16.msra.mxu0 %v975
    %1087 = vmatprep.subr.bf16.mxu0 %v980
    %1088 = vmatpush1.bf16.msra.mxu0 %v979
    %1089 = vmatprep.subr.bf16.mxu0 %v984
    %1090 = vmatpush1.bf16.msra.mxu0 %v983
    %1091 = vmatprep.subr.bf16.mxu0 %v988
    %1092 = vmatpush1.bf16.msra.mxu0 %v987
    %1093 = vmatprep.subr.bf16.mxu0 %v992
    %1094 = vmatpush1.bf16.msra.mxu0 %v991
    %1095 = vmatprep.subr.bf16.mxu0 %v996
    %1096 = vmatpush1.bf16.msra.mxu0 %v995
    %1097 = vmatprep.subr.bf16.mxu0 %v1000
    %1098 = vmatpush1.bf16.msra.mxu0 %v999
    %1099 = vmatprep.mubr.bf16.mxu0 %v660
    %1100 = vmatmul.mubr.bf16.gmra.mrb[0].mxu0 %v659
    %v1101 = vpop.f32.mrb[0].mxu0
    %v1102 = vadd.f32 %v730, %v1101
    %v1103 = vpop.f32.mrb[0].mxu0
    %v1104 = vadd.f32 %v734, %v1103
    %v1105 = vpop.f32.mrb[0].mxu0
    %v1106 = vpop.f32.mrb[0].mxu0
    %1107 = vdwg.mxu0
    %1108 = vmatprep.subr.bf16.mxu0 %v942
    %1109 = vmatpush1.bf16.msra.mxu0 %v941
    %1110 = vmatprep.subr.bf16.mxu0 %v946
    %1111 = vmatpush1.bf16.msra.mxu0 %v945
    %1112 = vmatprep.subr.bf16.mxu0 %v950
    %1113 = vmatpush1.bf16.msra.mxu0 %v949
    %1114 = vmatprep.subr.bf16.mxu0 %v954
    %1115 = vmatpush1.bf16.msra.mxu0 %v953
    %1116 = vmatprep.subr.bf16.mxu0 %v958
    %1117 = vmatpush1.bf16.msra.mxu0 %v957
    %1118 = vmatprep.subr.bf16.mxu0 %v962
    %1119 = vmatpush1.bf16.msra.mxu0 %v961
    %1120 = vmatprep.subr.bf16.mxu0 %v966
    %1121 = vmatpush1.bf16.msra.mxu0 %v965
    %1122 = vmatprep.subr.bf16.mxu0 %v970
    %1123 = vmatpush1.bf16.msra.mxu0 %v969
    %1124 = vmatprep.subr.bf16.mxu0 %v974
    %1125 = vmatpush1.bf16.msra.mxu0 %v973
    %1126 = vmatprep.subr.bf16.mxu0 %v978
    %1127 = vmatpush1.bf16.msra.mxu0 %v977
    %1128 = vmatprep.subr.bf16.mxu0 %v982
    %1129 = vmatpush1.bf16.msra.mxu0 %v981
    %1130 = vmatprep.subr.bf16.mxu0 %v986
    %1131 = vmatpush1.bf16.msra.mxu0 %v985
    %1132 = vmatprep.subr.bf16.mxu0 %v990
    %1133 = vmatpush1.bf16.msra.mxu0 %v989
    %1134 = vmatprep.subr.bf16.mxu0 %v994
    %1135 = vmatpush1.bf16.msra.mxu0 %v993
    %1136 = vmatprep.subr.bf16.mxu0 %v998
    %1137 = vmatpush1.bf16.msra.mxu0 %v997
    %1138 = vmatprep.subr.bf16.mxu0 %v1002
    %1139 = vmatpush1.bf16.msra.mxu0 %v1001
    %1140 = vmatprep.mubr.bf16.mxu0 %v660
    %1141 = vmatmul.mubr.bf16.gmra.mrb[0].mxu0 %v659
    %v1142 = vpop.f32.mrb[0].mxu0
    %v1143 = vadd.f32 %v738, %v1142
    %v1144 = vpop.f32.mrb[0].mxu0
    %v1145 = vadd.f32 %v742, %v1144
    %v1146 = vpop.f32.mrb[0].mxu0
    %v1147 = vpop.f32.mrb[0].mxu0
    %1148 = vdwg.mxu0
    %s1149 = scalar_lea.vmem [#allocation3], 8
    %v1150 = vld [vmem:[%s1149] sm:$0xff]
    %v1151 = vxor.u32 %v1102, 2147483648
    %v1152 = vmul.f32 %v1151, 1.442695
    %v1153 = vpow.pop %v1152
    %v1154 = vadd.f32 %v1153, 1.0
    %v1155 = vrcp.pop %v1154
    %v1156 = vmul.f32 1.0, %v1155
    %v1157 = vxor.u32 %v1104, 2147483648
    %v1158 = vmul.f32 %v1157, 1.442695
    %v1159 = vpow.pop %v1158
    %v1160 = vadd.f32 %v1159, 1.0
    %v1161 = vrcp.pop %v1160
    %v1162 = vmul.f32 1.0, %v1161
    %v1163 = vtanh.pop %v1143
    %v1164 = vxor.u32 %v1145, 2147483648
    %v1165 = vmul.f32 %v1164, 1.442695
    %v1166 = vpow.pop %v1165
    %v1167 = vadd.f32 %v1166, 1.0
    %v1168 = vrcp.pop %v1167
    %v1169 = vmul.f32 1.0, %v1168
    %v1170 = vmul.f32 %v1162, %v1150
    %v1171 = vmul.f32 %v1156, %v1163
    %v1172 = vadd.f32 %v1170, %v1171
    %v1173 = vtanh.pop %v1172
    %v1174 = vmul.f32 %v1169, %v1173
    %1175 = vst [vmem:[%s657] sm:$0xff] %v1174
    %1176 = vst [vmem:[%s1149] sm:$0xff] %v1172
    %v1177 = vld [vmem:[#allocation4 + $0x20] sm:$0xff]
    %v1178 = vld [vmem:[#allocation4 + $0x28] sm:$0xff]
    %v1179 = vld [vmem:[#allocation4 + $0x30] sm:$0xff]
    %v1180 = vld [vmem:[#allocation4 + $0x38] sm:$0xff]
    %v1181 = vld [vmem:[#allocation2] sm:$0xff]
    %v1182 = vpack.c.bf16 %v1181, %v1181
    %v1183 = vld [vmem:[#allocation5] sm:$0xff]
    %v1184 = vld [vmem:[#allocation5 + $0x8] sm:$0xff]
    %v1185 = vld [vmem:[#allocation5 + $0x10] sm:$0xff]
    %v1186 = vld [vmem:[#allocation5 + $0x18] sm:$0xff]
    %v1187 = vld [vmem:[#allocation5 + $0x20] sm:$0xff]
    %v1188 = vld [vmem:[#allocation5 + $0x28] sm:$0xff]
    %v1189 = vld [vmem:[#allocation5 + $0x30] sm:$0xff]
    %v1190 = vld [vmem:[#allocation5 + $0x38] sm:$0xff]
    %v1191 = vld [vmem:[#allocation5 + $0x40] sm:$0xff]
    %v1192 = vld [vmem:[#allocation5 + $0x48] sm:$0xff]
    %v1193 = vld [vmem:[#allocation5 + $0x50] sm:$0xff]
    %v1194 = vld [vmem:[#allocation5 + $0x58] sm:$0xff]
    %v1195 = vld [vmem:[#allocation5 + $0x60] sm:$0xff]
    %v1196 = vld [vmem:[#allocation5 + $0x68] sm:$0xff]
    %v1197 = vld [vmem:[#allocation5 + $0x70] sm:$0xff]
    %v1198 = vld [vmem:[#allocation5 + $0x78] sm:$0xff]
    %v1199 = vld [vmem:[#allocation5 + $0x80] sm:$0xff]
    %v1200 = vld [vmem:[#allocation5 + $0x88] sm:$0xff]
    %v1201 = vld [vmem:[#allocation5 + $0x90] sm:$0xff]
    %v1202 = vld [vmem:[#allocation5 + $0x98] sm:$0xff]
    %v1203 = vld [vmem:[#allocation5 + $0xa0] sm:$0xff]
    %v1204 = vld [vmem:[#allocation5 + $0xa8] sm:$0xff]
    %v1205 = vld [vmem:[#allocation5 + $0xb0] sm:$0xff]
    %v1206 = vld [vmem:[#allocation5 + $0xb8] sm:$0xff]
    %v1207 = vld [vmem:[#allocation5 + $0xc0] sm:$0xff]
    %v1208 = vld [vmem:[#allocation5 + $0xc8] sm:$0xff]
    %v1209 = vld [vmem:[#allocation5 + $0xd0] sm:$0xff]
    %v1210 = vld [vmem:[#allocation5 + $0xd8] sm:$0xff]
    %v1211 = vld [vmem:[#allocation5 + $0xe0] sm:$0xff]
    %v1212 = vld [vmem:[#allocation5 + $0xe8] sm:$0xff]
    %v1213 = vld [vmem:[#allocation5 + $0xf0] sm:$0xff]
    %v1214 = vld [vmem:[#allocation5 + $0xf8] sm:$0xff]
    %v1247 = vunpack.c.l.b16 %v1183
    %v1248 = vunpack.c.h.b16 %v1183
    %v1249 = vunpack.c.l.b16 %v1184
    %v1250 = vunpack.c.h.b16 %v1184
    %v1251 = vunpack.c.l.b16 %v1185
    %v1252 = vunpack.c.h.b16 %v1185
    %v1253 = vunpack.c.l.b16 %v1186
    %v1254 = vunpack.c.h.b16 %v1186
    %v1255 = vunpack.c.l.b16 %v1187
    %v1256 = vunpack.c.h.b16 %v1187
    %v1257 = vunpack.c.l.b16 %v1188
    %v1258 = vunpack.c.h.b16 %v1188
    %v1259 = vunpack.c.l.b16 %v1189
    %v1260 = vunpack.c.h.b16 %v1189
    %v1261 = vunpack.c.l.b16 %v1190
    %v1262 = vunpack.c.h.b16 %v1190
    %v1263 = vunpack.c.l.b16 %v1191
    %v1264 = vunpack.c.h.b16 %v1191
    %v1265 = vunpack.c.l.b16 %v1192
    %v1266 = vunpack.c.h.b16 %v1192
    %v1267 = vunpack.c.l.b16 %v1193
    %v1268 = vunpack.c.h.b16 %v1193
    %v1269 = vunpack.c.l.b16 %v1194
    %v1270 = vunpack.c.h.b16 %v1194
    %v1271 = vunpack.c.l.b16 %v1195
    %v1272 = vunpack.c.h.b16 %v1195
    %v1273 = vunpack.c.l.b16 %v1196
    %v1274 = vunpack.c.h.b16 %v1196
    %v1275 = vunpack.c.l.b16 %v1197
    %v1276 = vunpack.c.h.b16 %v1197
    %v1277 = vunpack.c.l.b16 %v1198
    %v1278 = vunpack.c.h.b16 %v1198
    %v1279 = vunpack.c.l.b16 %v1199
    %v1280 = vunpack.c.h.b16 %v1199
    %v1281 = vunpack.c.l.b16 %v1200
    %v1282 = vunpack.c.h.b16 %v1200
    %v1283 = vunpack.c.l.b16 %v1201
    %v1284 = vunpack.c.h.b16 %v1201
    %v1285 = vunpack.c.l.b16 %v1202
    %v1286 = vunpack.c.h.b16 %v1202
    %v1287 = vunpack.c.l.b16 %v1203
    %v1288 = vunpack.c.h.b16 %v1203
    %v1289 = vunpack.c.l.b16 %v1204
    %v1290 = vunpack.c.h.b16 %v1204
    %v1291 = vunpack.c.l.b16 %v1205
    %v1292 = vunpack.c.h.b16 %v1205
    %v1293 = vunpack.c.l.b16 %v1206
    %v1294 = vunpack.c.h.b16 %v1206
    %v1295 = vunpack.c.l.b16 %v1207
    %v1296 = vunpack.c.h.b16 %v1207
    %v1297 = vunpack.c.l.b16 %v1208
    %v1298 = vunpack.c.h.b16 %v1208
    %v1299 = vunpack.c.l.b16 %v1209
    %v1300 = vunpack.c.h.b16 %v1209
    %v1301 = vunpack.c.l.b16 %v1210
    %v1302 = vunpack.c.h.b16 %v1210
    %v1303 = vunpack.c.l.b16 %v1211
    %v1304 = vunpack.c.h.b16 %v1211
    %v1305 = vunpack.c.l.b16 %v1212
    %v1306 = vunpack.c.h.b16 %v1212
    %v1307 = vunpack.c.l.b16 %v1213
    %v1308 = vunpack.c.h.b16 %v1213
    %v1309 = vunpack.c.l.b16 %v1214
    %v1310 = vunpack.c.h.b16 %v1214
    %v1311 = vpack.c.b16 %v1251, %v1247
    %v1312 = vpack.c.b16 %v1252, %v1248
    %v1313 = vpack.c.b16 %v1253, %v1249
    %v1314 = vpack.c.b16 %v1254, %v1250
    %v1315 = vpack.c.b16 %v1259, %v1255
    %v1316 = vpack.c.b16 %v1260, %v1256
    %v1317 = vpack.c.b16 %v1261, %v1257
    %v1318 = vpack.c.b16 %v1262, %v1258
    %v1319 = vpack.c.b16 %v1267, %v1263
    %v1320 = vpack.c.b16 %v1268, %v1264
    %v1321 = vpack.c.b16 %v1269, %v1265
    %v1322 = vpack.c.b16 %v1270, %v1266
    %v1323 = vpack.c.b16 %v1275, %v1271
    %v1324 = vpack.c.b16 %v1276, %v1272
    %v1325 = vpack.c.b16 %v1277, %v1273
    %v1326 = vpack.c.b16 %v1278, %v1274
    %v1327 = vpack.c.b16 %v1283, %v1279
    %v1328 = vpack.c.b16 %v1284, %v1280
    %v1329 = vpack.c.b16 %v1285, %v1281
    %v1330 = vpack.c.b16 %v1286, %v1282
    %v1331 = vpack.c.b16 %v1291, %v1287
    %v1332 = vpack.c.b16 %v1292, %v1288
    %v1333 = vpack.c.b16 %v1293, %v1289
    %v1334 = vpack.c.b16 %v1294, %v1290
    %v1335 = vpack.c.b16 %v1299, %v1295
    %v1336 = vpack.c.b16 %v1300, %v1296
    %v1337 = vpack.c.b16 %v1301, %v1297
    %v1338 = vpack.c.b16 %v1302, %v1298
    %v1339 = vpack.c.b16 %v1307, %v1303
    %v1340 = vpack.c.b16 %v1308, %v1304
    %v1341 = vpack.c.b16 %v1309, %v1305
    %v1342 = vpack.c.b16 %v1310, %v1306
    %1375 = vmatprep.subr.bf16.mxu0 %v1312
    %1376 = vmatpush1.bf16.msra.mxu0 %v1311
    %1377 = vmatprep.subr.bf16.mxu0 %v1316
    %1378 = vmatpush1.bf16.msra.mxu0 %v1315
    %1379 = vmatprep.subr.bf16.mxu0 %v1320
    %1380 = vmatpush1.bf16.msra.mxu0 %v1319
    %1381 = vmatprep.subr.bf16.mxu0 %v1324
    %1382 = vmatpush1.bf16.msra.mxu0 %v1323
    %1383 = vmatprep.subr.bf16.mxu0 %v1328
    %1384 = vmatpush1.bf16.msra.mxu0 %v1327
    %1385 = vmatprep.subr.bf16.mxu0 %v1332
    %1386 = vmatpush1.bf16.msra.mxu0 %v1331
    %1387 = vmatprep.subr.bf16.mxu0 %v1336
    %1388 = vmatpush1.bf16.msra.mxu0 %v1335
    %1389 = vmatprep.subr.bf16.mxu0 %v1340
    %1390 = vmatpush1.bf16.msra.mxu0 %v1339
    %1391 = vmatprep.subr.bf16.mxu0 0
    %1392 = vmatpush1.bf16.msra.mxu0 0
    %1393 = vmatprep.subr.bf16.mxu0 0
    %1394 = vmatpush1.bf16.msra.mxu0 0
    %1395 = vmatprep.subr.bf16.mxu0 0
    %1396 = vmatpush1.bf16.msra.mxu0 0
    %1397 = vmatprep.subr.bf16.mxu0 0
    %1398 = vmatpush1.bf16.msra.mxu0 0
    %1399 = vmatprep.subr.bf16.mxu0 0
    %1400 = vmatpush1.bf16.msra.mxu0 0
    %1401 = vmatprep.subr.bf16.mxu0 0
    %1402 = vmatpush1.bf16.msra.mxu0 0
    %1403 = vmatprep.subr.bf16.mxu0 0
    %1404 = vmatpush1.bf16.msra.mxu0 0
    %1405 = vmatprep.subr.bf16.mxu0 0
    %1406 = vmatpush1.bf16.msra.mxu0 0
    %1407 = vmatprep.mubr.bf16.mxu0 0
    %1408 = vmatmul.mubr.bf16.gmra.mrb[0].mxu0 %v1182
    %v1409 = vpop.f32.mrb[0].mxu0
    %v1410 = vadd.f32 0.0, %v1409
    %v1411 = vpop.f32.mrb[0].mxu0
    %v1412 = vadd.f32 0.0, %v1411
    %v1413 = vpop.f32.mrb[0].mxu0
    %v1414 = vpop.f32.mrb[0].mxu0
    %1415 = vdwg.mxu0
    %1416 = vmatprep.subr.bf16.mxu0 %v1314
    %1417 = vmatpush1.bf16.msra.mxu0 %v1313
    %1418 = vmatprep.subr.bf16.mxu0 %v1318
    %1419 = vmatpush1.bf16.msra.mxu0 %v1317
    %1420 = vmatprep.subr.bf16.mxu0 %v1322
    %1421 = vmatpush1.bf16.msra.mxu0 %v1321
    %1422 = vmatprep.subr.bf16.mxu0 %v1326
    %1423 = vmatpush1.bf16.msra.mxu0 %v1325
    %1424 = vmatprep.subr.bf16.mxu0 %v1330
    %1425 = vmatpush1.bf16.msra.mxu0 %v1329
    %1426 = vmatprep.subr.bf16.mxu0 %v1334
    %1427 = vmatpush1.bf16.msra.mxu0 %v1333
    %1428 = vmatprep.subr.bf16.mxu0 %v1338
    %1429 = vmatpush1.bf16.msra.mxu0 %v1337
    %1430 = vmatprep.subr.bf16.mxu0 %v1342
    %1431 = vmatpush1.bf16.msra.mxu0 %v1341
    %1432 = vmatprep.subr.bf16.mxu0 0
    %1433 = vmatpush1.bf16.msra.mxu0 0
    %1434 = vmatprep.subr.bf16.mxu0 0
    %1435 = vmatpush1.bf16.msra.mxu0 0
    %1436 = vmatprep.subr.bf16.mxu0 0
    %1437 = vmatpush1.bf16.msra.mxu0 0
    %1438 = vmatprep.subr.bf16.mxu0 0
    %1439 = vmatpush1.bf16.msra.mxu0 0
    %1440 = vmatprep.subr.bf16.mxu0 0
    %1441 = vmatpush1.bf16.msra.mxu0 0
    %1442 = vmatprep.subr.bf16.mxu0 0
    %1443 = vmatpush1.bf16.msra.mxu0 0
    %1444 = vmatprep.subr.bf16.mxu0 0
    %1445 = vmatpush1.bf16.msra.mxu0 0
    %1446 = vmatprep.subr.bf16.mxu0 0
    %1447 = vmatpush1.bf16.msra.mxu0 0
    %1448 = vmatprep.mubr.bf16.mxu0 0
    %1449 = vmatmul.mubr.bf16.gmra.mrb[0].mxu0 %v1182
    %v1450 = vpop.f32.mrb[0].mxu0
    %v1451 = vadd.f32 0.0, %v1450
    %v1452 = vpop.f32.mrb[0].mxu0
    %v1453 = vadd.f32 0.0, %v1452
    %v1454 = vpop.f32.mrb[0].mxu0
    %v1455 = vpop.f32.mrb[0].mxu0
    %1456 = vdwg.mxu0
    %v1457 = vadd.f32 %v1177, %v1410
    %v1458 = vadd.f32 %v1178, %v1412
    %v1459 = vadd.f32 %v1179, %v1451
    %v1460 = vadd.f32 %v1180, %v1453
    %v1461 = vld [vmem:[#allocation3] sm:$0xff]
    %v1462 = vxor.u32 %v1457, 2147483648
    %v1463 = vmul.f32 %v1462, 1.442695
    %v1464 = vpow.pop %v1463
    %v1465 = vadd.f32 %v1464, 1.0
    %v1466 = vrcp.pop %v1465
    %v1467 = vmul.f32 1.0, %v1466
    %v1468 = vxor.u32 %v1458, 2147483648
    %v1469 = vmul.f32 %v1468, 1.442695
    %v1470 = vpow.pop %v1469
    %v1471 = vadd.f32 %v1470, 1.0
    %v1472 = vrcp.pop %v1471
    %v1473 = vmul.f32 1.0, %v1472
    %v1474 = vtanh.pop %v1459
    %v1475 = vxor.u32 %v1460, 2147483648
    %v1476 = vmul.f32 %v1475, 1.442695
    %v1477 = vpow.pop %v1476
    %v1478 = vadd.f32 %v1477, 1.0
    %v1479 = vrcp.pop %v1478
    %v1480 = vmul.f32 1.0, %v1479
    %v1481 = vmul.f32 %v1473, %v1461
    %v1482 = vmul.f32 %v1467, %v1474
    %v1483 = vadd.f32 %v1481, %v1482
    %v1484 = vtanh.pop %v1483
    %v1485 = vmul.f32 %v1480, %v1484
    %1486 = vst [vmem:[#allocation2] sm:$0xff] %v1485
    %1487 = vst [vmem:[#allocation3] sm:$0xff] %v1483
    %v1488 = vld [vmem:[%s657] sm:$0xff]
    %v1489 = vpack.c.bf16 %v1485, %v1485
    %v1490 = vpack.c.bf16 %v1488, %v1488
    %v1491 = vld [vmem:[#allocation8] sm:$0xff]
    %v1492 = vld [vmem:[#allocation8 + $0x8] sm:$0xff]
    %v1493 = vld [vmem:[#allocation8 + $0x10] sm:$0xff]
    %v1494 = vld [vmem:[#allocation8 + $0x18] sm:$0xff]
    %v1495 = vld [vmem:[#allocation8 + $0x20] sm:$0xff]
    %v1496 = vld [vmem:[#allocation8 + $0x28] sm:$0xff]
    %v1497 = vld [vmem:[#allocation8 + $0x30] sm:$0xff]
    %v1498 = vld [vmem:[#allocation8 + $0x38] sm:$0xff]
    %v1499 = vld [vmem:[#allocation8 + $0x40] sm:$0xff]
    %v1500 = vld [vmem:[#allocation8 + $0x48] sm:$0xff]
    %v1501 = vld [vmem:[#allocation8 + $0x50] sm:$0xff]
    %v1502 = vld [vmem:[#allocation8 + $0x58] sm:$0xff]
    %v1503 = vld [vmem:[#allocation8 + $0x60] sm:$0xff]
    %v1504 = vld [vmem:[#allocation8 + $0x68] sm:$0xff]
    %v1505 = vld [vmem:[#allocation8 + $0x70] sm:$0xff]
    %v1506 = vld [vmem:[#allocation8 + $0x78] sm:$0xff]
    %v1507 = vld [vmem:[#allocation8 + $0x80] sm:$0xff]
    %v1508 = vld [vmem:[#allocation8 + $0x88] sm:$0xff]
    %v1509 = vld [vmem:[#allocation8 + $0x90] sm:$0xff]
    %v1510 = vld [vmem:[#allocation8 + $0x98] sm:$0xff]
    %v1511 = vld [vmem:[#allocation8 + $0xa0] sm:$0xff]
    %v1512 = vld [vmem:[#allocation8 + $0xa8] sm:$0xff]
    %v1513 = vld [vmem:[#allocation8 + $0xb0] sm:$0xff]
    %v1514 = vld [vmem:[#allocation8 + $0xb8] sm:$0xff]
    %v1515 = vld [vmem:[#allocation8 + $0xc0] sm:$0xff]
    %v1516 = vld [vmem:[#allocation8 + $0xc8] sm:$0xff]
    %v1517 = vld [vmem:[#allocation8 + $0xd0] sm:$0xff]
    %v1518 = vld [vmem:[#allocation8 + $0xd8] sm:$0xff]
    %v1519 = vld [vmem:[#allocation8 + $0xe0] sm:$0xff]
    %v1520 = vld [vmem:[#allocation8 + $0xe8] sm:$0xff]
    %v1521 = vld [vmem:[#allocation8 + $0xf0] sm:$0xff]
    %v1522 = vld [vmem:[#allocation8 + $0xf8] sm:$0xff]
    %v1523 = vld [vmem:[#allocation8 + $0x100] sm:$0xff]
    %v1524 = vld [vmem:[#allocation8 + $0x108] sm:$0xff]
    %v1525 = vld [vmem:[#allocation8 + $0x110] sm:$0xff]
    %v1526 = vld [vmem:[#allocation8 + $0x118] sm:$0xff]
    %v1527 = vld [vmem:[#allocation8 + $0x120] sm:$0xff]
    %v1528 = vld [vmem:[#allocation8 + $0x128] sm:$0xff]
    %v1529 = vld [vmem:[#allocation8 + $0x130] sm:$0xff]
    %v1530 = vld [vmem:[#allocation8 + $0x138] sm:$0xff]
    %v1531 = vld [vmem:[#allocation8 + $0x140] sm:$0xff]
    %v1532 = vld [vmem:[#allocation8 + $0x148] sm:$0xff]
    %v1533 = vld [vmem:[#allocation8 + $0x150] sm:$0xff]
    %v1534 = vld [vmem:[#allocation8 + $0x158] sm:$0xff]
    %v1535 = vld [vmem:[#allocation8 + $0x160] sm:$0xff]
    %v1536 = vld [vmem:[#allocation8 + $0x168] sm:$0xff]
    %v1537 = vld [vmem:[#allocation8 + $0x170] sm:$0xff]
    %v1538 = vld [vmem:[#allocation8 + $0x178] sm:$0xff]
    %v1539 = vld [vmem:[#allocation8 + $0x180] sm:$0xff]
    %v1540 = vld [vmem:[#allocation8 + $0x188] sm:$0xff]
    %v1541 = vld [vmem:[#allocation8 + $0x190] sm:$0xff]
    %v1542 = vld [vmem:[#allocation8 + $0x198] sm:$0xff]
    %v1543 = vld [vmem:[#allocation8 + $0x1a0] sm:$0xff]
    %v1544 = vld [vmem:[#allocation8 + $0x1a8] sm:$0xff]
    %v1545 = vld [vmem:[#allocation8 + $0x1b0] sm:$0xff]
    %v1546 = vld [vmem:[#allocation8 + $0x1b8] sm:$0xff]
    %v1547 = vld [vmem:[#allocation8 + $0x1c0] sm:$0xff]
    %v1548 = vld [vmem:[#allocation8 + $0x1c8] sm:$0xff]
    %v1549 = vld [vmem:[#allocation8 + $0x1d0] sm:$0xff]
    %v1550 = vld [vmem:[#allocation8 + $0x1d8] sm:$0xff]
    %v1551 = vld [vmem:[#allocation8 + $0x1e0] sm:$0xff]
    %v1552 = vld [vmem:[#allocation8 + $0x1e8] sm:$0xff]
    %v1553 = vld [vmem:[#allocation8 + $0x1f0] sm:$0xff]
    %v1554 = vld [vmem:[#allocation8 + $0x1f8] sm:$0xff]
    %v1555 = vld [vmem:[%s5] sm:$0xf]
    %v1557 = vlaneseq
    %v1558 = vshrl.u32 %v1557, 7
    %v1559 = vsub.s32 0, %v1558
    %v1560 = vrot.slane %v1555, %v1559
    %v1561 = vlaneseq
    %v1562 = vshrl.u32 %v1561, 7
    %v1563 = vsub.s32 1, %v1562
    %v1564 = vrot.slane %v1555, %v1563
    %v1565 = vlaneseq
    %v1566 = vshrl.u32 %v1565, 7
    %v1567 = vsub.s32 2, %v1566
    %v1568 = vrot.slane %v1555, %v1567
    %v1569 = vlaneseq
    %v1570 = vshrl.u32 %v1569, 7
    %v1571 = vsub.s32 3, %v1570
    %v1572 = vrot.slane %v1555, %v1571
    %v1641 = vunpack.c.l.b16 %v1491
    %v1642 = vunpack.c.h.b16 %v1491
    %v1643 = vunpack.c.l.b16 %v1492
    %v1644 = vunpack.c.h.b16 %v1492
    %v1645 = vunpack.c.l.b16 %v1493
    %v1646 = vunpack.c.h.b16 %v1493
    %v1647 = vunpack.c.l.b16 %v1494
    %v1648 = vunpack.c.h.b16 %v1494
    %v1649 = vunpack.c.l.b16 %v1495
    %v1650 = vunpack.c.h.b16 %v1495
    %v1651 = vunpack.c.l.b16 %v1496
    %v1652 = vunpack.c.h.b16 %v1496
    %v1653 = vunpack.c.l.b16 %v1497
    %v1654 = vunpack.c.h.b16 %v1497
    %v1655 = vunpack.c.l.b16 %v1498
    %v1656 = vunpack.c.h.b16 %v1498
    %v1657 = vunpack.c.l.b16 %v1499
    %v1658 = vunpack.c.h.b16 %v1499
    %v1659 = vunpack.c.l.b16 %v1500
    %v1660 = vunpack.c.h.b16 %v1500
    %v1661 = vunpack.c.l.b16 %v1501
    %v1662 = vunpack.c.h.b16 %v1501
    %v1663 = vunpack.c.l.b16 %v1502
    %v1664 = vunpack.c.h.b16 %v1502
    %v1665 = vunpack.c.l.b16 %v1503
    %v1666 = vunpack.c.h.b16 %v1503
    %v1667 = vunpack.c.l.b16 %v1504
    %v1668 = vunpack.c.h.b16 %v1504
    %v1669 = vunpack.c.l.b16 %v1505
    %v1670 = vunpack.c.h.b16 %v1505
    %v1671 = vunpack.c.l.b16 %v1506
    %v1672 = vunpack.c.h.b16 %v1506
    %v1673 = vunpack.c.l.b16 %v1507
    %v1674 = vunpack.c.h.b16 %v1507
    %v1675 = vunpack.c.l.b16 %v1508
    %v1676 = vunpack.c.h.b16 %v1508
    %v1677 = vunpack.c.l.b16 %v1509
    %v1678 = vunpack.c.h.b16 %v1509
    %v1679 = vunpack.c.l.b16 %v1510
    %v1680 = vunpack.c.h.b16 %v1510
    %v1681 = vunpack.c.l.b16 %v1511
    %v1682 = vunpack.c.h.b16 %v1511
    %v1683 = vunpack.c.l.b16 %v1512
    %v1684 = vunpack.c.h.b16 %v1512
    %v1685 = vunpack.c.l.b16 %v1513
    %v1686 = vunpack.c.h.b16 %v1513
    %v1687 = vunpack.c.l.b16 %v1514
    %v1688 = vunpack.c.h.b16 %v1514
    %v1689 = vunpack.c.l.b16 %v1515
    %v1690 = vunpack.c.h.b16 %v1515
    %v1691 = vunpack.c.l.b16 %v1516
    %v1692 = vunpack.c.h.b16 %v1516
    %v1693 = vunpack.c.l.b16 %v1517
    %v1694 = vunpack.c.h.b16 %v1517
    %v1695 = vunpack.c.l.b16 %v1518
    %v1696 = vunpack.c.h.b16 %v1518
    %v1697 = vunpack.c.l.b16 %v1519
    %v1698 = vunpack.c.h.b16 %v1519
    %v1699 = vunpack.c.l.b16 %v1520
    %v1700 = vunpack.c.h.b16 %v1520
    %v1701 = vunpack.c.l.b16 %v1521
    %v1702 = vunpack.c.h.b16 %v1521
    %v1703 = vunpack.c.l.b16 %v1522
    %v1704 = vunpack.c.h.b16 %v1522
    %v1705 = vunpack.c.l.b16 %v1523
    %v1706 = vunpack.c.h.b16 %v1523
    %v1707 = vunpack.c.l.b16 %v1524
    %v1708 = vunpack.c.h.b16 %v1524
    %v1709 = vunpack.c.l.b16 %v1525
    %v1710 = vunpack.c.h.b16 %v1525
    %v1711 = vunpack.c.l.b16 %v1526
    %v1712 = vunpack.c.h.b16 %v1526
    %v1713 = vunpack.c.l.b16 %v1527
    %v1714 = vunpack.c.h.b16 %v1527
    %v1715 = vunpack.c.l.b16 %v1528
    %v1716 = vunpack.c.h.b16 %v1528
    %v1717 = vunpack.c.l.b16 %v1529
    %v1718 = vunpack.c.h.b16 %v1529
    %v1719 = vunpack.c.l.b16 %v1530
    %v1720 = vunpack.c.h.b16 %v1530
    %v1721 = vunpack.c.l.b16 %v1531
    %v1722 = vunpack.c.h.b16 %v1531
    %v1723 = vunpack.c.l.b16 %v1532
    %v1724 = vunpack.c.h.b16 %v1532
    %v1725 = vunpack.c.l.b16 %v1533
    %v1726 = vunpack.c.h.b16 %v1533
    %v1727 = vunpack.c.l.b16 %v1534
    %v1728 = vunpack.c.h.b16 %v1534
    %v1729 = vunpack.c.l.b16 %v1535
    %v1730 = vunpack.c.h.b16 %v1535
    %v1731 = vunpack.c.l.b16 %v1536
    %v1732 = vunpack.c.h.b16 %v1536
    %v1733 = vunpack.c.l.b16 %v1537
    %v1734 = vunpack.c.h.b16 %v1537
    %v1735 = vunpack.c.l.b16 %v1538
    %v1736 = vunpack.c.h.b16 %v1538
    %v1737 = vunpack.c.l.b16 %v1539
    %v1738 = vunpack.c.h.b16 %v1539
    %v1739 = vunpack.c.l.b16 %v1540
    %v1740 = vunpack.c.h.b16 %v1540
    %v1741 = vunpack.c.l.b16 %v1541
    %v1742 = vunpack.c.h.b16 %v1541
    %v1743 = vunpack.c.l.b16 %v1542
    %v1744 = vunpack.c.h.b16 %v1542
    %v1745 = vunpack.c.l.b16 %v1543
    %v1746 = vunpack.c.h.b16 %v1543
    %v1747 = vunpack.c.l.b16 %v1544
    %v1748 = vunpack.c.h.b16 %v1544
    %v1749 = vunpack.c.l.b16 %v1545
    %v1750 = vunpack.c.h.b16 %v1545
    %v1751 = vunpack.c.l.b16 %v1546
    %v1752 = vunpack.c.h.b16 %v1546
    %v1753 = vunpack.c.l.b16 %v1547
    %v1754 = vunpack.c.h.b16 %v1547
    %v1755 = vunpack.c.l.b16 %v1548
    %v1756 = vunpack.c.h.b16 %v1548
    %v1757 = vunpack.c.l.b16 %v1549
    %v1758 = vunpack.c.h.b16 %v1549
    %v1759 = vunpack.c.l.b16 %v1550
    %v1760 = vunpack.c.h.b16 %v1550
    %v1761 = vunpack.c.l.b16 %v1551
    %v1762 = vunpack.c.h.b16 %v1551
    %v1763 = vunpack.c.l.b16 %v1552
    %v1764 = vunpack.c.h.b16 %v1552
    %v1765 = vunpack.c.l.b16 %v1553
    %v1766 = vunpack.c.h.b16 %v1553
    %v1767 = vunpack.c.l.b16 %v1554
    %v1768 = vunpack.c.h.b16 %v1554
    %v1769 = vpack.c.b16 %v1645, %v1641
    %v1770 = vpack.c.b16 %v1646, %v1642
    %v1771 = vpack.c.b16 %v1647, %v1643
    %v1772 = vpack.c.b16 %v1648, %v1644
    %v1773 = vpack.c.b16 %v1653, %v1649
    %v1774 = vpack.c.b16 %v1654, %v1650
    %v1775 = vpack.c.b16 %v1655, %v1651
    %v1776 = vpack.c.b16 %v1656, %v1652
    %v1777 = vpack.c.b16 %v1661, %v1657
    %v1778 = vpack.c.b16 %v1662, %v1658
    %v1779 = vpack.c.b16 %v1663, %v1659
    %v1780 = vpack.c.b16 %v1664, %v1660
    %v1781 = vpack.c.b16 %v1669, %v1665
    %v1782 = vpack.c.b16 %v1670, %v1666
    %v1783 = vpack.c.b16 %v1671, %v1667
    %v1784 = vpack.c.b16 %v1672, %v1668
    %v1785 = vpack.c.b16 %v1677, %v1673
    %v1786 = vpack.c.b16 %v1678, %v1674
    %v1787 = vpack.c.b16 %v1679, %v1675
    %v1788 = vpack.c.b16 %v1680, %v1676
    %v1789 = vpack.c.b16 %v1685, %v1681
    %v1790 = vpack.c.b16 %v1686, %v1682
    %v1791 = vpack.c.b16 %v1687, %v1683
    %v1792 = vpack.c.b16 %v1688, %v1684
    %v1793 = vpack.c.b16 %v1693, %v1689
    %v1794 = vpack.c.b16 %v1694, %v1690
    %v1795 = vpack.c.b16 %v1695, %v1691
    %v1796 = vpack.c.b16 %v1696, %v1692
    %v1797 = vpack.c.b16 %v1701, %v1697
    %v1798 = vpack.c.b16 %v1702, %v1698
    %v1799 = vpack.c.b16 %v1703, %v1699
    %v1800 = vpack.c.b16 %v1704, %v1700
    %v1801 = vpack.c.b16 %v1709, %v1705
    %v1802 = vpack.c.b16 %v1710, %v1706
    %v1803 = vpack.c.b16 %v1711, %v1707
    %v1804 = vpack.c.b16 %v1712, %v1708
    %v1805 = vpack.c.b16 %v1717, %v1713
    %v1806 = vpack.c.b16 %v1718, %v1714
    %v1807 = vpack.c.b16 %v1719, %v1715
    %v1808 = vpack.c.b16 %v1720, %v1716
    %v1809 = vpack.c.b16 %v1725, %v1721
    %v1810 = vpack.c.b16 %v1726, %v1722
    %v1811 = vpack.c.b16 %v1727, %v1723
    %v1812 = vpack.c.b16 %v1728, %v1724
    %v1813 = vpack.c.b16 %v1733, %v1729
    %v1814 = vpack.c.b16 %v1734, %v1730
    %v1815 = vpack.c.b16 %v1735, %v1731
    %v1816 = vpack.c.b16 %v1736, %v1732
    %v1817 = vpack.c.b16 %v1741, %v1737
    %v1818 = vpack.c.b16 %v1742, %v1738
    %v1819 = vpack.c.b16 %v1743, %v1739
    %v1820 = vpack.c.b16 %v1744, %v1740
    %v1821 = vpack.c.b16 %v1749, %v1745
    %v1822 = vpack.c.b16 %v1750, %v1746
    %v1823 = vpack.c.b16 %v1751, %v1747
    %v1824 = vpack.c.b16 %v1752, %v1748
    %v1825 = vpack.c.b16 %v1757, %v1753
    %v1826 = vpack.c.b16 %v1758, %v1754
    %v1827 = vpack.c.b16 %v1759, %v1755
    %v1828 = vpack.c.b16 %v1760, %v1756
    %v1829 = vpack.c.b16 %v1765, %v1761
    %v1830 = vpack.c.b16 %v1766, %v1762
    %v1831 = vpack.c.b16 %v1767, %v1763
    %v1832 = vpack.c.b16 %v1768, %v1764
    %1897 = vmatprep.subr.bf16.mxu0 %v1770
    %1898 = vmatpush1.bf16.msra.mxu0 %v1769
    %1899 = vmatprep.subr.bf16.mxu0 %v1774
    %1900 = vmatpush1.bf16.msra.mxu0 %v1773
    %1901 = vmatprep.subr.bf16.mxu0 %v1778
    %1902 = vmatpush1.bf16.msra.mxu0 %v1777
    %1903 = vmatprep.subr.bf16.mxu0 %v1782
    %1904 = vmatpush1.bf16.msra.mxu0 %v1781
    %1905 = vmatprep.subr.bf16.mxu0 %v1786
    %1906 = vmatpush1.bf16.msra.mxu0 %v1785
    %1907 = vmatprep.subr.bf16.mxu0 %v1790
    %1908 = vmatpush1.bf16.msra.mxu0 %v1789
    %1909 = vmatprep.subr.bf16.mxu0 %v1794
    %1910 = vmatpush1.bf16.msra.mxu0 %v1793
    %1911 = vmatprep.subr.bf16.mxu0 %v1798
    %1912 = vmatpush1.bf16.msra.mxu0 %v1797
    %1913 = vmatprep.subr.bf16.mxu0 %v1802
    %1914 = vmatpush1.bf16.msra.mxu0 %v1801
    %1915 = vmatprep.subr.bf16.mxu0 %v1806
    %1916 = vmatpush1.bf16.msra.mxu0 %v1805
    %1917 = vmatprep.subr.bf16.mxu0 %v1810
    %1918 = vmatpush1.bf16.msra.mxu0 %v1809
    %1919 = vmatprep.subr.bf16.mxu0 %v1814
    %1920 = vmatpush1.bf16.msra.mxu0 %v1813
    %1921 = vmatprep.subr.bf16.mxu0 %v1818
    %1922 = vmatpush1.bf16.msra.mxu0 %v1817
    %1923 = vmatprep.subr.bf16.mxu0 %v1822
    %1924 = vmatpush1.bf16.msra.mxu0 %v1821
    %1925 = vmatprep.subr.bf16.mxu0 %v1826
    %1926 = vmatpush1.bf16.msra.mxu0 %v1825
    %1927 = vmatprep.subr.bf16.mxu0 %v1830
    %1928 = vmatpush1.bf16.msra.mxu0 %v1829
    %1929 = vmatprep.mubr.bf16.mxu0 %v1490
    %1930 = vmatmul.mubr.bf16.gmra.mrb[0].mxu0 %v1489
    %v1931 = vpop.f32.mrb[0].mxu0
    %v1932 = vadd.f32 %v1560, %v1931
    %v1933 = vpop.f32.mrb[0].mxu0
    %v1934 = vadd.f32 %v1564, %v1933
    %v1935 = vpop.f32.mrb[0].mxu0
    %v1936 = vpop.f32.mrb[0].mxu0
    %1937 = vdwg.mxu0
    %1938 = vmatprep.subr.bf16.mxu0 %v1772
    %1939 = vmatpush1.bf16.msra.mxu0 %v1771
    %1940 = vmatprep.subr.bf16.mxu0 %v1776
    %1941 = vmatpush1.bf16.msra.mxu0 %v1775
    %1942 = vmatprep.subr.bf16.mxu0 %v1780
    %1943 = vmatpush1.bf16.msra.mxu0 %v1779
    %1944 = vmatprep.subr.bf16.mxu0 %v1784
    %1945 = vmatpush1.bf16.msra.mxu0 %v1783
    %1946 = vmatprep.subr.bf16.mxu0 %v1788
    %1947 = vmatpush1.bf16.msra.mxu0 %v1787
    %1948 = vmatprep.subr.bf16.mxu0 %v1792
    %1949 = vmatpush1.bf16.msra.mxu0 %v1791
    %1950 = vmatprep.subr.bf16.mxu0 %v1796
    %1951 = vmatpush1.bf16.msra.mxu0 %v1795
    %1952 = vmatprep.subr.bf16.mxu0 %v1800
    %1953 = vmatpush1.bf16.msra.mxu0 %v1799
    %1954 = vmatprep.subr.bf16.mxu0 %v1804
    %1955 = vmatpush1.bf16.msra.mxu0 %v1803
    %1956 = vmatprep.subr.bf16.mxu0 %v1808
    %1957 = vmatpush1.bf16.msra.mxu0 %v1807
    %1958 = vmatprep.subr.bf16.mxu0 %v1812
    %1959 = vmatpush1.bf16.msra.mxu0 %v1811
    %1960 = vmatprep.subr.bf16.mxu0 %v1816
    %1961 = vmatpush1.bf16.msra.mxu0 %v1815
    %1962 = vmatprep.subr.bf16.mxu0 %v1820
    %1963 = vmatpush1.bf16.msra.mxu0 %v1819
    %1964 = vmatprep.subr.bf16.mxu0 %v1824
    %1965 = vmatpush1.bf16.msra.mxu0 %v1823
    %1966 = vmatprep.subr.bf16.mxu0 %v1828
    %1967 = vmatpush1.bf16.msra.mxu0 %v1827
    %1968 = vmatprep.subr.bf16.mxu0 %v1832
    %1969 = vmatpush1.bf16.msra.mxu0 %v1831
    %1970 = vmatprep.mubr.bf16.mxu0 %v1490
    %1971 = vmatmul.mubr.bf16.gmra.mrb[0].mxu0 %v1489
    %v1972 = vpop.f32.mrb[0].mxu0
    %v1973 = vadd.f32 %v1568, %v1972
    %v1974 = vpop.f32.mrb[0].mxu0
    %v1975 = vadd.f32 %v1572, %v1974
    %v1976 = vpop.f32.mrb[0].mxu0
    %v1977 = vpop.f32.mrb[0].mxu0
    %1978 = vdwg.mxu0
    %v1979 = vld [vmem:[%s1149] sm:$0xff]
    %v1980 = vxor.u32 %v1932, 2147483648
    %v1981 = vmul.f32 %v1980, 1.442695
    %v1982 = vpow.pop %v1981
    %v1983 = vadd.f32 %v1982, 1.0
    %v1984 = vrcp.pop %v1983
    %v1985 = vmul.f32 1.0, %v1984
    %v1986 = vxor.u32 %v1934, 2147483648
    %v1987 = vmul.f32 %v1986, 1.442695
    %v1988 = vpow.pop %v1987
    %v1989 = vadd.f32 %v1988, 1.0
    %v1990 = vrcp.pop %v1989
    %v1991 = vmul.f32 1.0, %v1990
    %v1992 = vtanh.pop %v1973
    %v1993 = vxor.u32 %v1975, 2147483648
    %v1994 = vmul.f32 %v1993, 1.442695
    %v1995 = vpow.pop %v1994
    %v1996 = vadd.f32 %v1995, 1.0
    %v1997 = vrcp.pop %v1996
    %v1998 = vmul.f32 1.0, %v1997
    %v1999 = vmul.f32 %v1991, %v1979
    %v2000 = vmul.f32 %v1985, %v1992
    %v2001 = vadd.f32 %v1999, %v2000
    %v2002 = vtanh.pop %v2001
    %v2003 = vmul.f32 %v1998, %v2002
    %2004 = vst [vmem:[%s657] sm:$0xff] %v2003
    %2005 = vst [vmem:[%s1149] sm:$0xff] %v2001
    %v2006 = vld [vmem:[#allocation4 + $0x40] sm:$0xff]
    %v2007 = vld [vmem:[#allocation4 + $0x48] sm:$0xff]
    %v2008 = vld [vmem:[#allocation4 + $0x50] sm:$0xff]
    %v2009 = vld [vmem:[#allocation4 + $0x58] sm:$0xff]
    %v2010 = vld [vmem:[#allocation2] sm:$0xff]
    %v2011 = vpack.c.bf16 %v2010, %v2010
    %v2012 = vld [vmem:[#allocation5] sm:$0xff]
    %v2013 = vld [vmem:[#allocation5 + $0x8] sm:$0xff]
    %v2014 = vld [vmem:[#allocation5 + $0x10] sm:$0xff]
    %v2015 = vld [vmem:[#allocation5 + $0x18] sm:$0xff]
    %v2016 = vld [vmem:[#allocation5 + $0x20] sm:$0xff]
    %v2017 = vld [vmem:[#allocation5 + $0x28] sm:$0xff]
    %v2018 = vld [vmem:[#allocation5 + $0x30] sm:$0xff]
    %v2019 = vld [vmem:[#allocation5 + $0x38] sm:$0xff]
    %v2020 = vld [vmem:[#allocation5 + $0x40] sm:$0xff]
    %v2021 = vld [vmem:[#allocation5 + $0x48] sm:$0xff]
    %v2022 = vld [vmem:[#allocation5 + $0x50] sm:$0xff]
    %v2023 = vld [vmem:[#allocation5 + $0x58] sm:$0xff]
    %v2024 = vld [vmem:[#allocation5 + $0x60] sm:$0xff]
    %v2025 = vld [vmem:[#allocation5 + $0x68] sm:$0xff]
    %v2026 = vld [vmem:[#allocation5 + $0x70] sm:$0xff]
    %v2027 = vld [vmem:[#allocation5 + $0x78] sm:$0xff]
    %v2028 = vld [vmem:[#allocation5 + $0x80] sm:$0xff]
    %v2029 = vld [vmem:[#allocation5 + $0x88] sm:$0xff]
    %v2030 = vld [vmem:[#allocation5 + $0x90] sm:$0xff]
    %v2031 = vld [vmem:[#allocation5 + $0x98] sm:$0xff]
    %v2032 = vld [vmem:[#allocation5 + $0xa0] sm:$0xff]
    %v2033 = vld [vmem:[#allocation5 + $0xa8] sm:$0xff]
    %v2034 = vld [vmem:[#allocation5 + $0xb0] sm:$0xff]
    %v2035 = vld [vmem:[#allocation5 + $0xb8] sm:$0xff]
    %v2036 = vld [vmem:[#allocation5 + $0xc0] sm:$0xff]
    %v2037 = vld [vmem:[#allocation5 + $0xc8] sm:$0xff]
    %v2038 = vld [vmem:[#allocation5 + $0xd0] sm:$0xff]
    %v2039 = vld [vmem:[#allocation5 + $0xd8] sm:$0xff]
    %v2040 = vld [vmem:[#allocation5 + $0xe0] sm:$0xff]
    %v2041 = vld [vmem:[#allocation5 + $0xe8] sm:$0xff]
    %v2042 = vld [vmem:[#allocation5 + $0xf0] sm:$0xff]
    %v2043 = vld [vmem:[#allocation5 + $0xf8] sm:$0xff]
    %v2076 = vunpack.c.l.b16 %v2012
    %v2077 = vunpack.c.h.b16 %v2012
    %v2078 = vunpack.c.l.b16 %v2013
    %v2079 = vunpack.c.h.b16 %v2013
    %v2080 = vunpack.c.l.b16 %v2014
    %v2081 = vunpack.c.h.b16 %v2014
    %v2082 = vunpack.c.l.b16 %v2015
    %v2083 = vunpack.c.h.b16 %v2015
    %v2084 = vunpack.c.l.b16 %v2016
    %v2085 = vunpack.c.h.b16 %v2016
    %v2086 = vunpack.c.l.b16 %v2017
    %v2087 = vunpack.c.h.b16 %v2017
    %v2088 = vunpack.c.l.b16 %v2018
    %v2089 = vunpack.c.h.b16 %v2018
    %v2090 = vunpack.c.l.b16 %v2019
    %v2091 = vunpack.c.h.b16 %v2019
    %v2092 = vunpack.c.l.b16 %v2020
    %v2093 = vunpack.c.h.b16 %v2020
    %v2094 = vunpack.c.l.b16 %v2021
    %v2095 = vunpack.c.h.b16 %v2021
    %v2096 = vunpack.c.l.b16 %v2022
    %v2097 = vunpack.c.h.b16 %v2022
    %v2098 = vunpack.c.l.b16 %v2023
    %v2099 = vunpack.c.h.b16 %v2023
    %v2100 = vunpack.c.l.b16 %v2024
    %v2101 = vunpack.c.h.b16 %v2024
    %v2102 = vunpack.c.l.b16 %v2025
    %v2103 = vunpack.c.h.b16 %v2025
    %v2104 = vunpack.c.l.b16 %v2026
    %v2105 = vunpack.c.h.b16 %v2026
    %v2106 = vunpack.c.l.b16 %v2027
    %v2107 = vunpack.c.h.b16 %v2027
    %v2108 = vunpack.c.l.b16 %v2028
    %v2109 = vunpack.c.h.b16 %v2028
    %v2110 = vunpack.c.l.b16 %v2029
    %v2111 = vunpack.c.h.b16 %v2029
    %v2112 = vunpack.c.l.b16 %v2030
    %v2113 = vunpack.c.h.b16 %v2030
    %v2114 = vunpack.c.l.b16 %v2031
    %v2115 = vunpack.c.h.b16 %v2031
    %v2116 = vunpack.c.l.b16 %v2032
    %v2117 = vunpack.c.h.b16 %v2032
    %v2118 = vunpack.c.l.b16 %v2033
    %v2119 = vunpack.c.h.b16 %v2033
    %v2120 = vunpack.c.l.b16 %v2034
    %v2121 = vunpack.c.h.b16 %v2034
    %v2122 = vunpack.c.l.b16 %v2035
    %v2123 = vunpack.c.h.b16 %v2035
    %v2124 = vunpack.c.l.b16 %v2036
    %v2125 = vunpack.c.h.b16 %v2036
    %v2126 = vunpack.c.l.b16 %v2037
    %v2127 = vunpack.c.h.b16 %v2037
    %v2128 = vunpack.c.l.b16 %v2038
    %v2129 = vunpack.c.h.b16 %v2038
    %v2130 = vunpack.c.l.b16 %v2039
    %v2131 = vunpack.c.h.b16 %v2039
    %v2132 = vunpack.c.l.b16 %v2040
    %v2133 = vunpack.c.h.b16 %v2040
    %v2134 = vunpack.c.l.b16 %v2041
    %v2135 = vunpack.c.h.b16 %v2041
    %v2136 = vunpack.c.l.b16 %v2042
    %v2137 = vunpack.c.h.b16 %v2042
    %v2138 = vunpack.c.l.b16 %v2043
    %v2139 = vunpack.c.h.b16 %v2043
    %v2140 = vpack.c.b16 %v2080, %v2076
    %v2141 = vpack.c.b16 %v2081, %v2077
    %v2142 = vpack.c.b16 %v2082, %v2078
    %v2143 = vpack.c.b16 %v2083, %v2079
    %v2144 = vpack.c.b16 %v2088, %v2084
    %v2145 = vpack.c.b16 %v2089, %v2085
    %v2146 = vpack.c.b16 %v2090, %v2086
    %v2147 = vpack.c.b16 %v2091, %v2087
    %v2148 = vpack.c.b16 %v2096, %v2092
    %v2149 = vpack.c.b16 %v2097, %v2093
    %v2150 = vpack.c.b16 %v2098, %v2094
    %v2151 = vpack.c.b16 %v2099, %v2095
    %v2152 = vpack.c.b16 %v2104, %v2100
    %v2153 = vpack.c.b16 %v2105, %v2101
    %v2154 = vpack.c.b16 %v2106, %v2102
    %v2155 = vpack.c.b16 %v2107, %v2103
    %v2156 = vpack.c.b16 %v2112, %v2108
    %v2157 = vpack.c.b16 %v2113, %v2109
    %v2158 = vpack.c.b16 %v2114, %v2110
    %v2159 = vpack.c.b16 %v2115, %v2111
    %v2160 = vpack.c.b16 %v2120, %v2116
    %v2161 = vpack.c.b16 %v2121, %v2117
    %v2162 = vpack.c.b16 %v2122, %v2118
    %v2163 = vpack.c.b16 %v2123, %v2119
    %v2164 = vpack.c.b16 %v2128, %v2124
    %v2165 = vpack.c.b16 %v2129, %v2125
    %v2166 = vpack.c.b16 %v2130, %v2126
    %v2167 = vpack.c.b16 %v2131, %v2127
    %v2168 = vpack.c.b16 %v2136, %v2132
    %v2169 = vpack.c.b16 %v2137, %v2133
    %v2170 = vpack.c.b16 %v2138, %v2134
    %v2171 = vpack.c.b16 %v2139, %v2135
    %2204 = vmatprep.subr.bf16.mxu0 %v2141
    %2205 = vmatpush1.bf16.msra.mxu0 %v2140
    %2206 = vmatprep.subr.bf16.mxu0 %v2145
    %2207 = vmatpush1.bf16.msra.mxu0 %v2144
    %2208 = vmatprep.subr.bf16.mxu0 %v2149
    %2209 = vmatpush1.bf16.msra.mxu0 %v2148
    %2210 = vmatprep.subr.bf16.mxu0 %v2153
    %2211 = vmatpush1.bf16.msra.mxu0 %v2152
    %2212 = vmatprep.subr.bf16.mxu0 %v2157
    %2213 = vmatpush1.bf16.msra.mxu0 %v2156
    %2214 = vmatprep.subr.bf16.mxu0 %v2161
    %2215 = vmatpush1.bf16.msra.mxu0 %v2160
    %2216 = vmatprep.subr.bf16.mxu0 %v2165
    %2217 = vmatpush1.bf16.msra.mxu0 %v2164
    %2218 = vmatprep.subr.bf16.mxu0 %v2169
    %2219 = vmatpush1.bf16.msra.mxu0 %v2168
    %2220 = vmatprep.subr.bf16.mxu0 0
    %2221 = vmatpush1.bf16.msra.mxu0 0
    %2222 = vmatprep.subr.bf16.mxu0 0
    %2223 = vmatpush1.bf16.msra.mxu0 0
    %2224 = vmatprep.subr.bf16.mxu0 0
    %2225 = vmatpush1.bf16.msra.mxu0 0
    %2226 = vmatprep.subr.bf16.mxu0 0
    %2227 = vmatpush1.bf16.msra.mxu0 0
    %2228 = vmatprep.subr.bf16.mxu0 0
    %2229 = vmatpush1.bf16.msra.mxu0 0
    %2230 = vmatprep.subr.bf16.mxu0 0
    %2231 = vmatpush1.bf16.msra.mxu0 0
    %2232 = vmatprep.subr.bf16.mxu0 0
    %2233 = vmatpush1.bf16.msra.mxu0 0
    %2234 = vmatprep.subr.bf16.mxu0 0
    %2235 = vmatpush1.bf16.msra.mxu0 0
    %2236 = vmatprep.mubr.bf16.mxu0 0
    %2237 = vmatmul.mubr.bf16.gmra.mrb[0].mxu0 %v2011
    %v2238 = vpop.f32.mrb[0].mxu0
    %v2239 = vadd.f32 0.0, %v2238
    %v2240 = vpop.f32.mrb[0].mxu0
    %v2241 = vadd.f32 0.0, %v2240
    %v2242 = vpop.f32.mrb[0].mxu0
    %v2243 = vpop.f32.mrb[0].mxu0
    %2244 = vdwg.mxu0
    %2245 = vmatprep.subr.bf16.mxu0 %v2143
    %2246 = vmatpush1.bf16.msra.mxu0 %v2142
    %2247 = vmatprep.subr.bf16.mxu0 %v2147
    %2248 = vmatpush1.bf16.msra.mxu0 %v2146
    %2249 = vmatprep.subr.bf16.mxu0 %v2151
    %2250 = vmatpush1.bf16.msra.mxu0 %v2150
    %2251 = vmatprep.subr.bf16.mxu0 %v2155
    %2252 = vmatpush1.bf16.msra.mxu0 %v2154
    %2253 = vmatprep.subr.bf16.mxu0 %v2159
    %2254 = vmatpush1.bf16.msra.mxu0 %v2158
    %2255 = vmatprep.subr.bf16.mxu0 %v2163
    %2256 = vmatpush1.bf16.msra.mxu0 %v2162
    %2257 = vmatprep.subr.bf16.mxu0 %v2167
    %2258 = vmatpush1.bf16.msra.mxu0 %v2166
    %2259 = vmatprep.subr.bf16.mxu0 %v2171
    %2260 = vmatpush1.bf16.msra.mxu0 %v2170
    %2261 = vmatprep.subr.bf16.mxu0 0
    %2262 = vmatpush1.bf16.msra.mxu0 0
    %2263 = vmatprep.subr.bf16.mxu0 0
    %2264 = vmatpush1.bf16.msra.mxu0 0
    %2265 = vmatprep.subr.bf16.mxu0 0
    %2266 = vmatpush1.bf16.msra.mxu0 0
    %2267 = vmatprep.subr.bf16.mxu0 0
    %2268 = vmatpush1.bf16.msra.mxu0 0
    %2269 = vmatprep.subr.bf16.mxu0 0
    %2270 = vmatpush1.bf16.msra.mxu0 0
    %2271 = vmatprep.subr.bf16.mxu0 0
    %2272 = vmatpush1.bf16.msra.mxu0 0
    %2273 = vmatprep.subr.bf16.mxu0 0
    %2274 = vmatpush1.bf16.msra.mxu0 0
    %2275 = vmatprep.subr.bf16.mxu0 0
    %2276 = vmatpush1.bf16.msra.mxu0 0
    %2277 = vmatprep.mubr.bf16.mxu0 0
    %2278 = vmatmul.mubr.bf16.gmra.mrb[0].mxu0 %v2011
    %v2279 = vpop.f32.mrb[0].mxu0
    %v2280 = vadd.f32 0.0, %v2279
    %v2281 = vpop.f32.mrb[0].mxu0
    %v2282 = vadd.f32 0.0, %v2281
    %v2283 = vpop.f32.mrb[0].mxu0
    %v2284 = vpop.f32.mrb[0].mxu0
    %2285 = vdwg.mxu0
    %v2286 = vadd.f32 %v2006, %v2239
    %v2287 = vadd.f32 %v2007, %v2241
    %v2288 = vadd.f32 %v2008, %v2280
    %v2289 = vadd.f32 %v2009, %v2282
    %v2290 = vld [vmem:[#allocation3] sm:$0xff]
    %v2291 = vxor.u32 %v2286, 2147483648
    %v2292 = vmul.f32 %v2291, 1.442695
    %v2293 = vpow.pop %v2292
    %v2294 = vadd.f32 %v2293, 1.0
    %v2295 = vrcp.pop %v2294
    %v2296 = vmul.f32 1.0, %v2295
    %v2297 = vxor.u32 %v2287, 2147483648
    %v2298 = vmul.f32 %v2297, 1.442695
    %v2299 = vpow.pop %v2298
    %v2300 = vadd.f32 %v2299, 1.0
    %v2301 = vrcp.pop %v2300
    %v2302 = vmul.f32 1.0, %v2301
    %v2303 = vtanh.pop %v2288
    %v2304 = vxor.u32 %v2289, 2147483648
    %v2305 = vmul.f32 %v2304, 1.442695
    %v2306 = vpow.pop %v2305
    %v2307 = vadd.f32 %v2306, 1.0
    %v2308 = vrcp.pop %v2307
    %v2309 = vmul.f32 1.0, %v2308
    %v2310 = vmul.f32 %v2302, %v2290
    %v2311 = vmul.f32 %v2296, %v2303
    %v2312 = vadd.f32 %v2310, %v2311
    %v2313 = vtanh.pop %v2312
    %v2314 = vmul.f32 %v2309, %v2313
    %2315 = vst [vmem:[#allocation2] sm:$0xff] %v2314
    %2316 = vst [vmem:[#allocation3] sm:$0xff] %v2312
    %v2317 = vld [vmem:[%s657] sm:$0xff]
    %v2318 = vpack.c.bf16 %v2314, %v2314
    %v2319 = vpack.c.bf16 %v2317, %v2317
    %v2320 = vld [vmem:[#allocation8] sm:$0xff]
    %v2321 = vld [vmem:[#allocation8 + $0x8] sm:$0xff]
    %v2322 = vld [vmem:[#allocation8 + $0x10] sm:$0xff]
    %v2323 = vld [vmem:[#allocation8 + $0x18] sm:$0xff]
    %v2324 = vld [vmem:[#allocation8 + $0x20] sm:$0xff]
    %v2325 = vld [vmem:[#allocation8 + $0x28] sm:$0xff]
    %v2326 = vld [vmem:[#allocation8 + $0x30] sm:$0xff]
    %v2327 = vld [vmem:[#allocation8 + $0x38] sm:$0xff]
    %v2328 = vld [vmem:[#allocation8 + $0x40] sm:$0xff]
    %v2329 = vld [vmem:[#allocation8 + $0x48] sm:$0xff]
    %v2330 = vld [vmem:[#allocation8 + $0x50] sm:$0xff]
    %v2331 = vld [vmem:[#allocation8 + $0x58] sm:$0xff]
    %v2332 = vld [vmem:[#allocation8 + $0x60] sm:$0xff]
    %v2333 = vld [vmem:[#allocation8 + $0x68] sm:$0xff]
    %v2334 = vld [vmem:[#allocation8 + $0x70] sm:$0xff]
    %v2335 = vld [vmem:[#allocation8 + $0x78] sm:$0xff]
    %v2336 = vld [vmem:[#allocation8 + $0x80] sm:$0xff]
    %v2337 = vld [vmem:[#allocation8 + $0x88] sm:$0xff]
    %v2338 = vld [vmem:[#allocation8 + $0x90] sm:$0xff]
    %v2339 = vld [vmem:[#allocation8 + $0x98] sm:$0xff]
    %v2340 = vld [vmem:[#allocation8 + $0xa0] sm:$0xff]
    %v2341 = vld [vmem:[#allocation8 + $0xa8] sm:$0xff]
    %v2342 = vld [vmem:[#allocation8 + $0xb0] sm:$0xff]
    %v2343 = vld [vmem:[#allocation8 + $0xb8] sm:$0xff]
    %v2344 = vld [vmem:[#allocation8 + $0xc0] sm:$0xff]
    %v2345 = vld [vmem:[#allocation8 + $0xc8] sm:$0xff]
    %v2346 = vld [vmem:[#allocation8 + $0xd0] sm:$0xff]
    %v2347 = vld [vmem:[#allocation8 + $0xd8] sm:$0xff]
    %v2348 = vld [vmem:[#allocation8 + $0xe0] sm:$0xff]
    %v2349 = vld [vmem:[#allocation8 + $0xe8] sm:$0xff]
    %v2350 = vld [vmem:[#allocation8 + $0xf0] sm:$0xff]
    %v2351 = vld [vmem:[#allocation8 + $0xf8] sm:$0xff]
    %v2352 = vld [vmem:[#allocation8 + $0x100] sm:$0xff]
    %v2353 = vld [vmem:[#allocation8 + $0x108] sm:$0xff]
    %v2354 = vld [vmem:[#allocation8 + $0x110] sm:$0xff]
    %v2355 = vld [vmem:[#allocation8 + $0x118] sm:$0xff]
    %v2356 = vld [vmem:[#allocation8 + $0x120] sm:$0xff]
    %v2357 = vld [vmem:[#allocation8 + $0x128] sm:$0xff]
    %v2358 = vld [vmem:[#allocation8 + $0x130] sm:$0xff]
    %v2359 = vld [vmem:[#allocation8 + $0x138] sm:$0xff]
    %v2360 = vld [vmem:[#allocation8 + $0x140] sm:$0xff]
    %v2361 = vld [vmem:[#allocation8 + $0x148] sm:$0xff]
    %v2362 = vld [vmem:[#allocation8 + $0x150] sm:$0xff]
    %v2363 = vld [vmem:[#allocation8 + $0x158] sm:$0xff]
    %v2364 = vld [vmem:[#allocation8 + $0x160] sm:$0xff]
    %v2365 = vld [vmem:[#allocation8 + $0x168] sm:$0xff]
    %v2366 = vld [vmem:[#allocation8 + $0x170] sm:$0xff]
    %v2367 = vld [vmem:[#allocation8 + $0x178] sm:$0xff]
    %v2368 = vld [vmem:[#allocation8 + $0x180] sm:$0xff]
    %v2369 = vld [vmem:[#allocation8 + $0x188] sm:$0xff]
    %v2370 = vld [vmem:[#allocation8 + $0x190] sm:$0xff]
    %v2371 = vld [vmem:[#allocation8 + $0x198] sm:$0xff]
    %v2372 = vld [vmem:[#allocation8 + $0x1a0] sm:$0xff]
    %v2373 = vld [vmem:[#allocation8 + $0x1a8] sm:$0xff]
    %v2374 = vld [vmem:[#allocation8 + $0x1b0] sm:$0xff]
    %v2375 = vld [vmem:[#allocation8 + $0x1b8] sm:$0xff]
    %v2376 = vld [vmem:[#allocation8 + $0x1c0] sm:$0xff]
    %v2377 = vld [vmem:[#allocation8 + $0x1c8] sm:$0xff]
    %v2378 = vld [vmem:[#allocation8 + $0x1d0] sm:$0xff]
    %v2379 = vld [vmem:[#allocation8 + $0x1d8] sm:$0xff]
    %v2380 = vld [vmem:[#allocation8 + $0x1e0] sm:$0xff]
    %v2381 = vld [vmem:[#allocation8 + $0x1e8] sm:$0xff]
    %v2382 = vld [vmem:[#allocation8 + $0x1f0] sm:$0xff]
    %v2383 = vld [vmem:[#allocation8 + $0x1f8] sm:$0xff]
    %v2384 = vld [vmem:[%s5] sm:$0xf]
    %v2386 = vlaneseq
    %v2387 = vshrl.u32 %v2386, 7
    %v2388 = vsub.s32 0, %v2387
    %v2389 = vrot.slane %v2384, %v2388
    %v2390 = vlaneseq
    %v2391 = vshrl.u32 %v2390, 7
    %v2392 = vsub.s32 1, %v2391
    %v2393 = vrot.slane %v2384, %v2392
    %v2394 = vlaneseq
    %v2395 = vshrl.u32 %v2394, 7
    %v2396 = vsub.s32 2, %v2395
    %v2397 = vrot.slane %v2384, %v2396
    %v2398 = vlaneseq
    %v2399 = vshrl.u32 %v2398, 7
    %v2400 = vsub.s32 3, %v2399
    %v2401 = vrot.slane %v2384, %v2400
    %v2470 = vunpack.c.l.b16 %v2320
    %v2471 = vunpack.c.h.b16 %v2320
    %v2472 = vunpack.c.l.b16 %v2321
    %v2473 = vunpack.c.h.b16 %v2321
    %v2474 = vunpack.c.l.b16 %v2322
    %v2475 = vunpack.c.h.b16 %v2322
    %v2476 = vunpack.c.l.b16 %v2323
    %v2477 = vunpack.c.h.b16 %v2323
    %v2478 = vunpack.c.l.b16 %v2324
    %v2479 = vunpack.c.h.b16 %v2324
    %v2480 = vunpack.c.l.b16 %v2325
    %v2481 = vunpack.c.h.b16 %v2325
    %v2482 = vunpack.c.l.b16 %v2326
    %v2483 = vunpack.c.h.b16 %v2326
    %v2484 = vunpack.c.l.b16 %v2327
    %v2485 = vunpack.c.h.b16 %v2327
    %v2486 = vunpack.c.l.b16 %v2328
    %v2487 = vunpack.c.h.b16 %v2328
    %v2488 = vunpack.c.l.b16 %v2329
    %v2489 = vunpack.c.h.b16 %v2329
    %v2490 = vunpack.c.l.b16 %v2330
    %v2491 = vunpack.c.h.b16 %v2330
    %v2492 = vunpack.c.l.b16 %v2331
    %v2493 = vunpack.c.h.b16 %v2331
    %v2494 = vunpack.c.l.b16 %v2332
    %v2495 = vunpack.c.h.b16 %v2332
    %v2496 = vunpack.c.l.b16 %v2333
    %v2497 = vunpack.c.h.b16 %v2333
    %v2498 = vunpack.c.l.b16 %v2334
    %v2499 = vunpack.c.h.b16 %v2334
    %v2500 = vunpack.c.l.b16 %v2335
    %v2501 = vunpack.c.h.b16 %v2335
    %v2502 = vunpack.c.l.b16 %v2336
    %v2503 = vunpack.c.h.b16 %v2336
    %v2504 = vunpack.c.l.b16 %v2337
    %v2505 = vunpack.c.h.b16 %v2337
    %v2506 = vunpack.c.l.b16 %v2338
    %v2507 = vunpack.c.h.b16 %v2338
    %v2508 = vunpack.c.l.b16 %v2339
    %v2509 = vunpack.c.h.b16 %v2339
    %v2510 = vunpack.c.l.b16 %v2340
    %v2511 = vunpack.c.h.b16 %v2340
    %v2512 = vunpack.c.l.b16 %v2341
    %v2513 = vunpack.c.h.b16 %v2341
    %v2514 = vunpack.c.l.b16 %v2342
    %v2515 = vunpack.c.h.b16 %v2342
    %v2516 = vunpack.c.l.b16 %v2343
    %v2517 = vunpack.c.h.b16 %v2343
    %v2518 = vunpack.c.l.b16 %v2344
    %v2519 = vunpack.c.h.b16 %v2344
    %v2520 = vunpack.c.l.b16 %v2345
    %v2521 = vunpack.c.h.b16 %v2345
    %v2522 = vunpack.c.l.b16 %v2346
    %v2523 = vunpack.c.h.b16 %v2346
    %v2524 = vunpack.c.l.b16 %v2347
    %v2525 = vunpack.c.h.b16 %v2347
    %v2526 = vunpack.c.l.b16 %v2348
    %v2527 = vunpack.c.h.b16 %v2348
    %v2528 = vunpack.c.l.b16 %v2349
    %v2529 = vunpack.c.h.b16 %v2349
    %v2530 = vunpack.c.l.b16 %v2350
    %v2531 = vunpack.c.h.b16 %v2350
    %v2532 = vunpack.c.l.b16 %v2351
    %v2533 = vunpack.c.h.b16 %v2351
    %v2534 = vunpack.c.l.b16 %v2352
    %v2535 = vunpack.c.h.b16 %v2352
    %v2536 = vunpack.c.l.b16 %v2353
    %v2537 = vunpack.c.h.b16 %v2353
    %v2538 = vunpack.c.l.b16 %v2354
    %v2539 = vunpack.c.h.b16 %v2354
    %v2540 = vunpack.c.l.b16 %v2355
    %v2541 = vunpack.c.h.b16 %v2355
    %v2542 = vunpack.c.l.b16 %v2356
    %v2543 = vunpack.c.h.b16 %v2356
    %v2544 = vunpack.c.l.b16 %v2357
    %v2545 = vunpack.c.h.b16 %v2357
    %v2546 = vunpack.c.l.b16 %v2358
    %v2547 = vunpack.c.h.b16 %v2358
    %v2548 = vunpack.c.l.b16 %v2359
    %v2549 = vunpack.c.h.b16 %v2359
    %v2550 = vunpack.c.l.b16 %v2360
    %v2551 = vunpack.c.h.b16 %v2360
    %v2552 = vunpack.c.l.b16 %v2361
    %v2553 = vunpack.c.h.b16 %v2361
    %v2554 = vunpack.c.l.b16 %v2362
    %v2555 = vunpack.c.h.b16 %v2362
    %v2556 = vunpack.c.l.b16 %v2363
    %v2557 = vunpack.c.h.b16 %v2363
    %v2558 = vunpack.c.l.b16 %v2364
    %v2559 = vunpack.c.h.b16 %v2364
    %v2560 = vunpack.c.l.b16 %v2365
    %v2561 = vunpack.c.h.b16 %v2365
    %v2562 = vunpack.c.l.b16 %v2366
    %v2563 = vunpack.c.h.b16 %v2366
    %v2564 = vunpack.c.l.b16 %v2367
    %v2565 = vunpack.c.h.b16 %v2367
    %v2566 = vunpack.c.l.b16 %v2368
    %v2567 = vunpack.c.h.b16 %v2368
    %v2568 = vunpack.c.l.b16 %v2369
    %v2569 = vunpack.c.h.b16 %v2369
    %v2570 = vunpack.c.l.b16 %v2370
    %v2571 = vunpack.c.h.b16 %v2370
    %v2572 = vunpack.c.l.b16 %v2371
    %v2573 = vunpack.c.h.b16 %v2371
    %v2574 = vunpack.c.l.b16 %v2372
    %v2575 = vunpack.c.h.b16 %v2372
    %v2576 = vunpack.c.l.b16 %v2373
    %v2577 = vunpack.c.h.b16 %v2373
    %v2578 = vunpack.c.l.b16 %v2374
    %v2579 = vunpack.c.h.b16 %v2374
    %v2580 = vunpack.c.l.b16 %v2375
    %v2581 = vunpack.c.h.b16 %v2375
    %v2582 = vunpack.c.l.b16 %v2376
    %v2583 = vunpack.c.h.b16 %v2376
    %v2584 = vunpack.c.l.b16 %v2377
    %v2585 = vunpack.c.h.b16 %v2377
    %v2586 = vunpack.c.l.b16 %v2378
    %v2587 = vunpack.c.h.b16 %v2378
    %v2588 = vunpack.c.l.b16 %v2379
    %v2589 = vunpack.c.h.b16 %v2379
    %v2590 = vunpack.c.l.b16 %v2380
    %v2591 = vunpack.c.h.b16 %v2380
    %v2592 = vunpack.c.l.b16 %v2381
    %v2593 = vunpack.c.h.b16 %v2381
    %v2594 = vunpack.c.l.b16 %v2382
    %v2595 = vunpack.c.h.b16 %v2382
    %v2596 = vunpack.c.l.b16 %v2383
    %v2597 = vunpack.c.h.b16 %v2383
    %v2598 = vpack.c.b16 %v2474, %v2470
    %v2599 = vpack.c.b16 %v2475, %v2471
    %v2600 = vpack.c.b16 %v2476, %v2472
    %v2601 = vpack.c.b16 %v2477, %v2473
    %v2602 = vpack.c.b16 %v2482, %v2478
    %v2603 = vpack.c.b16 %v2483, %v2479
    %v2604 = vpack.c.b16 %v2484, %v2480
    %v2605 = vpack.c.b16 %v2485, %v2481
    %v2606 = vpack.c.b16 %v2490, %v2486
    %v2607 = vpack.c.b16 %v2491, %v2487
    %v2608 = vpack.c.b16 %v2492, %v2488
    %v2609 = vpack.c.b16 %v2493, %v2489
    %v2610 = vpack.c.b16 %v2498, %v2494
    %v2611 = vpack.c.b16 %v2499, %v2495
    %v2612 = vpack.c.b16 %v2500, %v2496
    %v2613 = vpack.c.b16 %v2501, %v2497
    %v2614 = vpack.c.b16 %v2506, %v2502
    %v2615 = vpack.c.b16 %v2507, %v2503
    %v2616 = vpack.c.b16 %v2508, %v2504
    %v2617 = vpack.c.b16 %v2509, %v2505
    %v2618 = vpack.c.b16 %v2514, %v2510
    %v2619 = vpack.c.b16 %v2515, %v2511
    %v2620 = vpack.c.b16 %v2516, %v2512
    %v2621 = vpack.c.b16 %v2517, %v2513
    %v2622 = vpack.c.b16 %v2522, %v2518
    %v2623 = vpack.c.b16 %v2523, %v2519
    %v2624 = vpack.c.b16 %v2524, %v2520
    %v2625 = vpack.c.b16 %v2525, %v2521
    %v2626 = vpack.c.b16 %v2530, %v2526
    %v2627 = vpack.c.b16 %v2531, %v2527
    %v2628 = vpack.c.b16 %v2532, %v2528
    %v2629 = vpack.c.b16 %v2533, %v2529
    %v2630 = vpack.c.b16 %v2538, %v2534
    %v2631 = vpack.c.b16 %v2539, %v2535
    %v2632 = vpack.c.b16 %v2540, %v2536
    %v2633 = vpack.c.b16 %v2541, %v2537
    %v2634 = vpack.c.b16 %v2546, %v2542
    %v2635 = vpack.c.b16 %v2547, %v2543
    %v2636 = vpack.c.b16 %v2548, %v2544
    %v2637 = vpack.c.b16 %v2549, %v2545
    %v2638 = vpack.c.b16 %v2554, %v2550
    %v2639 = vpack.c.b16 %v2555, %v2551
    %v2640 = vpack.c.b16 %v2556, %v2552
    %v2641 = vpack.c.b16 %v2557, %v2553
    %v2642 = vpack.c.b16 %v2562, %v2558
    %v2643 = vpack.c.b16 %v2563, %v2559
    %v2644 = vpack.c.b16 %v2564, %v2560
    %v2645 = vpack.c.b16 %v2565, %v2561
    %v2646 = vpack.c.b16 %v2570, %v2566
    %v2647 = vpack.c.b16 %v2571, %v2567
    %v2648 = vpack.c.b16 %v2572, %v2568
    %v2649 = vpack.c.b16 %v2573, %v2569
    %v2650 = vpack.c.b16 %v2578, %v2574
    %v2651 = vpack.c.b16 %v2579, %v2575
    %v2652 = vpack.c.b16 %v2580, %v2576
    %v2653 = vpack.c.b16 %v2581, %v2577
    %v2654 = vpack.c.b16 %v2586, %v2582
    %v2655 = vpack.c.b16 %v2587, %v2583
    %v2656 = vpack.c.b16 %v2588, %v2584
    %v2657 = vpack.c.b16 %v2589, %v2585
    %v2658 = vpack.c.b16 %v2594, %v2590
    %v2659 = vpack.c.b16 %v2595, %v2591
    %v2660 = vpack.c.b16 %v2596, %v2592
    %v2661 = vpack.c.b16 %v2597, %v2593
    %2726 = vmatprep.subr.bf16.mxu0 %v2599
    %2727 = vmatpush1.bf16.msra.mxu0 %v2598
    %2728 = vmatprep.subr.bf16.mxu0 %v2603
    %2729 = vmatpush1.bf16.msra.mxu0 %v2602
    %2730 = vmatprep.subr.bf16.mxu0 %v2607
    %2731 = vmatpush1.bf16.msra.mxu0 %v2606
    %2732 = vmatprep.subr.bf16.mxu0 %v2611
    %2733 = vmatpush1.bf16.msra.mxu0 %v2610
    %2734 = vmatprep.subr.bf16.mxu0 %v2615
    %2735 = vmatpush1.bf16.msra.mxu0 %v2614
    %2736 = vmatprep.subr.bf16.mxu0 %v2619
    %2737 = vmatpush1.bf16.msra.mxu0 %v2618
    %2738 = vmatprep.subr.bf16.mxu0 %v2623
    %2739 = vmatpush1.bf16.msra.mxu0 %v2622
    %2740 = vmatprep.subr.bf16.mxu0 %v2627
    %2741 = vmatpush1.bf16.msra.mxu0 %v2626
    %2742 = vmatprep.subr.bf16.mxu0 %v2631
    %2743 = vmatpush1.bf16.msra.mxu0 %v2630
    %2744 = vmatprep.subr.bf16.mxu0 %v2635
    %2745 = vmatpush1.bf16.msra.mxu0 %v2634
    %2746 = vmatprep.subr.bf16.mxu0 %v2639
    %2747 = vmatpush1.bf16.msra.mxu0 %v2638
    %2748 = vmatprep.subr.bf16.mxu0 %v2643
    %2749 = vmatpush1.bf16.msra.mxu0 %v2642
    %2750 = vmatprep.subr.bf16.mxu0 %v2647
    %2751 = vmatpush1.bf16.msra.mxu0 %v2646
    %2752 = vmatprep.subr.bf16.mxu0 %v2651
    %2753 = vmatpush1.bf16.msra.mxu0 %v2650
    %2754 = vmatprep.subr.bf16.mxu0 %v2655
    %2755 = vmatpush1.bf16.msra.mxu0 %v2654
    %2756 = vmatprep.subr.bf16.mxu0 %v2659
    %2757 = vmatpush1.bf16.msra.mxu0 %v2658
    %2758 = vmatprep.mubr.bf16.mxu0 %v2319
    %2759 = vmatmul.mubr.bf16.gmra.mrb[0].mxu0 %v2318
    %v2760 = vpop.f32.mrb[0].mxu0
    %v2761 = vadd.f32 %v2389, %v2760
    %v2762 = vpop.f32.mrb[0].mxu0
    %v2763 = vadd.f32 %v2393, %v2762
    %v2764 = vpop.f32.mrb[0].mxu0
    %v2765 = vpop.f32.mrb[0].mxu0
    %2766 = vdwg.mxu0
    %2767 = vmatprep.subr.bf16.mxu0 %v2601
    %2768 = vmatpush1.bf16.msra.mxu0 %v2600
    %2769 = vmatprep.subr.bf16.mxu0 %v2605
    %2770 = vmatpush1.bf16.msra.mxu0 %v2604
    %2771 = vmatprep.subr.bf16.mxu0 %v2609
    %2772 = vmatpush1.bf16.msra.mxu0 %v2608
    %2773 = vmatprep.subr.bf16.mxu0 %v2613
    %2774 = vmatpush1.bf16.msra.mxu0 %v2612
    %2775 = vmatprep.subr.bf16.mxu0 %v2617
    %2776 = vmatpush1.bf16.msra.mxu0 %v2616
    %2777 = vmatprep.subr.bf16.mxu0 %v2621
    %2778 = vmatpush1.bf16.msra.mxu0 %v2620
    %2779 = vmatprep.subr.bf16.mxu0 %v2625
    %2780 = vmatpush1.bf16.msra.mxu0 %v2624
    %2781 = vmatprep.subr.bf16.mxu0 %v2629
    %2782 = vmatpush1.bf16.msra.mxu0 %v2628
    %2783 = vmatprep.subr.bf16.mxu0 %v2633
    %2784 = vmatpush1.bf16.msra.mxu0 %v2632
    %2785 = vmatprep.subr.bf16.mxu0 %v2637
    %2786 = vmatpush1.bf16.msra.mxu0 %v2636
    %2787 = vmatprep.subr.bf16.mxu0 %v2641
    %2788 = vmatpush1.bf16.msra.mxu0 %v2640
    %2789 = vmatprep.subr.bf16.mxu0 %v2645
    %2790 = vmatpush1.bf16.msra.mxu0 %v2644
    %2791 = vmatprep.subr.bf16.mxu0 %v2649
    %2792 = vmatpush1.bf16.msra.mxu0 %v2648
    %2793 = vmatprep.subr.bf16.mxu0 %v2653
    %2794 = vmatpush1.bf16.msra.mxu0 %v2652
    %2795 = vmatprep.subr.bf16.mxu0 %v2657
    %2796 = vmatpush1.bf16.msra.mxu0 %v2656
    %2797 = vmatprep.subr.bf16.mxu0 %v2661
    %2798 = vmatpush1.bf16.msra.mxu0 %v2660
    %2799 = vmatprep.mubr.bf16.mxu0 %v2319
    %2800 = vmatmul.mubr.bf16.gmra.mrb[0].mxu0 %v2318
    %v2801 = vpop.f32.mrb[0].mxu0
    %v2802 = vadd.f32 %v2397, %v2801
    %v2803 = vpop.f32.mrb[0].mxu0
    %v2804 = vadd.f32 %v2401, %v2803
    %v2805 = vpop.f32.mrb[0].mxu0
    %v2806 = vpop.f32.mrb[0].mxu0
    %2807 = vdwg.mxu0
    %v2808 = vld [vmem:[%s1149] sm:$0xff]
    %v2809 = vxor.u32 %v2761, 2147483648
    %v2810 = vmul.f32 %v2809, 1.442695
    %v2811 = vpow.pop %v2810
    %v2812 = vadd.f32 %v2811, 1.0
    %v2813 = vrcp.pop %v2812
    %v2814 = vmul.f32 1.0, %v2813
    %v2815 = vxor.u32 %v2763, 2147483648
    %v2816 = vmul.f32 %v2815, 1.442695
    %v2817 = vpow.pop %v2816
    %v2818 = vadd.f32 %v2817, 1.0
    %v2819 = vrcp.pop %v2818
    %v2820 = vmul.f32 1.0, %v2819
    %v2821 = vtanh.pop %v2802
    %v2822 = vxor.u32 %v2804, 2147483648
    %v2823 = vmul.f32 %v2822, 1.442695
    %v2824 = vpow.pop %v2823
    %v2825 = vadd.f32 %v2824, 1.0
    %v2826 = vrcp.pop %v2825
    %v2827 = vmul.f32 1.0, %v2826
    %v2828 = vmul.f32 %v2820, %v2808
    %v2829 = vmul.f32 %v2814, %v2821
    %v2830 = vadd.f32 %v2828, %v2829
    %v2831 = vtanh.pop %v2830
    %v2832 = vmul.f32 %v2827, %v2831
    %2833 = vst [vmem:[%s657] sm:$0xff] %v2832
    %2834 = vst [vmem:[%s1149] sm:$0xff] %v2830
    %v2835 = vld [vmem:[#allocation4 + $0x60] sm:$0xff]
    %v2836 = vld [vmem:[#allocation4 + $0x68] sm:$0xff]
    %v2837 = vld [vmem:[#allocation4 + $0x70] sm:$0xff]
    %v2838 = vld [vmem:[#allocation4 + $0x78] sm:$0xff]
    %v2839 = vld [vmem:[#allocation2] sm:$0xff]
    %v2840 = vpack.c.bf16 %v2839, %v2839
    %v2841 = vld [vmem:[#allocation5] sm:$0xff]
    %v2842 = vld [vmem:[#allocation5 + $0x8] sm:$0xff]
    %v2843 = vld [vmem:[#allocation5 + $0x10] sm:$0xff]
    %v2844 = vld [vmem:[#allocation5 + $0x18] sm:$0xff]
    %v2845 = vld [vmem:[#allocation5 + $0x20] sm:$0xff]
    %v2846 = vld [vmem:[#allocation5 + $0x28] sm:$0xff]
    %v2847 = vld [vmem:[#allocation5 + $0x30] sm:$0xff]
    %v2848 = vld [vmem:[#allocation5 + $0x38] sm:$0xff]
    %v2849 = vld [vmem:[#allocation5 + $0x40] sm:$0xff]
    %v2850 = vld [vmem:[#allocation5 + $0x48] sm:$0xff]
    %v2851 = vld [vmem:[#allocation5 + $0x50] sm:$0xff]
    %v2852 = vld [vmem:[#allocation5 + $0x58] sm:$0xff]
    %v2853 = vld [vmem:[#allocation5 + $0x60] sm:$0xff]
    %v2854 = vld [vmem:[#allocation5 + $0x68] sm:$0xff]
    %v2855 = vld [vmem:[#allocation5 + $0x70] sm:$0xff]
    %v2856 = vld [vmem:[#allocation5 + $0x78] sm:$0xff]
    %v2857 = vld [vmem:[#allocation5 + $0x80] sm:$0xff]
    %v2858 = vld [vmem:[#allocation5 + $0x88] sm:$0xff]
    %v2859 = vld [vmem:[#allocation5 + $0x90] sm:$0xff]
    %v2860 = vld [vmem:[#allocation5 + $0x98] sm:$0xff]
    %v2861 = vld [vmem:[#allocation5 + $0xa0] sm:$0xff]
    %v2862 = vld [vmem:[#allocation5 + $0xa8] sm:$0xff]
    %v2863 = vld [vmem:[#allocation5 + $0xb0] sm:$0xff]
    %v2864 = vld [vmem:[#allocation5 + $0xb8] sm:$0xff]
    %v2865 = vld [vmem:[#allocation5 + $0xc0] sm:$0xff]
    %v2866 = vld [vmem:[#allocation5 + $0xc8] sm:$0xff]
    %v2867 = vld [vmem:[#allocation5 + $0xd0] sm:$0xff]
    %v2868 = vld [vmem:[#allocation5 + $0xd8] sm:$0xff]
    %v2869 = vld [vmem:[#allocation5 + $0xe0] sm:$0xff]
    %v2870 = vld [vmem:[#allocation5 + $0xe8] sm:$0xff]
    %v2871 = vld [vmem:[#allocation5 + $0xf0] sm:$0xff]
    %v2872 = vld [vmem:[#allocation5 + $0xf8] sm:$0xff]
    %v2905 = vunpack.c.l.b16 %v2841
    %v2906 = vunpack.c.h.b16 %v2841
    %v2907 = vunpack.c.l.b16 %v2842
    %v2908 = vunpack.c.h.b16 %v2842
    %v2909 = vunpack.c.l.b16 %v2843
    %v2910 = vunpack.c.h.b16 %v2843
    %v2911 = vunpack.c.l.b16 %v2844
    %v2912 = vunpack.c.h.b16 %v2844
    %v2913 = vunpack.c.l.b16 %v2845
    %v2914 = vunpack.c.h.b16 %v2845
    %v2915 = vunpack.c.l.b16 %v2846
    %v2916 = vunpack.c.h.b16 %v2846
    %v2917 = vunpack.c.l.b16 %v2847
    %v2918 = vunpack.c.h.b16 %v2847
    %v2919 = vunpack.c.l.b16 %v2848
    %v2920 = vunpack.c.h.b16 %v2848
    %v2921 = vunpack.c.l.b16 %v2849
    %v2922 = vunpack.c.h.b16 %v2849
    %v2923 = vunpack.c.l.b16 %v2850
    %v2924 = vunpack.c.h.b16 %v2850
    %v2925 = vunpack.c.l.b16 %v2851
    %v2926 = vunpack.c.h.b16 %v2851
    %v2927 = vunpack.c.l.b16 %v2852
    %v2928 = vunpack.c.h.b16 %v2852
    %v2929 = vunpack.c.l.b16 %v2853
    %v2930 = vunpack.c.h.b16 %v2853
    %v2931 = vunpack.c.l.b16 %v2854
    %v2932 = vunpack.c.h.b16 %v2854
    %v2933 = vunpack.c.l.b16 %v2855
    %v2934 = vunpack.c.h.b16 %v2855
    %v2935 = vunpack.c.l.b16 %v2856
    %v2936 = vunpack.c.h.b16 %v2856
    %v2937 = vunpack.c.l.b16 %v2857
    %v2938 = vunpack.c.h.b16 %v2857
    %v2939 = vunpack.c.l.b16 %v2858
    %v2940 = vunpack.c.h.b16 %v2858
    %v2941 = vunpack.c.l.b16 %v2859
    %v2942 = vunpack.c.h.b16 %v2859
    %v2943 = vunpack.c.l.b16 %v2860
    %v2944 = vunpack.c.h.b16 %v2860
    %v2945 = vunpack.c.l.b16 %v2861
    %v2946 = vunpack.c.h.b16 %v2861
    %v2947 = vunpack.c.l.b16 %v2862
    %v2948 = vunpack.c.h.b16 %v2862
    %v2949 = vunpack.c.l.b16 %v2863
    %v2950 = vunpack.c.h.b16 %v2863
    %v2951 = vunpack.c.l.b16 %v2864
    %v2952 = vunpack.c.h.b16 %v2864
    %v2953 = vunpack.c.l.b16 %v2865
    %v2954 = vunpack.c.h.b16 %v2865
    %v2955 = vunpack.c.l.b16 %v2866
    %v2956 = vunpack.c.h.b16 %v2866
    %v2957 = vunpack.c.l.b16 %v2867
    %v2958 = vunpack.c.h.b16 %v2867
    %v2959 = vunpack.c.l.b16 %v2868
    %v2960 = vunpack.c.h.b16 %v2868
    %v2961 = vunpack.c.l.b16 %v2869
    %v2962 = vunpack.c.h.b16 %v2869
    %v2963 = vunpack.c.l.b16 %v2870
    %v2964 = vunpack.c.h.b16 %v2870
    %v2965 = vunpack.c.l.b16 %v2871
    %v2966 = vunpack.c.h.b16 %v2871
    %v2967 = vunpack.c.l.b16 %v2872
    %v2968 = vunpack.c.h.b16 %v2872
    %v2969 = vpack.c.b16 %v2909, %v2905
    %v2970 = vpack.c.b16 %v2910, %v2906
    %v2971 = vpack.c.b16 %v2911, %v2907
    %v2972 = vpack.c.b16 %v2912, %v2908
    %v2973 = vpack.c.b16 %v2917, %v2913
    %v2974 = vpack.c.b16 %v2918, %v2914
    %v2975 = vpack.c.b16 %v2919, %v2915
    %v2976 = vpack.c.b16 %v2920, %v2916
    %v2977 = vpack.c.b16 %v2925, %v2921
    %v2978 = vpack.c.b16 %v2926, %v2922
    %v2979 = vpack.c.b16 %v2927, %v2923
    %v2980 = vpack.c.b16 %v2928, %v2924
    %v2981 = vpack.c.b16 %v2933, %v2929
    %v2982 = vpack.c.b16 %v2934, %v2930
    %v2983 = vpack.c.b16 %v2935, %v2931
    %v2984 = vpack.c.b16 %v2936, %v2932
    %v2985 = vpack.c.b16 %v2941, %v2937
    %v2986 = vpack.c.b16 %v2942, %v2938
    %v2987 = vpack.c.b16 %v2943, %v2939
    %v2988 = vpack.c.b16 %v2944, %v2940
    %v2989 = vpack.c.b16 %v2949, %v2945
    %v2990 = vpack.c.b16 %v2950, %v2946
    %v2991 = vpack.c.b16 %v2951, %v2947
    %v2992 = vpack.c.b16 %v2952, %v2948
    %v2993 = vpack.c.b16 %v2957, %v2953
    %v2994 = vpack.c.b16 %v2958, %v2954
    %v2995 = vpack.c.b16 %v2959, %v2955
    %v2996 = vpack.c.b16 %v2960, %v2956
    %v2997 = vpack.c.b16 %v2965, %v2961
    %v2998 = vpack.c.b16 %v2966, %v2962
    %v2999 = vpack.c.b16 %v2967, %v2963
    %v3000 = vpack.c.b16 %v2968, %v2964
    %3033 = vmatprep.subr.bf16.mxu0 %v2970
    %3034 = vmatpush1.bf16.msra.mxu0 %v2969
    %3035 = vmatprep.subr.bf16.mxu0 %v2974
    %3036 = vmatpush1.bf16.msra.mxu0 %v2973
    %3037 = vmatprep.subr.bf16.mxu0 %v2978
    %3038 = vmatpush1.bf16.msra.mxu0 %v2977
    %3039 = vmatprep.subr.bf16.mxu0 %v2982
    %3040 = vmatpush1.bf16.msra.mxu0 %v2981
    %3041 = vmatprep.subr.bf16.mxu0 %v2986
    %3042 = vmatpush1.bf16.msra.mxu0 %v2985
    %3043 = vmatprep.subr.bf16.mxu0 %v2990
    %3044 = vmatpush1.bf16.msra.mxu0 %v2989
    %3045 = vmatprep.subr.bf16.mxu0 %v2994
    %3046 = vmatpush1.bf16.msra.mxu0 %v2993
    %3047 = vmatprep.subr.bf16.mxu0 %v2998
    %3048 = vmatpush1.bf16.msra.mxu0 %v2997
    %3049 = vmatprep.subr.bf16.mxu0 0
    %3050 = vmatpush1.bf16.msra.mxu0 0
    %3051 = vmatprep.subr.bf16.mxu0 0
    %3052 = vmatpush1.bf16.msra.mxu0 0
    %3053 = vmatprep.subr.bf16.mxu0 0
    %3054 = vmatpush1.bf16.msra.mxu0 0
    %3055 = vmatprep.subr.bf16.mxu0 0
    %3056 = vmatpush1.bf16.msra.mxu0 0
    %3057 = vmatprep.subr.bf16.mxu0 0
    %3058 = vmatpush1.bf16.msra.mxu0 0
    %3059 = vmatprep.subr.bf16.mxu0 0
    %3060 = vmatpush1.bf16.msra.mxu0 0
    %3061 = vmatprep.subr.bf16.mxu0 0
    %3062 = vmatpush1.bf16.msra.mxu0 0
    %3063 = vmatprep.subr.bf16.mxu0 0
    %3064 = vmatpush1.bf16.msra.mxu0 0
    %3065 = vmatprep.mubr.bf16.mxu0 0
    %3066 = vmatmul.mubr.bf16.gmra.mrb[0].mxu0 %v2840
    %v3067 = vpop.f32.mrb[0].mxu0
    %v3068 = vadd.f32 0.0, %v3067
    %v3069 = vpop.f32.mrb[0].mxu0
    %v3070 = vadd.f32 0.0, %v3069
    %v3071 = vpop.f32.mrb[0].mxu0
    %v3072 = vpop.f32.mrb[0].mxu0
    %3073 = vdwg.mxu0
    %3074 = vmatprep.subr.bf16.mxu0 %v2972
    %3075 = vmatpush1.bf16.msra.mxu0 %v2971
    %3076 = vmatprep.subr.bf16.mxu0 %v2976
    %3077 = vmatpush1.bf16.msra.mxu0 %v2975
    %3078 = vmatprep.subr.bf16.mxu0 %v2980
    %3079 = vmatpush1.bf16.msra.mxu0 %v2979
    %3080 = vmatprep.subr.bf16.mxu0 %v2984
    %3081 = vmatpush1.bf16.msra.mxu0 %v2983
    %3082 = vmatprep.subr.bf16.mxu0 %v2988
    %3083 = vmatpush1.bf16.msra.mxu0 %v2987
    %3084 = vmatprep.subr.bf16.mxu0 %v2992
    %3085 = vmatpush1.bf16.msra.mxu0 %v2991
    %3086 = vmatprep.subr.bf16.mxu0 %v2996
    %3087 = vmatpush1.bf16.msra.mxu0 %v2995
    %3088 = vmatprep.subr.bf16.mxu0 %v3000
    %3089 = vmatpush1.bf16.msra.mxu0 %v2999
    %3090 = vmatprep.subr.bf16.mxu0 0
    %3091 = vmatpush1.bf16.msra.mxu0 0
    %3092 = vmatprep.subr.bf16.mxu0 0
    %3093 = vmatpush1.bf16.msra.mxu0 0
    %3094 = vmatprep.subr.bf16.mxu0 0
    %3095 = vmatpush1.bf16.msra.mxu0 0
    %3096 = vmatprep.subr.bf16.mxu0 0
    %3097 = vmatpush1.bf16.msra.mxu0 0
    %3098 = vmatprep.subr.bf16.mxu0 0
    %3099 = vmatpush1.bf16.msra.mxu0 0
    %3100 = vmatprep.subr.bf16.mxu0 0
    %3101 = vmatpush1.bf16.msra.mxu0 0
    %3102 = vmatprep.subr.bf16.mxu0 0
    %3103 = vmatpush1.bf16.msra.mxu0 0
    %3104 = vmatprep.subr.bf16.mxu0 0
    %3105 = vmatpush1.bf16.msra.mxu0 0
    %3106 = vmatprep.mubr.bf16.mxu0 0
    %3107 = vmatmul.mubr.bf16.gmra.mrb[0].mxu0 %v2840
    %v3108 = vpop.f32.mrb[0].mxu0
    %v3109 = vadd.f32 0.0, %v3108
    %v3110 = vpop.f32.mrb[0].mxu0
    %v3111 = vadd.f32 0.0, %v3110
    %v3112 = vpop.f32.mrb[0].mxu0
    %v3113 = vpop.f32.mrb[0].mxu0
    %3114 = vdwg.mxu0
    %v3115 = vadd.f32 %v2835, %v3068
    %v3116 = vadd.f32 %v2836, %v3070
    %v3117 = vadd.f32 %v2837, %v3109
    %v3118 = vadd.f32 %v2838, %v3111
    %v3119 = vld [vmem:[#allocation3] sm:$0xff]
    %v3120 = vxor.u32 %v3115, 2147483648
    %v3121 = vmul.f32 %v3120, 1.442695
    %v3122 = vpow.pop %v3121
    %v3123 = vadd.f32 %v3122, 1.0
    %v3124 = vrcp.pop %v3123
    %v3125 = vmul.f32 1.0, %v3124
    %v3126 = vxor.u32 %v3116, 2147483648
    %v3127 = vmul.f32 %v3126, 1.442695
    %v3128 = vpow.pop %v3127
    %v3129 = vadd.f32 %v3128, 1.0
    %v3130 = vrcp.pop %v3129
    %v3131 = vmul.f32 1.0, %v3130
    %v3132 = vtanh.pop %v3117
    %v3133 = vxor.u32 %v3118, 2147483648
    %v3134 = vmul.f32 %v3133, 1.442695
    %v3135 = vpow.pop %v3134
    %v3136 = vadd.f32 %v3135, 1.0
    %v3137 = vrcp.pop %v3136
    %v3138 = vmul.f32 1.0, %v3137
    %v3139 = vmul.f32 %v3131, %v3119
    %v3140 = vmul.f32 %v3125, %v3132
    %v3141 = vadd.f32 %v3139, %v3140
    %v3142 = vtanh.pop %v3141
    %v3143 = vmul.f32 %v3138, %v3142
    %3144 = vst [vmem:[#allocation2] sm:$0xff] %v3143
    %3145 = vst [vmem:[#allocation3] sm:$0xff] %v3141
    %v3146 = vld [vmem:[%s657] sm:$0xff]
    %v3147 = vpack.c.bf16 %v3143, %v3143
    %v3148 = vpack.c.bf16 %v3146, %v3146
    %v3149 = vld [vmem:[#allocation8] sm:$0xff]
    %v3150 = vld [vmem:[#allocation8 + $0x8] sm:$0xff]
    %v3151 = vld [vmem:[#allocation8 + $0x10] sm:$0xff]
    %v3152 = vld [vmem:[#allocation8 + $0x18] sm:$0xff]
    %v3153 = vld [vmem:[#allocation8 + $0x20] sm:$0xff]
    %v3154 = vld [vmem:[#allocation8 + $0x28] sm:$0xff]
    %v3155 = vld [vmem:[#allocation8 + $0x30] sm:$0xff]
    %v3156 = vld [vmem:[#allocation8 + $0x38] sm:$0xff]
    %v3157 = vld [vmem:[#allocation8 + $0x40] sm:$0xff]
    %v3158 = vld [vmem:[#allocation8 + $0x48] sm:$0xff]
    %v3159 = vld [vmem:[#allocation8 + $0x50] sm:$0xff]
    %v3160 = vld [vmem:[#allocation8 + $0x58] sm:$0xff]
    %v3161 = vld [vmem:[#allocation8 + $0x60] sm:$0xff]
    %v3162 = vld [vmem:[#allocation8 + $0x68] sm:$0xff]
    %v3163 = vld [vmem:[#allocation8 + $0x70] sm:$0xff]
    %v3164 = vld [vmem:[#allocation8 + $0x78] sm:$0xff]
    %v3165 = vld [vmem:[#allocation8 + $0x80] sm:$0xff]
    %v3166 = vld [vmem:[#allocation8 + $0x88] sm:$0xff]
    %v3167 = vld [vmem:[#allocation8 + $0x90] sm:$0xff]
    %v3168 = vld [vmem:[#allocation8 + $0x98] sm:$0xff]
    %v3169 = vld [vmem:[#allocation8 + $0xa0] sm:$0xff]
    %v3170 = vld [vmem:[#allocation8 + $0xa8] sm:$0xff]
    %v3171 = vld [vmem:[#allocation8 + $0xb0] sm:$0xff]
    %v3172 = vld [vmem:[#allocation8 + $0xb8] sm:$0xff]
    %v3173 = vld [vmem:[#allocation8 + $0xc0] sm:$0xff]
    %v3174 = vld [vmem:[#allocation8 + $0xc8] sm:$0xff]
    %v3175 = vld [vmem:[#allocation8 + $0xd0] sm:$0xff]
    %v3176 = vld [vmem:[#allocation8 + $0xd8] sm:$0xff]
    %v3177 = vld [vmem:[#allocation8 + $0xe0] sm:$0xff]
    %v3178 = vld [vmem:[#allocation8 + $0xe8] sm:$0xff]
    %v3179 = vld [vmem:[#allocation8 + $0xf0] sm:$0xff]
    %v3180 = vld [vmem:[#allocation8 + $0xf8] sm:$0xff]
    %v3181 = vld [vmem:[#allocation8 + $0x100] sm:$0xff]
    %v3182 = vld [vmem:[#allocation8 + $0x108] sm:$0xff]
    %v3183 = vld [vmem:[#allocation8 + $0x110] sm:$0xff]
    %v3184 = vld [vmem:[#allocation8 + $0x118] sm:$0xff]
    %v3185 = vld [vmem:[#allocation8 + $0x120] sm:$0xff]
    %v3186 = vld [vmem:[#allocation8 + $0x128] sm:$0xff]
    %v3187 = vld [vmem:[#allocation8 + $0x130] sm:$0xff]
    %v3188 = vld [vmem:[#allocation8 + $0x138] sm:$0xff]
    %v3189 = vld [vmem:[#allocation8 + $0x140] sm:$0xff]
    %v3190 = vld [vmem:[#allocation8 + $0x148] sm:$0xff]
    %v3191 = vld [vmem:[#allocation8 + $0x150] sm:$0xff]
    %v3192 = vld [vmem:[#allocation8 + $0x158] sm:$0xff]
    %v3193 = vld [vmem:[#allocation8 + $0x160] sm:$0xff]
    %v3194 = vld [vmem:[#allocation8 + $0x168] sm:$0xff]
    %v3195 = vld [vmem:[#allocation8 + $0x170] sm:$0xff]
    %v3196 = vld [vmem:[#allocation8 + $0x178] sm:$0xff]
    %v3197 = vld [vmem:[#allocation8 + $0x180] sm:$0xff]
    %v3198 = vld [vmem:[#allocation8 + $0x188] sm:$0xff]
    %v3199 = vld [vmem:[#allocation8 + $0x190] sm:$0xff]
    %v3200 = vld [vmem:[#allocation8 + $0x198] sm:$0xff]
    %v3201 = vld [vmem:[#allocation8 + $0x1a0] sm:$0xff]
    %v3202 = vld [vmem:[#allocation8 + $0x1a8] sm:$0xff]
    %v3203 = vld [vmem:[#allocation8 + $0x1b0] sm:$0xff]
    %v3204 = vld [vmem:[#allocation8 + $0x1b8] sm:$0xff]
    %v3205 = vld [vmem:[#allocation8 + $0x1c0] sm:$0xff]
    %v3206 = vld [vmem:[#allocation8 + $0x1c8] sm:$0xff]
    %v3207 = vld [vmem:[#allocation8 + $0x1d0] sm:$0xff]
    %v3208 = vld [vmem:[#allocation8 + $0x1d8] sm:$0xff]
    %v3209 = vld [vmem:[#allocation8 + $0x1e0] sm:$0xff]
    %v3210 = vld [vmem:[#allocation8 + $0x1e8] sm:$0xff]
    %v3211 = vld [vmem:[#allocation8 + $0x1f0] sm:$0xff]
    %v3212 = vld [vmem:[#allocation8 + $0x1f8] sm:$0xff]
    %v3213 = vld [vmem:[%s5] sm:$0xf]
    %v3215 = vlaneseq
    %v3216 = vshrl.u32 %v3215, 7
    %v3217 = vsub.s32 0, %v3216
    %v3218 = vrot.slane %v3213, %v3217
    %v3219 = vlaneseq
    %v3220 = vshrl.u32 %v3219, 7
    %v3221 = vsub.s32 1, %v3220
    %v3222 = vrot.slane %v3213, %v3221
    %v3223 = vlaneseq
    %v3224 = vshrl.u32 %v3223, 7
    %v3225 = vsub.s32 2, %v3224
    %v3226 = vrot.slane %v3213, %v3225
    %v3227 = vlaneseq
    %v3228 = vshrl.u32 %v3227, 7
    %v3229 = vsub.s32 3, %v3228
    %v3230 = vrot.slane %v3213, %v3229
    %v3299 = vunpack.c.l.b16 %v3149
    %v3300 = vunpack.c.h.b16 %v3149
    %v3301 = vunpack.c.l.b16 %v3150
    %v3302 = vunpack.c.h.b16 %v3150
    %v3303 = vunpack.c.l.b16 %v3151
    %v3304 = vunpack.c.h.b16 %v3151
    %v3305 = vunpack.c.l.b16 %v3152
    %v3306 = vunpack.c.h.b16 %v3152
    %v3307 = vunpack.c.l.b16 %v3153
    %v3308 = vunpack.c.h.b16 %v3153
    %v3309 = vunpack.c.l.b16 %v3154
    %v3310 = vunpack.c.h.b16 %v3154
    %v3311 = vunpack.c.l.b16 %v3155
    %v3312 = vunpack.c.h.b16 %v3155
    %v3313 = vunpack.c.l.b16 %v3156
    %v3314 = vunpack.c.h.b16 %v3156
    %v3315 = vunpack.c.l.b16 %v3157
    %v3316 = vunpack.c.h.b16 %v3157
    %v3317 = vunpack.c.l.b16 %v3158
    %v3318 = vunpack.c.h.b16 %v3158
    %v3319 = vunpack.c.l.b16 %v3159
    %v3320 = vunpack.c.h.b16 %v3159
    %v3321 = vunpack.c.l.b16 %v3160
    %v3322 = vunpack.c.h.b16 %v3160
    %v3323 = vunpack.c.l.b16 %v3161
    %v3324 = vunpack.c.h.b16 %v3161
    %v3325 = vunpack.c.l.b16 %v3162
    %v3326 = vunpack.c.h.b16 %v3162
    %v3327 = vunpack.c.l.b16 %v3163
    %v3328 = vunpack.c.h.b16 %v3163
    %v3329 = vunpack.c.l.b16 %v3164
    %v3330 = vunpack.c.h.b16 %v3164
    %v3331 = vunpack.c.l.b16 %v3165
    %v3332 = vunpack.c.h.b16 %v3165
    %v3333 = vunpack.c.l.b16 %v3166
    %v3334 = vunpack.c.h.b16 %v3166
    %v3335 = vunpack.c.l.b16 %v3167
    %v3336 = vunpack.c.h.b16 %v3167
    %v3337 = vunpack.c.l.b16 %v3168
    %v3338 = vunpack.c.h.b16 %v3168
    %v3339 = vunpack.c.l.b16 %v3169
    %v3340 = vunpack.c.h.b16 %v3169
    %v3341 = vunpack.c.l.b16 %v3170
    %v3342 = vunpack.c.h.b16 %v3170
    %v3343 = vunpack.c.l.b16 %v3171
    %v3344 = vunpack.c.h.b16 %v3171
    %v3345 = vunpack.c.l.b16 %v3172
    %v3346 = vunpack.c.h.b16 %v3172
    %v3347 = vunpack.c.l.b16 %v3173
    %v3348 = vunpack.c.h.b16 %v3173
    %v3349 = vunpack.c.l.b16 %v3174
    %v3350 = vunpack.c.h.b16 %v3174
    %v3351 = vunpack.c.l.b16 %v3175
    %v3352 = vunpack.c.h.b16 %v3175
    %v3353 = vunpack.c.l.b16 %v3176
    %v3354 = vunpack.c.h.b16 %v3176
    %v3355 = vunpack.c.l.b16 %v3177
    %v3356 = vunpack.c.h.b16 %v3177
    %v3357 = vunpack.c.l.b16 %v3178
    %v3358 = vunpack.c.h.b16 %v3178
    %v3359 = vunpack.c.l.b16 %v3179
    %v3360 = vunpack.c.h.b16 %v3179
    %v3361 = vunpack.c.l.b16 %v3180
    %v3362 = vunpack.c.h.b16 %v3180
    %v3363 = vunpack.c.l.b16 %v3181
    %v3364 = vunpack.c.h.b16 %v3181
    %v3365 = vunpack.c.l.b16 %v3182
    %v3366 = vunpack.c.h.b16 %v3182
    %v3367 = vunpack.c.l.b16 %v3183
    %v3368 = vunpack.c.h.b16 %v3183
    %v3369 = vunpack.c.l.b16 %v3184
    %v3370 = vunpack.c.h.b16 %v3184
    %v3371 = vunpack.c.l.b16 %v3185
    %v3372 = vunpack.c.h.b16 %v3185
    %v3373 = vunpack.c.l.b16 %v3186
    %v3374 = vunpack.c.h.b16 %v3186
    %v3375 = vunpack.c.l.b16 %v3187
    %v3376 = vunpack.c.h.b16 %v3187
    %v3377 = vunpack.c.l.b16 %v3188
    %v3378 = vunpack.c.h.b16 %v3188
    %v3379 = vunpack.c.l.b16 %v3189
    %v3380 = vunpack.c.h.b16 %v3189
    %v3381 = vunpack.c.l.b16 %v3190
    %v3382 = vunpack.c.h.b16 %v3190
    %v3383 = vunpack.c.l.b16 %v3191
    %v3384 = vunpack.c.h.b16 %v3191
    %v3385 = vunpack.c.l.b16 %v3192
    %v3386 = vunpack.c.h.b16 %v3192
    %v3387 = vunpack.c.l.b16 %v3193
    %v3388 = vunpack.c.h.b16 %v3193
    %v3389 = vunpack.c.l.b16 %v3194
    %v3390 = vunpack.c.h.b16 %v3194
    %v3391 = vunpack.c.l.b16 %v3195
    %v3392 = vunpack.c.h.b16 %v3195
    %v3393 = vunpack.c.l.b16 %v3196
    %v3394 = vunpack.c.h.b16 %v3196
    %v3395 = vunpack.c.l.b16 %v3197
    %v3396 = vunpack.c.h.b16 %v3197
    %v3397 = vunpack.c.l.b16 %v3198
    %v3398 = vunpack.c.h.b16 %v3198
    %v3399 = vunpack.c.l.b16 %v3199
    %v3400 = vunpack.c.h.b16 %v3199
    %v3401 = vunpack.c.l.b16 %v3200
    %v3402 = vunpack.c.h.b16 %v3200
    %v3403 = vunpack.c.l.b16 %v3201
    %v3404 = vunpack.c.h.b16 %v3201
    %v3405 = vunpack.c.l.b16 %v3202
    %v3406 = vunpack.c.h.b16 %v3202
    %v3407 = vunpack.c.l.b16 %v3203
    %v3408 = vunpack.c.h.b16 %v3203
    %v3409 = vunpack.c.l.b16 %v3204
    %v3410 = vunpack.c.h.b16 %v3204
    %v3411 = vunpack.c.l.b16 %v3205
    %v3412 = vunpack.c.h.b16 %v3205
    %v3413 = vunpack.c.l.b16 %v3206
    %v3414 = vunpack.c.h.b16 %v3206
    %v3415 = vunpack.c.l.b16 %v3207
    %v3416 = vunpack.c.h.b16 %v3207
    %v3417 = vunpack.c.l.b16 %v3208
    %v3418 = vunpack.c.h.b16 %v3208
    %v3419 = vunpack.c.l.b16 %v3209
    %v3420 = vunpack.c.h.b16 %v3209
    %v3421 = vunpack.c.l.b16 %v3210
    %v3422 = vunpack.c.h.b16 %v3210
    %v3423 = vunpack.c.l.b16 %v3211
    %v3424 = vunpack.c.h.b16 %v3211
    %v3425 = vunpack.c.l.b16 %v3212
    %v3426 = vunpack.c.h.b16 %v3212
    %v3427 = vpack.c.b16 %v3303, %v3299
    %v3428 = vpack.c.b16 %v3304, %v3300
    %v3429 = vpack.c.b16 %v3305, %v3301
    %v3430 = vpack.c.b16 %v3306, %v3302
    %v3431 = vpack.c.b16 %v3311, %v3307
    %v3432 = vpack.c.b16 %v3312, %v3308
    %v3433 = vpack.c.b16 %v3313, %v3309
    %v3434 = vpack.c.b16 %v3314, %v3310
    %v3435 = vpack.c.b16 %v3319, %v3315
    %v3436 = vpack.c.b16 %v3320, %v3316
    %v3437 = vpack.c.b16 %v3321, %v3317
    %v3438 = vpack.c.b16 %v3322, %v3318
    %v3439 = vpack.c.b16 %v3327, %v3323
    %v3440 = vpack.c.b16 %v3328, %v3324
    %v3441 = vpack.c.b16 %v3329, %v3325
    %v3442 = vpack.c.b16 %v3330, %v3326
    %v3443 = vpack.c.b16 %v3335, %v3331
    %v3444 = vpack.c.b16 %v3336, %v3332
    %v3445 = vpack.c.b16 %v3337, %v3333
    %v3446 = vpack.c.b16 %v3338, %v3334
    %v3447 = vpack.c.b16 %v3343, %v3339
    %v3448 = vpack.c.b16 %v3344, %v3340
    %v3449 = vpack.c.b16 %v3345, %v3341
    %v3450 = vpack.c.b16 %v3346, %v3342
    %v3451 = vpack.c.b16 %v3351, %v3347
    %v3452 = vpack.c.b16 %v3352, %v3348
    %v3453 = vpack.c.b16 %v3353, %v3349
    %v3454 = vpack.c.b16 %v3354, %v3350
    %v3455 = vpack.c.b16 %v3359, %v3355
    %v3456 = vpack.c.b16 %v3360, %v3356
    %v3457 = vpack.c.b16 %v3361, %v3357
    %v3458 = vpack.c.b16 %v3362, %v3358
    %v3459 = vpack.c.b16 %v3367, %v3363
    %v3460 = vpack.c.b16 %v3368, %v3364
    %v3461 = vpack.c.b16 %v3369, %v3365
    %v3462 = vpack.c.b16 %v3370, %v3366
    %v3463 = vpack.c.b16 %v3375, %v3371
    %v3464 = vpack.c.b16 %v3376, %v3372
    %v3465 = vpack.c.b16 %v3377, %v3373
    %v3466 = vpack.c.b16 %v3378, %v3374
    %v3467 = vpack.c.b16 %v3383, %v3379
    %v3468 = vpack.c.b16 %v3384, %v3380
    %v3469 = vpack.c.b16 %v3385, %v3381
    %v3470 = vpack.c.b16 %v3386, %v3382
    %v3471 = vpack.c.b16 %v3391, %v3387
    %v3472 = vpack.c.b16 %v3392, %v3388
    %v3473 = vpack.c.b16 %v3393, %v3389
    %v3474 = vpack.c.b16 %v3394, %v3390
    %v3475 = vpack.c.b16 %v3399, %v3395
    %v3476 = vpack.c.b16 %v3400, %v3396
    %v3477 = vpack.c.b16 %v3401, %v3397
    %v3478 = vpack.c.b16 %v3402, %v3398
    %v3479 = vpack.c.b16 %v3407, %v3403
    %v3480 = vpack.c.b16 %v3408, %v3404
    %v3481 = vpack.c.b16 %v3409, %v3405
    %v3482 = vpack.c.b16 %v3410, %v3406
    %v3483 = vpack.c.b16 %v3415, %v3411
    %v3484 = vpack.c.b16 %v3416, %v3412
    %v3485 = vpack.c.b16 %v3417, %v3413
    %v3486 = vpack.c.b16 %v3418, %v3414
    %v3487 = vpack.c.b16 %v3423, %v3419
    %v3488 = vpack.c.b16 %v3424, %v3420
    %v3489 = vpack.c.b16 %v3425, %v3421
    %v3490 = vpack.c.b16 %v3426, %v3422
    %3555 = vmatprep.subr.bf16.mxu0 %v3428
    %3556 = vmatpush1.bf16.msra.mxu0 %v3427
    %3557 = vmatprep.subr.bf16.mxu0 %v3432
    %3558 = vmatpush1.bf16.msra.mxu0 %v3431
    %3559 = vmatprep.subr.bf16.mxu0 %v3436
    %3560 = vmatpush1.bf16.msra.mxu0 %v3435
    %3561 = vmatprep.subr.bf16.mxu0 %v3440
    %3562 = vmatpush1.bf16.msra.mxu0 %v3439
    %3563 = vmatprep.subr.bf16.mxu0 %v3444
    %3564 = vmatpush1.bf16.msra.mxu0 %v3443
    %3565 = vmatprep.subr.bf16.mxu0 %v3448
    %3566 = vmatpush1.bf16.msra.mxu0 %v3447
    %3567 = vmatprep.subr.bf16.mxu0 %v3452
    %3568 = vmatpush1.bf16.msra.mxu0 %v3451
    %3569 = vmatprep.subr.bf16.mxu0 %v3456
    %3570 = vmatpush1.bf16.msra.mxu0 %v3455
    %3571 = vmatprep.subr.bf16.mxu0 %v3460
    %3572 = vmatpush1.bf16.msra.mxu0 %v3459
    %3573 = vmatprep.subr.bf16.mxu0 %v3464
    %3574 = vmatpush1.bf16.msra.mxu0 %v3463
    %3575 = vmatprep.subr.bf16.mxu0 %v3468
    %3576 = vmatpush1.bf16.msra.mxu0 %v3467
    %3577 = vmatprep.subr.bf16.mxu0 %v3472
    %3578 = vmatpush1.bf16.msra.mxu0 %v3471
    %3579 = vmatprep.subr.bf16.mxu0 %v3476
    %3580 = vmatpush1.bf16.msra.mxu0 %v3475
    %3581 = vmatprep.subr.bf16.mxu0 %v3480
    %3582 = vmatpush1.bf16.msra.mxu0 %v3479
    %3583 = vmatprep.subr.bf16.mxu0 %v3484
    %3584 = vmatpush1.bf16.msra.mxu0 %v3483
    %3585 = vmatprep.subr.bf16.mxu0 %v3488
    %3586 = vmatpush1.bf16.msra.mxu0 %v3487
    %3587 = vmatprep.mubr.bf16.mxu0 %v3148
    %3588 = vmatmul.mubr.bf16.gmra.mrb[0].mxu0 %v3147
    %v3589 = vpop.f32.mrb[0].mxu0
    %v3590 = vadd.f32 %v3218, %v3589
    %v3591 = vpop.f32.mrb[0].mxu0
    %v3592 = vadd.f32 %v3222, %v3591
    %v3593 = vpop.f32.mrb[0].mxu0
    %v3594 = vpop.f32.mrb[0].mxu0
    %3595 = vdwg.mxu0
    %3596 = vmatprep.subr.bf16.mxu0 %v3430
    %3597 = vmatpush1.bf16.msra.mxu0 %v3429
    %3598 = vmatprep.subr.bf16.mxu0 %v3434
    %3599 = vmatpush1.bf16.msra.mxu0 %v3433
    %3600 = vmatprep.subr.bf16.mxu0 %v3438
    %3601 = vmatpush1.bf16.msra.mxu0 %v3437
    %3602 = vmatprep.subr.bf16.mxu0 %v3442
    %3603 = vmatpush1.bf16.msra.mxu0 %v3441
    %3604 = vmatprep.subr.bf16.mxu0 %v3446
    %3605 = vmatpush1.bf16.msra.mxu0 %v3445
    %3606 = vmatprep.subr.bf16.mxu0 %v3450
    %3607 = vmatpush1.bf16.msra.mxu0 %v3449
    %3608 = vmatprep.subr.bf16.mxu0 %v3454
    %3609 = vmatpush1.bf16.msra.mxu0 %v3453
    %3610 = vmatprep.subr.bf16.mxu0 %v3458
    %3611 = vmatpush1.bf16.msra.mxu0 %v3457
    %3612 = vmatprep.subr.bf16.mxu0 %v3462
    %3613 = vmatpush1.bf16.msra.mxu0 %v3461
    %3614 = vmatprep.subr.bf16.mxu0 %v3466
    %3615 = vmatpush1.bf16.msra.mxu0 %v3465
    %3616 = vmatprep.subr.bf16.mxu0 %v3470
    %3617 = vmatpush1.bf16.msra.mxu0 %v3469
    %3618 = vmatprep.subr.bf16.mxu0 %v3474
    %3619 = vmatpush1.bf16.msra.mxu0 %v3473
    %3620 = vmatprep.subr.bf16.mxu0 %v3478
    %3621 = vmatpush1.bf16.msra.mxu0 %v3477
    %3622 = vmatprep.subr.bf16.mxu0 %v3482
    %3623 = vmatpush1.bf16.msra.mxu0 %v3481
    %3624 = vmatprep.subr.bf16.mxu0 %v3486
    %3625 = vmatpush1.bf16.msra.mxu0 %v3485
    %3626 = vmatprep.subr.bf16.mxu0 %v3490
    %3627 = vmatpush1.bf16.msra.mxu0 %v3489
    %3628 = vmatprep.mubr.bf16.mxu0 %v3148
    %3629 = vmatmul.mubr.bf16.gmra.mrb[0].mxu0 %v3147
    %v3630 = vpop.f32.mrb[0].mxu0
    %v3631 = vadd.f32 %v3226, %v3630
    %v3632 = vpop.f32.mrb[0].mxu0
    %v3633 = vadd.f32 %v3230, %v3632
    %v3634 = vpop.f32.mrb[0].mxu0
    %v3635 = vpop.f32.mrb[0].mxu0
    %3636 = vdwg.mxu0
    %v3637 = vld [vmem:[%s1149] sm:$0xff]
    %v3638 = vxor.u32 %v3590, 2147483648
    %v3639 = vmul.f32 %v3638, 1.442695
    %v3640 = vpow.pop %v3639
    %v3641 = vadd.f32 %v3640, 1.0
    %v3642 = vrcp.pop %v3641
    %v3643 = vmul.f32 1.0, %v3642
    %v3644 = vxor.u32 %v3592, 2147483648
    %v3645 = vmul.f32 %v3644, 1.442695
    %v3646 = vpow.pop %v3645
    %v3647 = vadd.f32 %v3646, 1.0
    %v3648 = vrcp.pop %v3647
    %v3649 = vmul.f32 1.0, %v3648
    %v3650 = vtanh.pop %v3631
    %v3651 = vxor.u32 %v3633, 2147483648
    %v3652 = vmul.f32 %v3651, 1.442695
    %v3653 = vpow.pop %v3652
    %v3654 = vadd.f32 %v3653, 1.0
    %v3655 = vrcp.pop %v3654
    %v3656 = vmul.f32 1.0, %v3655
    %v3657 = vmul.f32 %v3649, %v3637
    %v3658 = vmul.f32 %v3643, %v3650
    %v3659 = vadd.f32 %v3657, %v3658
    %v3660 = vtanh.pop %v3659
    %v3661 = vmul.f32 %v3656, %v3660
    %3662 = vst [vmem:[%s657] sm:$0xff] %v3661
    %3663 = vst [vmem:[%s1149] sm:$0xff] %v3659
    %v3664 = vld [vmem:[#allocation4 + $0x80] sm:$0xff]
    %v3665 = vld [vmem:[#allocation4 + $0x88] sm:$0xff]
    %v3666 = vld [vmem:[#allocation4 + $0x90] sm:$0xff]
    %v3667 = vld [vmem:[#allocation4 + $0x98] sm:$0xff]
    %v3668 = vld [vmem:[#allocation2] sm:$0xff]
    %v3669 = vpack.c.bf16 %v3668, %v3668
    %v3670 = vld [vmem:[#allocation5] sm:$0xff]
    %v3671 = vld [vmem:[#allocation5 + $0x8] sm:$0xff]
    %v3672 = vld [vmem:[#allocation5 + $0x10] sm:$0xff]
    %v3673 = vld [vmem:[#allocation5 + $0x18] sm:$0xff]
    %v3674 = vld [vmem:[#allocation5 + $0x20] sm:$0xff]
    %v3675 = vld [vmem:[#allocation5 + $0x28] sm:$0xff]
    %v3676 = vld [vmem:[#allocation5 + $0x30] sm:$0xff]
    %v3677 = vld [vmem:[#allocation5 + $0x38] sm:$0xff]
    %v3678 = vld [vmem:[#allocation5 + $0x40] sm:$0xff]
    %v3679 = vld [vmem:[#allocation5 + $0x48] sm:$0xff]
    %v3680 = vld [vmem:[#allocation5 + $0x50] sm:$0xff]
    %v3681 = vld [vmem:[#allocation5 + $0x58] sm:$0xff]
    %v3682 = vld [vmem:[#allocation5 + $0x60] sm:$0xff]
    %v3683 = vld [vmem:[#allocation5 + $0x68] sm:$0xff]
    %v3684 = vld [vmem:[#allocation5 + $0x70] sm:$0xff]
    %v3685 = vld [vmem:[#allocation5 + $0x78] sm:$0xff]
    %v3686 = vld [vmem:[#allocation5 + $0x80] sm:$0xff]
    %v3687 = vld [vmem:[#allocation5 + $0x88] sm:$0xff]
    %v3688 = vld [vmem:[#allocation5 + $0x90] sm:$0xff]
    %v3689 = vld [vmem:[#allocation5 + $0x98] sm:$0xff]
    %v3690 = vld [vmem:[#allocation5 + $0xa0] sm:$0xff]
    %v3691 = vld [vmem:[#allocation5 + $0xa8] sm:$0xff]
    %v3692 = vld [vmem:[#allocation5 + $0xb0] sm:$0xff]
    %v3693 = vld [vmem:[#allocation5 + $0xb8] sm:$0xff]
    %v3694 = vld [vmem:[#allocation5 + $0xc0] sm:$0xff]
    %v3695 = vld [vmem:[#allocation5 + $0xc8] sm:$0xff]
    %v3696 = vld [vmem:[#allocation5 + $0xd0] sm:$0xff]
    %v3697 = vld [vmem:[#allocation5 + $0xd8] sm:$0xff]
    %v3698 = vld [vmem:[#allocation5 + $0xe0] sm:$0xff]
    %v3699 = vld [vmem:[#allocation5 + $0xe8] sm:$0xff]
    %v3700 = vld [vmem:[#allocation5 + $0xf0] sm:$0xff]
    %v3701 = vld [vmem:[#allocation5 + $0xf8] sm:$0xff]
    %v3734 = vunpack.c.l.b16 %v3670
    %v3735 = vunpack.c.h.b16 %v3670
    %v3736 = vunpack.c.l.b16 %v3671
    %v3737 = vunpack.c.h.b16 %v3671
    %v3738 = vunpack.c.l.b16 %v3672
    %v3739 = vunpack.c.h.b16 %v3672
    %v3740 = vunpack.c.l.b16 %v3673
    %v3741 = vunpack.c.h.b16 %v3673
    %v3742 = vunpack.c.l.b16 %v3674
    %v3743 = vunpack.c.h.b16 %v3674
    %v3744 = vunpack.c.l.b16 %v3675
    %v3745 = vunpack.c.h.b16 %v3675
    %v3746 = vunpack.c.l.b16 %v3676
    %v3747 = vunpack.c.h.b16 %v3676
    %v3748 = vunpack.c.l.b16 %v3677
    %v3749 = vunpack.c.h.b16 %v3677
    %v3750 = vunpack.c.l.b16 %v3678
    %v3751 = vunpack.c.h.b16 %v3678
    %v3752 = vunpack.c.l.b16 %v3679
    %v3753 = vunpack.c.h.b16 %v3679
    %v3754 = vunpack.c.l.b16 %v3680
    %v3755 = vunpack.c.h.b16 %v3680
    %v3756 = vunpack.c.l.b16 %v3681
    %v3757 = vunpack.c.h.b16 %v3681
    %v3758 = vunpack.c.l.b16 %v3682
    %v3759 = vunpack.c.h.b16 %v3682
    %v3760 = vunpack.c.l.b16 %v3683
    %v3761 = vunpack.c.h.b16 %v3683
    %v3762 = vunpack.c.l.b16 %v3684
    %v3763 = vunpack.c.h.b16 %v3684
    %v3764 = vunpack.c.l.b16 %v3685
    %v3765 = vunpack.c.h.b16 %v3685
    %v3766 = vunpack.c.l.b16 %v3686
    %v3767 = vunpack.c.h.b16 %v3686
    %v3768 = vunpack.c.l.b16 %v3687
    %v3769 = vunpack.c.h.b16 %v3687
    %v3770 = vunpack.c.l.b16 %v3688
    %v3771 = vunpack.c.h.b16 %v3688
    %v3772 = vunpack.c.l.b16 %v3689
    %v3773 = vunpack.c.h.b16 %v3689
    %v3774 = vunpack.c.l.b16 %v3690
    %v3775 = vunpack.c.h.b16 %v3690
    %v3776 = vunpack.c.l.b16 %v3691
    %v3777 = vunpack.c.h.b16 %v3691
    %v3778 = vunpack.c.l.b16 %v3692
    %v3779 = vunpack.c.h.b16 %v3692
    %v3780 = vunpack.c.l.b16 %v3693
    %v3781 = vunpack.c.h.b16 %v3693
    %v3782 = vunpack.c.l.b16 %v3694
    %v3783 = vunpack.c.h.b16 %v3694
    %v3784 = vunpack.c.l.b16 %v3695
    %v3785 = vunpack.c.h.b16 %v3695
    %v3786 = vunpack.c.l.b16 %v3696
    %v3787 = vunpack.c.h.b16 %v3696
    %v3788 = vunpack.c.l.b16 %v3697
    %v3789 = vunpack.c.h.b16 %v3697
    %v3790 = vunpack.c.l.b16 %v3698
    %v3791 = vunpack.c.h.b16 %v3698
    %v3792 = vunpack.c.l.b16 %v3699
    %v3793 = vunpack.c.h.b16 %v3699
    %v3794 = vunpack.c.l.b16 %v3700
    %v3795 = vunpack.c.h.b16 %v3700
    %v3796 = vunpack.c.l.b16 %v3701
    %v3797 = vunpack.c.h.b16 %v3701
    %v3798 = vpack.c.b16 %v3738, %v3734
    %v3799 = vpack.c.b16 %v3739, %v3735
    %v3800 = vpack.c.b16 %v3740, %v3736
    %v3801 = vpack.c.b16 %v3741, %v3737
    %v3802 = vpack.c.b16 %v3746, %v3742
    %v3803 = vpack.c.b16 %v3747, %v3743
    %v3804 = vpack.c.b16 %v3748, %v3744
    %v3805 = vpack.c.b16 %v3749, %v3745
    %v3806 = vpack.c.b16 %v3754, %v3750
    %v3807 = vpack.c.b16 %v3755, %v3751
    %v3808 = vpack.c.b16 %v3756, %v3752
    %v3809 = vpack.c.b16 %v3757, %v3753
    %v3810 = vpack.c.b16 %v3762, %v3758
    %v3811 = vpack.c.b16 %v3763, %v3759
    %v3812 = vpack.c.b16 %v3764, %v3760
    %v3813 = vpack.c.b16 %v3765, %v3761
    %v3814 = vpack.c.b16 %v3770, %v3766
    %v3815 = vpack.c.b16 %v3771, %v3767
    %v3816 = vpack.c.b16 %v3772, %v3768
    %v3817 = vpack.c.b16 %v3773, %v3769
    %v3818 = vpack.c.b16 %v3778, %v3774
    %v3819 = vpack.c.b16 %v3779, %v3775
    %v3820 = vpack.c.b16 %v3780, %v3776
    %v3821 = vpack.c.b16 %v3781, %v3777
    %v3822 = vpack.c.b16 %v3786, %v3782
    %v3823 = vpack.c.b16 %v3787, %v3783
    %v3824 = vpack.c.b16 %v3788, %v3784
    %v3825 = vpack.c.b16 %v3789, %v3785
    %v3826 = vpack.c.b16 %v3794, %v3790
    %v3827 = vpack.c.b16 %v3795, %v3791
    %v3828 = vpack.c.b16 %v3796, %v3792
    %v3829 = vpack.c.b16 %v3797, %v3793
    %3862 = vmatprep.subr.bf16.mxu0 %v3799
    %3863 = vmatpush1.bf16.msra.mxu0 %v3798
    %3864 = vmatprep.subr.bf16.mxu0 %v3803
    %3865 = vmatpush1.bf16.msra.mxu0 %v3802
    %3866 = vmatprep.subr.bf16.mxu0 %v3807
    %3867 = vmatpush1.bf16.msra.mxu0 %v3806
    %3868 = vmatprep.subr.bf16.mxu0 %v3811
    %3869 = vmatpush1.bf16.msra.mxu0 %v3810
    %3870 = vmatprep.subr.bf16.mxu0 %v3815
    %3871 = vmatpush1.bf16.msra.mxu0 %v3814
    %3872 = vmatprep.subr.bf16.mxu0 %v3819
    %3873 = vmatpush1.bf16.msra.mxu0 %v3818
    %3874 = vmatprep.subr.bf16.mxu0 %v3823
    %3875 = vmatpush1.bf16.msra.mxu0 %v3822
    %3876 = vmatprep.subr.bf16.mxu0 %v3827
    %3877 = vmatpush1.bf16.msra.mxu0 %v3826
    %3878 = vmatprep.subr.bf16.mxu0 0
    %3879 = vmatpush1.bf16.msra.mxu0 0
    %3880 = vmatprep.subr.bf16.mxu0 0
    %3881 = vmatpush1.bf16.msra.mxu0 0
    %3882 = vmatprep.subr.bf16.mxu0 0
    %3883 = vmatpush1.bf16.msra.mxu0 0
    %3884 = vmatprep.subr.bf16.mxu0 0
    %3885 = vmatpush1.bf16.msra.mxu0 0
    %3886 = vmatprep.subr.bf16.mxu0 0
    %3887 = vmatpush1.bf16.msra.mxu0 0
    %3888 = vmatprep.subr.bf16.mxu0 0
    %3889 = vmatpush1.bf16.msra.mxu0 0
    %3890 = vmatprep.subr.bf16.mxu0 0
    %3891 = vmatpush1.bf16.msra.mxu0 0
    %3892 = vmatprep.subr.bf16.mxu0 0
    %3893 = vmatpush1.bf16.msra.mxu0 0
    %3894 = vmatprep.mubr.bf16.mxu0 0
    %3895 = vmatmul.mubr.bf16.gmra.mrb[0].mxu0 %v3669
    %v3896 = vpop.f32.mrb[0].mxu0
    %v3897 = vadd.f32 0.0, %v3896
    %v3898 = vpop.f32.mrb[0].mxu0
    %v3899 = vadd.f32 0.0, %v3898
    %v3900 = vpop.f32.mrb[0].mxu0
    %v3901 = vpop.f32.mrb[0].mxu0
    %3902 = vdwg.mxu0
    %3903 = vmatprep.subr.bf16.mxu0 %v3801
    %3904 = vmatpush1.bf16.msra.mxu0 %v3800
    %3905 = vmatprep.subr.bf16.mxu0 %v3805
    %3906 = vmatpush1.bf16.msra.mxu0 %v3804
    %3907 = vmatprep.subr.bf16.mxu0 %v3809
    %3908 = vmatpush1.bf16.msra.mxu0 %v3808
    %3909 = vmatprep.subr.bf16.mxu0 %v3813
    %3910 = vmatpush1.bf16.msra.mxu0 %v3812
    %3911 = vmatprep.subr.bf16.mxu0 %v3817
    %3912 = vmatpush1.bf16.msra.mxu0 %v3816
    %3913 = vmatprep.subr.bf16.mxu0 %v3821
    %3914 = vmatpush1.bf16.msra.mxu0 %v3820
    %3915 = vmatprep.subr.bf16.mxu0 %v3825
    %3916 = vmatpush1.bf16.msra.mxu0 %v3824
    %3917 = vmatprep.subr.bf16.mxu0 %v3829
    %3918 = vmatpush1.bf16.msra.mxu0 %v3828
    %3919 = vmatprep.subr.bf16.mxu0 0
    %3920 = vmatpush1.bf16.msra.mxu0 0
    %3921 = vmatprep.subr.bf16.mxu0 0
    %3922 = vmatpush1.bf16.msra.mxu0 0
    %3923 = vmatprep.subr.bf16.mxu0 0
    %3924 = vmatpush1.bf16.msra.mxu0 0
    %3925 = vmatprep.subr.bf16.mxu0 0
    %3926 = vmatpush1.bf16.msra.mxu0 0
    %3927 = vmatprep.subr.bf16.mxu0 0
    %3928 = vmatpush1.bf16.msra.mxu0 0
    %3929 = vmatprep.subr.bf16.mxu0 0
    %3930 = vmatpush1.bf16.msra.mxu0 0
    %3931 = vmatprep.subr.bf16.mxu0 0
    %3932 = vmatpush1.bf16.msra.mxu0 0
    %3933 = vmatprep.subr.bf16.mxu0 0
    %3934 = vmatpush1.bf16.msra.mxu0 0
    %3935 = vmatprep.mubr.bf16.mxu0 0
    %3936 = vmatmul.mubr.bf16.gmra.mrb[0].mxu0 %v3669
    %v3937 = vpop.f32.mrb[0].mxu0
    %v3938 = vadd.f32 0.0, %v3937
    %v3939 = vpop.f32.mrb[0].mxu0
    %v3940 = vadd.f32 0.0, %v3939
    %v3941 = vpop.f32.mrb[0].mxu0
    %v3942 = vpop.f32.mrb[0].mxu0
    %3943 = vdwg.mxu0
    %v3944 = vadd.f32 %v3664, %v3897
    %v3945 = vadd.f32 %v3665, %v3899
    %v3946 = vadd.f32 %v3666, %v3938
    %v3947 = vadd.f32 %v3667, %v3940
    %v3948 = vld [vmem:[#allocation3] sm:$0xff]
    %v3949 = vxor.u32 %v3944, 2147483648
    %v3950 = vmul.f32 %v3949, 1.442695
    %v3951 = vpow.pop %v3950
    %v3952 = vadd.f32 %v3951, 1.0
    %v3953 = vrcp.pop %v3952
    %v3954 = vmul.f32 1.0, %v3953
    %v3955 = vxor.u32 %v3945, 2147483648
    %v3956 = vmul.f32 %v3955, 1.442695
    %v3957 = vpow.pop %v3956
    %v3958 = vadd.f32 %v3957, 1.0
    %v3959 = vrcp.pop %v3958
    %v3960 = vmul.f32 1.0, %v3959
    %v3961 = vtanh.pop %v3946
    %v3962 = vxor.u32 %v3947, 2147483648
    %v3963 = vmul.f32 %v3962, 1.442695
    %v3964 = vpow.pop %v3963
    %v3965 = vadd.f32 %v3964, 1.0
    %v3966 = vrcp.pop %v3965
    %v3967 = vmul.f32 1.0, %v3966
    %v3968 = vmul.f32 %v3960, %v3948
    %v3969 = vmul.f32 %v3954, %v3961
    %v3970 = vadd.f32 %v3968, %v3969
    %v3971 = vtanh.pop %v3970
    %v3972 = vmul.f32 %v3967, %v3971
    %3973 = vst [vmem:[#allocation2] sm:$0xff] %v3972
    %3974 = vst [vmem:[#allocation3] sm:$0xff] %v3970
    %v3975 = vld [vmem:[%s657] sm:$0xff]
    %v3976 = vpack.c.bf16 %v3972, %v3972
    %v3977 = vpack.c.bf16 %v3975, %v3975
    %v3978 = vld [vmem:[#allocation8] sm:$0xff]
    %v3979 = vld [vmem:[#allocation8 + $0x8] sm:$0xff]
    %v3980 = vld [vmem:[#allocation8 + $0x10] sm:$0xff]
    %v3981 = vld [vmem:[#allocation8 + $0x18] sm:$0xff]
    %v3982 = vld [vmem:[#allocation8 + $0x20] sm:$0xff]
    %v3983 = vld [vmem:[#allocation8 + $0x28] sm:$0xff]
    %v3984 = vld [vmem:[#allocation8 + $0x30] sm:$0xff]
    %v3985 = vld [vmem:[#allocation8 + $0x38] sm:$0xff]
    %v3986 = vld [vmem:[#allocation8 + $0x40] sm:$0xff]
    %v3987 = vld [vmem:[#allocation8 + $0x48] sm:$0xff]
    %v3988 = vld [vmem:[#allocation8 + $0x50] sm:$0xff]
    %v3989 = vld [vmem:[#allocation8 + $0x58] sm:$0xff]
    %v3990 = vld [vmem:[#allocation8 + $0x60] sm:$0xff]
    %v3991 = vld [vmem:[#allocation8 + $0x68] sm:$0xff]
    %v3992 = vld [vmem:[#allocation8 + $0x70] sm:$0xff]
    %v3993 = vld [vmem:[#allocation8 + $0x78] sm:$0xff]
    %v3994 = vld [vmem:[#allocation8 + $0x80] sm:$0xff]
    %v3995 = vld [vmem:[#allocation8 + $0x88] sm:$0xff]
    %v3996 = vld [vmem:[#allocation8 + $0x90] sm:$0xff]
    %v3997 = vld [vmem:[#allocation8 + $0x98] sm:$0xff]
    %v3998 = vld [vmem:[#allocation8 + $0xa0] sm:$0xff]
    %v3999 = vld [vmem:[#allocation8 + $0xa8] sm:$0xff]
    %v4000 = vld [vmem:[#allocation8 + $0xb0] sm:$0xff]
    %v4001 = vld [vmem:[#allocation8 + $0xb8] sm:$0xff]
    %v4002 = vld [vmem:[#allocation8 + $0xc0] sm:$0xff]
    %v4003 = vld [vmem:[#allocation8 + $0xc8] sm:$0xff]
    %v4004 = vld [vmem:[#allocation8 + $0xd0] sm:$0xff]
    %v4005 = vld [vmem:[#allocation8 + $0xd8] sm:$0xff]
    %v4006 = vld [vmem:[#allocation8 + $0xe0] sm:$0xff]
    %v4007 = vld [vmem:[#allocation8 + $0xe8] sm:$0xff]
    %v4008 = vld [vmem:[#allocation8 + $0xf0] sm:$0xff]
    %v4009 = vld [vmem:[#allocation8 + $0xf8] sm:$0xff]
    %v4010 = vld [vmem:[#allocation8 + $0x100] sm:$0xff]
    %v4011 = vld [vmem:[#allocation8 + $0x108] sm:$0xff]
    %v4012 = vld [vmem:[#allocation8 + $0x110] sm:$0xff]
    %v4013 = vld [vmem:[#allocation8 + $0x118] sm:$0xff]
    %v4014 = vld [vmem:[#allocation8 + $0x120] sm:$0xff]
    %v4015 = vld [vmem:[#allocation8 + $0x128] sm:$0xff]
    %v4016 = vld [vmem:[#allocation8 + $0x130] sm:$0xff]
    %v4017 = vld [vmem:[#allocation8 + $0x138] sm:$0xff]
    %v4018 = vld [vmem:[#allocation8 + $0x140] sm:$0xff]
    %v4019 = vld [vmem:[#allocation8 + $0x148] sm:$0xff]
    %v4020 = vld [vmem:[#allocation8 + $0x150] sm:$0xff]
    %v4021 = vld [vmem:[#allocation8 + $0x158] sm:$0xff]
    %v4022 = vld [vmem:[#allocation8 + $0x160] sm:$0xff]
    %v4023 = vld [vmem:[#allocation8 + $0x168] sm:$0xff]
    %v4024 = vld [vmem:[#allocation8 + $0x170] sm:$0xff]
    %v4025 = vld [vmem:[#allocation8 + $0x178] sm:$0xff]
    %v4026 = vld [vmem:[#allocation8 + $0x180] sm:$0xff]
    %v4027 = vld [vmem:[#allocation8 + $0x188] sm:$0xff]
    %v4028 = vld [vmem:[#allocation8 + $0x190] sm:$0xff]
    %v4029 = vld [vmem:[#allocation8 + $0x198] sm:$0xff]
    %v4030 = vld [vmem:[#allocation8 + $0x1a0] sm:$0xff]
    %v4031 = vld [vmem:[#allocation8 + $0x1a8] sm:$0xff]
    %v4032 = vld [vmem:[#allocation8 + $0x1b0] sm:$0xff]
    %v4033 = vld [vmem:[#allocation8 + $0x1b8] sm:$0xff]
    %v4034 = vld [vmem:[#allocation8 + $0x1c0] sm:$0xff]
    %v4035 = vld [vmem:[#allocation8 + $0x1c8] sm:$0xff]
    %v4036 = vld [vmem:[#allocation8 + $0x1d0] sm:$0xff]
    %v4037 = vld [vmem:[#allocation8 + $0x1d8] sm:$0xff]
    %v4038 = vld [vmem:[#allocation8 + $0x1e0] sm:$0xff]
    %v4039 = vld [vmem:[#allocation8 + $0x1e8] sm:$0xff]
    %v4040 = vld [vmem:[#allocation8 + $0x1f0] sm:$0xff]
    %v4041 = vld [vmem:[#allocation8 + $0x1f8] sm:$0xff]
    %v4042 = vld [vmem:[%s5] sm:$0xf]
    %v4044 = vlaneseq
    %v4045 = vshrl.u32 %v4044, 7
    %v4046 = vsub.s32 0, %v4045
    %v4047 = vrot.slane %v4042, %v4046
    %v4048 = vlaneseq
    %v4049 = vshrl.u32 %v4048, 7
    %v4050 = vsub.s32 1, %v4049
    %v4051 = vrot.slane %v4042, %v4050
    %v4052 = vlaneseq
    %v4053 = vshrl.u32 %v4052, 7
    %v4054 = vsub.s32 2, %v4053
    %v4055 = vrot.slane %v4042, %v4054
    %v4056 = vlaneseq
    %v4057 = vshrl.u32 %v4056, 7
    %v4058 = vsub.s32 3, %v4057
    %v4059 = vrot.slane %v4042, %v4058
    %v4128 = vunpack.c.l.b16 %v3978
    %v4129 = vunpack.c.h.b16 %v3978
    %v4130 = vunpack.c.l.b16 %v3979
    %v4131 = vunpack.c.h.b16 %v3979
    %v4132 = vunpack.c.l.b16 %v3980
    %v4133 = vunpack.c.h.b16 %v3980
    %v4134 = vunpack.c.l.b16 %v3981
    %v4135 = vunpack.c.h.b16 %v3981
    %v4136 = vunpack.c.l.b16 %v3982
    %v4137 = vunpack.c.h.b16 %v3982
    %v4138 = vunpack.c.l.b16 %v3983
    %v4139 = vunpack.c.h.b16 %v3983
    %v4140 = vunpack.c.l.b16 %v3984
    %v4141 = vunpack.c.h.b16 %v3984
    %v4142 = vunpack.c.l.b16 %v3985
    %v4143 = vunpack.c.h.b16 %v3985
    %v4144 = vunpack.c.l.b16 %v3986
    %v4145 = vunpack.c.h.b16 %v3986
    %v4146 = vunpack.c.l.b16 %v3987
    %v4147 = vunpack.c.h.b16 %v3987
    %v4148 = vunpack.c.l.b16 %v3988
    %v4149 = vunpack.c.h.b16 %v3988
    %v4150 = vunpack.c.l.b16 %v3989
    %v4151 = vunpack.c.h.b16 %v3989
    %v4152 = vunpack.c.l.b16 %v3990
    %v4153 = vunpack.c.h.b16 %v3990
    %v4154 = vunpack.c.l.b16 %v3991
    %v4155 = vunpack.c.h.b16 %v3991
    %v4156 = vunpack.c.l.b16 %v3992
    %v4157 = vunpack.c.h.b16 %v3992
    %v4158 = vunpack.c.l.b16 %v3993
    %v4159 = vunpack.c.h.b16 %v3993
    %v4160 = vunpack.c.l.b16 %v3994
    %v4161 = vunpack.c.h.b16 %v3994
    %v4162 = vunpack.c.l.b16 %v3995
    %v4163 = vunpack.c.h.b16 %v3995
    %v4164 = vunpack.c.l.b16 %v3996
    %v4165 = vunpack.c.h.b16 %v3996
    %v4166 = vunpack.c.l.b16 %v3997
    %v4167 = vunpack.c.h.b16 %v3997
    %v4168 = vunpack.c.l.b16 %v3998
    %v4169 = vunpack.c.h.b16 %v3998
    %v4170 = vunpack.c.l.b16 %v3999
    %v4171 = vunpack.c.h.b16 %v3999
    %v4172 = vunpack.c.l.b16 %v4000
    %v4173 = vunpack.c.h.b16 %v4000
    %v4174 = vunpack.c.l.b16 %v4001
    %v4175 = vunpack.c.h.b16 %v4001
    %v4176 = vunpack.c.l.b16 %v4002
    %v4177 = vunpack.c.h.b16 %v4002
    %v4178 = vunpack.c.l.b16 %v4003
    %v4179 = vunpack.c.h.b16 %v4003
    %v4180 = vunpack.c.l.b16 %v4004
    %v4181 = vunpack.c.h.b16 %v4004
    %v4182 = vunpack.c.l.b16 %v4005
    %v4183 = vunpack.c.h.b16 %v4005
    %v4184 = vunpack.c.l.b16 %v4006
    %v4185 = vunpack.c.h.b16 %v4006
    %v4186 = vunpack.c.l.b16 %v4007
    %v4187 = vunpack.c.h.b16 %v4007
    %v4188 = vunpack.c.l.b16 %v4008
    %v4189 = vunpack.c.h.b16 %v4008
    %v4190 = vunpack.c.l.b16 %v4009
    %v4191 = vunpack.c.h.b16 %v4009
    %v4192 = vunpack.c.l.b16 %v4010
    %v4193 = vunpack.c.h.b16 %v4010
    %v4194 = vunpack.c.l.b16 %v4011
    %v4195 = vunpack.c.h.b16 %v4011
    %v4196 = vunpack.c.l.b16 %v4012
    %v4197 = vunpack.c.h.b16 %v4012
    %v4198 = vunpack.c.l.b16 %v4013
    %v4199 = vunpack.c.h.b16 %v4013
    %v4200 = vunpack.c.l.b16 %v4014
    %v4201 = vunpack.c.h.b16 %v4014
    %v4202 = vunpack.c.l.b16 %v4015
    %v4203 = vunpack.c.h.b16 %v4015
    %v4204 = vunpack.c.l.b16 %v4016
    %v4205 = vunpack.c.h.b16 %v4016
    %v4206 = vunpack.c.l.b16 %v4017
    %v4207 = vunpack.c.h.b16 %v4017
    %v4208 = vunpack.c.l.b16 %v4018
    %v4209 = vunpack.c.h.b16 %v4018
    %v4210 = vunpack.c.l.b16 %v4019
    %v4211 = vunpack.c.h.b16 %v4019
    %v4212 = vunpack.c.l.b16 %v4020
    %v4213 = vunpack.c.h.b16 %v4020
    %v4214 = vunpack.c.l.b16 %v4021
    %v4215 = vunpack.c.h.b16 %v4021
    %v4216 = vunpack.c.l.b16 %v4022
    %v4217 = vunpack.c.h.b16 %v4022
    %v4218 = vunpack.c.l.b16 %v4023
    %v4219 = vunpack.c.h.b16 %v4023
    %v4220 = vunpack.c.l.b16 %v4024
    %v4221 = vunpack.c.h.b16 %v4024
    %v4222 = vunpack.c.l.b16 %v4025
    %v4223 = vunpack.c.h.b16 %v4025
    %v4224 = vunpack.c.l.b16 %v4026
    %v4225 = vunpack.c.h.b16 %v4026
    %v4226 = vunpack.c.l.b16 %v4027
    %v4227 = vunpack.c.h.b16 %v4027
    %v4228 = vunpack.c.l.b16 %v4028
    %v4229 = vunpack.c.h.b16 %v4028
    %v4230 = vunpack.c.l.b16 %v4029
    %v4231 = vunpack.c.h.b16 %v4029
    %v4232 = vunpack.c.l.b16 %v4030
    %v4233 = vunpack.c.h.b16 %v4030
    %v4234 = vunpack.c.l.b16 %v4031
    %v4235 = vunpack.c.h.b16 %v4031
    %v4236 = vunpack.c.l.b16 %v4032
    %v4237 = vunpack.c.h.b16 %v4032
    %v4238 = vunpack.c.l.b16 %v4033
    %v4239 = vunpack.c.h.b16 %v4033
    %v4240 = vunpack.c.l.b16 %v4034
    %v4241 = vunpack.c.h.b16 %v4034
    %v4242 = vunpack.c.l.b16 %v4035
    %v4243 = vunpack.c.h.b16 %v4035
    %v4244 = vunpack.c.l.b16 %v4036
    %v4245 = vunpack.c.h.b16 %v4036
    %v4246 = vunpack.c.l.b16 %v4037
    %v4247 = vunpack.c.h.b16 %v4037
    %v4248 = vunpack.c.l.b16 %v4038
    %v4249 = vunpack.c.h.b16 %v4038
    %v4250 = vunpack.c.l.b16 %v4039
    %v4251 = vunpack.c.h.b16 %v4039
    %v4252 = vunpack.c.l.b16 %v4040
    %v4253 = vunpack.c.h.b16 %v4040
    %v4254 = vunpack.c.l.b16 %v4041
    %v4255 = vunpack.c.h.b16 %v4041
    %v4256 = vpack.c.b16 %v4132, %v4128
    %v4257 = vpack.c.b16 %v4133, %v4129
    %v4258 = vpack.c.b16 %v4134, %v4130
    %v4259 = vpack.c.b16 %v4135, %v4131
    %v4260 = vpack.c.b16 %v4140, %v4136
    %v4261 = vpack.c.b16 %v4141, %v4137
    %v4262 = vpack.c.b16 %v4142, %v4138
    %v4263 = vpack.c.b16 %v4143, %v4139
    %v4264 = vpack.c.b16 %v4148, %v4144
    %v4265 = vpack.c.b16 %v4149, %v4145
    %v4266 = vpack.c.b16 %v4150, %v4146
    %v4267 = vpack.c.b16 %v4151, %v4147
    %v4268 = vpack.c.b16 %v4156, %v4152
    %v4269 = vpack.c.b16 %v4157, %v4153
    %v4270 = vpack.c.b16 %v4158, %v4154
    %v4271 = vpack.c.b16 %v4159, %v4155
    %v4272 = vpack.c.b16 %v4164, %v4160
    %v4273 = vpack.c.b16 %v4165, %v4161
    %v4274 = vpack.c.b16 %v4166, %v4162
    %v4275 = vpack.c.b16 %v4167, %v4163
    %v4276 = vpack.c.b16 %v4172, %v4168
    %v4277 = vpack.c.b16 %v4173, %v4169
    %v4278 = vpack.c.b16 %v4174, %v4170
    %v4279 = vpack.c.b16 %v4175, %v4171
    %v4280 = vpack.c.b16 %v4180, %v4176
    %v4281 = vpack.c.b16 %v4181, %v4177
    %v4282 = vpack.c.b16 %v4182, %v4178
    %v4283 = vpack.c.b16 %v4183, %v4179
    %v4284 = vpack.c.b16 %v4188, %v4184
    %v4285 = vpack.c.b16 %v4189, %v4185
    %v4286 = vpack.c.b16 %v4190, %v4186
    %v4287 = vpack.c.b16 %v4191, %v4187
    %v4288 = vpack.c.b16 %v4196, %v4192
    %v4289 = vpack.c.b16 %v4197, %v4193
    %v4290 = vpack.c.b16 %v4198, %v4194
    %v4291 = vpack.c.b16 %v4199, %v4195
    %v4292 = vpack.c.b16 %v4204, %v4200
    %v4293 = vpack.c.b16 %v4205, %v4201
    %v4294 = vpack.c.b16 %v4206, %v4202
    %v4295 = vpack.c.b16 %v4207, %v4203
    %v4296 = vpack.c.b16 %v4212, %v4208
    %v4297 = vpack.c.b16 %v4213, %v4209
    %v4298 = vpack.c.b16 %v4214, %v4210
    %v4299 = vpack.c.b16 %v4215, %v4211
    %v4300 = vpack.c.b16 %v4220, %v4216
    %v4301 = vpack.c.b16 %v4221, %v4217
    %v4302 = vpack.c.b16 %v4222, %v4218
    %v4303 = vpack.c.b16 %v4223, %v4219
    %v4304 = vpack.c.b16 %v4228, %v4224
    %v4305 = vpack.c.b16 %v4229, %v4225
    %v4306 = vpack.c.b16 %v4230, %v4226
    %v4307 = vpack.c.b16 %v4231, %v4227
    %v4308 = vpack.c.b16 %v4236, %v4232
    %v4309 = vpack.c.b16 %v4237, %v4233
    %v4310 = vpack.c.b16 %v4238, %v4234
    %v4311 = vpack.c.b16 %v4239, %v4235
    %v4312 = vpack.c.b16 %v4244, %v4240
    %v4313 = vpack.c.b16 %v4245, %v4241
    %v4314 = vpack.c.b16 %v4246, %v4242
    %v4315 = vpack.c.b16 %v4247, %v4243
    %v4316 = vpack.c.b16 %v4252, %v4248
    %v4317 = vpack.c.b16 %v4253, %v4249
    %v4318 = vpack.c.b16 %v4254, %v4250
    %v4319 = vpack.c.b16 %v4255, %v4251
    %4384 = vmatprep.subr.bf16.mxu0 %v4257
    %4385 = vmatpush1.bf16.msra.mxu0 %v4256
    %4386 = vmatprep.subr.bf16.mxu0 %v4261
    %4387 = vmatpush1.bf16.msra.mxu0 %v4260
    %4388 = vmatprep.subr.bf16.mxu0 %v4265
    %4389 = vmatpush1.bf16.msra.mxu0 %v4264
    %4390 = vmatprep.subr.bf16.mxu0 %v4269
    %4391 = vmatpush1.bf16.msra.mxu0 %v4268
    %4392 = vmatprep.subr.bf16.mxu0 %v4273
    %4393 = vmatpush1.bf16.msra.mxu0 %v4272
    %4394 = vmatprep.subr.bf16.mxu0 %v4277
    %4395 = vmatpush1.bf16.msra.mxu0 %v4276
    %4396 = vmatprep.subr.bf16.mxu0 %v4281
    %4397 = vmatpush1.bf16.msra.mxu0 %v4280
    %4398 = vmatprep.subr.bf16.mxu0 %v4285
    %4399 = vmatpush1.bf16.msra.mxu0 %v4284
    %4400 = vmatprep.subr.bf16.mxu0 %v4289
    %4401 = vmatpush1.bf16.msra.mxu0 %v4288
    %4402 = vmatprep.subr.bf16.mxu0 %v4293
    %4403 = vmatpush1.bf16.msra.mxu0 %v4292
    %4404 = vmatprep.subr.bf16.mxu0 %v4297
    %4405 = vmatpush1.bf16.msra.mxu0 %v4296
    %4406 = vmatprep.subr.bf16.mxu0 %v4301
    %4407 = vmatpush1.bf16.msra.mxu0 %v4300
    %4408 = vmatprep.subr.bf16.mxu0 %v4305
    %4409 = vmatpush1.bf16.msra.mxu0 %v4304
    %4410 = vmatprep.subr.bf16.mxu0 %v4309
    %4411 = vmatpush1.bf16.msra.mxu0 %v4308
    %4412 = vmatprep.subr.bf16.mxu0 %v4313
    %4413 = vmatpush1.bf16.msra.mxu0 %v4312
    %4414 = vmatprep.subr.bf16.mxu0 %v4317
    %4415 = vmatpush1.bf16.msra.mxu0 %v4316
    %4416 = vmatprep.mubr.bf16.mxu0 %v3977
    %4417 = vmatmul.mubr.bf16.gmra.mrb[0].mxu0 %v3976
    %v4418 = vpop.f32.mrb[0].mxu0
    %v4419 = vadd.f32 %v4047, %v4418
    %v4420 = vpop.f32.mrb[0].mxu0
    %v4421 = vadd.f32 %v4051, %v4420
    %v4422 = vpop.f32.mrb[0].mxu0
    %v4423 = vpop.f32.mrb[0].mxu0
    %4424 = vdwg.mxu0
    %4425 = vmatprep.subr.bf16.mxu0 %v4259
    %4426 = vmatpush1.bf16.msra.mxu0 %v4258
    %4427 = vmatprep.subr.bf16.mxu0 %v4263
    %4428 = vmatpush1.bf16.msra.mxu0 %v4262
    %4429 = vmatprep.subr.bf16.mxu0 %v4267
    %4430 = vmatpush1.bf16.msra.mxu0 %v4266
    %4431 = vmatprep.subr.bf16.mxu0 %v4271
    %4432 = vmatpush1.bf16.msra.mxu0 %v4270
    %4433 = vmatprep.subr.bf16.mxu0 %v4275
    %4434 = vmatpush1.bf16.msra.mxu0 %v4274
    %4435 = vmatprep.subr.bf16.mxu0 %v4279
    %4436 = vmatpush1.bf16.msra.mxu0 %v4278
    %4437 = vmatprep.subr.bf16.mxu0 %v4283
    %4438 = vmatpush1.bf16.msra.mxu0 %v4282
    %4439 = vmatprep.subr.bf16.mxu0 %v4287
    %4440 = vmatpush1.bf16.msra.mxu0 %v4286
    %4441 = vmatprep.subr.bf16.mxu0 %v4291
    %4442 = vmatpush1.bf16.msra.mxu0 %v4290
    %4443 = vmatprep.subr.bf16.mxu0 %v4295
    %4444 = vmatpush1.bf16.msra.mxu0 %v4294
    %4445 = vmatprep.subr.bf16.mxu0 %v4299
    %4446 = vmatpush1.bf16.msra.mxu0 %v4298
    %4447 = vmatprep.subr.bf16.mxu0 %v4303
    %4448 = vmatpush1.bf16.msra.mxu0 %v4302
    %4449 = vmatprep.subr.bf16.mxu0 %v4307
    %4450 = vmatpush1.bf16.msra.mxu0 %v4306
    %4451 = vmatprep.subr.bf16.mxu0 %v4311
    %4452 = vmatpush1.bf16.msra.mxu0 %v4310
    %4453 = vmatprep.subr.bf16.mxu0 %v4315
    %4454 = vmatpush1.bf16.msra.mxu0 %v4314
    %4455 = vmatprep.subr.bf16.mxu0 %v4319
    %4456 = vmatpush1.bf16.msra.mxu0 %v4318
    %4457 = vmatprep.mubr.bf16.mxu0 %v3977
    %4458 = vmatmul.mubr.bf16.gmra.mrb[0].mxu0 %v3976
    %v4459 = vpop.f32.mrb[0].mxu0
    %v4460 = vadd.f32 %v4055, %v4459
    %v4461 = vpop.f32.mrb[0].mxu0
    %v4462 = vadd.f32 %v4059, %v4461
    %v4463 = vpop.f32.mrb[0].mxu0
    %v4464 = vpop.f32.mrb[0].mxu0
    %4465 = vdwg.mxu0
    %v4466 = vld [vmem:[%s1149] sm:$0xff]
    %v4467 = vxor.u32 %v4419, 2147483648
    %v4468 = vmul.f32 %v4467, 1.442695
    %v4469 = vpow.pop %v4468
    %v4470 = vadd.f32 %v4469, 1.0
    %v4471 = vrcp.pop %v4470
    %v4472 = vmul.f32 1.0, %v4471
    %v4473 = vxor.u32 %v4421, 2147483648
    %v4474 = vmul.f32 %v4473, 1.442695
    %v4475 = vpow.pop %v4474
    %v4476 = vadd.f32 %v4475, 1.0
    %v4477 = vrcp.pop %v4476
    %v4478 = vmul.f32 1.0, %v4477
    %v4479 = vtanh.pop %v4460
    %v4480 = vxor.u32 %v4462, 2147483648
    %v4481 = vmul.f32 %v4480, 1.442695
    %v4482 = vpow.pop %v4481
    %v4483 = vadd.f32 %v4482, 1.0
    %v4484 = vrcp.pop %v4483
    %v4485 = vmul.f32 1.0, %v4484
    %v4486 = vmul.f32 %v4478, %v4466
    %v4487 = vmul.f32 %v4472, %v4479
    %v4488 = vadd.f32 %v4486, %v4487
    %v4489 = vtanh.pop %v4488
    %v4490 = vmul.f32 %v4485, %v4489
    %4491 = vst [vmem:[%s657] sm:$0xff] %v4490
    %4492 = vst [vmem:[%s1149] sm:$0xff] %v4488
    %v4493 = vld [vmem:[#allocation4 + $0xa0] sm:$0xff]
    %v4494 = vld [vmem:[#allocation4 + $0xa8] sm:$0xff]
    %v4495 = vld [vmem:[#allocation4 + $0xb0] sm:$0xff]
    %v4496 = vld [vmem:[#allocation4 + $0xb8] sm:$0xff]
    %v4497 = vld [vmem:[#allocation2] sm:$0xff]
    %v4498 = vpack.c.bf16 %v4497, %v4497
    %v4499 = vld [vmem:[#allocation5] sm:$0xff]
    %v4500 = vld [vmem:[#allocation5 + $0x8] sm:$0xff]
    %v4501 = vld [vmem:[#allocation5 + $0x10] sm:$0xff]
    %v4502 = vld [vmem:[#allocation5 + $0x18] sm:$0xff]
    %v4503 = vld [vmem:[#allocation5 + $0x20] sm:$0xff]
    %v4504 = vld [vmem:[#allocation5 + $0x28] sm:$0xff]
    %v4505 = vld [vmem:[#allocation5 + $0x30] sm:$0xff]
    %v4506 = vld [vmem:[#allocation5 + $0x38] sm:$0xff]
    %v4507 = vld [vmem:[#allocation5 + $0x40] sm:$0xff]
    %v4508 = vld [vmem:[#allocation5 + $0x48] sm:$0xff]
    %v4509 = vld [vmem:[#allocation5 + $0x50] sm:$0xff]
    %v4510 = vld [vmem:[#allocation5 + $0x58] sm:$0xff]
    %v4511 = vld [vmem:[#allocation5 + $0x60] sm:$0xff]
    %v4512 = vld [vmem:[#allocation5 + $0x68] sm:$0xff]
    %v4513 = vld [vmem:[#allocation5 + $0x70] sm:$0xff]
    %v4514 = vld [vmem:[#allocation5 + $0x78] sm:$0xff]
    %v4515 = vld [vmem:[#allocation5 + $0x80] sm:$0xff]
    %v4516 = vld [vmem:[#allocation5 + $0x88] sm:$0xff]
    %v4517 = vld [vmem:[#allocation5 + $0x90] sm:$0xff]
    %v4518 = vld [vmem:[#allocation5 + $0x98] sm:$0xff]
    %v4519 = vld [vmem:[#allocation5 + $0xa0] sm:$0xff]
    %v4520 = vld [vmem:[#allocation5 + $0xa8] sm:$0xff]
    %v4521 = vld [vmem:[#allocation5 + $0xb0] sm:$0xff]
    %v4522 = vld [vmem:[#allocation5 + $0xb8] sm:$0xff]
    %v4523 = vld [vmem:[#allocation5 + $0xc0] sm:$0xff]
    %v4524 = vld [vmem:[#allocation5 + $0xc8] sm:$0xff]
    %v4525 = vld [vmem:[#allocation5 + $0xd0] sm:$0xff]
    %v4526 = vld [vmem:[#allocation5 + $0xd8] sm:$0xff]
    %v4527 = vld [vmem:[#allocation5 + $0xe0] sm:$0xff]
    %v4528 = vld [vmem:[#allocation5 + $0xe8] sm:$0xff]
    %v4529 = vld [vmem:[#allocation5 + $0xf0] sm:$0xff]
    %v4530 = vld [vmem:[#allocation5 + $0xf8] sm:$0xff]
    %v4563 = vunpack.c.l.b16 %v4499
    %v4564 = vunpack.c.h.b16 %v4499
    %v4565 = vunpack.c.l.b16 %v4500
    %v4566 = vunpack.c.h.b16 %v4500
    %v4567 = vunpack.c.l.b16 %v4501
    %v4568 = vunpack.c.h.b16 %v4501
    %v4569 = vunpack.c.l.b16 %v4502
    %v4570 = vunpack.c.h.b16 %v4502
    %v4571 = vunpack.c.l.b16 %v4503
    %v4572 = vunpack.c.h.b16 %v4503
    %v4573 = vunpack.c.l.b16 %v4504
    %v4574 = vunpack.c.h.b16 %v4504
    %v4575 = vunpack.c.l.b16 %v4505
    %v4576 = vunpack.c.h.b16 %v4505
    %v4577 = vunpack.c.l.b16 %v4506
    %v4578 = vunpack.c.h.b16 %v4506
    %v4579 = vunpack.c.l.b16 %v4507
    %v4580 = vunpack.c.h.b16 %v4507
    %v4581 = vunpack.c.l.b16 %v4508
    %v4582 = vunpack.c.h.b16 %v4508
    %v4583 = vunpack.c.l.b16 %v4509
    %v4584 = vunpack.c.h.b16 %v4509
    %v4585 = vunpack.c.l.b16 %v4510
    %v4586 = vunpack.c.h.b16 %v4510
    %v4587 = vunpack.c.l.b16 %v4511
    %v4588 = vunpack.c.h.b16 %v4511
    %v4589 = vunpack.c.l.b16 %v4512
    %v4590 = vunpack.c.h.b16 %v4512
    %v4591 = vunpack.c.l.b16 %v4513
    %v4592 = vunpack.c.h.b16 %v4513
    %v4593 = vunpack.c.l.b16 %v4514
    %v4594 = vunpack.c.h.b16 %v4514
    %v4595 = vunpack.c.l.b16 %v4515
    %v4596 = vunpack.c.h.b16 %v4515
    %v4597 = vunpack.c.l.b16 %v4516
    %v4598 = vunpack.c.h.b16 %v4516
    %v4599 = vunpack.c.l.b16 %v4517
    %v4600 = vunpack.c.h.b16 %v4517
    %v4601 = vunpack.c.l.b16 %v4518
    %v4602 = vunpack.c.h.b16 %v4518
    %v4603 = vunpack.c.l.b16 %v4519
    %v4604 = vunpack.c.h.b16 %v4519
    %v4605 = vunpack.c.l.b16 %v4520
    %v4606 = vunpack.c.h.b16 %v4520
    %v4607 = vunpack.c.l.b16 %v4521
    %v4608 = vunpack.c.h.b16 %v4521
    %v4609 = vunpack.c.l.b16 %v4522
    %v4610 = vunpack.c.h.b16 %v4522
    %v4611 = vunpack.c.l.b16 %v4523
    %v4612 = vunpack.c.h.b16 %v4523
    %v4613 = vunpack.c.l.b16 %v4524
    %v4614 = vunpack.c.h.b16 %v4524
    %v4615 = vunpack.c.l.b16 %v4525
    %v4616 = vunpack.c.h.b16 %v4525
    %v4617 = vunpack.c.l.b16 %v4526
    %v4618 = vunpack.c.h.b16 %v4526
    %v4619 = vunpack.c.l.b16 %v4527
    %v4620 = vunpack.c.h.b16 %v4527
    %v4621 = vunpack.c.l.b16 %v4528
    %v4622 = vunpack.c.h.b16 %v4528
    %v4623 = vunpack.c.l.b16 %v4529
    %v4624 = vunpack.c.h.b16 %v4529
    %v4625 = vunpack.c.l.b16 %v4530
    %v4626 = vunpack.c.h.b16 %v4530
    %v4627 = vpack.c.b16 %v4567, %v4563
    %v4628 = vpack.c.b16 %v4568, %v4564
    %v4629 = vpack.c.b16 %v4569, %v4565
    %v4630 = vpack.c.b16 %v4570, %v4566
    %v4631 = vpack.c.b16 %v4575, %v4571
    %v4632 = vpack.c.b16 %v4576, %v4572
    %v4633 = vpack.c.b16 %v4577, %v4573
    %v4634 = vpack.c.b16 %v4578, %v4574
    %v4635 = vpack.c.b16 %v4583, %v4579
    %v4636 = vpack.c.b16 %v4584, %v4580
    %v4637 = vpack.c.b16 %v4585, %v4581
    %v4638 = vpack.c.b16 %v4586, %v4582
    %v4639 = vpack.c.b16 %v4591, %v4587
    %v4640 = vpack.c.b16 %v4592, %v4588
    %v4641 = vpack.c.b16 %v4593, %v4589
    %v4642 = vpack.c.b16 %v4594, %v4590
    %v4643 = vpack.c.b16 %v4599, %v4595
    %v4644 = vpack.c.b16 %v4600, %v4596
    %v4645 = vpack.c.b16 %v4601, %v4597
    %v4646 = vpack.c.b16 %v4602, %v4598
    %v4647 = vpack.c.b16 %v4607, %v4603
    %v4648 = vpack.c.b16 %v4608, %v4604
    %v4649 = vpack.c.b16 %v4609, %v4605
    %v4650 = vpack.c.b16 %v4610, %v4606
    %v4651 = vpack.c.b16 %v4615, %v4611
    %v4652 = vpack.c.b16 %v4616, %v4612
    %v4653 = vpack.c.b16 %v4617, %v4613
    %v4654 = vpack.c.b16 %v4618, %v4614
    %v4655 = vpack.c.b16 %v4623, %v4619
    %v4656 = vpack.c.b16 %v4624, %v4620
    %v4657 = vpack.c.b16 %v4625, %v4621
    %v4658 = vpack.c.b16 %v4626, %v4622
    %4691 = vmatprep.subr.bf16.mxu0 %v4628
    %4692 = vmatpush1.bf16.msra.mxu0 %v4627
    %4693 = vmatprep.subr.bf16.mxu0 %v4632
    %4694 = vmatpush1.bf16.msra.mxu0 %v4631
    %4695 = vmatprep.subr.bf16.mxu0 %v4636
    %4696 = vmatpush1.bf16.msra.mxu0 %v4635
    %4697 = vmatprep.subr.bf16.mxu0 %v4640
    %4698 = vmatpush1.bf16.msra.mxu0 %v4639
    %4699 = vmatprep.subr.bf16.mxu0 %v4644
    %4700 = vmatpush1.bf16.msra.mxu0 %v4643
    %4701 = vmatprep.subr.bf16.mxu0 %v4648
    %4702 = vmatpush1.bf16.msra.mxu0 %v4647
    %4703 = vmatprep.subr.bf16.mxu0 %v4652
    %4704 = vmatpush1.bf16.msra.mxu0 %v4651
    %4705 = vmatprep.subr.bf16.mxu0 %v4656
    %4706 = vmatpush1.bf16.msra.mxu0 %v4655
    %4707 = vmatprep.subr.bf16.mxu0 0
    %4708 = vmatpush1.bf16.msra.mxu0 0
    %4709 = vmatprep.subr.bf16.mxu0 0
    %4710 = vmatpush1.bf16.msra.mxu0 0
    %4711 = vmatprep.subr.bf16.mxu0 0
    %4712 = vmatpush1.bf16.msra.mxu0 0
    %4713 = vmatprep.subr.bf16.mxu0 0
    %4714 = vmatpush1.bf16.msra.mxu0 0
    %4715 = vmatprep.subr.bf16.mxu0 0
    %4716 = vmatpush1.bf16.msra.mxu0 0
    %4717 = vmatprep.subr.bf16.mxu0 0
    %4718 = vmatpush1.bf16.msra.mxu0 0
    %4719 = vmatprep.subr.bf16.mxu0 0
    %4720 = vmatpush1.bf16.msra.mxu0 0
    %4721 = vmatprep.subr.bf16.mxu0 0
    %4722 = vmatpush1.bf16.msra.mxu0 0
    %4723 = vmatprep.mubr.bf16.mxu0 0
    %4724 = vmatmul.mubr.bf16.gmra.mrb[0].mxu0 %v4498
    %v4725 = vpop.f32.mrb[0].mxu0
    %v4726 = vadd.f32 0.0, %v4725
    %v4727 = vpop.f32.mrb[0].mxu0
    %v4728 = vadd.f32 0.0, %v4727
    %v4729 = vpop.f32.mrb[0].mxu0
    %v4730 = vpop.f32.mrb[0].mxu0
    %4731 = vdwg.mxu0
    %4732 = vmatprep.subr.bf16.mxu0 %v4630
    %4733 = vmatpush1.bf16.msra.mxu0 %v4629
    %4734 = vmatprep.subr.bf16.mxu0 %v4634
    %4735 = vmatpush1.bf16.msra.mxu0 %v4633
    %4736 = vmatprep.subr.bf16.mxu0 %v4638
    %4737 = vmatpush1.bf16.msra.mxu0 %v4637
    %4738 = vmatprep.subr.bf16.mxu0 %v4642
    %4739 = vmatpush1.bf16.msra.mxu0 %v4641
    %4740 = vmatprep.subr.bf16.mxu0 %v4646
    %4741 = vmatpush1.bf16.msra.mxu0 %v4645
    %4742 = vmatprep.subr.bf16.mxu0 %v4650
    %4743 = vmatpush1.bf16.msra.mxu0 %v4649
    %4744 = vmatprep.subr.bf16.mxu0 %v4654
    %4745 = vmatpush1.bf16.msra.mxu0 %v4653
    %4746 = vmatprep.subr.bf16.mxu0 %v4658
    %4747 = vmatpush1.bf16.msra.mxu0 %v4657
    %4748 = vmatprep.subr.bf16.mxu0 0
    %4749 = vmatpush1.bf16.msra.mxu0 0
    %4750 = vmatprep.subr.bf16.mxu0 0
    %4751 = vmatpush1.bf16.msra.mxu0 0
    %4752 = vmatprep.subr.bf16.mxu0 0
    %4753 = vmatpush1.bf16.msra.mxu0 0
    %4754 = vmatprep.subr.bf16.mxu0 0
    %4755 = vmatpush1.bf16.msra.mxu0 0
    %4756 = vmatprep.subr.bf16.mxu0 0
    %4757 = vmatpush1.bf16.msra.mxu0 0
    %4758 = vmatprep.subr.bf16.mxu0 0
    %4759 = vmatpush1.bf16.msra.mxu0 0
    %4760 = vmatprep.subr.bf16.mxu0 0
    %4761 = vmatpush1.bf16.msra.mxu0 0
    %4762 = vmatprep.subr.bf16.mxu0 0
    %4763 = vmatpush1.bf16.msra.mxu0 0
    %4764 = vmatprep.mubr.bf16.mxu0 0
    %4765 = vmatmul.mubr.bf16.gmra.mrb[0].mxu0 %v4498
    %v4766 = vpop.f32.mrb[0].mxu0
    %v4767 = vadd.f32 0.0, %v4766
    %v4768 = vpop.f32.mrb[0].mxu0
    %v4769 = vadd.f32 0.0, %v4768
    %v4770 = vpop.f32.mrb[0].mxu0
    %v4771 = vpop.f32.mrb[0].mxu0
    %4772 = vdwg.mxu0
    %v4773 = vadd.f32 %v4493, %v4726
    %v4774 = vadd.f32 %v4494, %v4728
    %v4775 = vadd.f32 %v4495, %v4767
    %v4776 = vadd.f32 %v4496, %v4769
    %v4777 = vld [vmem:[#allocation3] sm:$0xff]
    %v4778 = vxor.u32 %v4773, 2147483648
    %v4779 = vmul.f32 %v4778, 1.442695
    %v4780 = vpow.pop %v4779
    %v4781 = vadd.f32 %v4780, 1.0
    %v4782 = vrcp.pop %v4781
    %v4783 = vmul.f32 1.0, %v4782
    %v4784 = vxor.u32 %v4774, 2147483648
    %v4785 = vmul.f32 %v4784, 1.442695
    %v4786 = vpow.pop %v4785
    %v4787 = vadd.f32 %v4786, 1.0
    %v4788 = vrcp.pop %v4787
    %v4789 = vmul.f32 1.0, %v4788
    %v4790 = vtanh.pop %v4775
    %v4791 = vxor.u32 %v4776, 2147483648
    %v4792 = vmul.f32 %v4791, 1.442695
    %v4793 = vpow.pop %v4792
    %v4794 = vadd.f32 %v4793, 1.0
    %v4795 = vrcp.pop %v4794
    %v4796 = vmul.f32 1.0, %v4795
    %v4797 = vmul.f32 %v4789, %v4777
    %v4798 = vmul.f32 %v4783, %v4790
    %v4799 = vadd.f32 %v4797, %v4798
    %v4800 = vtanh.pop %v4799
    %v4801 = vmul.f32 %v4796, %v4800
    %4802 = vst [vmem:[#allocation2] sm:$0xff] %v4801
    %4803 = vst [vmem:[#allocation3] sm:$0xff] %v4799
    %v4804 = vld [vmem:[%s657] sm:$0xff]
    %v4805 = vpack.c.bf16 %v4801, %v4801
    %v4806 = vpack.c.bf16 %v4804, %v4804
    %v4807 = vld [vmem:[#allocation8] sm:$0xff]
    %v4808 = vld [vmem:[#allocation8 + $0x8] sm:$0xff]
    %v4809 = vld [vmem:[#allocation8 + $0x10] sm:$0xff]
    %v4810 = vld [vmem:[#allocation8 + $0x18] sm:$0xff]
    %v4811 = vld [vmem:[#allocation8 + $0x20] sm:$0xff]
    %v4812 = vld [vmem:[#allocation8 + $0x28] sm:$0xff]
    %v4813 = vld [vmem:[#allocation8 + $0x30] sm:$0xff]
    %v4814 = vld [vmem:[#allocation8 + $0x38] sm:$0xff]
    %v4815 = vld [vmem:[#allocation8 + $0x40] sm:$0xff]
    %v4816 = vld [vmem:[#allocation8 + $0x48] sm:$0xff]
    %v4817 = vld [vmem:[#allocation8 + $0x50] sm:$0xff]
    %v4818 = vld [vmem:[#allocation8 + $0x58] sm:$0xff]
    %v4819 = vld [vmem:[#allocation8 + $0x60] sm:$0xff]
    %v4820 = vld [vmem:[#allocation8 + $0x68] sm:$0xff]
    %v4821 = vld [vmem:[#allocation8 + $0x70] sm:$0xff]
    %v4822 = vld [vmem:[#allocation8 + $0x78] sm:$0xff]
    %v4823 = vld [vmem:[#allocation8 + $0x80] sm:$0xff]
    %v4824 = vld [vmem:[#allocation8 + $0x88] sm:$0xff]
    %v4825 = vld [vmem:[#allocation8 + $0x90] sm:$0xff]
    %v4826 = vld [vmem:[#allocation8 + $0x98] sm:$0xff]
    %v4827 = vld [vmem:[#allocation8 + $0xa0] sm:$0xff]
    %v4828 = vld [vmem:[#allocation8 + $0xa8] sm:$0xff]
    %v4829 = vld [vmem:[#allocation8 + $0xb0] sm:$0xff]
    %v4830 = vld [vmem:[#allocation8 + $0xb8] sm:$0xff]
    %v4831 = vld [vmem:[#allocation8 + $0xc0] sm:$0xff]
    %v4832 = vld [vmem:[#allocation8 + $0xc8] sm:$0xff]
    %v4833 = vld [vmem:[#allocation8 + $0xd0] sm:$0xff]
    %v4834 = vld [vmem:[#allocation8 + $0xd8] sm:$0xff]
    %v4835 = vld [vmem:[#allocation8 + $0xe0] sm:$0xff]
    %v4836 = vld [vmem:[#allocation8 + $0xe8] sm:$0xff]
    %v4837 = vld [vmem:[#allocation8 + $0xf0] sm:$0xff]
    %v4838 = vld [vmem:[#allocation8 + $0xf8] sm:$0xff]
    %v4839 = vld [vmem:[#allocation8 + $0x100] sm:$0xff]
    %v4840 = vld [vmem:[#allocation8 + $0x108] sm:$0xff]
    %v4841 = vld [vmem:[#allocation8 + $0x110] sm:$0xff]
    %v4842 = vld [vmem:[#allocation8 + $0x118] sm:$0xff]
    %v4843 = vld [vmem:[#allocation8 + $0x120] sm:$0xff]
    %v4844 = vld [vmem:[#allocation8 + $0x128] sm:$0xff]
    %v4845 = vld [vmem:[#allocation8 + $0x130] sm:$0xff]
    %v4846 = vld [vmem:[#allocation8 + $0x138] sm:$0xff]
    %v4847 = vld [vmem:[#allocation8 + $0x140] sm:$0xff]
    %v4848 = vld [vmem:[#allocation8 + $0x148] sm:$0xff]
    %v4849 = vld [vmem:[#allocation8 + $0x150] sm:$0xff]
    %v4850 = vld [vmem:[#allocation8 + $0x158] sm:$0xff]
    %v4851 = vld [vmem:[#allocation8 + $0x160] sm:$0xff]
    %v4852 = vld [vmem:[#allocation8 + $0x168] sm:$0xff]
    %v4853 = vld [vmem:[#allocation8 + $0x170] sm:$0xff]
    %v4854 = vld [vmem:[#allocation8 + $0x178] sm:$0xff]
    %v4855 = vld [vmem:[#allocation8 + $0x180] sm:$0xff]
    %v4856 = vld [vmem:[#allocation8 + $0x188] sm:$0xff]
    %v4857 = vld [vmem:[#allocation8 + $0x190] sm:$0xff]
    %v4858 = vld [vmem:[#allocation8 + $0x198] sm:$0xff]
    %v4859 = vld [vmem:[#allocation8 + $0x1a0] sm:$0xff]
    %v4860 = vld [vmem:[#allocation8 + $0x1a8] sm:$0xff]
    %v4861 = vld [vmem:[#allocation8 + $0x1b0] sm:$0xff]
    %v4862 = vld [vmem:[#allocation8 + $0x1b8] sm:$0xff]
    %v4863 = vld [vmem:[#allocation8 + $0x1c0] sm:$0xff]
    %v4864 = vld [vmem:[#allocation8 + $0x1c8] sm:$0xff]
    %v4865 = vld [vmem:[#allocation8 + $0x1d0] sm:$0xff]
    %v4866 = vld [vmem:[#allocation8 + $0x1d8] sm:$0xff]
    %v4867 = vld [vmem:[#allocation8 + $0x1e0] sm:$0xff]
    %v4868 = vld [vmem:[#allocation8 + $0x1e8] sm:$0xff]
    %v4869 = vld [vmem:[#allocation8 + $0x1f0] sm:$0xff]
    %v4870 = vld [vmem:[#allocation8 + $0x1f8] sm:$0xff]
    %v4871 = vld [vmem:[%s5] sm:$0xf]
    %v4873 = vlaneseq
    %v4874 = vshrl.u32 %v4873, 7
    %v4875 = vsub.s32 0, %v4874
    %v4876 = vrot.slane %v4871, %v4875
    %v4877 = vlaneseq
    %v4878 = vshrl.u32 %v4877, 7
    %v4879 = vsub.s32 1, %v4878
    %v4880 = vrot.slane %v4871, %v4879
    %v4881 = vlaneseq
    %v4882 = vshrl.u32 %v4881, 7
    %v4883 = vsub.s32 2, %v4882
    %v4884 = vrot.slane %v4871, %v4883
    %v4885 = vlaneseq
    %v4886 = vshrl.u32 %v4885, 7
    %v4887 = vsub.s32 3, %v4886
    %v4888 = vrot.slane %v4871, %v4887
    %v4957 = vunpack.c.l.b16 %v4807
    %v4958 = vunpack.c.h.b16 %v4807
    %v4959 = vunpack.c.l.b16 %v4808
    %v4960 = vunpack.c.h.b16 %v4808
    %v4961 = vunpack.c.l.b16 %v4809
    %v4962 = vunpack.c.h.b16 %v4809
    %v4963 = vunpack.c.l.b16 %v4810
    %v4964 = vunpack.c.h.b16 %v4810
    %v4965 = vunpack.c.l.b16 %v4811
    %v4966 = vunpack.c.h.b16 %v4811
    %v4967 = vunpack.c.l.b16 %v4812
    %v4968 = vunpack.c.h.b16 %v4812
    %v4969 = vunpack.c.l.b16 %v4813
    %v4970 = vunpack.c.h.b16 %v4813
    %v4971 = vunpack.c.l.b16 %v4814
    %v4972 = vunpack.c.h.b16 %v4814
    %v4973 = vunpack.c.l.b16 %v4815
    %v4974 = vunpack.c.h.b16 %v4815
    %v4975 = vunpack.c.l.b16 %v4816
    %v4976 = vunpack.c.h.b16 %v4816
    %v4977 = vunpack.c.l.b16 %v4817
    %v4978 = vunpack.c.h.b16 %v4817
    %v4979 = vunpack.c.l.b16 %v4818
    %v4980 = vunpack.c.h.b16 %v4818
    %v4981 = vunpack.c.l.b16 %v4819
    %v4982 = vunpack.c.h.b16 %v4819
    %v4983 = vunpack.c.l.b16 %v4820
    %v4984 = vunpack.c.h.b16 %v4820
    %v4985 = vunpack.c.l.b16 %v4821
    %v4986 = vunpack.c.h.b16 %v4821
    %v4987 = vunpack.c.l.b16 %v4822
    %v4988 = vunpack.c.h.b16 %v4822
    %v4989 = vunpack.c.l.b16 %v4823
    %v4990 = vunpack.c.h.b16 %v4823
    %v4991 = vunpack.c.l.b16 %v4824
    %v4992 = vunpack.c.h.b16 %v4824
    %v4993 = vunpack.c.l.b16 %v4825
    %v4994 = vunpack.c.h.b16 %v4825
    %v4995 = vunpack.c.l.b16 %v4826
    %v4996 = vunpack.c.h.b16 %v4826
    %v4997 = vunpack.c.l.b16 %v4827
    %v4998 = vunpack.c.h.b16 %v4827
    %v4999 = vunpack.c.l.b16 %v4828
    %v5000 = vunpack.c.h.b16 %v4828
    %v5001 = vunpack.c.l.b16 %v4829
    %v5002 = vunpack.c.h.b16 %v4829
    %v5003 = vunpack.c.l.b16 %v4830
    %v5004 = vunpack.c.h.b16 %v4830
    %v5005 = vunpack.c.l.b16 %v4831
    %v5006 = vunpack.c.h.b16 %v4831
    %v5007 = vunpack.c.l.b16 %v4832
    %v5008 = vunpack.c.h.b16 %v4832
    %v5009 = vunpack.c.l.b16 %v4833
    %v5010 = vunpack.c.h.b16 %v4833
    %v5011 = vunpack.c.l.b16 %v4834
    %v5012 = vunpack.c.h.b16 %v4834
    %v5013 = vunpack.c.l.b16 %v4835
    %v5014 = vunpack.c.h.b16 %v4835
    %v5015 = vunpack.c.l.b16 %v4836
    %v5016 = vunpack.c.h.b16 %v4836
    %v5017 = vunpack.c.l.b16 %v4837
    %v5018 = vunpack.c.h.b16 %v4837
    %v5019 = vunpack.c.l.b16 %v4838
    %v5020 = vunpack.c.h.b16 %v4838
    %v5021 = vunpack.c.l.b16 %v4839
    %v5022 = vunpack.c.h.b16 %v4839
    %v5023 = vunpack.c.l.b16 %v4840
    %v5024 = vunpack.c.h.b16 %v4840
    %v5025 = vunpack.c.l.b16 %v4841
    %v5026 = vunpack.c.h.b16 %v4841
    %v5027 = vunpack.c.l.b16 %v4842
    %v5028 = vunpack.c.h.b16 %v4842
    %v5029 = vunpack.c.l.b16 %v4843
    %v5030 = vunpack.c.h.b16 %v4843
    %v5031 = vunpack.c.l.b16 %v4844
    %v5032 = vunpack.c.h.b16 %v4844
    %v5033 = vunpack.c.l.b16 %v4845
    %v5034 = vunpack.c.h.b16 %v4845
    %v5035 = vunpack.c.l.b16 %v4846
    %v5036 = vunpack.c.h.b16 %v4846
    %v5037 = vunpack.c.l.b16 %v4847
    %v5038 = vunpack.c.h.b16 %v4847
    %v5039 = vunpack.c.l.b16 %v4848
    %v5040 = vunpack.c.h.b16 %v4848
    %v5041 = vunpack.c.l.b16 %v4849
    %v5042 = vunpack.c.h.b16 %v4849
    %v5043 = vunpack.c.l.b16 %v4850
    %v5044 = vunpack.c.h.b16 %v4850
    %v5045 = vunpack.c.l.b16 %v4851
    %v5046 = vunpack.c.h.b16 %v4851
    %v5047 = vunpack.c.l.b16 %v4852
    %v5048 = vunpack.c.h.b16 %v4852
    %v5049 = vunpack.c.l.b16 %v4853
    %v5050 = vunpack.c.h.b16 %v4853
    %v5051 = vunpack.c.l.b16 %v4854
    %v5052 = vunpack.c.h.b16 %v4854
    %v5053 = vunpack.c.l.b16 %v4855
    %v5054 = vunpack.c.h.b16 %v4855
    %v5055 = vunpack.c.l.b16 %v4856
    %v5056 = vunpack.c.h.b16 %v4856
    %v5057 = vunpack.c.l.b16 %v4857
    %v5058 = vunpack.c.h.b16 %v4857
    %v5059 = vunpack.c.l.b16 %v4858
    %v5060 = vunpack.c.h.b16 %v4858
    %v5061 = vunpack.c.l.b16 %v4859
    %v5062 = vunpack.c.h.b16 %v4859
    %v5063 = vunpack.c.l.b16 %v4860
    %v5064 = vunpack.c.h.b16 %v4860
    %v5065 = vunpack.c.l.b16 %v4861
    %v5066 = vunpack.c.h.b16 %v4861
    %v5067 = vunpack.c.l.b16 %v4862
    %v5068 = vunpack.c.h.b16 %v4862
    %v5069 = vunpack.c.l.b16 %v4863
    %v5070 = vunpack.c.h.b16 %v4863
    %v5071 = vunpack.c.l.b16 %v4864
    %v5072 = vunpack.c.h.b16 %v4864
    %v5073 = vunpack.c.l.b16 %v4865
    %v5074 = vunpack.c.h.b16 %v4865
    %v5075 = vunpack.c.l.b16 %v4866
    %v5076 = vunpack.c.h.b16 %v4866
    %v5077 = vunpack.c.l.b16 %v4867
    %v5078 = vunpack.c.h.b16 %v4867
    %v5079 = vunpack.c.l.b16 %v4868
    %v5080 = vunpack.c.h.b16 %v4868
    %v5081 = vunpack.c.l.b16 %v4869
    %v5082 = vunpack.c.h.b16 %v4869
    %v5083 = vunpack.c.l.b16 %v4870
    %v5084 = vunpack.c.h.b16 %v4870
    %v5085 = vpack.c.b16 %v4961, %v4957
    %v5086 = vpack.c.b16 %v4962, %v4958
    %v5087 = vpack.c.b16 %v4963, %v4959
    %v5088 = vpack.c.b16 %v4964, %v4960
    %v5089 = vpack.c.b16 %v4969, %v4965
    %v5090 = vpack.c.b16 %v4970, %v4966
    %v5091 = vpack.c.b16 %v4971, %v4967
    %v5092 = vpack.c.b16 %v4972, %v4968
    %v5093 = vpack.c.b16 %v4977, %v4973
    %v5094 = vpack.c.b16 %v4978, %v4974
    %v5095 = vpack.c.b16 %v4979, %v4975
    %v5096 = vpack.c.b16 %v4980, %v4976
    %v5097 = vpack.c.b16 %v4985, %v4981
    %v5098 = vpack.c.b16 %v4986, %v4982
    %v5099 = vpack.c.b16 %v4987, %v4983
    %v5100 = vpack.c.b16 %v4988, %v4984
    %v5101 = vpack.c.b16 %v4993, %v4989
    %v5102 = vpack.c.b16 %v4994, %v4990
    %v5103 = vpack.c.b16 %v4995, %v4991
    %v5104 = vpack.c.b16 %v4996, %v4992
    %v5105 = vpack.c.b16 %v5001, %v4997
    %v5106 = vpack.c.b16 %v5002, %v4998
    %v5107 = vpack.c.b16 %v5003, %v4999
    %v5108 = vpack.c.b16 %v5004, %v5000
    %v5109 = vpack.c.b16 %v5009, %v5005
    %v5110 = vpack.c.b16 %v5010, %v5006
    %v5111 = vpack.c.b16 %v5011, %v5007
    %v5112 = vpack.c.b16 %v5012, %v5008
    %v5113 = vpack.c.b16 %v5017, %v5013
    %v5114 = vpack.c.b16 %v5018, %v5014
    %v5115 = vpack.c.b16 %v5019, %v5015
    %v5116 = vpack.c.b16 %v5020, %v5016
    %v5117 = vpack.c.b16 %v5025, %v5021
    %v5118 = vpack.c.b16 %v5026, %v5022
    %v5119 = vpack.c.b16 %v5027, %v5023
    %v5120 = vpack.c.b16 %v5028, %v5024
    %v5121 = vpack.c.b16 %v5033, %v5029
    %v5122 = vpack.c.b16 %v5034, %v5030
    %v5123 = vpack.c.b16 %v5035, %v5031
    %v5124 = vpack.c.b16 %v5036, %v5032
    %v5125 = vpack.c.b16 %v5041, %v5037
    %v5126 = vpack.c.b16 %v5042, %v5038
    %v5127 = vpack.c.b16 %v5043, %v5039
    %v5128 = vpack.c.b16 %v5044, %v5040
    %v5129 = vpack.c.b16 %v5049, %v5045
    %v5130 = vpack.c.b16 %v5050, %v5046
    %v5131 = vpack.c.b16 %v5051, %v5047
    %v5132 = vpack.c.b16 %v5052, %v5048
    %v5133 = vpack.c.b16 %v5057, %v5053
    %v5134 = vpack.c.b16 %v5058, %v5054
    %v5135 = vpack.c.b16 %v5059, %v5055
    %v5136 = vpack.c.b16 %v5060, %v5056
    %v5137 = vpack.c.b16 %v5065, %v5061
    %v5138 = vpack.c.b16 %v5066, %v5062
    %v5139 = vpack.c.b16 %v5067, %v5063
    %v5140 = vpack.c.b16 %v5068, %v5064
    %v5141 = vpack.c.b16 %v5073, %v5069
    %v5142 = vpack.c.b16 %v5074, %v5070
    %v5143 = vpack.c.b16 %v5075, %v5071
    %v5144 = vpack.c.b16 %v5076, %v5072
    %v5145 = vpack.c.b16 %v5081, %v5077
    %v5146 = vpack.c.b16 %v5082, %v5078
    %v5147 = vpack.c.b16 %v5083, %v5079
    %v5148 = vpack.c.b16 %v5084, %v5080
    %5213 = vmatprep.subr.bf16.mxu0 %v5086
    %5214 = vmatpush1.bf16.msra.mxu0 %v5085
    %5215 = vmatprep.subr.bf16.mxu0 %v5090
    %5216 = vmatpush1.bf16.msra.mxu0 %v5089
    %5217 = vmatprep.subr.bf16.mxu0 %v5094
    %5218 = vmatpush1.bf16.msra.mxu0 %v5093
    %5219 = vmatprep.subr.bf16.mxu0 %v5098
    %5220 = vmatpush1.bf16.msra.mxu0 %v5097
    %5221 = vmatprep.subr.bf16.mxu0 %v5102
    %5222 = vmatpush1.bf16.msra.mxu0 %v5101
    %5223 = vmatprep.subr.bf16.mxu0 %v5106
    %5224 = vmatpush1.bf16.msra.mxu0 %v5105
    %5225 = vmatprep.subr.bf16.mxu0 %v5110
    %5226 = vmatpush1.bf16.msra.mxu0 %v5109
    %5227 = vmatprep.subr.bf16.mxu0 %v5114
    %5228 = vmatpush1.bf16.msra.mxu0 %v5113
    %5229 = vmatprep.subr.bf16.mxu0 %v5118
    %5230 = vmatpush1.bf16.msra.mxu0 %v5117
    %5231 = vmatprep.subr.bf16.mxu0 %v5122
    %5232 = vmatpush1.bf16.msra.mxu0 %v5121
    %5233 = vmatprep.subr.bf16.mxu0 %v5126
    %5234 = vmatpush1.bf16.msra.mxu0 %v5125
    %5235 = vmatprep.subr.bf16.mxu0 %v5130
    %5236 = vmatpush1.bf16.msra.mxu0 %v5129
    %5237 = vmatprep.subr.bf16.mxu0 %v5134
    %5238 = vmatpush1.bf16.msra.mxu0 %v5133
    %5239 = vmatprep.subr.bf16.mxu0 %v5138
    %5240 = vmatpush1.bf16.msra.mxu0 %v5137
    %5241 = vmatprep.subr.bf16.mxu0 %v5142
    %5242 = vmatpush1.bf16.msra.mxu0 %v5141
    %5243 = vmatprep.subr.bf16.mxu0 %v5146
    %5244 = vmatpush1.bf16.msra.mxu0 %v5145
    %5245 = vmatprep.mubr.bf16.mxu0 %v4806
    %5246 = vmatmul.mubr.bf16.gmra.mrb[0].mxu0 %v4805
    %v5247 = vpop.f32.mrb[0].mxu0
    %v5248 = vadd.f32 %v4876, %v5247
    %v5249 = vpop.f32.mrb[0].mxu0
    %v5250 = vadd.f32 %v4880, %v5249
    %v5251 = vpop.f32.mrb[0].mxu0
    %v5252 = vpop.f32.mrb[0].mxu0
    %5253 = vdwg.mxu0
    %5254 = vmatprep.subr.bf16.mxu0 %v5088
    %5255 = vmatpush1.bf16.msra.mxu0 %v5087
    %5256 = vmatprep.subr.bf16.mxu0 %v5092
    %5257 = vmatpush1.bf16.msra.mxu0 %v5091
    %5258 = vmatprep.subr.bf16.mxu0 %v5096
    %5259 = vmatpush1.bf16.msra.mxu0 %v5095
    %5260 = vmatprep.subr.bf16.mxu0 %v5100
    %5261 = vmatpush1.bf16.msra.mxu0 %v5099
    %5262 = vmatprep.subr.bf16.mxu0 %v5104
    %5263 = vmatpush1.bf16.msra.mxu0 %v5103
    %5264 = vmatprep.subr.bf16.mxu0 %v5108
    %5265 = vmatpush1.bf16.msra.mxu0 %v5107
    %5266 = vmatprep.subr.bf16.mxu0 %v5112
    %5267 = vmatpush1.bf16.msra.mxu0 %v5111
    %5268 = vmatprep.subr.bf16.mxu0 %v5116
    %5269 = vmatpush1.bf16.msra.mxu0 %v5115
    %5270 = vmatprep.subr.bf16.mxu0 %v5120
    %5271 = vmatpush1.bf16.msra.mxu0 %v5119
    %5272 = vmatprep.subr.bf16.mxu0 %v5124
    %5273 = vmatpush1.bf16.msra.mxu0 %v5123
    %5274 = vmatprep.subr.bf16.mxu0 %v5128
    %5275 = vmatpush1.bf16.msra.mxu0 %v5127
    %5276 = vmatprep.subr.bf16.mxu0 %v5132
    %5277 = vmatpush1.bf16.msra.mxu0 %v5131
    %5278 = vmatprep.subr.bf16.mxu0 %v5136
    %5279 = vmatpush1.bf16.msra.mxu0 %v5135
    %5280 = vmatprep.subr.bf16.mxu0 %v5140
    %5281 = vmatpush1.bf16.msra.mxu0 %v5139
    %5282 = vmatprep.subr.bf16.mxu0 %v5144
    %5283 = vmatpush1.bf16.msra.mxu0 %v5143
    %5284 = vmatprep.subr.bf16.mxu0 %v5148
    %5285 = vmatpush1.bf16.msra.mxu0 %v5147
    %5286 = vmatprep.mubr.bf16.mxu0 %v4806
    %5287 = vmatmul.mubr.bf16.gmra.mrb[0].mxu0 %v4805
    %v5288 = vpop.f32.mrb[0].mxu0
    %v5289 = vadd.f32 %v4884, %v5288
    %v5290 = vpop.f32.mrb[0].mxu0
    %v5291 = vadd.f32 %v4888, %v5290
    %v5292 = vpop.f32.mrb[0].mxu0
    %v5293 = vpop.f32.mrb[0].mxu0
    %5294 = vdwg.mxu0
    %v5295 = vld [vmem:[%s1149] sm:$0xff]
    %v5296 = vxor.u32 %v5248, 2147483648
    %v5297 = vmul.f32 %v5296, 1.442695
    %v5298 = vpow.pop %v5297
    %v5299 = vadd.f32 %v5298, 1.0
    %v5300 = vrcp.pop %v5299
    %v5301 = vmul.f32 1.0, %v5300
    %v5302 = vxor.u32 %v5250, 2147483648
    %v5303 = vmul.f32 %v5302, 1.442695
    %v5304 = vpow.pop %v5303
    %v5305 = vadd.f32 %v5304, 1.0
    %v5306 = vrcp.pop %v5305
    %v5307 = vmul.f32 1.0, %v5306
    %v5308 = vtanh.pop %v5289
    %v5309 = vxor.u32 %v5291, 2147483648
    %v5310 = vmul.f32 %v5309, 1.442695
    %v5311 = vpow.pop %v5310
    %v5312 = vadd.f32 %v5311, 1.0
    %v5313 = vrcp.pop %v5312
    %v5314 = vmul.f32 1.0, %v5313
    %v5315 = vmul.f32 %v5307, %v5295
    %v5316 = vmul.f32 %v5301, %v5308
    %v5317 = vadd.f32 %v5315, %v5316
    %v5318 = vtanh.pop %v5317
    %v5319 = vmul.f32 %v5314, %v5318
    %5320 = vst [vmem:[%s657] sm:$0xff] %v5319
    %5321 = vst [vmem:[%s1149] sm:$0xff] %v5317
    %v5322 = vld [vmem:[#allocation4 + $0xc0] sm:$0xff]
    %v5323 = vld [vmem:[#allocation4 + $0xc8] sm:$0xff]
    %v5324 = vld [vmem:[#allocation4 + $0xd0] sm:$0xff]
    %v5325 = vld [vmem:[#allocation4 + $0xd8] sm:$0xff]
    %v5326 = vld [vmem:[#allocation2] sm:$0xff]
    %v5327 = vpack.c.bf16 %v5326, %v5326
    %v5328 = vld [vmem:[#allocation5] sm:$0xff]
    %v5329 = vld [vmem:[#allocation5 + $0x8] sm:$0xff]
    %v5330 = vld [vmem:[#allocation5 + $0x10] sm:$0xff]
    %v5331 = vld [vmem:[#allocation5 + $0x18] sm:$0xff]
    %v5332 = vld [vmem:[#allocation5 + $0x20] sm:$0xff]
    %v5333 = vld [vmem:[#allocation5 + $0x28] sm:$0xff]
    %v5334 = vld [vmem:[#allocation5 + $0x30] sm:$0xff]
    %v5335 = vld [vmem:[#allocation5 + $0x38] sm:$0xff]
    %v5336 = vld [vmem:[#allocation5 + $0x40] sm:$0xff]
    %v5337 = vld [vmem:[#allocation5 + $0x48] sm:$0xff]
    %v5338 = vld [vmem:[#allocation5 + $0x50] sm:$0xff]
    %v5339 = vld [vmem:[#allocation5 + $0x58] sm:$0xff]
    %v5340 = vld [vmem:[#allocation5 + $0x60] sm:$0xff]
    %v5341 = vld [vmem:[#allocation5 + $0x68] sm:$0xff]
    %v5342 = vld [vmem:[#allocation5 + $0x70] sm:$0xff]
    %v5343 = vld [vmem:[#allocation5 + $0x78] sm:$0xff]
    %v5344 = vld [vmem:[#allocation5 + $0x80] sm:$0xff]
    %v5345 = vld [vmem:[#allocation5 + $0x88] sm:$0xff]
    %v5346 = vld [vmem:[#allocation5 + $0x90] sm:$0xff]
    %v5347 = vld [vmem:[#allocation5 + $0x98] sm:$0xff]
    %v5348 = vld [vmem:[#allocation5 + $0xa0] sm:$0xff]
    %v5349 = vld [vmem:[#allocation5 + $0xa8] sm:$0xff]
    %v5350 = vld [vmem:[#allocation5 + $0xb0] sm:$0xff]
    %v5351 = vld [vmem:[#allocation5 + $0xb8] sm:$0xff]
    %v5352 = vld [vmem:[#allocation5 + $0xc0] sm:$0xff]
    %v5353 = vld [vmem:[#allocation5 + $0xc8] sm:$0xff]
    %v5354 = vld [vmem:[#allocation5 + $0xd0] sm:$0xff]
    %v5355 = vld [vmem:[#allocation5 + $0xd8] sm:$0xff]
    %v5356 = vld [vmem:[#allocation5 + $0xe0] sm:$0xff]
    %v5357 = vld [vmem:[#allocation5 + $0xe8] sm:$0xff]
    %v5358 = vld [vmem:[#allocation5 + $0xf0] sm:$0xff]
    %v5359 = vld [vmem:[#allocation5 + $0xf8] sm:$0xff]
    %v5392 = vunpack.c.l.b16 %v5328
    %v5393 = vunpack.c.h.b16 %v5328
    %v5394 = vunpack.c.l.b16 %v5329
    %v5395 = vunpack.c.h.b16 %v5329
    %v5396 = vunpack.c.l.b16 %v5330
    %v5397 = vunpack.c.h.b16 %v5330
    %v5398 = vunpack.c.l.b16 %v5331
    %v5399 = vunpack.c.h.b16 %v5331
    %v5400 = vunpack.c.l.b16 %v5332
    %v5401 = vunpack.c.h.b16 %v5332
    %v5402 = vunpack.c.l.b16 %v5333
    %v5403 = vunpack.c.h.b16 %v5333
    %v5404 = vunpack.c.l.b16 %v5334
    %v5405 = vunpack.c.h.b16 %v5334
    %v5406 = vunpack.c.l.b16 %v5335
    %v5407 = vunpack.c.h.b16 %v5335
    %v5408 = vunpack.c.l.b16 %v5336
    %v5409 = vunpack.c.h.b16 %v5336
    %v5410 = vunpack.c.l.b16 %v5337
    %v5411 = vunpack.c.h.b16 %v5337
    %v5412 = vunpack.c.l.b16 %v5338
    %v5413 = vunpack.c.h.b16 %v5338
    %v5414 = vunpack.c.l.b16 %v5339
    %v5415 = vunpack.c.h.b16 %v5339
    %v5416 = vunpack.c.l.b16 %v5340
    %v5417 = vunpack.c.h.b16 %v5340
    %v5418 = vunpack.c.l.b16 %v5341
    %v5419 = vunpack.c.h.b16 %v5341
    %v5420 = vunpack.c.l.b16 %v5342
    %v5421 = vunpack.c.h.b16 %v5342
    %v5422 = vunpack.c.l.b16 %v5343
    %v5423 = vunpack.c.h.b16 %v5343
    %v5424 = vunpack.c.l.b16 %v5344
    %v5425 = vunpack.c.h.b16 %v5344
    %v5426 = vunpack.c.l.b16 %v5345
    %v5427 = vunpack.c.h.b16 %v5345
    %v5428 = vunpack.c.l.b16 %v5346
    %v5429 = vunpack.c.h.b16 %v5346
    %v5430 = vunpack.c.l.b16 %v5347
    %v5431 = vunpack.c.h.b16 %v5347
    %v5432 = vunpack.c.l.b16 %v5348
    %v5433 = vunpack.c.h.b16 %v5348
    %v5434 = vunpack.c.l.b16 %v5349
    %v5435 = vunpack.c.h.b16 %v5349
    %v5436 = vunpack.c.l.b16 %v5350
    %v5437 = vunpack.c.h.b16 %v5350
    %v5438 = vunpack.c.l.b16 %v5351
    %v5439 = vunpack.c.h.b16 %v5351
    %v5440 = vunpack.c.l.b16 %v5352
    %v5441 = vunpack.c.h.b16 %v5352
    %v5442 = vunpack.c.l.b16 %v5353
    %v5443 = vunpack.c.h.b16 %v5353
    %v5444 = vunpack.c.l.b16 %v5354
    %v5445 = vunpack.c.h.b16 %v5354
    %v5446 = vunpack.c.l.b16 %v5355
    %v5447 = vunpack.c.h.b16 %v5355
    %v5448 = vunpack.c.l.b16 %v5356
    %v5449 = vunpack.c.h.b16 %v5356
    %v5450 = vunpack.c.l.b16 %v5357
    %v5451 = vunpack.c.h.b16 %v5357
    %v5452 = vunpack.c.l.b16 %v5358
    %v5453 = vunpack.c.h.b16 %v5358
    %v5454 = vunpack.c.l.b16 %v5359
    %v5455 = vunpack.c.h.b16 %v5359
    %v5456 = vpack.c.b16 %v5396, %v5392
    %v5457 = vpack.c.b16 %v5397, %v5393
    %v5458 = vpack.c.b16 %v5398, %v5394
    %v5459 = vpack.c.b16 %v5399, %v5395
    %v5460 = vpack.c.b16 %v5404, %v5400
    %v5461 = vpack.c.b16 %v5405, %v5401
    %v5462 = vpack.c.b16 %v5406, %v5402
    %v5463 = vpack.c.b16 %v5407, %v5403
    %v5464 = vpack.c.b16 %v5412, %v5408
    %v5465 = vpack.c.b16 %v5413, %v5409
    %v5466 = vpack.c.b16 %v5414, %v5410
    %v5467 = vpack.c.b16 %v5415, %v5411
    %v5468 = vpack.c.b16 %v5420, %v5416
    %v5469 = vpack.c.b16 %v5421, %v5417
    %v5470 = vpack.c.b16 %v5422, %v5418
    %v5471 = vpack.c.b16 %v5423, %v5419
    %v5472 = vpack.c.b16 %v5428, %v5424
    %v5473 = vpack.c.b16 %v5429, %v5425
    %v5474 = vpack.c.b16 %v5430, %v5426
    %v5475 = vpack.c.b16 %v5431, %v5427
    %v5476 = vpack.c.b16 %v5436, %v5432
    %v5477 = vpack.c.b16 %v5437, %v5433
    %v5478 = vpack.c.b16 %v5438, %v5434
    %v5479 = vpack.c.b16 %v5439, %v5435
    %v5480 = vpack.c.b16 %v5444, %v5440
    %v5481 = vpack.c.b16 %v5445, %v5441
    %v5482 = vpack.c.b16 %v5446, %v5442
    %v5483 = vpack.c.b16 %v5447, %v5443
    %v5484 = vpack.c.b16 %v5452, %v5448
    %v5485 = vpack.c.b16 %v5453, %v5449
    %v5486 = vpack.c.b16 %v5454, %v5450
    %v5487 = vpack.c.b16 %v5455, %v5451
    %5520 = vmatprep.subr.bf16.mxu0 %v5457
    %5521 = vmatpush1.bf16.msra.mxu0 %v5456
    %5522 = vmatprep.subr.bf16.mxu0 %v5461
    %5523 = vmatpush1.bf16.msra.mxu0 %v5460
    %5524 = vmatprep.subr.bf16.mxu0 %v5465
    %5525 = vmatpush1.bf16.msra.mxu0 %v5464
    %5526 = vmatprep.subr.bf16.mxu0 %v5469
    %5527 = vmatpush1.bf16.msra.mxu0 %v5468
    %5528 = vmatprep.subr.bf16.mxu0 %v5473
    %5529 = vmatpush1.bf16.msra.mxu0 %v5472
    %5530 = vmatprep.subr.bf16.mxu0 %v5477
    %5531 = vmatpush1.bf16.msra.mxu0 %v5476
    %5532 = vmatprep.subr.bf16.mxu0 %v5481
    %5533 = vmatpush1.bf16.msra.mxu0 %v5480
    %5534 = vmatprep.subr.bf16.mxu0 %v5485
    %5535 = vmatpush1.bf16.msra.mxu0 %v5484
    %5536 = vmatprep.subr.bf16.mxu0 0
    %5537 = vmatpush1.bf16.msra.mxu0 0
    %5538 = vmatprep.subr.bf16.mxu0 0
    %5539 = vmatpush1.bf16.msra.mxu0 0
    %5540 = vmatprep.subr.bf16.mxu0 0
    %5541 = vmatpush1.bf16.msra.mxu0 0
    %5542 = vmatprep.subr.bf16.mxu0 0
    %5543 = vmatpush1.bf16.msra.mxu0 0
    %5544 = vmatprep.subr.bf16.mxu0 0
    %5545 = vmatpush1.bf16.msra.mxu0 0
    %5546 = vmatprep.subr.bf16.mxu0 0
    %5547 = vmatpush1.bf16.msra.mxu0 0
    %5548 = vmatprep.subr.bf16.mxu0 0
    %5549 = vmatpush1.bf16.msra.mxu0 0
    %5550 = vmatprep.subr.bf16.mxu0 0
    %5551 = vmatpush1.bf16.msra.mxu0 0
    %5552 = vmatprep.mubr.bf16.mxu0 0
    %5553 = vmatmul.mubr.bf16.gmra.mrb[0].mxu0 %v5327
    %v5554 = vpop.f32.mrb[0].mxu0
    %v5555 = vadd.f32 0.0, %v5554
    %v5556 = vpop.f32.mrb[0].mxu0
    %v5557 = vadd.f32 0.0, %v5556
    %v5558 = vpop.f32.mrb[0].mxu0
    %v5559 = vpop.f32.mrb[0].mxu0
    %5560 = vdwg.mxu0
    %5561 = vmatprep.subr.bf16.mxu0 %v5459
    %5562 = vmatpush1.bf16.msra.mxu0 %v5458
    %5563 = vmatprep.subr.bf16.mxu0 %v5463
    %5564 = vmatpush1.bf16.msra.mxu0 %v5462
    %5565 = vmatprep.subr.bf16.mxu0 %v5467
    %5566 = vmatpush1.bf16.msra.mxu0 %v5466
    %5567 = vmatprep.subr.bf16.mxu0 %v5471
    %5568 = vmatpush1.bf16.msra.mxu0 %v5470
    %5569 = vmatprep.subr.bf16.mxu0 %v5475
    %5570 = vmatpush1.bf16.msra.mxu0 %v5474
    %5571 = vmatprep.subr.bf16.mxu0 %v5479
    %5572 = vmatpush1.bf16.msra.mxu0 %v5478
    %5573 = vmatprep.subr.bf16.mxu0 %v5483
    %5574 = vmatpush1.bf16.msra.mxu0 %v5482
    %5575 = vmatprep.subr.bf16.mxu0 %v5487
    %5576 = vmatpush1.bf16.msra.mxu0 %v5486
    %5577 = vmatprep.subr.bf16.mxu0 0
    %5578 = vmatpush1.bf16.msra.mxu0 0
    %5579 = vmatprep.subr.bf16.mxu0 0
    %5580 = vmatpush1.bf16.msra.mxu0 0
    %5581 = vmatprep.subr.bf16.mxu0 0
    %5582 = vmatpush1.bf16.msra.mxu0 0
    %5583 = vmatprep.subr.bf16.mxu0 0
    %5584 = vmatpush1.bf16.msra.mxu0 0
    %5585 = vmatprep.subr.bf16.mxu0 0
    %5586 = vmatpush1.bf16.msra.mxu0 0
    %5587 = vmatprep.subr.bf16.mxu0 0
    %5588 = vmatpush1.bf16.msra.mxu0 0
    %5589 = vmatprep.subr.bf16.mxu0 0
    %5590 = vmatpush1.bf16.msra.mxu0 0
    %5591 = vmatprep.subr.bf16.mxu0 0
    %5592 = vmatpush1.bf16.msra.mxu0 0
    %5593 = vmatprep.mubr.bf16.mxu0 0
    %5594 = vmatmul.mubr.bf16.gmra.mrb[0].mxu0 %v5327
    %v5595 = vpop.f32.mrb[0].mxu0
    %v5596 = vadd.f32 0.0, %v5595
    %v5597 = vpop.f32.mrb[0].mxu0
    %v5598 = vadd.f32 0.0, %v5597
    %v5599 = vpop.f32.mrb[0].mxu0
    %v5600 = vpop.f32.mrb[0].mxu0
    %5601 = vdwg.mxu0
    %v5602 = vadd.f32 %v5322, %v5555
    %v5603 = vadd.f32 %v5323, %v5557
    %v5604 = vadd.f32 %v5324, %v5596
    %v5605 = vadd.f32 %v5325, %v5598
    %v5606 = vld [vmem:[#allocation3] sm:$0xff]
    %v5607 = vxor.u32 %v5602, 2147483648
    %v5608 = vmul.f32 %v5607, 1.442695
    %v5609 = vpow.pop %v5608
    %v5610 = vadd.f32 %v5609, 1.0
    %v5611 = vrcp.pop %v5610
    %v5612 = vmul.f32 1.0, %v5611
    %v5613 = vxor.u32 %v5603, 2147483648
    %v5614 = vmul.f32 %v5613, 1.442695
    %v5615 = vpow.pop %v5614
    %v5616 = vadd.f32 %v5615, 1.0
    %v5617 = vrcp.pop %v5616
    %v5618 = vmul.f32 1.0, %v5617
    %v5619 = vtanh.pop %v5604
    %v5620 = vxor.u32 %v5605, 2147483648
    %v5621 = vmul.f32 %v5620, 1.442695
    %v5622 = vpow.pop %v5621
    %v5623 = vadd.f32 %v5622, 1.0
    %v5624 = vrcp.pop %v5623
    %v5625 = vmul.f32 1.0, %v5624
    %v5626 = vmul.f32 %v5618, %v5606
    %v5627 = vmul.f32 %v5612, %v5619
    %v5628 = vadd.f32 %v5626, %v5627
    %v5629 = vtanh.pop %v5628
    %v5630 = vmul.f32 %v5625, %v5629
    %5631 = vst [vmem:[#allocation2] sm:$0xff] %v5630
    %5632 = vst [vmem:[#allocation3] sm:$0xff] %v5628
    %v5633 = vld [vmem:[%s657] sm:$0xff]
    %v5634 = vpack.c.bf16 %v5630, %v5630
    %v5635 = vpack.c.bf16 %v5633, %v5633
    %v5636 = vld [vmem:[#allocation8] sm:$0xff]
    %v5637 = vld [vmem:[#allocation8 + $0x8] sm:$0xff]
    %v5638 = vld [vmem:[#allocation8 + $0x10] sm:$0xff]
    %v5639 = vld [vmem:[#allocation8 + $0x18] sm:$0xff]
    %v5640 = vld [vmem:[#allocation8 + $0x20] sm:$0xff]
    %v5641 = vld [vmem:[#allocation8 + $0x28] sm:$0xff]
    %v5642 = vld [vmem:[#allocation8 + $0x30] sm:$0xff]
    %v5643 = vld [vmem:[#allocation8 + $0x38] sm:$0xff]
    %v5644 = vld [vmem:[#allocation8 + $0x40] sm:$0xff]
    %v5645 = vld [vmem:[#allocation8 + $0x48] sm:$0xff]
    %v5646 = vld [vmem:[#allocation8 + $0x50] sm:$0xff]
    %v5647 = vld [vmem:[#allocation8 + $0x58] sm:$0xff]
    %v5648 = vld [vmem:[#allocation8 + $0x60] sm:$0xff]
    %v5649 = vld [vmem:[#allocation8 + $0x68] sm:$0xff]
    %v5650 = vld [vmem:[#allocation8 + $0x70] sm:$0xff]
    %v5651 = vld [vmem:[#allocation8 + $0x78] sm:$0xff]
    %v5652 = vld [vmem:[#allocation8 + $0x80] sm:$0xff]
    %v5653 = vld [vmem:[#allocation8 + $0x88] sm:$0xff]
    %v5654 = vld [vmem:[#allocation8 + $0x90] sm:$0xff]
    %v5655 = vld [vmem:[#allocation8 + $0x98] sm:$0xff]
    %v5656 = vld [vmem:[#allocation8 + $0xa0] sm:$0xff]
    %v5657 = vld [vmem:[#allocation8 + $0xa8] sm:$0xff]
    %v5658 = vld [vmem:[#allocation8 + $0xb0] sm:$0xff]
    %v5659 = vld [vmem:[#allocation8 + $0xb8] sm:$0xff]
    %v5660 = vld [vmem:[#allocation8 + $0xc0] sm:$0xff]
    %v5661 = vld [vmem:[#allocation8 + $0xc8] sm:$0xff]
    %v5662 = vld [vmem:[#allocation8 + $0xd0] sm:$0xff]
    %v5663 = vld [vmem:[#allocation8 + $0xd8] sm:$0xff]
    %v5664 = vld [vmem:[#allocation8 + $0xe0] sm:$0xff]
    %v5665 = vld [vmem:[#allocation8 + $0xe8] sm:$0xff]
    %v5666 = vld [vmem:[#allocation8 + $0xf0] sm:$0xff]
    %v5667 = vld [vmem:[#allocation8 + $0xf8] sm:$0xff]
    %v5668 = vld [vmem:[#allocation8 + $0x100] sm:$0xff]
    %v5669 = vld [vmem:[#allocation8 + $0x108] sm:$0xff]
    %v5670 = vld [vmem:[#allocation8 + $0x110] sm:$0xff]
    %v5671 = vld [vmem:[#allocation8 + $0x118] sm:$0xff]
    %v5672 = vld [vmem:[#allocation8 + $0x120] sm:$0xff]
    %v5673 = vld [vmem:[#allocation8 + $0x128] sm:$0xff]
    %v5674 = vld [vmem:[#allocation8 + $0x130] sm:$0xff]
    %v5675 = vld [vmem:[#allocation8 + $0x138] sm:$0xff]
    %v5676 = vld [vmem:[#allocation8 + $0x140] sm:$0xff]
    %v5677 = vld [vmem:[#allocation8 + $0x148] sm:$0xff]
    %v5678 = vld [vmem:[#allocation8 + $0x150] sm:$0xff]
    %v5679 = vld [vmem:[#allocation8 + $0x158] sm:$0xff]
    %v5680 = vld [vmem:[#allocation8 + $0x160] sm:$0xff]
    %v5681 = vld [vmem:[#allocation8 + $0x168] sm:$0xff]
    %v5682 = vld [vmem:[#allocation8 + $0x170] sm:$0xff]
    %v5683 = vld [vmem:[#allocation8 + $0x178] sm:$0xff]
    %v5684 = vld [vmem:[#allocation8 + $0x180] sm:$0xff]
    %v5685 = vld [vmem:[#allocation8 + $0x188] sm:$0xff]
    %v5686 = vld [vmem:[#allocation8 + $0x190] sm:$0xff]
    %v5687 = vld [vmem:[#allocation8 + $0x198] sm:$0xff]
    %v5688 = vld [vmem:[#allocation8 + $0x1a0] sm:$0xff]
    %v5689 = vld [vmem:[#allocation8 + $0x1a8] sm:$0xff]
    %v5690 = vld [vmem:[#allocation8 + $0x1b0] sm:$0xff]
    %v5691 = vld [vmem:[#allocation8 + $0x1b8] sm:$0xff]
    %v5692 = vld [vmem:[#allocation8 + $0x1c0] sm:$0xff]
    %v5693 = vld [vmem:[#allocation8 + $0x1c8] sm:$0xff]
    %v5694 = vld [vmem:[#allocation8 + $0x1d0] sm:$0xff]
    %v5695 = vld [vmem:[#allocation8 + $0x1d8] sm:$0xff]
    %v5696 = vld [vmem:[#allocation8 + $0x1e0] sm:$0xff]
    %v5697 = vld [vmem:[#allocation8 + $0x1e8] sm:$0xff]
    %v5698 = vld [vmem:[#allocation8 + $0x1f0] sm:$0xff]
    %v5699 = vld [vmem:[#allocation8 + $0x1f8] sm:$0xff]
    %v5700 = vld [vmem:[%s5] sm:$0xf]
    %v5702 = vlaneseq
    %v5703 = vshrl.u32 %v5702, 7
    %v5704 = vsub.s32 0, %v5703
    %v5705 = vrot.slane %v5700, %v5704
    %v5706 = vlaneseq
    %v5707 = vshrl.u32 %v5706, 7
    %v5708 = vsub.s32 1, %v5707
    %v5709 = vrot.slane %v5700, %v5708
    %v5710 = vlaneseq
    %v5711 = vshrl.u32 %v5710, 7
    %v5712 = vsub.s32 2, %v5711
    %v5713 = vrot.slane %v5700, %v5712
    %v5714 = vlaneseq
    %v5715 = vshrl.u32 %v5714, 7
    %v5716 = vsub.s32 3, %v5715
    %v5717 = vrot.slane %v5700, %v5716
    %v5786 = vunpack.c.l.b16 %v5636
    %v5787 = vunpack.c.h.b16 %v5636
    %v5788 = vunpack.c.l.b16 %v5637
    %v5789 = vunpack.c.h.b16 %v5637
    %v5790 = vunpack.c.l.b16 %v5638
    %v5791 = vunpack.c.h.b16 %v5638
    %v5792 = vunpack.c.l.b16 %v5639
    %v5793 = vunpack.c.h.b16 %v5639
    %v5794 = vunpack.c.l.b16 %v5640
    %v5795 = vunpack.c.h.b16 %v5640
    %v5796 = vunpack.c.l.b16 %v5641
    %v5797 = vunpack.c.h.b16 %v5641
    %v5798 = vunpack.c.l.b16 %v5642
    %v5799 = vunpack.c.h.b16 %v5642
    %v5800 = vunpack.c.l.b16 %v5643
    %v5801 = vunpack.c.h.b16 %v5643
    %v5802 = vunpack.c.l.b16 %v5644
    %v5803 = vunpack.c.h.b16 %v5644
    %v5804 = vunpack.c.l.b16 %v5645
    %v5805 = vunpack.c.h.b16 %v5645
    %v5806 = vunpack.c.l.b16 %v5646
    %v5807 = vunpack.c.h.b16 %v5646
    %v5808 = vunpack.c.l.b16 %v5647
    %v5809 = vunpack.c.h.b16 %v5647
    %v5810 = vunpack.c.l.b16 %v5648
    %v5811 = vunpack.c.h.b16 %v5648
    %v5812 = vunpack.c.l.b16 %v5649
    %v5813 = vunpack.c.h.b16 %v5649
    %v5814 = vunpack.c.l.b16 %v5650
    %v5815 = vunpack.c.h.b16 %v5650
    %v5816 = vunpack.c.l.b16 %v5651
    %v5817 = vunpack.c.h.b16 %v5651
    %v5818 = vunpack.c.l.b16 %v5652
    %v5819 = vunpack.c.h.b16 %v5652
    %v5820 = vunpack.c.l.b16 %v5653
    %v5821 = vunpack.c.h.b16 %v5653
    %v5822 = vunpack.c.l.b16 %v5654
    %v5823 = vunpack.c.h.b16 %v5654
    %v5824 = vunpack.c.l.b16 %v5655
    %v5825 = vunpack.c.h.b16 %v5655
    %v5826 = vunpack.c.l.b16 %v5656
    %v5827 = vunpack.c.h.b16 %v5656
    %v5828 = vunpack.c.l.b16 %v5657
    %v5829 = vunpack.c.h.b16 %v5657
    %v5830 = vunpack.c.l.b16 %v5658
    %v5831 = vunpack.c.h.b16 %v5658
    %v5832 = vunpack.c.l.b16 %v5659
    %v5833 = vunpack.c.h.b16 %v5659
    %v5834 = vunpack.c.l.b16 %v5660
    %v5835 = vunpack.c.h.b16 %v5660
    %v5836 = vunpack.c.l.b16 %v5661
    %v5837 = vunpack.c.h.b16 %v5661
    %v5838 = vunpack.c.l.b16 %v5662
    %v5839 = vunpack.c.h.b16 %v5662
    %v5840 = vunpack.c.l.b16 %v5663
    %v5841 = vunpack.c.h.b16 %v5663
    %v5842 = vunpack.c.l.b16 %v5664
    %v5843 = vunpack.c.h.b16 %v5664
    %v5844 = vunpack.c.l.b16 %v5665
    %v5845 = vunpack.c.h.b16 %v5665
    %v5846 = vunpack.c.l.b16 %v5666
    %v5847 = vunpack.c.h.b16 %v5666
    %v5848 = vunpack.c.l.b16 %v5667
    %v5849 = vunpack.c.h.b16 %v5667
    %v5850 = vunpack.c.l.b16 %v5668
    %v5851 = vunpack.c.h.b16 %v5668
    %v5852 = vunpack.c.l.b16 %v5669
    %v5853 = vunpack.c.h.b16 %v5669
    %v5854 = vunpack.c.l.b16 %v5670
    %v5855 = vunpack.c.h.b16 %v5670
    %v5856 = vunpack.c.l.b16 %v5671
    %v5857 = vunpack.c.h.b16 %v5671
    %v5858 = vunpack.c.l.b16 %v5672
    %v5859 = vunpack.c.h.b16 %v5672
    %v5860 = vunpack.c.l.b16 %v5673
    %v5861 = vunpack.c.h.b16 %v5673
    %v5862 = vunpack.c.l.b16 %v5674
    %v5863 = vunpack.c.h.b16 %v5674
    %v5864 = vunpack.c.l.b16 %v5675
    %v5865 = vunpack.c.h.b16 %v5675
    %v5866 = vunpack.c.l.b16 %v5676
    %v5867 = vunpack.c.h.b16 %v5676
    %v5868 = vunpack.c.l.b16 %v5677
    %v5869 = vunpack.c.h.b16 %v5677
    %v5870 = vunpack.c.l.b16 %v5678
    %v5871 = vunpack.c.h.b16 %v5678
    %v5872 = vunpack.c.l.b16 %v5679
    %v5873 = vunpack.c.h.b16 %v5679
    %v5874 = vunpack.c.l.b16 %v5680
    %v5875 = vunpack.c.h.b16 %v5680
    %v5876 = vunpack.c.l.b16 %v5681
    %v5877 = vunpack.c.h.b16 %v5681
    %v5878 = vunpack.c.l.b16 %v5682
    %v5879 = vunpack.c.h.b16 %v5682
    %v5880 = vunpack.c.l.b16 %v5683
    %v5881 = vunpack.c.h.b16 %v5683
    %v5882 = vunpack.c.l.b16 %v5684
    %v5883 = vunpack.c.h.b16 %v5684
    %v5884 = vunpack.c.l.b16 %v5685
    %v5885 = vunpack.c.h.b16 %v5685
    %v5886 = vunpack.c.l.b16 %v5686
    %v5887 = vunpack.c.h.b16 %v5686
    %v5888 = vunpack.c.l.b16 %v5687
    %v5889 = vunpack.c.h.b16 %v5687
    %v5890 = vunpack.c.l.b16 %v5688
    %v5891 = vunpack.c.h.b16 %v5688
    %v5892 = vunpack.c.l.b16 %v5689
    %v5893 = vunpack.c.h.b16 %v5689
    %v5894 = vunpack.c.l.b16 %v5690
    %v5895 = vunpack.c.h.b16 %v5690
    %v5896 = vunpack.c.l.b16 %v5691
    %v5897 = vunpack.c.h.b16 %v5691
    %v5898 = vunpack.c.l.b16 %v5692
    %v5899 = vunpack.c.h.b16 %v5692
    %v5900 = vunpack.c.l.b16 %v5693
    %v5901 = vunpack.c.h.b16 %v5693
    %v5902 = vunpack.c.l.b16 %v5694
    %v5903 = vunpack.c.h.b16 %v5694
    %v5904 = vunpack.c.l.b16 %v5695
    %v5905 = vunpack.c.h.b16 %v5695
    %v5906 = vunpack.c.l.b16 %v5696
    %v5907 = vunpack.c.h.b16 %v5696
    %v5908 = vunpack.c.l.b16 %v5697
    %v5909 = vunpack.c.h.b16 %v5697
    %v5910 = vunpack.c.l.b16 %v5698
    %v5911 = vunpack.c.h.b16 %v5698
    %v5912 = vunpack.c.l.b16 %v5699
    %v5913 = vunpack.c.h.b16 %v5699
    %v5914 = vpack.c.b16 %v5790, %v5786
    %v5915 = vpack.c.b16 %v5791, %v5787
    %v5916 = vpack.c.b16 %v5792, %v5788
    %v5917 = vpack.c.b16 %v5793, %v5789
    %v5918 = vpack.c.b16 %v5798, %v5794
    %v5919 = vpack.c.b16 %v5799, %v5795
    %v5920 = vpack.c.b16 %v5800, %v5796
    %v5921 = vpack.c.b16 %v5801, %v5797
    %v5922 = vpack.c.b16 %v5806, %v5802
    %v5923 = vpack.c.b16 %v5807, %v5803
    %v5924 = vpack.c.b16 %v5808, %v5804
    %v5925 = vpack.c.b16 %v5809, %v5805
    %v5926 = vpack.c.b16 %v5814, %v5810
    %v5927 = vpack.c.b16 %v5815, %v5811
    %v5928 = vpack.c.b16 %v5816, %v5812
    %v5929 = vpack.c.b16 %v5817, %v5813
    %v5930 = vpack.c.b16 %v5822, %v5818
    %v5931 = vpack.c.b16 %v5823, %v5819
    %v5932 = vpack.c.b16 %v5824, %v5820
    %v5933 = vpack.c.b16 %v5825, %v5821
    %v5934 = vpack.c.b16 %v5830, %v5826
    %v5935 = vpack.c.b16 %v5831, %v5827
    %v5936 = vpack.c.b16 %v5832, %v5828
    %v5937 = vpack.c.b16 %v5833, %v5829
    %v5938 = vpack.c.b16 %v5838, %v5834
    %v5939 = vpack.c.b16 %v5839, %v5835
    %v5940 = vpack.c.b16 %v5840, %v5836
    %v5941 = vpack.c.b16 %v5841, %v5837
    %v5942 = vpack.c.b16 %v5846, %v5842
    %v5943 = vpack.c.b16 %v5847, %v5843
    %v5944 = vpack.c.b16 %v5848, %v5844
    %v5945 = vpack.c.b16 %v5849, %v5845
    %v5946 = vpack.c.b16 %v5854, %v5850
    %v5947 = vpack.c.b16 %v5855, %v5851
    %v5948 = vpack.c.b16 %v5856, %v5852
    %v5949 = vpack.c.b16 %v5857, %v5853
    %v5950 = vpack.c.b16 %v5862, %v5858
    %v5951 = vpack.c.b16 %v5863, %v5859
    %v5952 = vpack.c.b16 %v5864, %v5860
    %v5953 = vpack.c.b16 %v5865, %v5861
    %v5954 = vpack.c.b16 %v5870, %v5866
    %v5955 = vpack.c.b16 %v5871, %v5867
    %v5956 = vpack.c.b16 %v5872, %v5868
    %v5957 = vpack.c.b16 %v5873, %v5869
    %v5958 = vpack.c.b16 %v5878, %v5874
    %v5959 = vpack.c.b16 %v5879, %v5875
    %v5960 = vpack.c.b16 %v5880, %v5876
    %v5961 = vpack.c.b16 %v5881, %v5877
    %v5962 = vpack.c.b16 %v5886, %v5882
    %v5963 = vpack.c.b16 %v5887, %v5883
    %v5964 = vpack.c.b16 %v5888, %v5884
    %v5965 = vpack.c.b16 %v5889, %v5885
    %v5966 = vpack.c.b16 %v5894, %v5890
    %v5967 = vpack.c.b16 %v5895, %v5891
    %v5968 = vpack.c.b16 %v5896, %v5892
    %v5969 = vpack.c.b16 %v5897, %v5893
    %v5970 = vpack.c.b16 %v5902, %v5898
    %v5971 = vpack.c.b16 %v5903, %v5899
    %v5972 = vpack.c.b16 %v5904, %v5900
    %v5973 = vpack.c.b16 %v5905, %v5901
    %v5974 = vpack.c.b16 %v5910, %v5906
    %v5975 = vpack.c.b16 %v5911, %v5907
    %v5976 = vpack.c.b16 %v5912, %v5908
    %v5977 = vpack.c.b16 %v5913, %v5909
    %6042 = vmatprep.subr.bf16.mxu0 %v5915
    %6043 = vmatpush1.bf16.msra.mxu0 %v5914
    %6044 = vmatprep.subr.bf16.mxu0 %v5919
    %6045 = vmatpush1.bf16.msra.mxu0 %v5918
    %6046 = vmatprep.subr.bf16.mxu0 %v5923
    %6047 = vmatpush1.bf16.msra.mxu0 %v5922
    %6048 = vmatprep.subr.bf16.mxu0 %v5927
    %6049 = vmatpush1.bf16.msra.mxu0 %v5926
    %6050 = vmatprep.subr.bf16.mxu0 %v5931
    %6051 = vmatpush1.bf16.msra.mxu0 %v5930
    %6052 = vmatprep.subr.bf16.mxu0 %v5935
    %6053 = vmatpush1.bf16.msra.mxu0 %v5934
    %6054 = vmatprep.subr.bf16.mxu0 %v5939
    %6055 = vmatpush1.bf16.msra.mxu0 %v5938
    %6056 = vmatprep.subr.bf16.mxu0 %v5943
    %6057 = vmatpush1.bf16.msra.mxu0 %v5942
    %6058 = vmatprep.subr.bf16.mxu0 %v5947
    %6059 = vmatpush1.bf16.msra.mxu0 %v5946
    %6060 = vmatprep.subr.bf16.mxu0 %v5951
    %6061 = vmatpush1.bf16.msra.mxu0 %v5950
    %6062 = vmatprep.subr.bf16.mxu0 %v5955
    %6063 = vmatpush1.bf16.msra.mxu0 %v5954
    %6064 = vmatprep.subr.bf16.mxu0 %v5959
    %6065 = vmatpush1.bf16.msra.mxu0 %v5958
    %6066 = vmatprep.subr.bf16.mxu0 %v5963
    %6067 = vmatpush1.bf16.msra.mxu0 %v5962
    %6068 = vmatprep.subr.bf16.mxu0 %v5967
    %6069 = vmatpush1.bf16.msra.mxu0 %v5966
    %6070 = vmatprep.subr.bf16.mxu0 %v5971
    %6071 = vmatpush1.bf16.msra.mxu0 %v5970
    %6072 = vmatprep.subr.bf16.mxu0 %v5975
    %6073 = vmatpush1.bf16.msra.mxu0 %v5974
    %6074 = vmatprep.mubr.bf16.mxu0 %v5635
    %6075 = vmatmul.mubr.bf16.gmra.mrb[0].mxu0 %v5634
    %v6076 = vpop.f32.mrb[0].mxu0
    %v6077 = vadd.f32 %v5705, %v6076
    %v6078 = vpop.f32.mrb[0].mxu0
    %v6079 = vadd.f32 %v5709, %v6078
    %v6080 = vpop.f32.mrb[0].mxu0
    %v6081 = vpop.f32.mrb[0].mxu0
    %6082 = vdwg.mxu0
    %6083 = vmatprep.subr.bf16.mxu0 %v5917
    %6084 = vmatpush1.bf16.msra.mxu0 %v5916
    %6085 = vmatprep.subr.bf16.mxu0 %v5921
    %6086 = vmatpush1.bf16.msra.mxu0 %v5920
    %6087 = vmatprep.subr.bf16.mxu0 %v5925
    %6088 = vmatpush1.bf16.msra.mxu0 %v5924
    %6089 = vmatprep.subr.bf16.mxu0 %v5929
    %6090 = vmatpush1.bf16.msra.mxu0 %v5928
    %6091 = vmatprep.subr.bf16.mxu0 %v5933
    %6092 = vmatpush1.bf16.msra.mxu0 %v5932
    %6093 = vmatprep.subr.bf16.mxu0 %v5937
    %6094 = vmatpush1.bf16.msra.mxu0 %v5936
    %6095 = vmatprep.subr.bf16.mxu0 %v5941
    %6096 = vmatpush1.bf16.msra.mxu0 %v5940
    %6097 = vmatprep.subr.bf16.mxu0 %v5945
    %6098 = vmatpush1.bf16.msra.mxu0 %v5944
    %6099 = vmatprep.subr.bf16.mxu0 %v5949
    %6100 = vmatpush1.bf16.msra.mxu0 %v5948
    %6101 = vmatprep.subr.bf16.mxu0 %v5953
    %6102 = vmatpush1.bf16.msra.mxu0 %v5952
    %6103 = vmatprep.subr.bf16.mxu0 %v5957
    %6104 = vmatpush1.bf16.msra.mxu0 %v5956
    %6105 = vmatprep.subr.bf16.mxu0 %v5961
    %6106 = vmatpush1.bf16.msra.mxu0 %v5960
    %6107 = vmatprep.subr.bf16.mxu0 %v5965
    %6108 = vmatpush1.bf16.msra.mxu0 %v5964
    %6109 = vmatprep.subr.bf16.mxu0 %v5969
    %6110 = vmatpush1.bf16.msra.mxu0 %v5968
    %6111 = vmatprep.subr.bf16.mxu0 %v5973
    %6112 = vmatpush1.bf16.msra.mxu0 %v5972
    %6113 = vmatprep.subr.bf16.mxu0 %v5977
    %6114 = vmatpush1.bf16.msra.mxu0 %v5976
    %6115 = vmatprep.mubr.bf16.mxu0 %v5635
    %6116 = vmatmul.mubr.bf16.gmra.mrb[0].mxu0 %v5634
    %v6117 = vpop.f32.mrb[0].mxu0
    %v6118 = vadd.f32 %v5713, %v6117
    %v6119 = vpop.f32.mrb[0].mxu0
    %v6120 = vadd.f32 %v5717, %v6119
    %v6121 = vpop.f32.mrb[0].mxu0
    %v6122 = vpop.f32.mrb[0].mxu0
    %6123 = vdwg.mxu0
    %v6124 = vld [vmem:[%s1149] sm:$0xff]
    %v6125 = vxor.u32 %v6077, 2147483648
    %v6126 = vmul.f32 %v6125, 1.442695
    %v6127 = vpow.pop %v6126
    %v6128 = vadd.f32 %v6127, 1.0
    %v6129 = vrcp.pop %v6128
    %v6130 = vmul.f32 1.0, %v6129
    %v6131 = vxor.u32 %v6079, 2147483648
    %v6132 = vmul.f32 %v6131, 1.442695
    %v6133 = vpow.pop %v6132
    %v6134 = vadd.f32 %v6133, 1.0
    %v6135 = vrcp.pop %v6134
    %v6136 = vmul.f32 1.0, %v6135
    %v6137 = vtanh.pop %v6118
    %v6138 = vxor.u32 %v6120, 2147483648
    %v6139 = vmul.f32 %v6138, 1.442695
    %v6140 = vpow.pop %v6139
    %v6141 = vadd.f32 %v6140, 1.0
    %v6142 = vrcp.pop %v6141
    %v6143 = vmul.f32 1.0, %v6142
    %v6144 = vmul.f32 %v6136, %v6124
    %v6145 = vmul.f32 %v6130, %v6137
    %v6146 = vadd.f32 %v6144, %v6145
    %v6147 = vtanh.pop %v6146
    %v6148 = vmul.f32 %v6143, %v6147
    %6149 = vst [vmem:[%s657] sm:$0xff] %v6148
    %6150 = vst [vmem:[%s1149] sm:$0xff] %v6146
    %v6151 = vld [vmem:[#allocation4 + $0xe0] sm:$0xff]
    %v6152 = vld [vmem:[#allocation4 + $0xe8] sm:$0xff]
    %v6153 = vld [vmem:[#allocation4 + $0xf0] sm:$0xff]
    %v6154 = vld [vmem:[#allocation4 + $0xf8] sm:$0xff]
    %v6155 = vld [vmem:[#allocation2] sm:$0xff]
    %v6156 = vpack.c.bf16 %v6155, %v6155
    %v6157 = vld [vmem:[#allocation5] sm:$0xff]
    %v6158 = vld [vmem:[#allocation5 + $0x8] sm:$0xff]
    %v6159 = vld [vmem:[#allocation5 + $0x10] sm:$0xff]
    %v6160 = vld [vmem:[#allocation5 + $0x18] sm:$0xff]
    %v6161 = vld [vmem:[#allocation5 + $0x20] sm:$0xff]
    %v6162 = vld [vmem:[#allocation5 + $0x28] sm:$0xff]
    %v6163 = vld [vmem:[#allocation5 + $0x30] sm:$0xff]
    %v6164 = vld [vmem:[#allocation5 + $0x38] sm:$0xff]
    %v6165 = vld [vmem:[#allocation5 + $0x40] sm:$0xff]
    %v6166 = vld [vmem:[#allocation5 + $0x48] sm:$0xff]
    %v6167 = vld [vmem:[#allocation5 + $0x50] sm:$0xff]
    %v6168 = vld [vmem:[#allocation5 + $0x58] sm:$0xff]
    %v6169 = vld [vmem:[#allocation5 + $0x60] sm:$0xff]
    %v6170 = vld [vmem:[#allocation5 + $0x68] sm:$0xff]
    %v6171 = vld [vmem:[#allocation5 + $0x70] sm:$0xff]
    %v6172 = vld [vmem:[#allocation5 + $0x78] sm:$0xff]
    %v6173 = vld [vmem:[#allocation5 + $0x80] sm:$0xff]
    %v6174 = vld [vmem:[#allocation5 + $0x88] sm:$0xff]
    %v6175 = vld [vmem:[#allocation5 + $0x90] sm:$0xff]
    %v6176 = vld [vmem:[#allocation5 + $0x98] sm:$0xff]
    %v6177 = vld [vmem:[#allocation5 + $0xa0] sm:$0xff]
    %v6178 = vld [vmem:[#allocation5 + $0xa8] sm:$0xff]
    %v6179 = vld [vmem:[#allocation5 + $0xb0] sm:$0xff]
    %v6180 = vld [vmem:[#allocation5 + $0xb8] sm:$0xff]
    %v6181 = vld [vmem:[#allocation5 + $0xc0] sm:$0xff]
    %v6182 = vld [vmem:[#allocation5 + $0xc8] sm:$0xff]
    %v6183 = vld [vmem:[#allocation5 + $0xd0] sm:$0xff]
    %v6184 = vld [vmem:[#allocation5 + $0xd8] sm:$0xff]
    %v6185 = vld [vmem:[#allocation5 + $0xe0] sm:$0xff]
    %v6186 = vld [vmem:[#allocation5 + $0xe8] sm:$0xff]
    %v6187 = vld [vmem:[#allocation5 + $0xf0] sm:$0xff]
    %v6188 = vld [vmem:[#allocation5 + $0xf8] sm:$0xff]
    %v6221 = vunpack.c.l.b16 %v6157
    %v6222 = vunpack.c.h.b16 %v6157
    %v6223 = vunpack.c.l.b16 %v6158
    %v6224 = vunpack.c.h.b16 %v6158
    %v6225 = vunpack.c.l.b16 %v6159
    %v6226 = vunpack.c.h.b16 %v6159
    %v6227 = vunpack.c.l.b16 %v6160
    %v6228 = vunpack.c.h.b16 %v6160
    %v6229 = vunpack.c.l.b16 %v6161
    %v6230 = vunpack.c.h.b16 %v6161
    %v6231 = vunpack.c.l.b16 %v6162
    %v6232 = vunpack.c.h.b16 %v6162
    %v6233 = vunpack.c.l.b16 %v6163
    %v6234 = vunpack.c.h.b16 %v6163
    %v6235 = vunpack.c.l.b16 %v6164
    %v6236 = vunpack.c.h.b16 %v6164
    %v6237 = vunpack.c.l.b16 %v6165
    %v6238 = vunpack.c.h.b16 %v6165
    %v6239 = vunpack.c.l.b16 %v6166
    %v6240 = vunpack.c.h.b16 %v6166
    %v6241 = vunpack.c.l.b16 %v6167
    %v6242 = vunpack.c.h.b16 %v6167
    %v6243 = vunpack.c.l.b16 %v6168
    %v6244 = vunpack.c.h.b16 %v6168
    %v6245 = vunpack.c.l.b16 %v6169
    %v6246 = vunpack.c.h.b16 %v6169
    %v6247 = vunpack.c.l.b16 %v6170
    %v6248 = vunpack.c.h.b16 %v6170
    %v6249 = vunpack.c.l.b16 %v6171
    %v6250 = vunpack.c.h.b16 %v6171
    %v6251 = vunpack.c.l.b16 %v6172
    %v6252 = vunpack.c.h.b16 %v6172
    %v6253 = vunpack.c.l.b16 %v6173
    %v6254 = vunpack.c.h.b16 %v6173
    %v6255 = vunpack.c.l.b16 %v6174
    %v6256 = vunpack.c.h.b16 %v6174
    %v6257 = vunpack.c.l.b16 %v6175
    %v6258 = vunpack.c.h.b16 %v6175
    %v6259 = vunpack.c.l.b16 %v6176
    %v6260 = vunpack.c.h.b16 %v6176
    %v6261 = vunpack.c.l.b16 %v6177
    %v6262 = vunpack.c.h.b16 %v6177
    %v6263 = vunpack.c.l.b16 %v6178
    %v6264 = vunpack.c.h.b16 %v6178
    %v6265 = vunpack.c.l.b16 %v6179
    %v6266 = vunpack.c.h.b16 %v6179
    %v6267 = vunpack.c.l.b16 %v6180
    %v6268 = vunpack.c.h.b16 %v6180
    %v6269 = vunpack.c.l.b16 %v6181
    %v6270 = vunpack.c.h.b16 %v6181
    %v6271 = vunpack.c.l.b16 %v6182
    %v6272 = vunpack.c.h.b16 %v6182
    %v6273 = vunpack.c.l.b16 %v6183
    %v6274 = vunpack.c.h.b16 %v6183
    %v6275 = vunpack.c.l.b16 %v6184
    %v6276 = vunpack.c.h.b16 %v6184
    %v6277 = vunpack.c.l.b16 %v6185
    %v6278 = vunpack.c.h.b16 %v6185
    %v6279 = vunpack.c.l.b16 %v6186
    %v6280 = vunpack.c.h.b16 %v6186
    %v6281 = vunpack.c.l.b16 %v6187
    %v6282 = vunpack.c.h.b16 %v6187
    %v6283 = vunpack.c.l.b16 %v6188
    %v6284 = vunpack.c.h.b16 %v6188
    %v6285 = vpack.c.b16 %v6225, %v6221
    %v6286 = vpack.c.b16 %v6226, %v6222
    %v6287 = vpack.c.b16 %v6227, %v6223
    %v6288 = vpack.c.b16 %v6228, %v6224
    %v6289 = vpack.c.b16 %v6233, %v6229
    %v6290 = vpack.c.b16 %v6234, %v6230
    %v6291 = vpack.c.b16 %v6235, %v6231
    %v6292 = vpack.c.b16 %v6236, %v6232
    %v6293 = vpack.c.b16 %v6241, %v6237
    %v6294 = vpack.c.b16 %v6242, %v6238
    %v6295 = vpack.c.b16 %v6243, %v6239
    %v6296 = vpack.c.b16 %v6244, %v6240
    %v6297 = vpack.c.b16 %v6249, %v6245
    %v6298 = vpack.c.b16 %v6250, %v6246
    %v6299 = vpack.c.b16 %v6251, %v6247
    %v6300 = vpack.c.b16 %v6252, %v6248
    %v6301 = vpack.c.b16 %v6257, %v6253
    %v6302 = vpack.c.b16 %v6258, %v6254
    %v6303 = vpack.c.b16 %v6259, %v6255
    %v6304 = vpack.c.b16 %v6260, %v6256
    %v6305 = vpack.c.b16 %v6265, %v6261
    %v6306 = vpack.c.b16 %v6266, %v6262
    %v6307 = vpack.c.b16 %v6267, %v6263
    %v6308 = vpack.c.b16 %v6268, %v6264
    %v6309 = vpack.c.b16 %v6273, %v6269
    %v6310 = vpack.c.b16 %v6274, %v6270
    %v6311 = vpack.c.b16 %v6275, %v6271
    %v6312 = vpack.c.b16 %v6276, %v6272
    %v6313 = vpack.c.b16 %v6281, %v6277
    %v6314 = vpack.c.b16 %v6282, %v6278
    %v6315 = vpack.c.b16 %v6283, %v6279
    %v6316 = vpack.c.b16 %v6284, %v6280
    %6349 = vmatprep.subr.bf16.mxu0 %v6286
    %6350 = vmatpush1.bf16.msra.mxu0 %v6285
    %6351 = vmatprep.subr.bf16.mxu0 %v6290
    %6352 = vmatpush1.bf16.msra.mxu0 %v6289
    %6353 = vmatprep.subr.bf16.mxu0 %v6294
    %6354 = vmatpush1.bf16.msra.mxu0 %v6293
    %6355 = vmatprep.subr.bf16.mxu0 %v6298
    %6356 = vmatpush1.bf16.msra.mxu0 %v6297
    %6357 = vmatprep.subr.bf16.mxu0 %v6302
    %6358 = vmatpush1.bf16.msra.mxu0 %v6301
    %6359 = vmatprep.subr.bf16.mxu0 %v6306
    %6360 = vmatpush1.bf16.msra.mxu0 %v6305
    %6361 = vmatprep.subr.bf16.mxu0 %v6310
    %6362 = vmatpush1.bf16.msra.mxu0 %v6309
    %6363 = vmatprep.subr.bf16.mxu0 %v6314
    %6364 = vmatpush1.bf16.msra.mxu0 %v6313
    %6365 = vmatprep.subr.bf16.mxu0 0
    %6366 = vmatpush1.bf16.msra.mxu0 0
    %6367 = vmatprep.subr.bf16.mxu0 0
    %6368 = vmatpush1.bf16.msra.mxu0 0
    %6369 = vmatprep.subr.bf16.mxu0 0
    %6370 = vmatpush1.bf16.msra.mxu0 0
    %6371 = vmatprep.subr.bf16.mxu0 0
    %6372 = vmatpush1.bf16.msra.mxu0 0
    %6373 = vmatprep.subr.bf16.mxu0 0
    %6374 = vmatpush1.bf16.msra.mxu0 0
    %6375 = vmatprep.subr.bf16.mxu0 0
    %6376 = vmatpush1.bf16.msra.mxu0 0
    %6377 = vmatprep.subr.bf16.mxu0 0
    %6378 = vmatpush1.bf16.msra.mxu0 0
    %6379 = vmatprep.subr.bf16.mxu0 0
    %6380 = vmatpush1.bf16.msra.mxu0 0
    %6381 = vmatprep.mubr.bf16.mxu0 0
    %6382 = vmatmul.mubr.bf16.gmra.mrb[0].mxu0 %v6156
    %v6383 = vpop.f32.mrb[0].mxu0
    %v6384 = vadd.f32 0.0, %v6383
    %v6385 = vpop.f32.mrb[0].mxu0
    %v6386 = vadd.f32 0.0, %v6385
    %v6387 = vpop.f32.mrb[0].mxu0
    %v6388 = vpop.f32.mrb[0].mxu0
    %6389 = vdwg.mxu0
    %6390 = vmatprep.subr.bf16.mxu0 %v6288
    %6391 = vmatpush1.bf16.msra.mxu0 %v6287
    %6392 = vmatprep.subr.bf16.mxu0 %v6292
    %6393 = vmatpush1.bf16.msra.mxu0 %v6291
    %6394 = vmatprep.subr.bf16.mxu0 %v6296
    %6395 = vmatpush1.bf16.msra.mxu0 %v6295
    %6396 = vmatprep.subr.bf16.mxu0 %v6300
    %6397 = vmatpush1.bf16.msra.mxu0 %v6299
    %6398 = vmatprep.subr.bf16.mxu0 %v6304
    %6399 = vmatpush1.bf16.msra.mxu0 %v6303
    %6400 = vmatprep.subr.bf16.mxu0 %v6308
    %6401 = vmatpush1.bf16.msra.mxu0 %v6307
    %6402 = vmatprep.subr.bf16.mxu0 %v6312
    %6403 = vmatpush1.bf16.msra.mxu0 %v6311
    %6404 = vmatprep.subr.bf16.mxu0 %v6316
    %6405 = vmatpush1.bf16.msra.mxu0 %v6315
    %6406 = vmatprep.subr.bf16.mxu0 0
    %6407 = vmatpush1.bf16.msra.mxu0 0
    %6408 = vmatprep.subr.bf16.mxu0 0
    %6409 = vmatpush1.bf16.msra.mxu0 0
    %6410 = vmatprep.subr.bf16.mxu0 0
    %6411 = vmatpush1.bf16.msra.mxu0 0
    %6412 = vmatprep.subr.bf16.mxu0 0
    %6413 = vmatpush1.bf16.msra.mxu0 0
    %6414 = vmatprep.subr.bf16.mxu0 0
    %6415 = vmatpush1.bf16.msra.mxu0 0
    %6416 = vmatprep.subr.bf16.mxu0 0
    %6417 = vmatpush1.bf16.msra.mxu0 0
    %6418 = vmatprep.subr.bf16.mxu0 0
    %6419 = vmatpush1.bf16.msra.mxu0 0
    %6420 = vmatprep.subr.bf16.mxu0 0
    %6421 = vmatpush1.bf16.msra.mxu0 0
    %6422 = vmatprep.mubr.bf16.mxu0 0
    %6423 = vmatmul.mubr.bf16.gmra.mrb[0].mxu0 %v6156
    %v6424 = vpop.f32.mrb[0].mxu0
    %v6425 = vadd.f32 0.0, %v6424
    %v6426 = vpop.f32.mrb[0].mxu0
    %v6427 = vadd.f32 0.0, %v6426
    %v6428 = vpop.f32.mrb[0].mxu0
    %v6429 = vpop.f32.mrb[0].mxu0
    %6430 = vdwg.mxu0
    %v6431 = vadd.f32 %v6151, %v6384
    %v6432 = vadd.f32 %v6152, %v6386
    %v6433 = vadd.f32 %v6153, %v6425
    %v6434 = vadd.f32 %v6154, %v6427
    %v6435 = vld [vmem:[#allocation3] sm:$0xff]
    %v6436 = vxor.u32 %v6431, 2147483648
    %v6437 = vmul.f32 %v6436, 1.442695
    %v6438 = vpow.pop %v6437
    %v6439 = vadd.f32 %v6438, 1.0
    %v6440 = vrcp.pop %v6439
    %v6441 = vmul.f32 1.0, %v6440
    %v6442 = vxor.u32 %v6432, 2147483648
    %v6443 = vmul.f32 %v6442, 1.442695
    %v6444 = vpow.pop %v6443
    %v6445 = vadd.f32 %v6444, 1.0
    %v6446 = vrcp.pop %v6445
    %v6447 = vmul.f32 1.0, %v6446
    %v6448 = vtanh.pop %v6433
    %v6449 = vxor.u32 %v6434, 2147483648
    %v6450 = vmul.f32 %v6449, 1.442695
    %v6451 = vpow.pop %v6450
    %v6452 = vadd.f32 %v6451, 1.0
    %v6453 = vrcp.pop %v6452
    %v6454 = vmul.f32 1.0, %v6453
    %v6455 = vmul.f32 %v6447, %v6435
    %v6456 = vmul.f32 %v6441, %v6448
    %v6457 = vadd.f32 %v6455, %v6456
    %v6458 = vtanh.pop %v6457
    %v6459 = vmul.f32 %v6454, %v6458
    %6460 = vst [vmem:[#allocation2] sm:$0xff] %v6459
    %6461 = vst [vmem:[#allocation3] sm:$0xff] %v6457
    %v6462 = vld [vmem:[%s657] sm:$0xff]
    %v6463 = vpack.c.bf16 %v6459, %v6459
    %v6464 = vpack.c.bf16 %v6462, %v6462
    %v6465 = vld [vmem:[#allocation8] sm:$0xff]
    %v6466 = vld [vmem:[#allocation8 + $0x8] sm:$0xff]
    %v6467 = vld [vmem:[#allocation8 + $0x10] sm:$0xff]
    %v6468 = vld [vmem:[#allocation8 + $0x18] sm:$0xff]
    %v6469 = vld [vmem:[#allocation8 + $0x20] sm:$0xff]
    %v6470 = vld [vmem:[#allocation8 + $0x28] sm:$0xff]
    %v6471 = vld [vmem:[#allocation8 + $0x30] sm:$0xff]
    %v6472 = vld [vmem:[#allocation8 + $0x38] sm:$0xff]
    %v6473 = vld [vmem:[#allocation8 + $0x40] sm:$0xff]
    %v6474 = vld [vmem:[#allocation8 + $0x48] sm:$0xff]
    %v6475 = vld [vmem:[#allocation8 + $0x50] sm:$0xff]
    %v6476 = vld [vmem:[#allocation8 + $0x58] sm:$0xff]
    %v6477 = vld [vmem:[#allocation8 + $0x60] sm:$0xff]
    %v6478 = vld [vmem:[#allocation8 + $0x68] sm:$0xff]
    %v6479 = vld [vmem:[#allocation8 + $0x70] sm:$0xff]
    %v6480 = vld [vmem:[#allocation8 + $0x78] sm:$0xff]
    %v6481 = vld [vmem:[#allocation8 + $0x80] sm:$0xff]
    %v6482 = vld [vmem:[#allocation8 + $0x88] sm:$0xff]
    %v6483 = vld [vmem:[#allocation8 + $0x90] sm:$0xff]
    %v6484 = vld [vmem:[#allocation8 + $0x98] sm:$0xff]
    %v6485 = vld [vmem:[#allocation8 + $0xa0] sm:$0xff]
    %v6486 = vld [vmem:[#allocation8 + $0xa8] sm:$0xff]
    %v6487 = vld [vmem:[#allocation8 + $0xb0] sm:$0xff]
    %v6488 = vld [vmem:[#allocation8 + $0xb8] sm:$0xff]
    %v6489 = vld [vmem:[#allocation8 + $0xc0] sm:$0xff]
    %v6490 = vld [vmem:[#allocation8 + $0xc8] sm:$0xff]
    %v6491 = vld [vmem:[#allocation8 + $0xd0] sm:$0xff]
    %v6492 = vld [vmem:[#allocation8 + $0xd8] sm:$0xff]
    %v6493 = vld [vmem:[#allocation8 + $0xe0] sm:$0xff]
    %v6494 = vld [vmem:[#allocation8 + $0xe8] sm:$0xff]
    %v6495 = vld [vmem:[#allocation8 + $0xf0] sm:$0xff]
    %v6496 = vld [vmem:[#allocation8 + $0xf8] sm:$0xff]
    %v6497 = vld [vmem:[#allocation8 + $0x100] sm:$0xff]
    %v6498 = vld [vmem:[#allocation8 + $0x108] sm:$0xff]
    %v6499 = vld [vmem:[#allocation8 + $0x110] sm:$0xff]
    %v6500 = vld [vmem:[#allocation8 + $0x118] sm:$0xff]
    %v6501 = vld [vmem:[#allocation8 + $0x120] sm:$0xff]
    %v6502 = vld [vmem:[#allocation8 + $0x128] sm:$0xff]
    %v6503 = vld [vmem:[#allocation8 + $0x130] sm:$0xff]
    %v6504 = vld [vmem:[#allocation8 + $0x138] sm:$0xff]
    %v6505 = vld [vmem:[#allocation8 + $0x140] sm:$0xff]
    %v6506 = vld [vmem:[#allocation8 + $0x148] sm:$0xff]
    %v6507 = vld [vmem:[#allocation8 + $0x150] sm:$0xff]
    %v6508 = vld [vmem:[#allocation8 + $0x158] sm:$0xff]
    %v6509 = vld [vmem:[#allocation8 + $0x160] sm:$0xff]
    %v6510 = vld [vmem:[#allocation8 + $0x168] sm:$0xff]
    %v6511 = vld [vmem:[#allocation8 + $0x170] sm:$0xff]
    %v6512 = vld [vmem:[#allocation8 + $0x178] sm:$0xff]
    %v6513 = vld [vmem:[#allocation8 + $0x180] sm:$0xff]
    %v6514 = vld [vmem:[#allocation8 + $0x188] sm:$0xff]
    %v6515 = vld [vmem:[#allocation8 + $0x190] sm:$0xff]
    %v6516 = vld [vmem:[#allocation8 + $0x198] sm:$0xff]
    %v6517 = vld [vmem:[#allocation8 + $0x1a0] sm:$0xff]
    %v6518 = vld [vmem:[#allocation8 + $0x1a8] sm:$0xff]
    %v6519 = vld [vmem:[#allocation8 + $0x1b0] sm:$0xff]
    %v6520 = vld [vmem:[#allocation8 + $0x1b8] sm:$0xff]
    %v6521 = vld [vmem:[#allocation8 + $0x1c0] sm:$0xff]
    %v6522 = vld [vmem:[#allocation8 + $0x1c8] sm:$0xff]
    %v6523 = vld [vmem:[#allocation8 + $0x1d0] sm:$0xff]
    %v6524 = vld [vmem:[#allocation8 + $0x1d8] sm:$0xff]
    %v6525 = vld [vmem:[#allocation8 + $0x1e0] sm:$0xff]
    %v6526 = vld [vmem:[#allocation8 + $0x1e8] sm:$0xff]
    %v6527 = vld [vmem:[#allocation8 + $0x1f0] sm:$0xff]
    %v6528 = vld [vmem:[#allocation8 + $0x1f8] sm:$0xff]
    %v6529 = vld [vmem:[%s5] sm:$0xf]
    %v6531 = vlaneseq
    %v6532 = vshrl.u32 %v6531, 7
    %v6533 = vsub.s32 0, %v6532
    %v6534 = vrot.slane %v6529, %v6533
    %v6535 = vlaneseq
    %v6536 = vshrl.u32 %v6535, 7
    %v6537 = vsub.s32 1, %v6536
    %v6538 = vrot.slane %v6529, %v6537
    %v6539 = vlaneseq
    %v6540 = vshrl.u32 %v6539, 7
    %v6541 = vsub.s32 2, %v6540
    %v6542 = vrot.slane %v6529, %v6541
    %v6543 = vlaneseq
    %v6544 = vshrl.u32 %v6543, 7
    %v6545 = vsub.s32 3, %v6544
    %v6546 = vrot.slane %v6529, %v6545
    %v6615 = vunpack.c.l.b16 %v6465
    %v6616 = vunpack.c.h.b16 %v6465
    %v6617 = vunpack.c.l.b16 %v6466
    %v6618 = vunpack.c.h.b16 %v6466
    %v6619 = vunpack.c.l.b16 %v6467
    %v6620 = vunpack.c.h.b16 %v6467
    %v6621 = vunpack.c.l.b16 %v6468
    %v6622 = vunpack.c.h.b16 %v6468
    %v6623 = vunpack.c.l.b16 %v6469
    %v6624 = vunpack.c.h.b16 %v6469
    %v6625 = vunpack.c.l.b16 %v6470
    %v6626 = vunpack.c.h.b16 %v6470
    %v6627 = vunpack.c.l.b16 %v6471
    %v6628 = vunpack.c.h.b16 %v6471
    %v6629 = vunpack.c.l.b16 %v6472
    %v6630 = vunpack.c.h.b16 %v6472
    %v6631 = vunpack.c.l.b16 %v6473
    %v6632 = vunpack.c.h.b16 %v6473
    %v6633 = vunpack.c.l.b16 %v6474
    %v6634 = vunpack.c.h.b16 %v6474
    %v6635 = vunpack.c.l.b16 %v6475
    %v6636 = vunpack.c.h.b16 %v6475
    %v6637 = vunpack.c.l.b16 %v6476
    %v6638 = vunpack.c.h.b16 %v6476
    %v6639 = vunpack.c.l.b16 %v6477
    %v6640 = vunpack.c.h.b16 %v6477
    %v6641 = vunpack.c.l.b16 %v6478
    %v6642 = vunpack.c.h.b16 %v6478
    %v6643 = vunpack.c.l.b16 %v6479
    %v6644 = vunpack.c.h.b16 %v6479
    %v6645 = vunpack.c.l.b16 %v6480
    %v6646 = vunpack.c.h.b16 %v6480
    %v6647 = vunpack.c.l.b16 %v6481
    %v6648 = vunpack.c.h.b16 %v6481
    %v6649 = vunpack.c.l.b16 %v6482
    %v6650 = vunpack.c.h.b16 %v6482
    %v6651 = vunpack.c.l.b16 %v6483
    %v6652 = vunpack.c.h.b16 %v6483
    %v6653 = vunpack.c.l.b16 %v6484
    %v6654 = vunpack.c.h.b16 %v6484
    %v6655 = vunpack.c.l.b16 %v6485
    %v6656 = vunpack.c.h.b16 %v6485
    %v6657 = vunpack.c.l.b16 %v6486
    %v6658 = vunpack.c.h.b16 %v6486
    %v6659 = vunpack.c.l.b16 %v6487
    %v6660 = vunpack.c.h.b16 %v6487
    %v6661 = vunpack.c.l.b16 %v6488
    %v6662 = vunpack.c.h.b16 %v6488
    %v6663 = vunpack.c.l.b16 %v6489
    %v6664 = vunpack.c.h.b16 %v6489
    %v6665 = vunpack.c.l.b16 %v6490
    %v6666 = vunpack.c.h.b16 %v6490
    %v6667 = vunpack.c.l.b16 %v6491
    %v6668 = vunpack.c.h.b16 %v6491
    %v6669 = vunpack.c.l.b16 %v6492
    %v6670 = vunpack.c.h.b16 %v6492
    %v6671 = vunpack.c.l.b16 %v6493
    %v6672 = vunpack.c.h.b16 %v6493
    %v6673 = vunpack.c.l.b16 %v6494
    %v6674 = vunpack.c.h.b16 %v6494
    %v6675 = vunpack.c.l.b16 %v6495
    %v6676 = vunpack.c.h.b16 %v6495
    %v6677 = vunpack.c.l.b16 %v6496
    %v6678 = vunpack.c.h.b16 %v6496
    %v6679 = vunpack.c.l.b16 %v6497
    %v6680 = vunpack.c.h.b16 %v6497
    %v6681 = vunpack.c.l.b16 %v6498
    %v6682 = vunpack.c.h.b16 %v6498
    %v6683 = vunpack.c.l.b16 %v6499
    %v6684 = vunpack.c.h.b16 %v6499
    %v6685 = vunpack.c.l.b16 %v6500
    %v6686 = vunpack.c.h.b16 %v6500
    %v6687 = vunpack.c.l.b16 %v6501
    %v6688 = vunpack.c.h.b16 %v6501
    %v6689 = vunpack.c.l.b16 %v6502
    %v6690 = vunpack.c.h.b16 %v6502
    %v6691 = vunpack.c.l.b16 %v6503
    %v6692 = vunpack.c.h.b16 %v6503
    %v6693 = vunpack.c.l.b16 %v6504
    %v6694 = vunpack.c.h.b16 %v6504
    %v6695 = vunpack.c.l.b16 %v6505
    %v6696 = vunpack.c.h.b16 %v6505
    %v6697 = vunpack.c.l.b16 %v6506
    %v6698 = vunpack.c.h.b16 %v6506
    %v6699 = vunpack.c.l.b16 %v6507
    %v6700 = vunpack.c.h.b16 %v6507
    %v6701 = vunpack.c.l.b16 %v6508
    %v6702 = vunpack.c.h.b16 %v6508
    %v6703 = vunpack.c.l.b16 %v6509
    %v6704 = vunpack.c.h.b16 %v6509
    %v6705 = vunpack.c.l.b16 %v6510
    %v6706 = vunpack.c.h.b16 %v6510
    %v6707 = vunpack.c.l.b16 %v6511
    %v6708 = vunpack.c.h.b16 %v6511
    %v6709 = vunpack.c.l.b16 %v6512
    %v6710 = vunpack.c.h.b16 %v6512
    %v6711 = vunpack.c.l.b16 %v6513
    %v6712 = vunpack.c.h.b16 %v6513
    %v6713 = vunpack.c.l.b16 %v6514
    %v6714 = vunpack.c.h.b16 %v6514
    %v6715 = vunpack.c.l.b16 %v6515
    %v6716 = vunpack.c.h.b16 %v6515
    %v6717 = vunpack.c.l.b16 %v6516
    %v6718 = vunpack.c.h.b16 %v6516
    %v6719 = vunpack.c.l.b16 %v6517
    %v6720 = vunpack.c.h.b16 %v6517
    %v6721 = vunpack.c.l.b16 %v6518
    %v6722 = vunpack.c.h.b16 %v6518
    %v6723 = vunpack.c.l.b16 %v6519
    %v6724 = vunpack.c.h.b16 %v6519
    %v6725 = vunpack.c.l.b16 %v6520
    %v6726 = vunpack.c.h.b16 %v6520
    %v6727 = vunpack.c.l.b16 %v6521
    %v6728 = vunpack.c.h.b16 %v6521
    %v6729 = vunpack.c.l.b16 %v6522
    %v6730 = vunpack.c.h.b16 %v6522
    %v6731 = vunpack.c.l.b16 %v6523
    %v6732 = vunpack.c.h.b16 %v6523
    %v6733 = vunpack.c.l.b16 %v6524
    %v6734 = vunpack.c.h.b16 %v6524
    %v6735 = vunpack.c.l.b16 %v6525
    %v6736 = vunpack.c.h.b16 %v6525
    %v6737 = vunpack.c.l.b16 %v6526
    %v6738 = vunpack.c.h.b16 %v6526
    %v6739 = vunpack.c.l.b16 %v6527
    %v6740 = vunpack.c.h.b16 %v6527
    %v6741 = vunpack.c.l.b16 %v6528
    %v6742 = vunpack.c.h.b16 %v6528
    %v6743 = vpack.c.b16 %v6619, %v6615
    %v6744 = vpack.c.b16 %v6620, %v6616
    %v6745 = vpack.c.b16 %v6621, %v6617
    %v6746 = vpack.c.b16 %v6622, %v6618
    %v6747 = vpack.c.b16 %v6627, %v6623
    %v6748 = vpack.c.b16 %v6628, %v6624
    %v6749 = vpack.c.b16 %v6629, %v6625
    %v6750 = vpack.c.b16 %v6630, %v6626
    %v6751 = vpack.c.b16 %v6635, %v6631
    %v6752 = vpack.c.b16 %v6636, %v6632
    %v6753 = vpack.c.b16 %v6637, %v6633
    %v6754 = vpack.c.b16 %v6638, %v6634
    %v6755 = vpack.c.b16 %v6643, %v6639
    %v6756 = vpack.c.b16 %v6644, %v6640
    %v6757 = vpack.c.b16 %v6645, %v6641
    %v6758 = vpack.c.b16 %v6646, %v6642
    %v6759 = vpack.c.b16 %v6651, %v6647
    %v6760 = vpack.c.b16 %v6652, %v6648
    %v6761 = vpack.c.b16 %v6653, %v6649
    %v6762 = vpack.c.b16 %v6654, %v6650
    %v6763 = vpack.c.b16 %v6659, %v6655
    %v6764 = vpack.c.b16 %v6660, %v6656
    %v6765 = vpack.c.b16 %v6661, %v6657
    %v6766 = vpack.c.b16 %v6662, %v6658
    %v6767 = vpack.c.b16 %v6667, %v6663
    %v6768 = vpack.c.b16 %v6668, %v6664
    %v6769 = vpack.c.b16 %v6669, %v6665
    %v6770 = vpack.c.b16 %v6670, %v6666
    %v6771 = vpack.c.b16 %v6675, %v6671
    %v6772 = vpack.c.b16 %v6676, %v6672
    %v6773 = vpack.c.b16 %v6677, %v6673
    %v6774 = vpack.c.b16 %v6678, %v6674
    %v6775 = vpack.c.b16 %v6683, %v6679
    %v6776 = vpack.c.b16 %v6684, %v6680
    %v6777 = vpack.c.b16 %v6685, %v6681
    %v6778 = vpack.c.b16 %v6686, %v6682
    %v6779 = vpack.c.b16 %v6691, %v6687
    %v6780 = vpack.c.b16 %v6692, %v6688
    %v6781 = vpack.c.b16 %v6693, %v6689
    %v6782 = vpack.c.b16 %v6694, %v6690
    %v6783 = vpack.c.b16 %v6699, %v6695
    %v6784 = vpack.c.b16 %v6700, %v6696
    %v6785 = vpack.c.b16 %v6701, %v6697
    %v6786 = vpack.c.b16 %v6702, %v6698
    %v6787 = vpack.c.b16 %v6707, %v6703
    %v6788 = vpack.c.b16 %v6708, %v6704
    %v6789 = vpack.c.b16 %v6709, %v6705
    %v6790 = vpack.c.b16 %v6710, %v6706
    %v6791 = vpack.c.b16 %v6715, %v6711
    %v6792 = vpack.c.b16 %v6716, %v6712
    %v6793 = vpack.c.b16 %v6717, %v6713
    %v6794 = vpack.c.b16 %v6718, %v6714
    %v6795 = vpack.c.b16 %v6723, %v6719
    %v6796 = vpack.c.b16 %v6724, %v6720
    %v6797 = vpack.c.b16 %v6725, %v6721
    %v6798 = vpack.c.b16 %v6726, %v6722
    %v6799 = vpack.c.b16 %v6731, %v6727
    %v6800 = vpack.c.b16 %v6732, %v6728
    %v6801 = vpack.c.b16 %v6733, %v6729
    %v6802 = vpack.c.b16 %v6734, %v6730
    %v6803 = vpack.c.b16 %v6739, %v6735
    %v6804 = vpack.c.b16 %v6740, %v6736
    %v6805 = vpack.c.b16 %v6741, %v6737
    %v6806 = vpack.c.b16 %v6742, %v6738
    %6871 = vmatprep.subr.bf16.mxu0 %v6744
    %6872 = vmatpush1.bf16.msra.mxu0 %v6743
    %6873 = vmatprep.subr.bf16.mxu0 %v6748
    %6874 = vmatpush1.bf16.msra.mxu0 %v6747
    %6875 = vmatprep.subr.bf16.mxu0 %v6752
    %6876 = vmatpush1.bf16.msra.mxu0 %v6751
    %6877 = vmatprep.subr.bf16.mxu0 %v6756
    %6878 = vmatpush1.bf16.msra.mxu0 %v6755
    %6879 = vmatprep.subr.bf16.mxu0 %v6760
    %6880 = vmatpush1.bf16.msra.mxu0 %v6759
    %6881 = vmatprep.subr.bf16.mxu0 %v6764
    %6882 = vmatpush1.bf16.msra.mxu0 %v6763
    %6883 = vmatprep.subr.bf16.mxu0 %v6768
    %6884 = vmatpush1.bf16.msra.mxu0 %v6767
    %6885 = vmatprep.subr.bf16.mxu0 %v6772
    %6886 = vmatpush1.bf16.msra.mxu0 %v6771
    %6887 = vmatprep.subr.bf16.mxu0 %v6776
    %6888 = vmatpush1.bf16.msra.mxu0 %v6775
    %6889 = vmatprep.subr.bf16.mxu0 %v6780
    %6890 = vmatpush1.bf16.msra.mxu0 %v6779
    %6891 = vmatprep.subr.bf16.mxu0 %v6784
    %6892 = vmatpush1.bf16.msra.mxu0 %v6783
    %6893 = vmatprep.subr.bf16.mxu0 %v6788
    %6894 = vmatpush1.bf16.msra.mxu0 %v6787
    %6895 = vmatprep.subr.bf16.mxu0 %v6792
    %6896 = vmatpush1.bf16.msra.mxu0 %v6791
    %6897 = vmatprep.subr.bf16.mxu0 %v6796
    %6898 = vmatpush1.bf16.msra.mxu0 %v6795
    %6899 = vmatprep.subr.bf16.mxu0 %v6800
    %6900 = vmatpush1.bf16.msra.mxu0 %v6799
    %6901 = vmatprep.subr.bf16.mxu0 %v6804
    %6902 = vmatpush1.bf16.msra.mxu0 %v6803
    %6903 = vmatprep.mubr.bf16.mxu0 %v6464
    %6904 = vmatmul.mubr.bf16.gmra.mrb[0].mxu0 %v6463
    %v6905 = vpop.f32.mrb[0].mxu0
    %v6906 = vadd.f32 %v6534, %v6905
    %v6907 = vpop.f32.mrb[0].mxu0
    %v6908 = vadd.f32 %v6538, %v6907
    %v6909 = vpop.f32.mrb[0].mxu0
    %v6910 = vpop.f32.mrb[0].mxu0
    %6911 = vdwg.mxu0
    %6912 = vmatprep.subr.bf16.mxu0 %v6746
    %6913 = vmatpush1.bf16.msra.mxu0 %v6745
    %6914 = vmatprep.subr.bf16.mxu0 %v6750
    %6915 = vmatpush1.bf16.msra.mxu0 %v6749
    %6916 = vmatprep.subr.bf16.mxu0 %v6754
    %6917 = vmatpush1.bf16.msra.mxu0 %v6753
    %6918 = vmatprep.subr.bf16.mxu0 %v6758
    %6919 = vmatpush1.bf16.msra.mxu0 %v6757
    %6920 = vmatprep.subr.bf16.mxu0 %v6762
    %6921 = vmatpush1.bf16.msra.mxu0 %v6761
    %6922 = vmatprep.subr.bf16.mxu0 %v6766
    %6923 = vmatpush1.bf16.msra.mxu0 %v6765
    %6924 = vmatprep.subr.bf16.mxu0 %v6770
    %6925 = vmatpush1.bf16.msra.mxu0 %v6769
    %6926 = vmatprep.subr.bf16.mxu0 %v6774
    %6927 = vmatpush1.bf16.msra.mxu0 %v6773
    %6928 = vmatprep.subr.bf16.mxu0 %v6778
    %6929 = vmatpush1.bf16.msra.mxu0 %v6777
    %6930 = vmatprep.subr.bf16.mxu0 %v6782
    %6931 = vmatpush1.bf16.msra.mxu0 %v6781
    %6932 = vmatprep.subr.bf16.mxu0 %v6786
    %6933 = vmatpush1.bf16.msra.mxu0 %v6785
    %6934 = vmatprep.subr.bf16.mxu0 %v6790
    %6935 = vmatpush1.bf16.msra.mxu0 %v6789
    %6936 = vmatprep.subr.bf16.mxu0 %v6794
    %6937 = vmatpush1.bf16.msra.mxu0 %v6793
    %6938 = vmatprep.subr.bf16.mxu0 %v6798
    %6939 = vmatpush1.bf16.msra.mxu0 %v6797
    %6940 = vmatprep.subr.bf16.mxu0 %v6802
    %6941 = vmatpush1.bf16.msra.mxu0 %v6801
    %6942 = vmatprep.subr.bf16.mxu0 %v6806
    %6943 = vmatpush1.bf16.msra.mxu0 %v6805
    %6944 = vmatprep.mubr.bf16.mxu0 %v6464
    %6945 = vmatmul.mubr.bf16.gmra.mrb[0].mxu0 %v6463
    %v6946 = vpop.f32.mrb[0].mxu0
    %v6947 = vadd.f32 %v6542, %v6946
    %v6948 = vpop.f32.mrb[0].mxu0
    %v6949 = vadd.f32 %v6546, %v6948
    %v6950 = vpop.f32.mrb[0].mxu0
    %v6951 = vpop.f32.mrb[0].mxu0
    %6952 = vdwg.mxu0
    %v6953 = vld [vmem:[%s1149] sm:$0xff]
    %v6954 = vxor.u32 %v6906, 2147483648
    %v6955 = vmul.f32 %v6954, 1.442695
    %v6956 = vpow.pop %v6955
    %v6957 = vadd.f32 %v6956, 1.0
    %v6958 = vrcp.pop %v6957
    %v6959 = vmul.f32 1.0, %v6958
    %v6960 = vxor.u32 %v6908, 2147483648
    %v6961 = vmul.f32 %v6960, 1.442695
    %v6962 = vpow.pop %v6961
    %v6963 = vadd.f32 %v6962, 1.0
    %v6964 = vrcp.pop %v6963
    %v6965 = vmul.f32 1.0, %v6964
    %v6966 = vtanh.pop %v6947
    %v6967 = vxor.u32 %v6949, 2147483648
    %v6968 = vmul.f32 %v6967, 1.442695
    %v6969 = vpow.pop %v6968
    %v6970 = vadd.f32 %v6969, 1.0
    %v6971 = vrcp.pop %v6970
    %v6972 = vmul.f32 1.0, %v6971
    %v6973 = vmul.f32 %v6965, %v6953
    %v6974 = vmul.f32 %v6959, %v6966
    %v6975 = vadd.f32 %v6973, %v6974
    %v6976 = vtanh.pop %v6975
    %v6977 = vmul.f32 %v6972, %v6976
    %6978 = vst [vmem:[%s657] sm:$0xff] %v6977
    %6979 = vst [vmem:[%s1149] sm:$0xff] %v6975
    // Predicated region
    $region50: #{tpu_custom_call.1} parent=1 // pred_check
      %p6980 = pneg %p72
    $region51: #{tpu_custom_call.1} parent=1 // pred_check_branch
      %6982 = sbr.rel (%p6980) target = $region53
    $region52: #{tpu_custom_call.1} parent=1 // pred_region
      %v6983 = vld [vmem:[%s657] sm:$0xff]
      %v6984 = vpack.c.bf16 %v6983, %v6983
      %v6985 = vld [vmem:[#allocation10] sm:$0xf]
      %v6986 = vld [vmem:[#allocation10 + $0x4] sm:$0xf]
      %v6987 = vld [vmem:[#allocation10 + $0x8] sm:$0xf]
      %v6988 = vld [vmem:[#allocation10 + $0xc] sm:$0xf]
      %v6989 = vld [vmem:[#allocation10 + $0x10] sm:$0xf]
      %v6990 = vld [vmem:[#allocation10 + $0x14] sm:$0xf]
      %v6991 = vld [vmem:[#allocation10 + $0x18] sm:$0xf]
      %v6992 = vld [vmem:[#allocation10 + $0x1c] sm:$0xf]
      %v6993 = vld [vmem:[#allocation10 + $0x20] sm:$0xf]
      %v6994 = vld [vmem:[#allocation10 + $0x24] sm:$0xf]
      %v6995 = vld [vmem:[#allocation10 + $0x28] sm:$0xf]
      %v6996 = vld [vmem:[#allocation10 + $0x2c] sm:$0xf]
      %v6997 = vld [vmem:[#allocation10 + $0x30] sm:$0xf]
      %v6998 = vld [vmem:[#allocation10 + $0x34] sm:$0xf]
      %v6999 = vld [vmem:[#allocation10 + $0x38] sm:$0xf]
      %v7000 = vld [vmem:[#allocation10 + $0x3c] sm:$0xf]
      %v7001 = vld [vmem:[%s7] sm:$0x1]
      %v7003 = vlaneseq
      %v7004 = vshrl.u32 %v7003, 7
      %v7005 = vsub.s32 0, %v7004
      %v7006 = vrot.slane %v7001, %v7005
      %v7024 = vunpack.c.l.b16 %v6985
      %v7025 = vunpack.c.l.b16 %v6986
      %v7026 = vunpack.c.l.b16 %v6987
      %v7027 = vunpack.c.l.b16 %v6988
      %v7028 = vunpack.c.l.b16 %v6989
      %v7029 = vunpack.c.l.b16 %v6990
      %v7030 = vunpack.c.l.b16 %v6991
      %v7031 = vunpack.c.l.b16 %v6992
      %v7032 = vunpack.c.l.b16 %v6993
      %v7033 = vunpack.c.l.b16 %v6994
      %v7034 = vunpack.c.l.b16 %v6995
      %v7035 = vunpack.c.l.b16 %v6996
      %v7036 = vunpack.c.l.b16 %v6997
      %v7037 = vunpack.c.l.b16 %v6998
      %v7038 = vunpack.c.l.b16 %v6999
      %v7039 = vunpack.c.l.b16 %v7000
      %v7040 = vpack.c.b16 %v7025, %v7024
      %v7041 = vpack.c.b16 %v7027, %v7026
      %v7042 = vpack.c.b16 %v7029, %v7028
      %v7043 = vpack.c.b16 %v7031, %v7030
      %v7044 = vpack.c.b16 %v7033, %v7032
      %v7045 = vpack.c.b16 %v7035, %v7034
      %v7046 = vpack.c.b16 %v7037, %v7036
      %v7047 = vpack.c.b16 %v7039, %v7038
      %7056 = vmatprep.subr.bf16.mxu0 0
      %7057 = vmatpush1.bf16.msra.mxu0 %v7040
      %7058 = vmatprep.subr.bf16.mxu0 0
      %7059 = vmatpush1.bf16.msra.mxu0 %v7041
      %7060 = vmatprep.subr.bf16.mxu0 0
      %7061 = vmatpush1.bf16.msra.mxu0 %v7042
      %7062 = vmatprep.subr.bf16.mxu0 0
      %7063 = vmatpush1.bf16.msra.mxu0 %v7043
      %7064 = vmatprep.subr.bf16.mxu0 0
      %7065 = vmatpush1.bf16.msra.mxu0 %v7044
      %7066 = vmatprep.subr.bf16.mxu0 0
      %7067 = vmatpush1.bf16.msra.mxu0 %v7045
      %7068 = vmatprep.subr.bf16.mxu0 0
      %7069 = vmatpush1.bf16.msra.mxu0 %v7046
      %7070 = vmatprep.subr.bf16.mxu0 0
      %7071 = vmatpush1.bf16.msra.mxu0 %v7047
      %7072 = vmatprep.subr.bf16.mxu0 0
      %7073 = vmatpush1.bf16.msra.mxu0 0
      %7074 = vmatprep.subr.bf16.mxu0 0
      %7075 = vmatpush1.bf16.msra.mxu0 0
      %7076 = vmatprep.subr.bf16.mxu0 0
      %7077 = vmatpush1.bf16.msra.mxu0 0
      %7078 = vmatprep.subr.bf16.mxu0 0
      %7079 = vmatpush1.bf16.msra.mxu0 0
      %7080 = vmatprep.subr.bf16.mxu0 0
      %7081 = vmatpush1.bf16.msra.mxu0 0
      %7082 = vmatprep.subr.bf16.mxu0 0
      %7083 = vmatpush1.bf16.msra.mxu0 0
      %7084 = vmatprep.subr.bf16.mxu0 0
      %7085 = vmatpush1.bf16.msra.mxu0 0
      %7086 = vmatprep.subr.bf16.mxu0 0
      %7087 = vmatpush1.bf16.msra.mxu0 0
      %7088 = vmatprep.mubr.bf16.mxu0 0
      %7089 = vmatmul.mubr.bf16.gmra.mrb[0].mxu0 %v6984
      %v7090 = vpop.f32.mrb[0].mxu0
      %v7091 = vadd.f32 %v7006, %v7090
      %v7092 = vpop.f32.mrb[0].mxu0
      %v7093 = vpop.f32.mrb[0].mxu0
      %v7094 = vpop.f32.mrb[0].mxu0
      %7095 = vdwg.mxu0
      %7096 = vst [vmem:[#allocation11] sm:$0xff] %v7091
    $region53: #{tpu_custom_call.1} parent=1 // pred_fallthru
      _
    // Predicated region
    $region54: #{tpu_custom_call.1} parent=1 // pred_check
      _
    $region55: #{tpu_custom_call.1} parent=1 // pred_check_branch
      %7098 = sbr.rel (0) target = $region57
    $region56: #{tpu_custom_call.1} parent=1 // pred_region
      %s7100 = ssub.s32 128, 128
      %7101 = vsyncadd [#allocation7], %s7100
      %s7103 = sshll.u32 [#allocation11], 4
      %s7104 = int_to_ptr.vmem [resolvable:$true] %s7103
      %7106 = dma.vmem_to_hbm [thread:$0]  %s7104, 128, %s8, [#allocation7]
    $region57: #{tpu_custom_call.1} parent=1 // pred_fallthru
      _
    // Predicated region
    $region58: #{tpu_custom_call.1} parent=1 // pred_check
      _
    $region59: #{tpu_custom_call.1} parent=1 // pred_check_branch
      %7108 = sbr.rel (0) target = $region61
    $region60: #{tpu_custom_call.1} parent=1 // pred_region
      %7109 = dma.done [#allocation7], 128
    $region61: #{tpu_custom_call.1} parent=1 // pred_fallthru
      _
    %7110 = vsyncpa [#allocation6], 1
    %7111 = vsyncpa [#allocation9], 1
    %7112 = vsyncpa [#allocation7], 1

</llo_original>
